<compile_context>
chip_gen: v7x
topology: tpu7x:2x2x1
jax: 0.10.0
libtpu: 0.0.40
codegen_flags: <defaults>
</compile_context>

<pallas_src>
import jax
import jax.numpy as jnp
from jax import lax
from jax.experimental import pallas as pl
from jax.experimental.pallas import tpu as pltpu


LANES = 128          # every matmul N (output-channel) dim is padded to the vreg width
TM_CAP = 512         # rows-per-block cap: ~85% of HBM roofline already, batch-robust VMEM
VMEM_LIMIT = 32 * 1024 * 1024


def _round_up(x, m):
    return (x + m - 1) // m * m


def _choose_tiling(m, cap=TM_CAP):
    """Rows-per-block (multiple of 8, <= cap, >= 2 blocks once M allows) and padded M."""
    tm = min(cap, max(8, _round_up(pl.cdiv(m, 2), 8)))
    grid_m = pl.cdiv(m, tm)
    tm = max(8, _round_up(pl.cdiv(m, grid_m), 8))   # rebalance to shrink the tail pad
    return tm, grid_m, grid_m * tm


# ----------------------------------------------------------------------------
# Kernel 1: fused conv (im2col matmul) + bias + ReLU + 2x2 max-pool.
# x_ref block: (4, tm, K) bf16 patches grouped by pool parity; w: (K, 128) bf16;
# b: (1, 128) f32.  Output: (tm, 128) bf16, already pooled, lane-dense store.
# ----------------------------------------------------------------------------
def _conv_pool_kernel(x_ref, w_ref, b_ref, o_ref):
    w = w_ref[...]
    b = b_ref[...]
    acc = None
    for q in range(4):                                   # the 4 positions of each 2x2 window
        y = jnp.dot(x_ref[q], w, preferred_element_type=jnp.float32)
        y = jnp.maximum(y + b, 0.0)                      # bias + ReLU epilogue in f32
        acc = y if acc is None else jnp.maximum(acc, y)  # max-pool across the window
    o_ref[...] = acc.astype(o_ref.dtype)                 # single bf16 lane-dense store


def conv_relu_pool(x_quads, w_bf16, b_row):
    """x_quads: (4, M, K) bf16, w: (K, 128) bf16, b: (1, 128) f32 -> (M, 128) bf16."""
    q, m, k = x_quads.shape
    n = w_bf16.shape[1]
    tm, grid_m, mp = _choose_tiling(m)
    if mp != m:                                          # zero-pad ragged tail (sliced off)
        x_quads = jnp.pad(x_quads, ((0, 0), (0, mp - m), (0, 0)))
    out = pl.pallas_call(
        _conv_pool_kernel,
        out_shape=jax.ShapeDtypeStruct((mp, n), jnp.bfloat16),
        grid=(grid_m,),
        in_specs=[
            pl.BlockSpec((q, tm, k), lambda i: (0, i, 0)),
            pl.BlockSpec((k, n), lambda i: (0, 0)),
            pl.BlockSpec((1, n), lambda i: (0, 0)),
        ],
        out_specs=pl.BlockSpec((tm, n), lambda i: (i, 0)),
        compiler_params=pltpu.CompilerParams(
            dimension_semantics=("parallel",),
            vmem_limit_bytes=VMEM_LIMIT),
    )(x_quads, w_bf16, b_row)
    return out[:m] if mp != m else out


# ----------------------------------------------------------------------------
# Kernel 2: matmul + bias + ReLU (final Linear layer; f32 output since it is the
# network output and only (B, 128) elements).
# ----------------------------------------------------------------------------
def _mm_bias_relu_kernel(x_ref, w_ref, b_ref, o_ref):
    y = jnp.dot(x_ref[...], w_ref[...], preferred_element_type=jnp.float32)
    o_ref[...] = jnp.maximum(y + b_ref[...], 0.0).astype(o_ref.dtype)


def linear_relu(x_bf16, w_bf16, b_row):
    """x: (M, K) bf16, w: (K, 128) bf16, b: (1, 128) f32 -> relu(x@w+b) f32."""
    m, k = x_bf16.shape
    n = w_bf16.shape[1]
    tm, grid_m, mp = _choose_tiling(m)
    if mp != m:
        x_bf16 = jnp.pad(x_bf16, ((0, mp - m), (0, 0)))
    out = pl.pallas_call(
        _mm_bias_relu_kernel,
        out_shape=jax.ShapeDtypeStruct((mp, n), jnp.float32),
        grid=(grid_m,),
        in_specs=[
            pl.BlockSpec((tm, k), lambda i: (i, 0)),
            pl.BlockSpec((k, n), lambda i: (0, 0)),
            pl.BlockSpec((1, n), lambda i: (0, 0)),
        ],
        out_specs=pl.BlockSpec((tm, n), lambda i: (i, 0)),
        compiler_params=pltpu.CompilerParams(
            dimension_semantics=("parallel",),
            vmem_limit_bytes=VMEM_LIMIT),
    )(x_bf16, w_bf16, b_row)
    return out[:m] if mp != m else out


# ----------------------------------------------------------------------------
# Plain-JAX glue: im2col patch extraction grouped by 2x2-pool parity.
# Data rearrangement only (the matmul/ReLU/pool all happen in the Pallas kernel).
# ----------------------------------------------------------------------------
def im2col_pooled(x, k, k_pad=None):
    """x: (B, H, W, C) -> (4, B*Hp*Wp, k*k*C) bf16 patches, ordered (kh, kw, c),
    grouped by the pool-window parity (dh, dw) of the conv-output position."""
    b, h, w, c = x.shape
    ho, wo = h - k + 1, w - k + 1
    hp, wp = ho // 2, wo // 2
    cols = [x[:, kh:kh + ho, kw:kw + wo, :] for kh in range(k) for kw in range(k)]
    p = jnp.concatenate(cols, axis=-1)                       # (B, Ho, Wo, k*k*C)
    quads = [p[:, dh::2, dw::2, :].reshape(b * hp * wp, k * k * c)
             for dh in (0, 1) for dw in (0, 1)]
    out = jnp.stack(quads, axis=0)                           # (4, B*Hp*Wp, k*k*C)
    if k_pad is not None and k_pad > out.shape[-1]:
        out = jnp.pad(out, ((0, 0), (0, 0), (0, k_pad - out.shape[-1])))
    return out


# ----------------------------------------------------------------------------
# One-time parameter preprocessing (hoisted out of the forward hot path).
# ----------------------------------------------------------------------------
def preprocess_params(params):
    w1, b1, w2, b2, w3, b3 = params

    # layer1: (64,3,5,5) OIHW -> (kh,kw,cin,cout) -> (75,64); pad K 75->128, N 64->128
    wk1 = jnp.transpose(w1, (2, 3, 1, 0)).reshape(5 * 5 * 3, 64)
    wk1 = jnp.pad(wk1, ((0, LANES - 75), (0, LANES - 64)))
    bk1 = jnp.pad(b1, (0, LANES - 64)).reshape(1, LANES)

    # layer2: (30,64,5,5) -> (5,5,64,30); keep the REAL cin=64 (no cin pad), pad N 30->128
    wk2 = jnp.transpose(w2, (2, 3, 1, 0))
    wk2 = jnp.pad(wk2, ((0, 0), (0, 0), (0, 0), (0, LANES - 30))).reshape(5 * 5 * 64, LANES)
    bk2 = jnp.pad(b2, (0, LANES - 30)).reshape(1, LANES)

    # layer3: (10, 750) with 750 flattened as (c=30,h=5,w=5) in PyTorch's NCHW view.
    # Re-lay it out as (h,w,c,out) so it consumes the NHWC (h,w,c128)-flattened padded
    # activation directly; pad c 30->128 (zero rows) and out 10->128.
    w3k = jnp.transpose(w3.reshape(10, 30, 5, 5), (2, 3, 1, 0))      # (5,5,30,10)
    w3k = jnp.pad(w3k, ((0, 0), (0, 0), (0, LANES - 30), (0, LANES - 10)))
    wk3 = w3k.reshape(5 * 5 * LANES, LANES)
    bk3 = jnp.pad(b3, (0, LANES - 10)).reshape(1, LANES)

    return (wk1.astype(jnp.bfloat16), bk1,
            wk2.astype(jnp.bfloat16), bk2,
            wk3.astype(jnp.bfloat16), bk3)


# ----------------------------------------------------------------------------
# Forward pass equivalent to MLP.forward
# ----------------------------------------------------------------------------
def mlp_forward(x_nchw, kparams):
    wk1, bk1, wk2, bk2, wk3, bk3 = kparams
    b = x_nchw.shape[0]
    x = jnp.transpose(x_nchw, (0, 2, 3, 1)).astype(jnp.bfloat16)     # NCHW -> NHWC, bf16

    # layer1: Conv2d(3->64, k=5) + ReLU + MaxPool2d(2), fused (cout padded to 128)
    y = conv_relu_pool(im2col_pooled(x, 5, k_pad=LANES), wk1, bk1)   # (B*14*14, 128) bf16
    y = y.reshape(b, 14, 14, LANES)[..., :64]                        # keep real 64 channels

    # layer2: Conv2d(64->30, k=5) + ReLU + MaxPool2d(2), fused (K=1600, no cin pad)
    y = conv_relu_pool(im2col_pooled(y, 5), wk2, bk2)                # (B*5*5, 128) bf16

    # layer3: Linear(750->10) + ReLU.  wk3's layout matches the NHWC (h,w,c128) flatten,
    # so the PyTorch-style NCHW x.view(B,-1) ordering is reproduced with no transpose.
    y = linear_relu(y.reshape(b, 5 * 5 * LANES), wk3, bk3)           # (B, 128) f32
    # TODO(synk): trailing nn.MaxPool2d(2) on the 2-D Linear output is invalid in
    # PyTorch (needs 3-D/4-D input) and is therefore omitted.
    return y[:, :10]


# ----------------------------------------------------------------------------
# Pure-JAX f32 reference (for correctness check only)
# ----------------------------------------------------------------------------
def reference_forward(x, params):
    w1, b1, w2, b2, w3, b3 = params
    dn = ("NCHW", "OIHW", "NCHW")
    y = lax.conv_general_dilated(x, w1, (1, 1), "VALID", dimension_numbers=dn)
    y = jnp.maximum(y + b1[None, :, None, None], 0.0)
    y = lax.reduce_window(y, -jnp.inf, lax.max, (1, 1, 2, 2), (1, 1, 2, 2), "VALID")
    y = lax.conv_general_dilated(y, w2, (1, 1), "VALID", dimension_numbers=dn)
    y = jnp.maximum(y + b2[None, :, None, None], 0.0)
    y = lax.reduce_window(y, -jnp.inf, lax.max, (1, 1, 2, 2), (1, 1, 2, 2), "VALID")
    y = y.reshape(y.shape[0], -1)
    return jnp.maximum(y @ w3.T + b3, 0.0)


if __name__ == "__main__":
    key = jax.random.PRNGKey(0)
    ks = jax.random.split(key, 7)
    # Deterministic synthetic parameters (PyTorch shapes: Conv OIHW, Linear (out, in))
    w1 = jax.random.normal(ks[0], (64, 3, 5, 5), jnp.float32) * 0.05
    b1 = jax.random.normal(ks[1], (64,), jnp.float32) * 0.05
    w2 = jax.random.normal(ks[2], (30, 64, 5, 5), jnp.float32) * 0.05
    b2 = jax.random.normal(ks[3], (30,), jnp.float32) * 0.05
    w3 = jax.random.normal(ks[4], (10, 750), jnp.float32) * 0.05
    b3 = jax.random.normal(ks[5], (10,), jnp.float32) * 0.05
    params = (w1, b1, w2, b2, w3, b3)

    # Input: batch=2, 3 channels, 32x32 (spatial size forced by the 30*5*5 Linear)
    x = jax.random.normal(ks[6], (2, 3, 32, 32), jnp.float32)

    kparams = preprocess_params(params)               # one-time weight relayout
    fwd = jax.jit(mlp_forward)
    out = jax.block_until_ready(fwd(x, kparams))

    ref = jax.block_until_ready(reference_forward(x, params))
    assert out.shape == (2, 10)
    # Tolerance loosened vs the f32 reference: the MXU runs in bf16 and activations
    # are now carried in bf16 end-to-end.
    assert jnp.allclose(out, ref, rtol=4e-2, atol=4e-2), "mismatch vs reference"

    print("KERNEL_OK")
</pallas_src>

<mosaic_0001>
module attributes {stable_mosaic.version = 11 : i64} {
  func.func @_conv_pool_kernel(%arg0: i32, %arg1: memref<4x200x128xbf16, #tpu.memory_space<vmem>>, %arg2: memref<128x128xbf16, #tpu.memory_space<vmem>>, %arg3: memref<1x128xf32, #tpu.memory_space<vmem>>, %arg4: memref<200x128xbf16, #tpu.memory_space<vmem>>) attributes {dimension_semantics = [#tpu.dimension_semantics<parallel>], iteration_bounds = array<i64: 2>, scalar_prefetch = 0 : i64, scratch_operands = 0 : i64, tpu.core_type = #tpu.core_type<tc>, window_params = [{transform_indices = @transform_0, window_bounds = array<i64: 4, 200, 128>}, {pipeline_mode = #tpu.pipeline_mode<synchronous>, transform_indices = @transform_1, window_bounds = array<i64: 128, 128>}, {pipeline_mode = #tpu.pipeline_mode<synchronous>, transform_indices = @transform_2, window_bounds = array<i64: 1, 128>}, {transform_indices = @transform_3, window_bounds = array<i64: 200, 128>}]} {
    %c0 = arith.constant 0 : index
    %c0_0 = arith.constant 0 : index
    %0 = vector.load %arg2[%c0, %c0_0] : memref<128x128xbf16, #tpu.memory_space<vmem>>, vector<128x128xbf16>
    %c0_1 = arith.constant 0 : index
    %c0_2 = arith.constant 0 : index
    %1 = vector.load %arg3[%c0_1, %c0_2] : memref<1x128xf32, #tpu.memory_space<vmem>>, vector<1x128xf32>
    %c0_3 = arith.constant 0 : index
    %c0_4 = arith.constant 0 : index
    %c0_5 = arith.constant 0 : index
    %2 = vector.load %arg1[%c0_3, %c0_4, %c0_5] : memref<4x200x128xbf16, #tpu.memory_space<vmem>>, vector<1x200x128xbf16>
    %3 = vector.shape_cast %2 : vector<1x200x128xbf16> to vector<200x128xbf16>
    %cst = arith.constant dense<0.000000e+00> : vector<200x128xf32>
    %4 = tpu.matmul %3, %0, %cst {dimension_numbers = #tpu.dot_dimension_numbers<[1], [0], [0], [1], [0, 0, 1, 1], [], []>} : vector<200x128xbf16>, vector<128x128xbf16>, vector<200x128xf32> -> vector<200x128xf32>
    %5 = vector.broadcast %1 : vector<1x128xf32> to vector<200x128xf32>
    %6 = arith.addf %4, %5 : vector<200x128xf32>
    %cst_6 = arith.constant 0.000000e+00 : f32
    %7 = vector.broadcast %cst_6 : f32 to vector<200x128xf32>
    %8 = arith.maximumf %6, %7 : vector<200x128xf32>
    %c1 = arith.constant 1 : index
    %c0_7 = arith.constant 0 : index
    %c0_8 = arith.constant 0 : index
    %9 = vector.load %arg1[%c1, %c0_7, %c0_8] : memref<4x200x128xbf16, #tpu.memory_space<vmem>>, vector<1x200x128xbf16>
    %10 = vector.shape_cast %9 : vector<1x200x128xbf16> to vector<200x128xbf16>
    %cst_9 = arith.constant dense<0.000000e+00> : vector<200x128xf32>
    %11 = tpu.matmul %10, %0, %cst_9 {dimension_numbers = #tpu.dot_dimension_numbers<[1], [0], [0], [1], [0, 0, 1, 1], [], []>} : vector<200x128xbf16>, vector<128x128xbf16>, vector<200x128xf32> -> vector<200x128xf32>
    %12 = vector.broadcast %1 : vector<1x128xf32> to vector<200x128xf32>
    %13 = arith.addf %11, %12 : vector<200x128xf32>
    %cst_10 = arith.constant 0.000000e+00 : f32
    %14 = vector.broadcast %cst_10 : f32 to vector<200x128xf32>
    %15 = arith.maximumf %13, %14 : vector<200x128xf32>
    %16 = arith.maximumf %8, %15 : vector<200x128xf32>
    %c2 = arith.constant 2 : index
    %c0_11 = arith.constant 0 : index
    %c0_12 = arith.constant 0 : index
    %17 = vector.load %arg1[%c2, %c0_11, %c0_12] : memref<4x200x128xbf16, #tpu.memory_space<vmem>>, vector<1x200x128xbf16>
    %18 = vector.shape_cast %17 : vector<1x200x128xbf16> to vector<200x128xbf16>
    %cst_13 = arith.constant dense<0.000000e+00> : vector<200x128xf32>
    %19 = tpu.matmul %18, %0, %cst_13 {dimension_numbers = #tpu.dot_dimension_numbers<[1], [0], [0], [1], [0, 0, 1, 1], [], []>} : vector<200x128xbf16>, vector<128x128xbf16>, vector<200x128xf32> -> vector<200x128xf32>
    %20 = vector.broadcast %1 : vector<1x128xf32> to vector<200x128xf32>
    %21 = arith.addf %19, %20 : vector<200x128xf32>
    %cst_14 = arith.constant 0.000000e+00 : f32
    %22 = vector.broadcast %cst_14 : f32 to vector<200x128xf32>
    %23 = arith.maximumf %21, %22 : vector<200x128xf32>
    %24 = arith.maximumf %16, %23 : vector<200x128xf32>
    %c3 = arith.constant 3 : index
    %c0_15 = arith.constant 0 : index
    %c0_16 = arith.constant 0 : index
    %25 = vector.load %arg1[%c3, %c0_15, %c0_16] : memref<4x200x128xbf16, #tpu.memory_space<vmem>>, vector<1x200x128xbf16>
    %26 = vector.shape_cast %25 : vector<1x200x128xbf16> to vector<200x128xbf16>
    %cst_17 = arith.constant dense<0.000000e+00> : vector<200x128xf32>
    %27 = tpu.matmul %26, %0, %cst_17 {dimension_numbers = #tpu.dot_dimension_numbers<[1], [0], [0], [1], [0, 0, 1, 1], [], []>} : vector<200x128xbf16>, vector<128x128xbf16>, vector<200x128xf32> -> vector<200x128xf32>
    %28 = vector.broadcast %1 : vector<1x128xf32> to vector<200x128xf32>
    %29 = arith.addf %27, %28 : vector<200x128xf32>
    %cst_18 = arith.constant 0.000000e+00 : f32
    %30 = vector.broadcast %cst_18 : f32 to vector<200x128xf32>
    %31 = arith.maximumf %29, %30 : vector<200x128xf32>
    %32 = arith.maximumf %24, %31 : vector<200x128xf32>
    %33 = arith.truncf %32 : vector<200x128xf32> to vector<200x128xbf16>
    %c0_19 = arith.constant 0 : index
    %c0_20 = arith.constant 0 : index
    %34 = vector.load %arg4[%c0_19, %c0_20] : memref<200x128xbf16, #tpu.memory_space<vmem>>, vector<200x128xbf16>
    tpu.vector_store %arg4[%c0_19, %c0_20], %33 {strides = array<i32>} : memref<200x128xbf16, #tpu.memory_space<vmem>>, vector<200x128xbf16>,
    return
  }
  func.func @transform_0(%arg0: i32) -> (i32, i32, i32) {
    %c0_i32 = arith.constant 0 : i32
    %c0_i32_0 = arith.constant 0 : i32
    %c0_i32_1 = arith.constant 0 : i32
    return %c0_i32, %arg0, %c0_i32_0 : i32, i32, i32
  }
  func.func @transform_1(%arg0: i32) -> (i32, i32) {
    %c0_i32 = arith.constant 0 : i32
    %c0_i32_0 = arith.constant 0 : i32
    %c0_i32_1 = arith.constant 0 : i32
    return %c0_i32, %c0_i32_0 : i32, i32
  }
  func.func @transform_2(%arg0: i32) -> (i32, i32) {
    %c0_i32 = arith.constant 0 : i32
    %c0_i32_0 = arith.constant 0 : i32
    %c0_i32_1 = arith.constant 0 : i32
    return %c0_i32, %c0_i32_0 : i32, i32
  }
  func.func @transform_3(%arg0: i32) -> (i32, i32) {
    %c0_i32 = arith.constant 0 : i32
    %c0_i32_0 = arith.constant 0 : i32
    return %arg0, %c0_i32 : i32, i32
  }
}

module attributes {stable_mosaic.version = 11 : i64} {
  func.func @_conv_pool_kernel(%arg0: i32, %arg1: memref<4x32x1600xbf16, #tpu.memory_space<vmem>>, %arg2: memref<1600x128xbf16, #tpu.memory_space<vmem>>, %arg3: memref<1x128xf32, #tpu.memory_space<vmem>>, %arg4: memref<32x128xbf16, #tpu.memory_space<vmem>>) attributes {dimension_semantics = [#tpu.dimension_semantics<parallel>], iteration_bounds = array<i64: 2>, scalar_prefetch = 0 : i64, scratch_operands = 0 : i64, tpu.core_type = #tpu.core_type<tc>, window_params = [{transform_indices = @transform_0, window_bounds = array<i64: 4, 32, 1600>}, {pipeline_mode = #tpu.pipeline_mode<synchronous>, transform_indices = @transform_1, window_bounds = array<i64: 1600, 128>}, {pipeline_mode = #tpu.pipeline_mode<synchronous>, transform_indices = @transform_2, window_bounds = array<i64: 1, 128>}, {transform_indices = @transform_3, window_bounds = array<i64: 32, 128>}]} {
    %c0 = arith.constant 0 : index
    %c0_0 = arith.constant 0 : index
    %0 = vector.load %arg2[%c0, %c0_0] : memref<1600x128xbf16, #tpu.memory_space<vmem>>, vector<1600x128xbf16>
    %c0_1 = arith.constant 0 : index
    %c0_2 = arith.constant 0 : index
    %1 = vector.load %arg3[%c0_1, %c0_2] : memref<1x128xf32, #tpu.memory_space<vmem>>, vector<1x128xf32>
    %c0_3 = arith.constant 0 : index
    %c0_4 = arith.constant 0 : index
    %c0_5 = arith.constant 0 : index
    %2 = vector.load %arg1[%c0_3, %c0_4, %c0_5] : memref<4x32x1600xbf16, #tpu.memory_space<vmem>>, vector<1x32x1600xbf16>
    %3 = vector.shape_cast %2 : vector<1x32x1600xbf16> to vector<32x1600xbf16>
    %cst = arith.constant dense<0.000000e+00> : vector<32x128xf32>
    %4 = tpu.matmul %3, %0, %cst {dimension_numbers = #tpu.dot_dimension_numbers<[1], [0], [0], [1], [0, 0, 1, 1], [], []>} : vector<32x1600xbf16>, vector<1600x128xbf16>, vector<32x128xf32> -> vector<32x128xf32>
    %5 = vector.broadcast %1 : vector<1x128xf32> to vector<32x128xf32>
    %6 = arith.addf %4, %5 : vector<32x128xf32>
    %cst_6 = arith.constant 0.000000e+00 : f32
    %7 = vector.broadcast %cst_6 : f32 to vector<32x128xf32>
    %8 = arith.maximumf %6, %7 : vector<32x128xf32>
    %c1 = arith.constant 1 : index
    %c0_7 = arith.constant 0 : index
    %c0_8 = arith.constant 0 : index
    %9 = vector.load %arg1[%c1, %c0_7, %c0_8] : memref<4x32x1600xbf16, #tpu.memory_space<vmem>>, vector<1x32x1600xbf16>
    %10 = vector.shape_cast %9 : vector<1x32x1600xbf16> to vector<32x1600xbf16>
    %cst_9 = arith.constant dense<0.000000e+00> : vector<32x128xf32>
    %11 = tpu.matmul %10, %0, %cst_9 {dimension_numbers = #tpu.dot_dimension_numbers<[1], [0], [0], [1], [0, 0, 1, 1], [], []>} : vector<32x1600xbf16>, vector<1600x128xbf16>, vector<32x128xf32> -> vector<32x128xf32>
    %12 = vector.broadcast %1 : vector<1x128xf32> to vector<32x128xf32>
    %13 = arith.addf %11, %12 : vector<32x128xf32>
    %cst_10 = arith.constant 0.000000e+00 : f32
    %14 = vector.broadcast %cst_10 : f32 to vector<32x128xf32>
    %15 = arith.maximumf %13, %14 : vector<32x128xf32>
    %16 = arith.maximumf %8, %15 : vector<32x128xf32>
    %c2 = arith.constant 2 : index
    %c0_11 = arith.constant 0 : index
    %c0_12 = arith.constant 0 : index
    %17 = vector.load %arg1[%c2, %c0_11, %c0_12] : memref<4x32x1600xbf16, #tpu.memory_space<vmem>>, vector<1x32x1600xbf16>
    %18 = vector.shape_cast %17 : vector<1x32x1600xbf16> to vector<32x1600xbf16>
    %cst_13 = arith.constant dense<0.000000e+00> : vector<32x128xf32>
    %19 = tpu.matmul %18, %0, %cst_13 {dimension_numbers = #tpu.dot_dimension_numbers<[1], [0], [0], [1], [0, 0, 1, 1], [], []>} : vector<32x1600xbf16>, vector<1600x128xbf16>, vector<32x128xf32> -> vector<32x128xf32>
    %20 = vector.broadcast %1 : vector<1x128xf32> to vector<32x128xf32>
    %21 = arith.addf %19, %20 : vector<32x128xf32>
    %cst_14 = arith.constant 0.000000e+00 : f32
    %22 = vector.broadcast %cst_14 : f32 to vector<32x128xf32>
    %23 = arith.maximumf %21, %22 : vector<32x128xf32>
    %24 = arith.maximumf %16, %23 : vector<32x128xf32>
    %c3 = arith.constant 3 : index
    %c0_15 = arith.constant 0 : index
    %c0_16 = arith.constant 0 : index
    %25 = vector.load %arg1[%c3, %c0_15, %c0_16] : memref<4x32x1600xbf16, #tpu.memory_space<vmem>>, vector<1x32x1600xbf16>
    %26 = vector.shape_cast %25 : vector<1x32x1600xbf16> to vector<32x1600xbf16>
    %cst_17 = arith.constant dense<0.000000e+00> : vector<32x128xf32>
    %27 = tpu.matmul %26, %0, %cst_17 {dimension_numbers = #tpu.dot_dimension_numbers<[1], [0], [0], [1], [0, 0, 1, 1], [], []>} : vector<32x1600xbf16>, vector<1600x128xbf16>, vector<32x128xf32> -> vector<32x128xf32>
    %28 = vector.broadcast %1 : vector<1x128xf32> to vector<32x128xf32>
    %29 = arith.addf %27, %28 : vector<32x128xf32>
    %cst_18 = arith.constant 0.000000e+00 : f32
    %30 = vector.broadcast %cst_18 : f32 to vector<32x128xf32>
    %31 = arith.maximumf %29, %30 : vector<32x128xf32>
    %32 = arith.maximumf %24, %31 : vector<32x128xf32>
    %33 = arith.truncf %32 : vector<32x128xf32> to vector<32x128xbf16>
    %c0_19 = arith.constant 0 : index
    %c0_20 = arith.constant 0 : index
    %34 = vector.load %arg4[%c0_19, %c0_20] : memref<32x128xbf16, #tpu.memory_space<vmem>>, vector<32x128xbf16>
    tpu.vector_store %arg4[%c0_19, %c0_20], %33 {strides = array<i32>} : memref<32x128xbf16, #tpu.memory_space<vmem>>, vector<32x128xbf16>,
    return
  }
  func.func @transform_0(%arg0: i32) -> (i32, i32, i32) {
    %c0_i32 = arith.constant 0 : i32
    %c0_i32_0 = arith.constant 0 : i32
    %c0_i32_1 = arith.constant 0 : i32
    return %c0_i32, %arg0, %c0_i32_0 : i32, i32, i32
  }
  func.func @transform_1(%arg0: i32) -> (i32, i32) {
    %c0_i32 = arith.constant 0 : i32
    %c0_i32_0 = arith.constant 0 : i32
    %c0_i32_1 = arith.constant 0 : i32
    return %c0_i32, %c0_i32_0 : i32, i32
  }
  func.func @transform_2(%arg0: i32) -> (i32, i32) {
    %c0_i32 = arith.constant 0 : i32
    %c0_i32_0 = arith.constant 0 : i32
    %c0_i32_1 = arith.constant 0 : i32
    return %c0_i32, %c0_i32_0 : i32, i32
  }
  func.func @transform_3(%arg0: i32) -> (i32, i32) {
    %c0_i32 = arith.constant 0 : i32
    %c0_i32_0 = arith.constant 0 : i32
    return %arg0, %c0_i32 : i32, i32
  }
}

module attributes {stable_mosaic.version = 11 : i64} {
  func.func @_mm_bias_relu_kernel(%arg0: i32, %arg1: memref<8x3200xbf16, #tpu.memory_space<vmem>>, %arg2: memref<3200x128xbf16, #tpu.memory_space<vmem>>, %arg3: memref<1x128xf32, #tpu.memory_space<vmem>>, %arg4: memref<8x128xf32, #tpu.memory_space<vmem>>) attributes {dimension_semantics = [#tpu.dimension_semantics<parallel>], iteration_bounds = array<i64: 1>, scalar_prefetch = 0 : i64, scratch_operands = 0 : i64, tpu.core_type = #tpu.core_type<tc>, window_params = [{transform_indices = @transform_0, window_bounds = array<i64: 8, 3200>}, {pipeline_mode = #tpu.pipeline_mode<synchronous>, transform_indices = @transform_1, window_bounds = array<i64: 3200, 128>}, {pipeline_mode = #tpu.pipeline_mode<synchronous>, transform_indices = @transform_2, window_bounds = array<i64: 1, 128>}, {transform_indices = @transform_3, window_bounds = array<i64: 8, 128>}]} {
    %c0 = arith.constant 0 : index
    %c0_0 = arith.constant 0 : index
    %0 = vector.load %arg1[%c0, %c0_0] : memref<8x3200xbf16, #tpu.memory_space<vmem>>, vector<8x3200xbf16>
    %c0_1 = arith.constant 0 : index
    %c0_2 = arith.constant 0 : index
    %1 = vector.load %arg2[%c0_1, %c0_2] : memref<3200x128xbf16, #tpu.memory_space<vmem>>, vector<3200x128xbf16>
    %cst = arith.constant dense<0.000000e+00> : vector<8x128xf32>
    %2 = tpu.matmul %0, %1, %cst {dimension_numbers = #tpu.dot_dimension_numbers<[1], [0], [0], [1], [0, 0, 1, 1], [], []>} : vector<8x3200xbf16>, vector<3200x128xbf16>, vector<8x128xf32> -> vector<8x128xf32>
    %c0_3 = arith.constant 0 : index
    %c0_4 = arith.constant 0 : index
    %3 = vector.load %arg3[%c0_3, %c0_4] : memref<1x128xf32, #tpu.memory_space<vmem>>, vector<1x128xf32>
    %4 = vector.broadcast %3 : vector<1x128xf32> to vector<8x128xf32>
    %5 = arith.addf %2, %4 : vector<8x128xf32>
    %cst_5 = arith.constant 0.000000e+00 : f32
    %6 = vector.broadcast %cst_5 : f32 to vector<8x128xf32>
    %7 = arith.maximumf %5, %6 : vector<8x128xf32>
    %c0_6 = arith.constant 0 : index
    %c0_7 = arith.constant 0 : index
    %8 = vector.load %arg4[%c0_6, %c0_7] : memref<8x128xf32, #tpu.memory_space<vmem>>, vector<8x128xf32>
    tpu.vector_store %arg4[%c0_6, %c0_7], %7 {strides = array<i32>} : memref<8x128xf32, #tpu.memory_space<vmem>>, vector<8x128xf32>,
    return
  }
  func.func @transform_0(%arg0: i32) -> (i32, i32) {
    %c0_i32 = arith.constant 0 : i32
    %c0_i32_0 = arith.constant 0 : i32
    return %arg0, %c0_i32 : i32, i32
  }
  func.func @transform_1(%arg0: i32) -> (i32, i32) {
    %c0_i32 = arith.constant 0 : i32
    %c0_i32_0 = arith.constant 0 : i32
    %c0_i32_1 = arith.constant 0 : i32
    return %c0_i32, %c0_i32_0 : i32, i32
  }
  func.func @transform_2(%arg0: i32) -> (i32, i32) {
    %c0_i32 = arith.constant 0 : i32
    %c0_i32_0 = arith.constant 0 : i32
    %c0_i32_1 = arith.constant 0 : i32
    return %c0_i32, %c0_i32_0 : i32, i32
  }
  func.func @transform_3(%arg0: i32) -> (i32, i32) {
    %c0_i32 = arith.constant 0 : i32
    %c0_i32_0 = arith.constant 0 : i32
    return %arg0, %c0_i32 : i32, i32
  }
}

</mosaic_0001>

<llo_original>
// kernel: mlp_forward.3
$region0: #{mlp_forward.3}
  #allocation0 [shape = 'u32[]', space=smem, size = 0x4, offset = 0x4, fixed_abs, tag = 'smem constant byte address 0x4 - core index']
  #allocation1 [shape = 'u32[144,128]{1,0:T(1,128)}', space=vmem, size = 0x12000, scoped, tag = 'internal scratch']
  %s0 = inlined_call_operand.vmem [shape: bf16[4,400,128], index: 0, kind: input, shape index: {}]
  %s1 = inlined_call_operand.vmem [shape: bf16[128,128], index: 1, kind: input, shape index: {}]
  %s2 = inlined_call_operand.vmem [shape: f32[1,128], index: 2, kind: input, shape index: {}]
  %s3 = inlined_call_operand.vmem [shape: bf16[400,128], index: 3, kind: output, shape index: {}]
  %s4 = sld [smem:[#allocation0]]
  $region86: #{mlp_forward.3} parent=0
    _
  %s6 = ssub.s32 1, %s4
  %s7 = scalar_select 0, %s6, %s4
  $region1: #{mlp_forward.3} parent=0
    #allocation2 [shape = 'u8[409600]{0}', space=vmem, size = 0x64000, scoped, tag = 'input window, operand 0']
    loop: start=0, step=1, limit=4
    $region2: #{mlp_forward.3} parent=1 // loop_pre_header
      _
    $region3: #{mlp_forward.3} parent=1 // loop_header
      %s9 = sphi 0, %s13
      %p10 = scmp.ge.s32.totalorder %s9, 4
      %s19 = sphi 0, %s21
      %s22 = sphi 0, %s19
      %s23 = sphi 0, %s22
      %s39 = sphi 0, %s23
      %s43 = sphi 0, %s43
      %s45 = sphi 0, %s43
      %s46 = sphi 0, %s45
      %s60 = sphi 0, %s46
      %s64 = sphi 0, %s64
      %s66 = sphi 0, %s64
      %s67 = sphi 0, %s66
      %s81 = sphi 0, %s67
      %s87 = sphi 0, %s89
      %s90 = sphi 0, %s87
      %s91 = sphi 0, %s90
      %s107 = sphi 0, %s91
    $region4: #{mlp_forward.3} parent=1 // loop_header_branch
      %12 = sbr.rel (%p10) target = $region8
    $region5: #{mlp_forward.3} parent=1 // loop_body
      %s14 = ssub.s32 %s9, 1
      %s15 = ssub.s32 %s9, 2
      %s16 = sadd.s32 %s9, 1
      %s17 = ssub.s32 %s9, %s16
      %p18 = scmp.eq.s32.totalorder %s17, 0
      %s20 = sadd.s32 %s19, 1
      %s21 = scalar_select %p18, %s19, %s20
      %p24 = pneg %p18
      %p25 = scmp.eq.s32.totalorder %s9, 1
      %p26 = por %p24, %p25
      %p27 = scmp.ne.s32.totalorder %s19, %s22
      %p28 = scmp.eq.s32.totalorder %s9, 0
      %p29 = por %p27, %p28
      %p30 = scmp.ne.s32.totalorder %s19, %s22
      %p31 = scmp.eq.s32.totalorder %s14, 1
      %p32 = por %p30, %p31
      %p33 = scmp.ne.s32.totalorder %s22, %s23
      %p34 = scmp.eq.s32.totalorder %s14, 0
      %p35 = por %p33, %p34
      %p36 = scmp.ne.s32.totalorder %s22, %s23
      %p37 = scmp.eq.s32.totalorder %s15, 1
      %p38 = por %p36, %p37
      %p40 = scmp.ne.s32.totalorder %s23, %s39
      %p41 = scmp.eq.s32.totalorder %s15, 0
      %p42 = por %p40, %p41
      %s44 = sadd.s32 %s43, 1
      %p47 = scmp.eq.s32.totalorder %s9, 1
      %p48 = scmp.ne.s32.totalorder %s43, %s45
      %p49 = scmp.eq.s32.totalorder %s9, 0
      %p50 = por %p48, %p49
      %p51 = scmp.ne.s32.totalorder %s43, %s45
      %p52 = scmp.eq.s32.totalorder %s14, 1
      %p53 = por %p51, %p52
      %p54 = scmp.ne.s32.totalorder %s45, %s46
      %p55 = scmp.eq.s32.totalorder %s14, 0
      %p56 = por %p54, %p55
      %p57 = scmp.ne.s32.totalorder %s45, %s46
      %p58 = scmp.eq.s32.totalorder %s15, 1
      %p59 = por %p57, %p58
      %p61 = scmp.ne.s32.totalorder %s46, %s60
      %p62 = scmp.eq.s32.totalorder %s15, 0
      %p63 = por %p61, %p62
      %s65 = sadd.s32 %s64, 1
      %p68 = scmp.eq.s32.totalorder %s9, 1
      %p69 = scmp.ne.s32.totalorder %s64, %s66
      %p70 = scmp.eq.s32.totalorder %s9, 0
      %p71 = por %p69, %p70
      %p72 = scmp.ne.s32.totalorder %s64, %s66
      %p73 = scmp.eq.s32.totalorder %s14, 1
      %p74 = por %p72, %p73
      %p75 = scmp.ne.s32.totalorder %s66, %s67
      %p76 = scmp.eq.s32.totalorder %s14, 0
      %p77 = por %p75, %p76
      %p78 = scmp.ne.s32.totalorder %s66, %s67
      %p79 = scmp.eq.s32.totalorder %s15, 1
      %p80 = por %p78, %p79
      %p82 = scmp.ne.s32.totalorder %s67, %s81
      %p83 = scmp.eq.s32.totalorder %s15, 0
      %p84 = por %p82, %p83
      %s85 = ssub.s32 %s9, %s16
      %p86 = scmp.eq.s32.totalorder %s85, 0
      %s88 = sadd.s32 %s87, 1
      %s89 = scalar_select %p86, %s87, %s88
      %p92 = pneg %p86
      %p93 = scmp.eq.s32.totalorder %s9, 1
      %p94 = por %p92, %p93
      %p95 = scmp.ne.s32.totalorder %s87, %s90
      %p96 = scmp.eq.s32.totalorder %s9, 0
      %p97 = por %p95, %p96
      %p98 = scmp.ne.s32.totalorder %s87, %s90
      %p99 = scmp.eq.s32.totalorder %s14, 1
      %p100 = por %p98, %p99
      %p101 = scmp.ne.s32.totalorder %s90, %s91
      %p102 = scmp.eq.s32.totalorder %s14, 0
      %p103 = por %p101, %p102
      %p104 = scmp.ne.s32.totalorder %s90, %s91
      %p105 = scmp.eq.s32.totalorder %s15, 1
      %p106 = por %p104, %p105
      %p108 = scmp.ne.s32.totalorder %s91, %s107
      %p109 = scmp.eq.s32.totalorder %s15, 0
      %p110 = por %p108, %p109
      %p111 = scmp.le.s32.totalorder 1, %s9
      %p112 = scmp.lt.s32.totalorder %s9, 3
      %p113 = pnand %p111, %p112
      %p114 = pneg %p113
      // Predicated region
      $region9: #{mlp_forward.3} parent=5 // pred_check
        _
      $region10: #{mlp_forward.3} parent=5 // pred_check_branch
        %116 = sbr.rel (%p113) target = $region12
      $region11: #{mlp_forward.3} parent=5 // pred_region
        %s117 = ssub.s32 %s9, 1
        // Predicated region
        $region13: #{mlp_forward.3} parent=11 // pred_check
          %p118 = pneg %p56
        $region14: #{mlp_forward.3} parent=11 // pred_check_branch
          %120 = sbr.rel (%p118) target = $region16
        $region15: #{mlp_forward.3} parent=11 // pred_region
          _
        $region16: #{mlp_forward.3} parent=11 // pred_fallthru
          _
        // Predicated region
        $region17: #{mlp_forward.3} parent=11 // pred_check
          %p121 = pneg %p77
        $region18: #{mlp_forward.3} parent=11 // pred_check_branch
          %123 = sbr.rel (%p121) target = $region20
        $region19: #{mlp_forward.3} parent=11 // pred_region
          _
        $region20: #{mlp_forward.3} parent=11 // pred_fallthru
          _
      $region12: #{mlp_forward.3} parent=5 // pred_fallthru
        _
      %p124 = scmp.lt.s32.totalorder %s9, 2
      // Predicated region
      $region21: #{mlp_forward.3} parent=5 // pred_check
        %p125 = pneg %p124
      $region22: #{mlp_forward.3} parent=5 // pred_check_branch
        %127 = sbr.rel (%p125) target = $region24
      $region23: #{mlp_forward.3} parent=5 // pred_region
        // Predicated region
        $region25: #{mlp_forward.3} parent=23 // pred_check
          %p128 = pneg %p29
        $region26: #{mlp_forward.3} parent=23 // pred_check_branch
          %130 = sbr.rel (%p128) target = $region28
        $region27: #{mlp_forward.3} parent=23 // pred_region
          %s131 = sand.u32 %s19, 1
          %s132 = sand.u32 %s19, 1
          %s133 = smul.addr %s132, 400
          %s134 = scalar_lea.vmem [#allocation2], %s133
          %s135 = smul.u32 25, %s9
          %s136 = smul.addr %s135, 4
          %s137 = scalar_lea.vmem %s0, %s136
          // Predicated region
          $region29: #{mlp_forward.3} parent=27 // pred_check
            _
          $region30: #{mlp_forward.3} parent=27 // pred_check_branch
            %139 = sbr.rel (0) target = $region32
          $region31: #{mlp_forward.3} parent=27 // pred_region
            // Predicated region
            $region33: #{mlp_forward.3} parent=31 // pred_check
              _
            $region34: #{mlp_forward.3} parent=31 // pred_check_branch
              %141 = sbr.rel target = $region36
            $region35: #{mlp_forward.3} parent=31 // pred_region
              // Predicated region
              $region48: #{mlp_forward.3} parent=35 // pred_check
                _
              $region49: #{mlp_forward.3} parent=35 // pred_check_branch
                %354 = sbr.rel (0) target = $region51
              $region50: #{mlp_forward.3} parent=35 // pred_region
                loop: start=0, step=1, limit=1
                $region52: #{mlp_forward.3} parent=50 // loop_pre_header
                  _
                $region53: #{mlp_forward.3} parent=50 // loop_header
                  %s356 = sphi 0, %s360
                  %p357 = scmp.ge.s32.totalorder %s356, 1
                  %s361 = sphi %s137, %s137
                  %s362 = sphi %s134, %s134
                $region54: #{mlp_forward.3} parent=50 // loop_header_branch
                  %359 = sbr.rel (%p357) target = $region58
                $region55: #{mlp_forward.3} parent=50 // loop_body
                  _
                $region56: #{mlp_forward.3} parent=50 // loop_footer
                  %s360 = sadd.s32 1, %s356
                $region57: #{mlp_forward.3} parent=50 // loop_footer_branch
                  %355 = sbr.rel target = $region53
                $region58: #{mlp_forward.3} parent=50 // loop_exit
                  _
                loop: start=0, step=1, limit=1
                $region59: #{mlp_forward.3} parent=50 // loop_pre_header
                  _
                $region60: #{mlp_forward.3} parent=50 // loop_header
                  %s365 = sphi 0, %s369
                  %p366 = scmp.ge.s32.totalorder %s365, 1
                  %s370 = sphi %s137, %s137
                  %s371 = sphi %s134, %s134
                $region61: #{mlp_forward.3} parent=50 // loop_header_branch
                  %368 = sbr.rel (%p366) target = $region65
                $region62: #{mlp_forward.3} parent=50 // loop_body
                  %v372 = vld [vmem:[%s370] sm:$0xf]
                  %373 = vst [vmem:[%s371] sm:$0xf] %v372
                  %v374 = vld [vmem:[%s370 + $0x4] sm:$0xf]
                  %375 = vst [vmem:[%s371 + $0x4] sm:$0xf] %v374
                  %v376 = vld [vmem:[%s370 + $0x8] sm:$0xf]
                  %377 = vst [vmem:[%s371 + $0x8] sm:$0xf] %v376
                  %v378 = vld [vmem:[%s370 + $0xc] sm:$0xf]
                  %379 = vst [vmem:[%s371 + $0xc] sm:$0xf] %v378
                  %v380 = vld [vmem:[%s370 + $0x10] sm:$0xf]
                  %381 = vst [vmem:[%s371 + $0x10] sm:$0xf] %v380
                  %v382 = vld [vmem:[%s370 + $0x14] sm:$0xf]
                  %383 = vst [vmem:[%s371 + $0x14] sm:$0xf] %v382
                  %v384 = vld [vmem:[%s370 + $0x18] sm:$0xf]
                  %385 = vst [vmem:[%s371 + $0x18] sm:$0xf] %v384
                  %v386 = vld [vmem:[%s370 + $0x1c] sm:$0xf]
                  %387 = vst [vmem:[%s371 + $0x1c] sm:$0xf] %v386
                  %v388 = vld [vmem:[%s370 + $0x20] sm:$0xf]
                  %389 = vst [vmem:[%s371 + $0x20] sm:$0xf] %v388
                  %v390 = vld [vmem:[%s370 + $0x24] sm:$0xf]
                  %391 = vst [vmem:[%s371 + $0x24] sm:$0xf] %v390
                  %v392 = vld [vmem:[%s370 + $0x28] sm:$0xf]
                  %393 = vst [vmem:[%s371 + $0x28] sm:$0xf] %v392
                  %v394 = vld [vmem:[%s370 + $0x2c] sm:$0xf]
                  %395 = vst [vmem:[%s371 + $0x2c] sm:$0xf] %v394
                  %v396 = vld [vmem:[%s370 + $0x30] sm:$0xf]
                  %397 = vst [vmem:[%s371 + $0x30] sm:$0xf] %v396
                  %v398 = vld [vmem:[%s370 + $0x34] sm:$0xf]
                  %399 = vst [vmem:[%s371 + $0x34] sm:$0xf] %v398
                  %v400 = vld [vmem:[%s370 + $0x38] sm:$0xf]
                  %401 = vst [vmem:[%s371 + $0x38] sm:$0xf] %v400
                  %v402 = vld [vmem:[%s370 + $0x3c] sm:$0xf]
                  %403 = vst [vmem:[%s371 + $0x3c] sm:$0xf] %v402
                  %v404 = vld [vmem:[%s370 + $0x40] sm:$0xf]
                  %405 = vst [vmem:[%s371 + $0x40] sm:$0xf] %v404
                  %v406 = vld [vmem:[%s370 + $0x44] sm:$0xf]
                  %407 = vst [vmem:[%s371 + $0x44] sm:$0xf] %v406
                  %v408 = vld [vmem:[%s370 + $0x48] sm:$0xf]
                  %409 = vst [vmem:[%s371 + $0x48] sm:$0xf] %v408
                  %v410 = vld [vmem:[%s370 + $0x4c] sm:$0xf]
                  %411 = vst [vmem:[%s371 + $0x4c] sm:$0xf] %v410
                  %v412 = vld [vmem:[%s370 + $0x50] sm:$0xf]
                  %413 = vst [vmem:[%s371 + $0x50] sm:$0xf] %v412
                  %v414 = vld [vmem:[%s370 + $0x54] sm:$0xf]
                  %415 = vst [vmem:[%s371 + $0x54] sm:$0xf] %v414
                  %v416 = vld [vmem:[%s370 + $0x58] sm:$0xf]
                  %417 = vst [vmem:[%s371 + $0x58] sm:$0xf] %v416
                  %v418 = vld [vmem:[%s370 + $0x5c] sm:$0xf]
                  %419 = vst [vmem:[%s371 + $0x5c] sm:$0xf] %v418
                  %v420 = vld [vmem:[%s370 + $0x60] sm:$0xf]
                  %421 = vst [vmem:[%s371 + $0x60] sm:$0xf] %v420
                  %v422 = vld [vmem:[%s370 + $0xc8] sm:$0xf]
                  %423 = vst [vmem:[%s371 + $0x64] sm:$0xf] %v422
                  %v424 = vld [vmem:[%s370 + $0xcc] sm:$0xf]
                  %425 = vst [vmem:[%s371 + $0x68] sm:$0xf] %v424
                  %v426 = vld [vmem:[%s370 + $0xd0] sm:$0xf]
                  %427 = vst [vmem:[%s371 + $0x6c] sm:$0xf] %v426
                  %v428 = vld [vmem:[%s370 + $0xd4] sm:$0xf]
                  %429 = vst [vmem:[%s371 + $0x70] sm:$0xf] %v428
                  %v430 = vld [vmem:[%s370 + $0xd8] sm:$0xf]
                  %431 = vst [vmem:[%s371 + $0x74] sm:$0xf] %v430
                  %v432 = vld [vmem:[%s370 + $0xdc] sm:$0xf]
                  %433 = vst [vmem:[%s371 + $0x78] sm:$0xf] %v432
                  %v434 = vld [vmem:[%s370 + $0xe0] sm:$0xf]
                  %435 = vst [vmem:[%s371 + $0x7c] sm:$0xf] %v434
                  %v436 = vld [vmem:[%s370 + $0xe4] sm:$0xf]
                  %437 = vst [vmem:[%s371 + $0x80] sm:$0xf] %v436
                  %v438 = vld [vmem:[%s370 + $0xe8] sm:$0xf]
                  %439 = vst [vmem:[%s371 + $0x84] sm:$0xf] %v438
                  %v440 = vld [vmem:[%s370 + $0xec] sm:$0xf]
                  %441 = vst [vmem:[%s371 + $0x88] sm:$0xf] %v440
                  %v442 = vld [vmem:[%s370 + $0xf0] sm:$0xf]
                  %443 = vst [vmem:[%s371 + $0x8c] sm:$0xf] %v442
                  %v444 = vld [vmem:[%s370 + $0xf4] sm:$0xf]
                  %445 = vst [vmem:[%s371 + $0x90] sm:$0xf] %v444
                  %v446 = vld [vmem:[%s370 + $0xf8] sm:$0xf]
                  %447 = vst [vmem:[%s371 + $0x94] sm:$0xf] %v446
                  %v448 = vld [vmem:[%s370 + $0xfc] sm:$0xf]
                  %449 = vst [vmem:[%s371 + $0x98] sm:$0xf] %v448
                  %v450 = vld [vmem:[%s370 + $0x100] sm:$0xf]
                  %451 = vst [vmem:[%s371 + $0x9c] sm:$0xf] %v450
                  %v452 = vld [vmem:[%s370 + $0x104] sm:$0xf]
                  %453 = vst [vmem:[%s371 + $0xa0] sm:$0xf] %v452
                  %v454 = vld [vmem:[%s370 + $0x108] sm:$0xf]
                  %455 = vst [vmem:[%s371 + $0xa4] sm:$0xf] %v454
                  %v456 = vld [vmem:[%s370 + $0x10c] sm:$0xf]
                  %457 = vst [vmem:[%s371 + $0xa8] sm:$0xf] %v456
                  %v458 = vld [vmem:[%s370 + $0x110] sm:$0xf]
                  %459 = vst [vmem:[%s371 + $0xac] sm:$0xf] %v458
                  %v460 = vld [vmem:[%s370 + $0x114] sm:$0xf]
                  %461 = vst [vmem:[%s371 + $0xb0] sm:$0xf] %v460
                  %v462 = vld [vmem:[%s370 + $0x118] sm:$0xf]
                  %463 = vst [vmem:[%s371 + $0xb4] sm:$0xf] %v462
                  %v464 = vld [vmem:[%s370 + $0x11c] sm:$0xf]
                  %465 = vst [vmem:[%s371 + $0xb8] sm:$0xf] %v464
                  %v466 = vld [vmem:[%s370 + $0x120] sm:$0xf]
                  %467 = vst [vmem:[%s371 + $0xbc] sm:$0xf] %v466
                  %v468 = vld [vmem:[%s370 + $0x124] sm:$0xf]
                  %469 = vst [vmem:[%s371 + $0xc0] sm:$0xf] %v468
                  %v470 = vld [vmem:[%s370 + $0x128] sm:$0xf]
                  %471 = vst [vmem:[%s371 + $0xc4] sm:$0xf] %v470
                  %v472 = vld [vmem:[%s370 + $0x190] sm:$0xf]
                  %473 = vst [vmem:[%s371 + $0xc8] sm:$0xf] %v472
                  %v474 = vld [vmem:[%s370 + $0x194] sm:$0xf]
                  %475 = vst [vmem:[%s371 + $0xcc] sm:$0xf] %v474
                  %v476 = vld [vmem:[%s370 + $0x198] sm:$0xf]
                  %477 = vst [vmem:[%s371 + $0xd0] sm:$0xf] %v476
                  %v478 = vld [vmem:[%s370 + $0x19c] sm:$0xf]
                  %479 = vst [vmem:[%s371 + $0xd4] sm:$0xf] %v478
                  %v480 = vld [vmem:[%s370 + $0x1a0] sm:$0xf]
                  %481 = vst [vmem:[%s371 + $0xd8] sm:$0xf] %v480
                  %v482 = vld [vmem:[%s370 + $0x1a4] sm:$0xf]
                  %483 = vst [vmem:[%s371 + $0xdc] sm:$0xf] %v482
                  %v484 = vld [vmem:[%s370 + $0x1a8] sm:$0xf]
                  %485 = vst [vmem:[%s371 + $0xe0] sm:$0xf] %v484
                  %v486 = vld [vmem:[%s370 + $0x1ac] sm:$0xf]
                  %487 = vst [vmem:[%s371 + $0xe4] sm:$0xf] %v486
                  %v488 = vld [vmem:[%s370 + $0x1b0] sm:$0xf]
                  %489 = vst [vmem:[%s371 + $0xe8] sm:$0xf] %v488
                  %v490 = vld [vmem:[%s370 + $0x1b4] sm:$0xf]
                  %491 = vst [vmem:[%s371 + $0xec] sm:$0xf] %v490
                  %v492 = vld [vmem:[%s370 + $0x1b8] sm:$0xf]
                  %493 = vst [vmem:[%s371 + $0xf0] sm:$0xf] %v492
                  %v494 = vld [vmem:[%s370 + $0x1bc] sm:$0xf]
                  %495 = vst [vmem:[%s371 + $0xf4] sm:$0xf] %v494
                  %v496 = vld [vmem:[%s370 + $0x1c0] sm:$0xf]
                  %497 = vst [vmem:[%s371 + $0xf8] sm:$0xf] %v496
                  %v498 = vld [vmem:[%s370 + $0x1c4] sm:$0xf]
                  %499 = vst [vmem:[%s371 + $0xfc] sm:$0xf] %v498
                  %v500 = vld [vmem:[%s370 + $0x1c8] sm:$0xf]
                  %501 = vst [vmem:[%s371 + $0x100] sm:$0xf] %v500
                  %v502 = vld [vmem:[%s370 + $0x1cc] sm:$0xf]
                  %503 = vst [vmem:[%s371 + $0x104] sm:$0xf] %v502
                  %v504 = vld [vmem:[%s370 + $0x1d0] sm:$0xf]
                  %505 = vst [vmem:[%s371 + $0x108] sm:$0xf] %v504
                  %v506 = vld [vmem:[%s370 + $0x1d4] sm:$0xf]
                  %507 = vst [vmem:[%s371 + $0x10c] sm:$0xf] %v506
                  %v508 = vld [vmem:[%s370 + $0x1d8] sm:$0xf]
                  %509 = vst [vmem:[%s371 + $0x110] sm:$0xf] %v508
                  %v510 = vld [vmem:[%s370 + $0x1dc] sm:$0xf]
                  %511 = vst [vmem:[%s371 + $0x114] sm:$0xf] %v510
                  %v512 = vld [vmem:[%s370 + $0x1e0] sm:$0xf]
                  %513 = vst [vmem:[%s371 + $0x118] sm:$0xf] %v512
                  %v514 = vld [vmem:[%s370 + $0x1e4] sm:$0xf]
                  %515 = vst [vmem:[%s371 + $0x11c] sm:$0xf] %v514
                  %v516 = vld [vmem:[%s370 + $0x1e8] sm:$0xf]
                  %517 = vst [vmem:[%s371 + $0x120] sm:$0xf] %v516
                  %v518 = vld [vmem:[%s370 + $0x1ec] sm:$0xf]
                  %519 = vst [vmem:[%s371 + $0x124] sm:$0xf] %v518
                  %v520 = vld [vmem:[%s370 + $0x1f0] sm:$0xf]
                  %521 = vst [vmem:[%s371 + $0x128] sm:$0xf] %v520
                  %v522 = vld [vmem:[%s370 + $0x258] sm:$0xf]
                  %523 = vst [vmem:[%s371 + $0x12c] sm:$0xf] %v522
                  %v524 = vld [vmem:[%s370 + $0x25c] sm:$0xf]
                  %525 = vst [vmem:[%s371 + $0x130] sm:$0xf] %v524
                  %v526 = vld [vmem:[%s370 + $0x260] sm:$0xf]
                  %527 = vst [vmem:[%s371 + $0x134] sm:$0xf] %v526
                  %v528 = vld [vmem:[%s370 + $0x264] sm:$0xf]
                  %529 = vst [vmem:[%s371 + $0x138] sm:$0xf] %v528
                  %v530 = vld [vmem:[%s370 + $0x268] sm:$0xf]
                  %531 = vst [vmem:[%s371 + $0x13c] sm:$0xf] %v530
                  %v532 = vld [vmem:[%s370 + $0x26c] sm:$0xf]
                  %533 = vst [vmem:[%s371 + $0x140] sm:$0xf] %v532
                  %v534 = vld [vmem:[%s370 + $0x270] sm:$0xf]
                  %535 = vst [vmem:[%s371 + $0x144] sm:$0xf] %v534
                  %v536 = vld [vmem:[%s370 + $0x274] sm:$0xf]
                  %537 = vst [vmem:[%s371 + $0x148] sm:$0xf] %v536
                  %v538 = vld [vmem:[%s370 + $0x278] sm:$0xf]
                  %539 = vst [vmem:[%s371 + $0x14c] sm:$0xf] %v538
                  %v540 = vld [vmem:[%s370 + $0x27c] sm:$0xf]
                  %541 = vst [vmem:[%s371 + $0x150] sm:$0xf] %v540
                  %v542 = vld [vmem:[%s370 + $0x280] sm:$0xf]
                  %543 = vst [vmem:[%s371 + $0x154] sm:$0xf] %v542
                  %v544 = vld [vmem:[%s370 + $0x284] sm:$0xf]
                  %545 = vst [vmem:[%s371 + $0x158] sm:$0xf] %v544
                  %v546 = vld [vmem:[%s370 + $0x288] sm:$0xf]
                  %547 = vst [vmem:[%s371 + $0x15c] sm:$0xf] %v546
                  %v548 = vld [vmem:[%s370 + $0x28c] sm:$0xf]
                  %549 = vst [vmem:[%s371 + $0x160] sm:$0xf] %v548
                  %v550 = vld [vmem:[%s370 + $0x290] sm:$0xf]
                  %551 = vst [vmem:[%s371 + $0x164] sm:$0xf] %v550
                  %v552 = vld [vmem:[%s370 + $0x294] sm:$0xf]
                  %553 = vst [vmem:[%s371 + $0x168] sm:$0xf] %v552
                  %v554 = vld [vmem:[%s370 + $0x298] sm:$0xf]
                  %555 = vst [vmem:[%s371 + $0x16c] sm:$0xf] %v554
                  %v556 = vld [vmem:[%s370 + $0x29c] sm:$0xf]
                  %557 = vst [vmem:[%s371 + $0x170] sm:$0xf] %v556
                  %v558 = vld [vmem:[%s370 + $0x2a0] sm:$0xf]
                  %559 = vst [vmem:[%s371 + $0x174] sm:$0xf] %v558
                  %v560 = vld [vmem:[%s370 + $0x2a4] sm:$0xf]
                  %561 = vst [vmem:[%s371 + $0x178] sm:$0xf] %v560
                  %v562 = vld [vmem:[%s370 + $0x2a8] sm:$0xf]
                  %563 = vst [vmem:[%s371 + $0x17c] sm:$0xf] %v562
                  %v564 = vld [vmem:[%s370 + $0x2ac] sm:$0xf]
                  %565 = vst [vmem:[%s371 + $0x180] sm:$0xf] %v564
                  %v566 = vld [vmem:[%s370 + $0x2b0] sm:$0xf]
                  %567 = vst [vmem:[%s371 + $0x184] sm:$0xf] %v566
                  %v568 = vld [vmem:[%s370 + $0x2b4] sm:$0xf]
                  %569 = vst [vmem:[%s371 + $0x188] sm:$0xf] %v568
                  %v570 = vld [vmem:[%s370 + $0x2b8] sm:$0xf]
                  %571 = vst [vmem:[%s371 + $0x18c] sm:$0xf] %v570
                $region63: #{mlp_forward.3} parent=50 // loop_footer
                  %s369 = sadd.s32 1, %s365
                $region64: #{mlp_forward.3} parent=50 // loop_footer_branch
                  %364 = sbr.rel target = $region60
                $region65: #{mlp_forward.3} parent=50 // loop_exit
                  _
              $region51: #{mlp_forward.3} parent=35 // pred_fallthru
                _
            $region36: #{mlp_forward.3} parent=31 // pred_fallthru
              _
            // Predicated region
            $region37: #{mlp_forward.3} parent=31 // pred_check
              _
            $region38: #{mlp_forward.3} parent=31 // pred_check_branch
              %143 = sbr.rel (0) target = $region40
            $region39: #{mlp_forward.3} parent=31 // pred_region
              loop: start=0, step=1, limit=1
              $region41: #{mlp_forward.3} parent=39 // loop_pre_header
                _
              $region42: #{mlp_forward.3} parent=39 // loop_header
                %s146 = sphi 0, %s150
                %p147 = scmp.ge.s32.totalorder %s146, 1
                %s151 = sphi %s137, %s137
                %s152 = sphi %s134, %s134
              $region43: #{mlp_forward.3} parent=39 // loop_header_branch
                %149 = sbr.rel (%p147) target = $region47
              $region44: #{mlp_forward.3} parent=39 // loop_body
                %v153 = vld [vmem:[%s151] sm:$0xf]
                %154 = vst [vmem:[%s152] sm:$0xf] %v153
                %v155 = vld [vmem:[%s151 + $0x4] sm:$0xf]
                %156 = vst [vmem:[%s152 + $0x4] sm:$0xf] %v155
                %v157 = vld [vmem:[%s151 + $0x8] sm:$0xf]
                %158 = vst [vmem:[%s152 + $0x8] sm:$0xf] %v157
                %v159 = vld [vmem:[%s151 + $0xc] sm:$0xf]
                %160 = vst [vmem:[%s152 + $0xc] sm:$0xf] %v159
                %v161 = vld [vmem:[%s151 + $0x10] sm:$0xf]
                %162 = vst [vmem:[%s152 + $0x10] sm:$0xf] %v161
                %v163 = vld [vmem:[%s151 + $0x14] sm:$0xf]
                %164 = vst [vmem:[%s152 + $0x14] sm:$0xf] %v163
                %v165 = vld [vmem:[%s151 + $0x18] sm:$0xf]
                %166 = vst [vmem:[%s152 + $0x18] sm:$0xf] %v165
                %v167 = vld [vmem:[%s151 + $0x1c] sm:$0xf]
                %168 = vst [vmem:[%s152 + $0x1c] sm:$0xf] %v167
                %v169 = vld [vmem:[%s151 + $0x20] sm:$0xf]
                %170 = vst [vmem:[%s152 + $0x20] sm:$0xf] %v169
                %v171 = vld [vmem:[%s151 + $0x24] sm:$0xf]
                %172 = vst [vmem:[%s152 + $0x24] sm:$0xf] %v171
                %v173 = vld [vmem:[%s151 + $0x28] sm:$0xf]
                %174 = vst [vmem:[%s152 + $0x28] sm:$0xf] %v173
                %v175 = vld [vmem:[%s151 + $0x2c] sm:$0xf]
                %176 = vst [vmem:[%s152 + $0x2c] sm:$0xf] %v175
                %v177 = vld [vmem:[%s151 + $0x30] sm:$0xf]
                %178 = vst [vmem:[%s152 + $0x30] sm:$0xf] %v177
                %v179 = vld [vmem:[%s151 + $0x34] sm:$0xf]
                %180 = vst [vmem:[%s152 + $0x34] sm:$0xf] %v179
                %v181 = vld [vmem:[%s151 + $0x38] sm:$0xf]
                %182 = vst [vmem:[%s152 + $0x38] sm:$0xf] %v181
                %v183 = vld [vmem:[%s151 + $0x3c] sm:$0xf]
                %184 = vst [vmem:[%s152 + $0x3c] sm:$0xf] %v183
                %v185 = vld [vmem:[%s151 + $0x40] sm:$0xf]
                %186 = vst [vmem:[%s152 + $0x40] sm:$0xf] %v185
                %v187 = vld [vmem:[%s151 + $0x44] sm:$0xf]
                %188 = vst [vmem:[%s152 + $0x44] sm:$0xf] %v187
                %v189 = vld [vmem:[%s151 + $0x48] sm:$0xf]
                %190 = vst [vmem:[%s152 + $0x48] sm:$0xf] %v189
                %v191 = vld [vmem:[%s151 + $0x4c] sm:$0xf]
                %192 = vst [vmem:[%s152 + $0x4c] sm:$0xf] %v191
                %v193 = vld [vmem:[%s151 + $0x50] sm:$0xf]
                %194 = vst [vmem:[%s152 + $0x50] sm:$0xf] %v193
                %v195 = vld [vmem:[%s151 + $0x54] sm:$0xf]
                %196 = vst [vmem:[%s152 + $0x54] sm:$0xf] %v195
                %v197 = vld [vmem:[%s151 + $0x58] sm:$0xf]
                %198 = vst [vmem:[%s152 + $0x58] sm:$0xf] %v197
                %v199 = vld [vmem:[%s151 + $0x5c] sm:$0xf]
                %200 = vst [vmem:[%s152 + $0x5c] sm:$0xf] %v199
                %v201 = vld [vmem:[%s151 + $0x60] sm:$0xf]
                %202 = vst [vmem:[%s152 + $0x60] sm:$0xf] %v201
                %v203 = vld [vmem:[%s151 + $0xc8] sm:$0xf]
                %204 = vst [vmem:[%s152 + $0x64] sm:$0xf] %v203
                %v205 = vld [vmem:[%s151 + $0xcc] sm:$0xf]
                %206 = vst [vmem:[%s152 + $0x68] sm:$0xf] %v205
                %v207 = vld [vmem:[%s151 + $0xd0] sm:$0xf]
                %208 = vst [vmem:[%s152 + $0x6c] sm:$0xf] %v207
                %v209 = vld [vmem:[%s151 + $0xd4] sm:$0xf]
                %210 = vst [vmem:[%s152 + $0x70] sm:$0xf] %v209
                %v211 = vld [vmem:[%s151 + $0xd8] sm:$0xf]
                %212 = vst [vmem:[%s152 + $0x74] sm:$0xf] %v211
                %v213 = vld [vmem:[%s151 + $0xdc] sm:$0xf]
                %214 = vst [vmem:[%s152 + $0x78] sm:$0xf] %v213
                %v215 = vld [vmem:[%s151 + $0xe0] sm:$0xf]
                %216 = vst [vmem:[%s152 + $0x7c] sm:$0xf] %v215
                %v217 = vld [vmem:[%s151 + $0xe4] sm:$0xf]
                %218 = vst [vmem:[%s152 + $0x80] sm:$0xf] %v217
                %v219 = vld [vmem:[%s151 + $0xe8] sm:$0xf]
                %220 = vst [vmem:[%s152 + $0x84] sm:$0xf] %v219
                %v221 = vld [vmem:[%s151 + $0xec] sm:$0xf]
                %222 = vst [vmem:[%s152 + $0x88] sm:$0xf] %v221
                %v223 = vld [vmem:[%s151 + $0xf0] sm:$0xf]
                %224 = vst [vmem:[%s152 + $0x8c] sm:$0xf] %v223
                %v225 = vld [vmem:[%s151 + $0xf4] sm:$0xf]
                %226 = vst [vmem:[%s152 + $0x90] sm:$0xf] %v225
                %v227 = vld [vmem:[%s151 + $0xf8] sm:$0xf]
                %228 = vst [vmem:[%s152 + $0x94] sm:$0xf] %v227
                %v229 = vld [vmem:[%s151 + $0xfc] sm:$0xf]
                %230 = vst [vmem:[%s152 + $0x98] sm:$0xf] %v229
                %v231 = vld [vmem:[%s151 + $0x100] sm:$0xf]
                %232 = vst [vmem:[%s152 + $0x9c] sm:$0xf] %v231
                %v233 = vld [vmem:[%s151 + $0x104] sm:$0xf]
                %234 = vst [vmem:[%s152 + $0xa0] sm:$0xf] %v233
                %v235 = vld [vmem:[%s151 + $0x108] sm:$0xf]
                %236 = vst [vmem:[%s152 + $0xa4] sm:$0xf] %v235
                %v237 = vld [vmem:[%s151 + $0x10c] sm:$0xf]
                %238 = vst [vmem:[%s152 + $0xa8] sm:$0xf] %v237
                %v239 = vld [vmem:[%s151 + $0x110] sm:$0xf]
                %240 = vst [vmem:[%s152 + $0xac] sm:$0xf] %v239
                %v241 = vld [vmem:[%s151 + $0x114] sm:$0xf]
                %242 = vst [vmem:[%s152 + $0xb0] sm:$0xf] %v241
                %v243 = vld [vmem:[%s151 + $0x118] sm:$0xf]
                %244 = vst [vmem:[%s152 + $0xb4] sm:$0xf] %v243
                %v245 = vld [vmem:[%s151 + $0x11c] sm:$0xf]
                %246 = vst [vmem:[%s152 + $0xb8] sm:$0xf] %v245
                %v247 = vld [vmem:[%s151 + $0x120] sm:$0xf]
                %248 = vst [vmem:[%s152 + $0xbc] sm:$0xf] %v247
                %v249 = vld [vmem:[%s151 + $0x124] sm:$0xf]
                %250 = vst [vmem:[%s152 + $0xc0] sm:$0xf] %v249
                %v251 = vld [vmem:[%s151 + $0x128] sm:$0xf]
                %252 = vst [vmem:[%s152 + $0xc4] sm:$0xf] %v251
                %v253 = vld [vmem:[%s151 + $0x190] sm:$0xf]
                %254 = vst [vmem:[%s152 + $0xc8] sm:$0xf] %v253
                %v255 = vld [vmem:[%s151 + $0x194] sm:$0xf]
                %256 = vst [vmem:[%s152 + $0xcc] sm:$0xf] %v255
                %v257 = vld [vmem:[%s151 + $0x198] sm:$0xf]
                %258 = vst [vmem:[%s152 + $0xd0] sm:$0xf] %v257
                %v259 = vld [vmem:[%s151 + $0x19c] sm:$0xf]
                %260 = vst [vmem:[%s152 + $0xd4] sm:$0xf] %v259
                %v261 = vld [vmem:[%s151 + $0x1a0] sm:$0xf]
                %262 = vst [vmem:[%s152 + $0xd8] sm:$0xf] %v261
                %v263 = vld [vmem:[%s151 + $0x1a4] sm:$0xf]
                %264 = vst [vmem:[%s152 + $0xdc] sm:$0xf] %v263
                %v265 = vld [vmem:[%s151 + $0x1a8] sm:$0xf]
                %266 = vst [vmem:[%s152 + $0xe0] sm:$0xf] %v265
                %v267 = vld [vmem:[%s151 + $0x1ac] sm:$0xf]
                %268 = vst [vmem:[%s152 + $0xe4] sm:$0xf] %v267
                %v269 = vld [vmem:[%s151 + $0x1b0] sm:$0xf]
                %270 = vst [vmem:[%s152 + $0xe8] sm:$0xf] %v269
                %v271 = vld [vmem:[%s151 + $0x1b4] sm:$0xf]
                %272 = vst [vmem:[%s152 + $0xec] sm:$0xf] %v271
                %v273 = vld [vmem:[%s151 + $0x1b8] sm:$0xf]
                %274 = vst [vmem:[%s152 + $0xf0] sm:$0xf] %v273
                %v275 = vld [vmem:[%s151 + $0x1bc] sm:$0xf]
                %276 = vst [vmem:[%s152 + $0xf4] sm:$0xf] %v275
                %v277 = vld [vmem:[%s151 + $0x1c0] sm:$0xf]
                %278 = vst [vmem:[%s152 + $0xf8] sm:$0xf] %v277
                %v279 = vld [vmem:[%s151 + $0x1c4] sm:$0xf]
                %280 = vst [vmem:[%s152 + $0xfc] sm:$0xf] %v279
                %v281 = vld [vmem:[%s151 + $0x1c8] sm:$0xf]
                %282 = vst [vmem:[%s152 + $0x100] sm:$0xf] %v281
                %v283 = vld [vmem:[%s151 + $0x1cc] sm:$0xf]
                %284 = vst [vmem:[%s152 + $0x104] sm:$0xf] %v283
                %v285 = vld [vmem:[%s151 + $0x1d0] sm:$0xf]
                %286 = vst [vmem:[%s152 + $0x108] sm:$0xf] %v285
                %v287 = vld [vmem:[%s151 + $0x1d4] sm:$0xf]
                %288 = vst [vmem:[%s152 + $0x10c] sm:$0xf] %v287
                %v289 = vld [vmem:[%s151 + $0x1d8] sm:$0xf]
                %290 = vst [vmem:[%s152 + $0x110] sm:$0xf] %v289
                %v291 = vld [vmem:[%s151 + $0x1dc] sm:$0xf]
                %292 = vst [vmem:[%s152 + $0x114] sm:$0xf] %v291
                %v293 = vld [vmem:[%s151 + $0x1e0] sm:$0xf]
                %294 = vst [vmem:[%s152 + $0x118] sm:$0xf] %v293
                %v295 = vld [vmem:[%s151 + $0x1e4] sm:$0xf]
                %296 = vst [vmem:[%s152 + $0x11c] sm:$0xf] %v295
                %v297 = vld [vmem:[%s151 + $0x1e8] sm:$0xf]
                %298 = vst [vmem:[%s152 + $0x120] sm:$0xf] %v297
                %v299 = vld [vmem:[%s151 + $0x1ec] sm:$0xf]
                %300 = vst [vmem:[%s152 + $0x124] sm:$0xf] %v299
                %v301 = vld [vmem:[%s151 + $0x1f0] sm:$0xf]
                %302 = vst [vmem:[%s152 + $0x128] sm:$0xf] %v301
                %v303 = vld [vmem:[%s151 + $0x258] sm:$0xf]
                %304 = vst [vmem:[%s152 + $0x12c] sm:$0xf] %v303
                %v305 = vld [vmem:[%s151 + $0x25c] sm:$0xf]
                %306 = vst [vmem:[%s152 + $0x130] sm:$0xf] %v305
                %v307 = vld [vmem:[%s151 + $0x260] sm:$0xf]
                %308 = vst [vmem:[%s152 + $0x134] sm:$0xf] %v307
                %v309 = vld [vmem:[%s151 + $0x264] sm:$0xf]
                %310 = vst [vmem:[%s152 + $0x138] sm:$0xf] %v309
                %v311 = vld [vmem:[%s151 + $0x268] sm:$0xf]
                %312 = vst [vmem:[%s152 + $0x13c] sm:$0xf] %v311
                %v313 = vld [vmem:[%s151 + $0x26c] sm:$0xf]
                %314 = vst [vmem:[%s152 + $0x140] sm:$0xf] %v313
                %v315 = vld [vmem:[%s151 + $0x270] sm:$0xf]
                %316 = vst [vmem:[%s152 + $0x144] sm:$0xf] %v315
                %v317 = vld [vmem:[%s151 + $0x274] sm:$0xf]
                %318 = vst [vmem:[%s152 + $0x148] sm:$0xf] %v317
                %v319 = vld [vmem:[%s151 + $0x278] sm:$0xf]
                %320 = vst [vmem:[%s152 + $0x14c] sm:$0xf] %v319
                %v321 = vld [vmem:[%s151 + $0x27c] sm:$0xf]
                %322 = vst [vmem:[%s152 + $0x150] sm:$0xf] %v321
                %v323 = vld [vmem:[%s151 + $0x280] sm:$0xf]
                %324 = vst [vmem:[%s152 + $0x154] sm:$0xf] %v323
                %v325 = vld [vmem:[%s151 + $0x284] sm:$0xf]
                %326 = vst [vmem:[%s152 + $0x158] sm:$0xf] %v325
                %v327 = vld [vmem:[%s151 + $0x288] sm:$0xf]
                %328 = vst [vmem:[%s152 + $0x15c] sm:$0xf] %v327
                %v329 = vld [vmem:[%s151 + $0x28c] sm:$0xf]
                %330 = vst [vmem:[%s152 + $0x160] sm:$0xf] %v329
                %v331 = vld [vmem:[%s151 + $0x290] sm:$0xf]
                %332 = vst [vmem:[%s152 + $0x164] sm:$0xf] %v331
                %v333 = vld [vmem:[%s151 + $0x294] sm:$0xf]
                %334 = vst [vmem:[%s152 + $0x168] sm:$0xf] %v333
                %v335 = vld [vmem:[%s151 + $0x298] sm:$0xf]
                %336 = vst [vmem:[%s152 + $0x16c] sm:$0xf] %v335
                %v337 = vld [vmem:[%s151 + $0x29c] sm:$0xf]
                %338 = vst [vmem:[%s152 + $0x170] sm:$0xf] %v337
                %v339 = vld [vmem:[%s151 + $0x2a0] sm:$0xf]
                %340 = vst [vmem:[%s152 + $0x174] sm:$0xf] %v339
                %v341 = vld [vmem:[%s151 + $0x2a4] sm:$0xf]
                %342 = vst [vmem:[%s152 + $0x178] sm:$0xf] %v341
                %v343 = vld [vmem:[%s151 + $0x2a8] sm:$0xf]
                %344 = vst [vmem:[%s152 + $0x17c] sm:$0xf] %v343
                %v345 = vld [vmem:[%s151 + $0x2ac] sm:$0xf]
                %346 = vst [vmem:[%s152 + $0x180] sm:$0xf] %v345
                %v347 = vld [vmem:[%s151 + $0x2b0] sm:$0xf]
                %348 = vst [vmem:[%s152 + $0x184] sm:$0xf] %v347
                %v349 = vld [vmem:[%s151 + $0x2b4] sm:$0xf]
                %350 = vst [vmem:[%s152 + $0x188] sm:$0xf] %v349
                %v351 = vld [vmem:[%s151 + $0x2b8] sm:$0xf]
                %352 = vst [vmem:[%s152 + $0x18c] sm:$0xf] %v351
              $region45: #{mlp_forward.3} parent=39 // loop_footer
                %s150 = sadd.s32 1, %s146
              $region46: #{mlp_forward.3} parent=39 // loop_footer_branch
                %145 = sbr.rel target = $region42
              $region47: #{mlp_forward.3} parent=39 // loop_exit
                _
            $region40: #{mlp_forward.3} parent=31 // pred_fallthru
              _
          $region32: #{mlp_forward.3} parent=27 // pred_fallthru
            _
          %572 = vnop
        $region28: #{mlp_forward.3} parent=23 // pred_fallthru
          _
      $region24: #{mlp_forward.3} parent=5 // pred_fallthru
        _
      %p573 = scmp.le.s32.totalorder 1, %s9
      %p574 = scmp.lt.s32.totalorder %s9, 3
      %p575 = pnand %p573, %p574
      %p576 = pneg %p575
      // Predicated region
      $region66: #{mlp_forward.3} parent=5 // pred_check
        _
      $region67: #{mlp_forward.3} parent=5 // pred_check_branch
        %578 = sbr.rel (%p575) target = $region69
      $region68: #{mlp_forward.3} parent=5 // pred_region
        %s579 = ssub.s32 %s9, 1
        %s580 = sand.u32 %s22, 1
        %s581 = sand.u32 %s22, 1
        %s582 = smul.addr %s581, 400
        %s583 = scalar_lea.vmem [#allocation2], %s582
        // Predicated region
        $region70: #{mlp_forward.3} parent=68 // pred_check
          %p584 = pneg %p35
        $region71: #{mlp_forward.3} parent=68 // pred_check_branch
          %586 = sbr.rel (%p584) target = $region73
        $region72: #{mlp_forward.3} parent=68 // pred_region
          _
        $region73: #{mlp_forward.3} parent=68 // pred_fallthru
          _
        %s587 = sand.u32 %s22, 1
        %s588 = sand.u32 %s22, 1
        %s589 = smul.addr %s588, 400
        %s590 = scalar_lea.vmem [#allocation2], %s589
        %p591 = pneg %p35
        %p592 = pneg %p32
        %p593 = pneg %p56
        %p594 = pneg %p53
        %p595 = pneg %p77
        %p596 = pneg %p74
        %p597 = pneg %p103
        %p598 = pneg %p100
        %s599 = smul.u32 25, %s14
        %p600 = scmp.lt.s32.totalorder %s599, 49
        %s601 = scalar_select %p600, %s599, 49
        %s602 = smul.addr %s601, 4
        %s603 = scalar_lea.vmem %s3, %s602
        %s604 = smul.u32 25, %s14
        %s605 = smul.u32 25, %s14
        %p606 = scmp.lt.s32.totalorder %s605, 49
        %s607 = scalar_select %p606, %s605, 49
        %s608 = smul.addr %s607, 4
        %s609 = scalar_lea.vmem %s3, %s608
        %s610 = smul.u32 25, %s14
        %v612 = vld [vmem:[%s1] sm:$0xf]
        %v613 = vld [vmem:[%s1 + $0x4] sm:$0xf]
        %v614 = vld [vmem:[%s1 + $0x8] sm:$0xf]
        %v615 = vld [vmem:[%s1 + $0xc] sm:$0xf]
        %v616 = vld [vmem:[%s1 + $0x10] sm:$0xf]
        %v617 = vld [vmem:[%s1 + $0x14] sm:$0xf]
        %v618 = vld [vmem:[%s1 + $0x18] sm:$0xf]
        %v619 = vld [vmem:[%s1 + $0x1c] sm:$0xf]
        %v620 = vld [vmem:[%s1 + $0x20] sm:$0xf]
        %v621 = vld [vmem:[%s1 + $0x24] sm:$0xf]
        %v622 = vld [vmem:[%s1 + $0x28] sm:$0xf]
        %v623 = vld [vmem:[%s1 + $0x2c] sm:$0xf]
        %v624 = vld [vmem:[%s1 + $0x30] sm:$0xf]
        %v625 = vld [vmem:[%s1 + $0x34] sm:$0xf]
        %v626 = vld [vmem:[%s1 + $0x38] sm:$0xf]
        %v627 = vld [vmem:[%s1 + $0x3c] sm:$0xf]
        %v628 = vld [vmem:[%s2] sm:$0x1]
        %v629 = vld [vmem:[%s583] sm:$0xf]
        %v630 = vld [vmem:[%s583 + $0x4] sm:$0xf]
        %v631 = vld [vmem:[%s583 + $0x8] sm:$0xf]
        %v632 = vld [vmem:[%s583 + $0xc] sm:$0xf]
        %v633 = vld [vmem:[%s583 + $0x10] sm:$0xf]
        %v634 = vld [vmem:[%s583 + $0x14] sm:$0xf]
        %v635 = vld [vmem:[%s583 + $0x18] sm:$0xf]
        %v636 = vld [vmem:[%s583 + $0x1c] sm:$0xf]
        %v637 = vld [vmem:[%s583 + $0x20] sm:$0xf]
        %v638 = vld [vmem:[%s583 + $0x24] sm:$0xf]
        %v639 = vld [vmem:[%s583 + $0x28] sm:$0xf]
        %v640 = vld [vmem:[%s583 + $0x2c] sm:$0xf]
        %v641 = vld [vmem:[%s583 + $0x30] sm:$0xf]
        %v642 = vld [vmem:[%s583 + $0x34] sm:$0xf]
        %v643 = vld [vmem:[%s583 + $0x38] sm:$0xf]
        %v644 = vld [vmem:[%s583 + $0x3c] sm:$0xf]
        %v645 = vld [vmem:[%s583 + $0x40] sm:$0xf]
        %v646 = vld [vmem:[%s583 + $0x44] sm:$0xf]
        %v647 = vld [vmem:[%s583 + $0x48] sm:$0xf]
        %v648 = vld [vmem:[%s583 + $0x4c] sm:$0xf]
        %v649 = vld [vmem:[%s583 + $0x50] sm:$0xf]
        %v650 = vld [vmem:[%s583 + $0x54] sm:$0xf]
        %v651 = vld [vmem:[%s583 + $0x58] sm:$0xf]
        %v652 = vld [vmem:[%s583 + $0x5c] sm:$0xf]
        %v653 = vld [vmem:[%s583 + $0x60] sm:$0xf]
        %v655 = vlaneseq
        %v656 = vshrl.u32 %v655, 7
        %v657 = vsub.s32 0, %v656
        %v658 = vrot.slane %v628, %v657
        %v685 = vunpack.c.l.b16 %v629
        %v686 = vunpack.c.l.b16 %v630
        %v687 = vunpack.c.l.b16 %v631
        %v688 = vunpack.c.l.b16 %v632
        %v689 = vunpack.c.l.b16 %v633
        %v690 = vunpack.c.l.b16 %v634
        %v691 = vunpack.c.l.b16 %v635
        %v692 = vunpack.c.l.b16 %v636
        %v693 = vunpack.c.l.b16 %v637
        %v694 = vunpack.c.l.b16 %v638
        %v695 = vunpack.c.l.b16 %v639
        %v696 = vunpack.c.l.b16 %v640
        %v697 = vunpack.c.l.b16 %v641
        %v698 = vunpack.c.l.b16 %v642
        %v699 = vunpack.c.l.b16 %v643
        %v700 = vunpack.c.l.b16 %v644
        %v701 = vunpack.c.l.b16 %v645
        %v702 = vunpack.c.l.b16 %v646
        %v703 = vunpack.c.l.b16 %v647
        %v704 = vunpack.c.l.b16 %v648
        %v705 = vunpack.c.l.b16 %v649
        %v706 = vunpack.c.l.b16 %v650
        %v707 = vunpack.c.l.b16 %v651
        %v708 = vunpack.c.l.b16 %v652
        %v709 = vunpack.c.l.b16 %v653
        %v710 = vpack.c.b16 %v686, %v685
        %v711 = vpack.c.b16 %v688, %v687
        %v712 = vpack.c.b16 %v690, %v689
        %v713 = vpack.c.b16 %v692, %v691
        %v714 = vpack.c.b16 %v694, %v693
        %v715 = vpack.c.b16 %v696, %v695
        %v716 = vpack.c.b16 %v698, %v697
        %v717 = vpack.c.b16 %v700, %v699
        %v718 = vpack.c.b16 %v702, %v701
        %v719 = vpack.c.b16 %v704, %v703
        %v720 = vpack.c.b16 %v706, %v705
        %v721 = vpack.c.b16 %v708, %v707
        %v722 = vpack.c.b16 %v709, %v709
        %v752 = vunpack.c.l.b16 %v612
        %v753 = vunpack.c.l.b16 %v613
        %v754 = vunpack.c.l.b16 %v614
        %v755 = vunpack.c.l.b16 %v615
        %v756 = vunpack.c.l.b16 %v616
        %v757 = vunpack.c.l.b16 %v617
        %v758 = vunpack.c.l.b16 %v618
        %v759 = vunpack.c.l.b16 %v619
        %v760 = vunpack.c.l.b16 %v620
        %v761 = vunpack.c.l.b16 %v621
        %v762 = vunpack.c.l.b16 %v622
        %v763 = vunpack.c.l.b16 %v623
        %v764 = vunpack.c.l.b16 %v624
        %v765 = vunpack.c.l.b16 %v625
        %v766 = vunpack.c.l.b16 %v626
        %v767 = vunpack.c.l.b16 %v627
        %v768 = vpack.c.b16 %v753, %v752
        %v769 = vpack.c.b16 %v755, %v754
        %v770 = vpack.c.b16 %v757, %v756
        %v771 = vpack.c.b16 %v759, %v758
        %v772 = vpack.c.b16 %v761, %v760
        %v773 = vpack.c.b16 %v763, %v762
        %v774 = vpack.c.b16 %v765, %v764
        %v775 = vpack.c.b16 %v767, %v766
        %784 = vmatprep.subr.bf16.mxu0 0
        %785 = vmatpush1.bf16.msra.mxu0 %v768
        %786 = vmatprep.subr.bf16.mxu0 0
        %787 = vmatpush1.bf16.msra.mxu0 %v769
        %788 = vmatprep.subr.bf16.mxu0 0
        %789 = vmatpush1.bf16.msra.mxu0 %v770
        %790 = vmatprep.subr.bf16.mxu0 0
        %791 = vmatpush1.bf16.msra.mxu0 %v771
        %792 = vmatprep.subr.bf16.mxu0 0
        %793 = vmatpush1.bf16.msra.mxu0 %v772
        %794 = vmatprep.subr.bf16.mxu0 0
        %795 = vmatpush1.bf16.msra.mxu0 %v773
        %796 = vmatprep.subr.bf16.mxu0 0
        %797 = vmatpush1.bf16.msra.mxu0 %v774
        %798 = vmatprep.subr.bf16.mxu0 0
        %799 = vmatpush1.bf16.msra.mxu0 %v775
        %800 = vmatprep.subr.bf16.mxu0 0
        %801 = vmatpush1.bf16.msra.mxu0 0
        %802 = vmatprep.subr.bf16.mxu0 0
        %803 = vmatpush1.bf16.msra.mxu0 0
        %804 = vmatprep.subr.bf16.mxu0 0
        %805 = vmatpush1.bf16.msra.mxu0 0
        %806 = vmatprep.subr.bf16.mxu0 0
        %807 = vmatpush1.bf16.msra.mxu0 0
        %808 = vmatprep.subr.bf16.mxu0 0
        %809 = vmatpush1.bf16.msra.mxu0 0
        %810 = vmatprep.subr.bf16.mxu0 0
        %811 = vmatpush1.bf16.msra.mxu0 0
        %812 = vmatprep.subr.bf16.mxu0 0
        %813 = vmatpush1.bf16.msra.mxu0 0
        %814 = vmatprep.subr.bf16.mxu0 0
        %815 = vmatpush1.bf16.msra.mxu0 0
        %816 = vmatprep.mubr.bf16.mxu0 0
        %817 = vmatmul.mubr.bf16.gmra.mrb[0].mxu0 %v710
        %v818 = vpop.f32.mrb[0].mxu0
        %v819 = vadd.f32 %v658, %v818
        %v820 = vpop.f32.mrb[0].mxu0
        %v821 = vpop.f32.mrb[0].mxu0
        %v822 = vadd.f32 %v658, %v821
        %v823 = vpop.f32.mrb[0].mxu0
        %824 = vmatprep.mubr.bf16.mxu0 0
        %825 = vmatmul.mubr.bf16.gmra.mrb[0].mxu0 %v711
        %v826 = vpop.f32.mrb[0].mxu0
        %v827 = vadd.f32 %v658, %v826
        %v828 = vpop.f32.mrb[0].mxu0
        %v829 = vpop.f32.mrb[0].mxu0
        %v830 = vadd.f32 %v658, %v829
        %v831 = vpop.f32.mrb[0].mxu0
        %832 = vmatprep.mubr.bf16.mxu0 0
        %833 = vmatmul.mubr.bf16.gmra.mrb[0].mxu0 %v712
        %v834 = vpop.f32.mrb[0].mxu0
        %v835 = vadd.f32 %v658, %v834
        %v836 = vpop.f32.mrb[0].mxu0
        %v837 = vpop.f32.mrb[0].mxu0
        %v838 = vadd.f32 %v658, %v837
        %v839 = vpop.f32.mrb[0].mxu0
        %840 = vmatprep.mubr.bf16.mxu0 0
        %841 = vmatmul.mubr.bf16.gmra.mrb[0].mxu0 %v713
        %v842 = vpop.f32.mrb[0].mxu0
        %v843 = vadd.f32 %v658, %v842
        %v844 = vpop.f32.mrb[0].mxu0
        %v845 = vpop.f32.mrb[0].mxu0
        %v846 = vadd.f32 %v658, %v845
        %v847 = vpop.f32.mrb[0].mxu0
        %848 = vmatprep.mubr.bf16.mxu0 0
        %849 = vmatmul.mubr.bf16.gmra.mrb[0].mxu0 %v714
        %v850 = vpop.f32.mrb[0].mxu0
        %v851 = vadd.f32 %v658, %v850
        %v852 = vpop.f32.mrb[0].mxu0
        %v853 = vpop.f32.mrb[0].mxu0
        %v854 = vadd.f32 %v658, %v853
        %v855 = vpop.f32.mrb[0].mxu0
        %856 = vmatprep.mubr.bf16.mxu0 0
        %857 = vmatmul.mubr.bf16.gmra.mrb[0].mxu0 %v715
        %v858 = vpop.f32.mrb[0].mxu0
        %v859 = vadd.f32 %v658, %v858
        %v860 = vpop.f32.mrb[0].mxu0
        %v861 = vpop.f32.mrb[0].mxu0
        %v862 = vadd.f32 %v658, %v861
        %v863 = vpop.f32.mrb[0].mxu0
        %864 = vmatprep.mubr.bf16.mxu0 0
        %865 = vmatmul.mubr.bf16.gmra.mrb[0].mxu0 %v716
        %v866 = vpop.f32.mrb[0].mxu0
        %v867 = vadd.f32 %v658, %v866
        %v868 = vpop.f32.mrb[0].mxu0
        %v869 = vpop.f32.mrb[0].mxu0
        %v870 = vadd.f32 %v658, %v869
        %v871 = vpop.f32.mrb[0].mxu0
        %872 = vmatprep.mubr.bf16.mxu0 0
        %873 = vmatmul.mubr.bf16.gmra.mrb[0].mxu0 %v717
        %v874 = vpop.f32.mrb[0].mxu0
        %v875 = vadd.f32 %v658, %v874
        %v876 = vpop.f32.mrb[0].mxu0
        %v877 = vpop.f32.mrb[0].mxu0
        %v878 = vadd.f32 %v658, %v877
        %v879 = vpop.f32.mrb[0].mxu0
        %880 = vmatprep.mubr.bf16.mxu0 0
        %881 = vmatmul.mubr.bf16.gmra.mrb[0].mxu0 %v718
        %v882 = vpop.f32.mrb[0].mxu0
        %v883 = vadd.f32 %v658, %v882
        %v884 = vpop.f32.mrb[0].mxu0
        %v885 = vpop.f32.mrb[0].mxu0
        %v886 = vadd.f32 %v658, %v885
        %v887 = vpop.f32.mrb[0].mxu0
        %888 = vmatprep.mubr.bf16.mxu0 0
        %889 = vmatmul.mubr.bf16.gmra.mrb[0].mxu0 %v719
        %v890 = vpop.f32.mrb[0].mxu0
        %v891 = vadd.f32 %v658, %v890
        %v892 = vpop.f32.mrb[0].mxu0
        %v893 = vpop.f32.mrb[0].mxu0
        %v894 = vadd.f32 %v658, %v893
        %v895 = vpop.f32.mrb[0].mxu0
        %896 = vmatprep.mubr.bf16.mxu0 0
        %897 = vmatmul.mubr.bf16.gmra.mrb[0].mxu0 %v720
        %v898 = vpop.f32.mrb[0].mxu0
        %v899 = vadd.f32 %v658, %v898
        %v900 = vpop.f32.mrb[0].mxu0
        %v901 = vpop.f32.mrb[0].mxu0
        %v902 = vadd.f32 %v658, %v901
        %v903 = vpop.f32.mrb[0].mxu0
        %904 = vmatprep.mubr.bf16.mxu0 0
        %905 = vmatmul.mubr.bf16.gmra.mrb[0].mxu0 %v721
        %v906 = vpop.f32.mrb[0].mxu0
        %v907 = vadd.f32 %v658, %v906
        %v908 = vpop.f32.mrb[0].mxu0
        %v909 = vpop.f32.mrb[0].mxu0
        %v910 = vadd.f32 %v658, %v909
        %v911 = vpop.f32.mrb[0].mxu0
        %912 = vmatprep.mubr.bf16.mxu0 0
        %913 = vmatmul.mubr.bf16.gmra.mrb[0].mxu0 %v722
        %v914 = vpop.f32.mrb[0].mxu0
        %v915 = vadd.f32 %v658, %v914
        %v916 = vpop.f32.mrb[0].mxu0
        %v917 = vpop.f32.mrb[0].mxu0
        %v918 = vpop.f32.mrb[0].mxu0
        %919 = vdwg.mxu0
        %v920 = vmax.f32 %v819, 0.0
        %v921 = vmax.f32 %v822, 0.0
        %v922 = vmax.f32 %v827, 0.0
        %v923 = vmax.f32 %v830, 0.0
        %v924 = vmax.f32 %v835, 0.0
        %v925 = vmax.f32 %v838, 0.0
        %v926 = vmax.f32 %v843, 0.0
        %v927 = vmax.f32 %v846, 0.0
        %v928 = vmax.f32 %v851, 0.0
        %v929 = vmax.f32 %v854, 0.0
        %v930 = vmax.f32 %v859, 0.0
        %v931 = vmax.f32 %v862, 0.0
        %v932 = vmax.f32 %v867, 0.0
        %v933 = vmax.f32 %v870, 0.0
        %v934 = vmax.f32 %v875, 0.0
        %v935 = vmax.f32 %v878, 0.0
        %v936 = vmax.f32 %v883, 0.0
        %v937 = vmax.f32 %v886, 0.0
        %v938 = vmax.f32 %v891, 0.0
        %v939 = vmax.f32 %v894, 0.0
        %v940 = vmax.f32 %v899, 0.0
        %v941 = vmax.f32 %v902, 0.0
        %v942 = vmax.f32 %v907, 0.0
        %v943 = vmax.f32 %v910, 0.0
        %v944 = vmax.f32 %v915, 0.0
        %s945 = scalar_lea.vmem %s583, 100 [#allocation2]
        %v946 = vld [vmem:[%s945] sm:$0xf]
        %v947 = vld [vmem:[%s945 + $0x4] sm:$0xf]
        %v948 = vld [vmem:[%s945 + $0x8] sm:$0xf]
        %v949 = vld [vmem:[%s945 + $0xc] sm:$0xf]
        %v950 = vld [vmem:[%s945 + $0x10] sm:$0xf]
        %v951 = vld [vmem:[%s945 + $0x14] sm:$0xf]
        %v952 = vld [vmem:[%s945 + $0x18] sm:$0xf]
        %v953 = vld [vmem:[%s945 + $0x1c] sm:$0xf]
        %v954 = vld [vmem:[%s945 + $0x20] sm:$0xf]
        %v955 = vld [vmem:[%s945 + $0x24] sm:$0xf]
        %v956 = vld [vmem:[%s945 + $0x28] sm:$0xf]
        %v957 = vld [vmem:[%s945 + $0x2c] sm:$0xf]
        %v958 = vld [vmem:[%s945 + $0x30] sm:$0xf]
        %v959 = vld [vmem:[%s945 + $0x34] sm:$0xf]
        %v960 = vld [vmem:[%s945 + $0x38] sm:$0xf]
        %v961 = vld [vmem:[%s945 + $0x3c] sm:$0xf]
        %v962 = vld [vmem:[%s945 + $0x40] sm:$0xf]
        %v963 = vld [vmem:[%s945 + $0x44] sm:$0xf]
        %v964 = vld [vmem:[%s945 + $0x48] sm:$0xf]
        %v965 = vld [vmem:[%s945 + $0x4c] sm:$0xf]
        %v966 = vld [vmem:[%s945 + $0x50] sm:$0xf]
        %v967 = vld [vmem:[%s945 + $0x54] sm:$0xf]
        %v968 = vld [vmem:[%s945 + $0x58] sm:$0xf]
        %v969 = vld [vmem:[%s945 + $0x5c] sm:$0xf]
        %v970 = vld [vmem:[%s945 + $0x60] sm:$0xf]
        %v996 = vunpack.c.l.b16 %v946
        %v997 = vunpack.c.l.b16 %v947
        %v998 = vunpack.c.l.b16 %v948
        %v999 = vunpack.c.l.b16 %v949
        %v1000 = vunpack.c.l.b16 %v950
        %v1001 = vunpack.c.l.b16 %v951
        %v1002 = vunpack.c.l.b16 %v952
        %v1003 = vunpack.c.l.b16 %v953
        %v1004 = vunpack.c.l.b16 %v954
        %v1005 = vunpack.c.l.b16 %v955
        %v1006 = vunpack.c.l.b16 %v956
        %v1007 = vunpack.c.l.b16 %v957
        %v1008 = vunpack.c.l.b16 %v958
        %v1009 = vunpack.c.l.b16 %v959
        %v1010 = vunpack.c.l.b16 %v960
        %v1011 = vunpack.c.l.b16 %v961
        %v1012 = vunpack.c.l.b16 %v962
        %v1013 = vunpack.c.l.b16 %v963
        %v1014 = vunpack.c.l.b16 %v964
        %v1015 = vunpack.c.l.b16 %v965
        %v1016 = vunpack.c.l.b16 %v966
        %v1017 = vunpack.c.l.b16 %v967
        %v1018 = vunpack.c.l.b16 %v968
        %v1019 = vunpack.c.l.b16 %v969
        %v1020 = vunpack.c.l.b16 %v970
        %v1021 = vpack.c.b16 %v997, %v996
        %v1022 = vpack.c.b16 %v999, %v998
        %v1023 = vpack.c.b16 %v1001, %v1000
        %v1024 = vpack.c.b16 %v1003, %v1002
        %v1025 = vpack.c.b16 %v1005, %v1004
        %v1026 = vpack.c.b16 %v1007, %v1006
        %v1027 = vpack.c.b16 %v1009, %v1008
        %v1028 = vpack.c.b16 %v1011, %v1010
        %v1029 = vpack.c.b16 %v1013, %v1012
        %v1030 = vpack.c.b16 %v1015, %v1014
        %v1031 = vpack.c.b16 %v1017, %v1016
        %v1032 = vpack.c.b16 %v1019, %v1018
        %v1033 = vpack.c.b16 %v1020, %v1020
        %1047 = vmatprep.subr.bf16.mxu0 0
        %1048 = vmatpush1.bf16.msra.mxu0 %v768
        %1049 = vmatprep.subr.bf16.mxu0 0
        %1050 = vmatpush1.bf16.msra.mxu0 %v769
        %1051 = vmatprep.subr.bf16.mxu0 0
        %1052 = vmatpush1.bf16.msra.mxu0 %v770
        %1053 = vmatprep.subr.bf16.mxu0 0
        %1054 = vmatpush1.bf16.msra.mxu0 %v771
        %1055 = vmatprep.subr.bf16.mxu0 0
        %1056 = vmatpush1.bf16.msra.mxu0 %v772
        %1057 = vmatprep.subr.bf16.mxu0 0
        %1058 = vmatpush1.bf16.msra.mxu0 %v773
        %1059 = vmatprep.subr.bf16.mxu0 0
        %1060 = vmatpush1.bf16.msra.mxu0 %v774
        %1061 = vmatprep.subr.bf16.mxu0 0
        %1062 = vmatpush1.bf16.msra.mxu0 %v775
        %1063 = vmatprep.subr.bf16.mxu0 0
        %1064 = vmatpush1.bf16.msra.mxu0 0
        %1065 = vmatprep.subr.bf16.mxu0 0
        %1066 = vmatpush1.bf16.msra.mxu0 0
        %1067 = vmatprep.subr.bf16.mxu0 0
        %1068 = vmatpush1.bf16.msra.mxu0 0
        %1069 = vmatprep.subr.bf16.mxu0 0
        %1070 = vmatpush1.bf16.msra.mxu0 0
        %1071 = vmatprep.subr.bf16.mxu0 0
        %1072 = vmatpush1.bf16.msra.mxu0 0
        %1073 = vmatprep.subr.bf16.mxu0 0
        %1074 = vmatpush1.bf16.msra.mxu0 0
        %1075 = vmatprep.subr.bf16.mxu0 0
        %1076 = vmatpush1.bf16.msra.mxu0 0
        %1077 = vmatprep.subr.bf16.mxu0 0
        %1078 = vmatpush1.bf16.msra.mxu0 0
        %1079 = vmatprep.mubr.bf16.mxu0 0
        %1080 = vmatmul.mubr.bf16.gmra.mrb[0].mxu0 %v1021
        %v1081 = vpop.f32.mrb[0].mxu0
        %v1082 = vadd.f32 %v658, %v1081
        %v1083 = vpop.f32.mrb[0].mxu0
        %v1084 = vpop.f32.mrb[0].mxu0
        %v1085 = vadd.f32 %v658, %v1084
        %v1086 = vpop.f32.mrb[0].mxu0
        %1087 = vmatprep.mubr.bf16.mxu0 0
        %1088 = vmatmul.mubr.bf16.gmra.mrb[0].mxu0 %v1022
        %v1089 = vpop.f32.mrb[0].mxu0
        %v1090 = vadd.f32 %v658, %v1089
        %v1091 = vpop.f32.mrb[0].mxu0
        %v1092 = vpop.f32.mrb[0].mxu0
        %v1093 = vadd.f32 %v658, %v1092
        %v1094 = vpop.f32.mrb[0].mxu0
        %1095 = vmatprep.mubr.bf16.mxu0 0
        %1096 = vmatmul.mubr.bf16.gmra.mrb[0].mxu0 %v1023
        %v1097 = vpop.f32.mrb[0].mxu0
        %v1098 = vadd.f32 %v658, %v1097
        %v1099 = vpop.f32.mrb[0].mxu0
        %v1100 = vpop.f32.mrb[0].mxu0
        %v1101 = vadd.f32 %v658, %v1100
        %v1102 = vpop.f32.mrb[0].mxu0
        %1103 = vmatprep.mubr.bf16.mxu0 0
        %1104 = vmatmul.mubr.bf16.gmra.mrb[0].mxu0 %v1024
        %v1105 = vpop.f32.mrb[0].mxu0
        %v1106 = vadd.f32 %v658, %v1105
        %v1107 = vpop.f32.mrb[0].mxu0
        %v1108 = vpop.f32.mrb[0].mxu0
        %v1109 = vadd.f32 %v658, %v1108
        %v1110 = vpop.f32.mrb[0].mxu0
        %1111 = vmatprep.mubr.bf16.mxu0 0
        %1112 = vmatmul.mubr.bf16.gmra.mrb[0].mxu0 %v1025
        %v1113 = vpop.f32.mrb[0].mxu0
        %v1114 = vadd.f32 %v658, %v1113
        %v1115 = vpop.f32.mrb[0].mxu0
        %v1116 = vpop.f32.mrb[0].mxu0
        %v1117 = vadd.f32 %v658, %v1116
        %v1118 = vpop.f32.mrb[0].mxu0
        %1119 = vmatprep.mubr.bf16.mxu0 0
        %1120 = vmatmul.mubr.bf16.gmra.mrb[0].mxu0 %v1026
        %v1121 = vpop.f32.mrb[0].mxu0
        %v1122 = vadd.f32 %v658, %v1121
        %v1123 = vpop.f32.mrb[0].mxu0
        %v1124 = vpop.f32.mrb[0].mxu0
        %v1125 = vadd.f32 %v658, %v1124
        %v1126 = vpop.f32.mrb[0].mxu0
        %1127 = vmatprep.mubr.bf16.mxu0 0
        %1128 = vmatmul.mubr.bf16.gmra.mrb[0].mxu0 %v1027
        %v1129 = vpop.f32.mrb[0].mxu0
        %v1130 = vadd.f32 %v658, %v1129
        %v1131 = vpop.f32.mrb[0].mxu0
        %v1132 = vpop.f32.mrb[0].mxu0
        %v1133 = vadd.f32 %v658, %v1132
        %v1134 = vpop.f32.mrb[0].mxu0
        %1135 = vmatprep.mubr.bf16.mxu0 0
        %1136 = vmatmul.mubr.bf16.gmra.mrb[0].mxu0 %v1028
        %v1137 = vpop.f32.mrb[0].mxu0
        %v1138 = vadd.f32 %v658, %v1137
        %v1139 = vpop.f32.mrb[0].mxu0
        %v1140 = vpop.f32.mrb[0].mxu0
        %v1141 = vadd.f32 %v658, %v1140
        %v1142 = vpop.f32.mrb[0].mxu0
        %1143 = vmatprep.mubr.bf16.mxu0 0
        %1144 = vmatmul.mubr.bf16.gmra.mrb[0].mxu0 %v1029
        %v1145 = vpop.f32.mrb[0].mxu0
        %v1146 = vadd.f32 %v658, %v1145
        %v1147 = vpop.f32.mrb[0].mxu0
        %v1148 = vpop.f32.mrb[0].mxu0
        %v1149 = vadd.f32 %v658, %v1148
        %v1150 = vpop.f32.mrb[0].mxu0
        %1151 = vmatprep.mubr.bf16.mxu0 0
        %1152 = vmatmul.mubr.bf16.gmra.mrb[0].mxu0 %v1030
        %v1153 = vpop.f32.mrb[0].mxu0
        %v1154 = vadd.f32 %v658, %v1153
        %v1155 = vpop.f32.mrb[0].mxu0
        %v1156 = vpop.f32.mrb[0].mxu0
        %v1157 = vadd.f32 %v658, %v1156
        %v1158 = vpop.f32.mrb[0].mxu0
        %1159 = vmatprep.mubr.bf16.mxu0 0
        %1160 = vmatmul.mubr.bf16.gmra.mrb[0].mxu0 %v1031
        %v1161 = vpop.f32.mrb[0].mxu0
        %v1162 = vadd.f32 %v658, %v1161
        %v1163 = vpop.f32.mrb[0].mxu0
        %v1164 = vpop.f32.mrb[0].mxu0
        %v1165 = vadd.f32 %v658, %v1164
        %v1166 = vpop.f32.mrb[0].mxu0
        %1167 = vmatprep.mubr.bf16.mxu0 0
        %1168 = vmatmul.mubr.bf16.gmra.mrb[0].mxu0 %v1032
        %v1169 = vpop.f32.mrb[0].mxu0
        %v1170 = vadd.f32 %v658, %v1169
        %v1171 = vpop.f32.mrb[0].mxu0
        %v1172 = vpop.f32.mrb[0].mxu0
        %v1173 = vadd.f32 %v658, %v1172
        %v1174 = vpop.f32.mrb[0].mxu0
        %1175 = vmatprep.mubr.bf16.mxu0 0
        %1176 = vmatmul.mubr.bf16.gmra.mrb[0].mxu0 %v1033
        %v1177 = vpop.f32.mrb[0].mxu0
        %v1178 = vadd.f32 %v658, %v1177
        %v1179 = vpop.f32.mrb[0].mxu0
        %v1180 = vpop.f32.mrb[0].mxu0
        %v1181 = vpop.f32.mrb[0].mxu0
        %1182 = vdwg.mxu0
        %v1183 = vmax.f32 %v1082, 0.0
        %v1184 = vmax.f32 %v1085, 0.0
        %v1185 = vmax.f32 %v1090, 0.0
        %v1186 = vmax.f32 %v1093, 0.0
        %v1187 = vmax.f32 %v1098, 0.0
        %v1188 = vmax.f32 %v1101, 0.0
        %v1189 = vmax.f32 %v1106, 0.0
        %v1190 = vmax.f32 %v1109, 0.0
        %v1191 = vmax.f32 %v1114, 0.0
        %v1192 = vmax.f32 %v1117, 0.0
        %v1193 = vmax.f32 %v1122, 0.0
        %v1194 = vmax.f32 %v1125, 0.0
        %v1195 = vmax.f32 %v1130, 0.0
        %v1196 = vmax.f32 %v1133, 0.0
        %v1197 = vmax.f32 %v1138, 0.0
        %v1198 = vmax.f32 %v1141, 0.0
        %v1199 = vmax.f32 %v1146, 0.0
        %v1200 = vmax.f32 %v1149, 0.0
        %v1201 = vmax.f32 %v1154, 0.0
        %v1202 = vmax.f32 %v1157, 0.0
        %v1203 = vmax.f32 %v1162, 0.0
        %v1204 = vmax.f32 %v1165, 0.0
        %v1205 = vmax.f32 %v1170, 0.0
        %v1206 = vmax.f32 %v1173, 0.0
        %v1207 = vmax.f32 %v1178, 0.0
        %v1208 = vmax.f32 %v920, %v1183
        %v1209 = vmax.f32 %v921, %v1184
        %v1210 = vmax.f32 %v922, %v1185
        %v1211 = vmax.f32 %v923, %v1186
        %v1212 = vmax.f32 %v924, %v1187
        %v1213 = vmax.f32 %v925, %v1188
        %v1214 = vmax.f32 %v926, %v1189
        %v1215 = vmax.f32 %v927, %v1190
        %v1216 = vmax.f32 %v928, %v1191
        %v1217 = vmax.f32 %v929, %v1192
        %v1218 = vmax.f32 %v930, %v1193
        %v1219 = vmax.f32 %v931, %v1194
        %v1220 = vmax.f32 %v932, %v1195
        %v1221 = vmax.f32 %v933, %v1196
        %v1222 = vmax.f32 %v934, %v1197
        %v1223 = vmax.f32 %v935, %v1198
        %v1224 = vmax.f32 %v936, %v1199
        %v1225 = vmax.f32 %v937, %v1200
        %v1226 = vmax.f32 %v938, %v1201
        %v1227 = vmax.f32 %v939, %v1202
        %v1228 = vmax.f32 %v940, %v1203
        %v1229 = vmax.f32 %v941, %v1204
        %v1230 = vmax.f32 %v942, %v1205
        %v1231 = vmax.f32 %v943, %v1206
        %v1232 = vmax.f32 %v944, %v1207
        %s1233 = scalar_lea.vmem %s583, 200 [#allocation2]
        %v1234 = vld [vmem:[%s1233] sm:$0xf]
        %v1235 = vld [vmem:[%s1233 + $0x4] sm:$0xf]
        %v1236 = vld [vmem:[%s1233 + $0x8] sm:$0xf]
        %v1237 = vld [vmem:[%s1233 + $0xc] sm:$0xf]
        %v1238 = vld [vmem:[%s1233 + $0x10] sm:$0xf]
        %v1239 = vld [vmem:[%s1233 + $0x14] sm:$0xf]
        %v1240 = vld [vmem:[%s1233 + $0x18] sm:$0xf]
        %v1241 = vld [vmem:[%s1233 + $0x1c] sm:$0xf]
        %v1242 = vld [vmem:[%s1233 + $0x20] sm:$0xf]
        %v1243 = vld [vmem:[%s1233 + $0x24] sm:$0xf]
        %v1244 = vld [vmem:[%s1233 + $0x28] sm:$0xf]
        %v1245 = vld [vmem:[%s1233 + $0x2c] sm:$0xf]
        %v1246 = vld [vmem:[%s1233 + $0x30] sm:$0xf]
        %v1247 = vld [vmem:[%s1233 + $0x34] sm:$0xf]
        %v1248 = vld [vmem:[%s1233 + $0x38] sm:$0xf]
        %v1249 = vld [vmem:[%s1233 + $0x3c] sm:$0xf]
        %v1250 = vld [vmem:[%s1233 + $0x40] sm:$0xf]
        %v1251 = vld [vmem:[%s1233 + $0x44] sm:$0xf]
        %v1252 = vld [vmem:[%s1233 + $0x48] sm:$0xf]
        %v1253 = vld [vmem:[%s1233 + $0x4c] sm:$0xf]
        %v1254 = vld [vmem:[%s1233 + $0x50] sm:$0xf]
        %v1255 = vld [vmem:[%s1233 + $0x54] sm:$0xf]
        %v1256 = vld [vmem:[%s1233 + $0x58] sm:$0xf]
        %v1257 = vld [vmem:[%s1233 + $0x5c] sm:$0xf]
        %v1258 = vld [vmem:[%s1233 + $0x60] sm:$0xf]
        %v1284 = vunpack.c.l.b16 %v1234
        %v1285 = vunpack.c.l.b16 %v1235
        %v1286 = vunpack.c.l.b16 %v1236
        %v1287 = vunpack.c.l.b16 %v1237
        %v1288 = vunpack.c.l.b16 %v1238
        %v1289 = vunpack.c.l.b16 %v1239
        %v1290 = vunpack.c.l.b16 %v1240
        %v1291 = vunpack.c.l.b16 %v1241
        %v1292 = vunpack.c.l.b16 %v1242
        %v1293 = vunpack.c.l.b16 %v1243
        %v1294 = vunpack.c.l.b16 %v1244
        %v1295 = vunpack.c.l.b16 %v1245
        %v1296 = vunpack.c.l.b16 %v1246
        %v1297 = vunpack.c.l.b16 %v1247
        %v1298 = vunpack.c.l.b16 %v1248
        %v1299 = vunpack.c.l.b16 %v1249
        %v1300 = vunpack.c.l.b16 %v1250
        %v1301 = vunpack.c.l.b16 %v1251
        %v1302 = vunpack.c.l.b16 %v1252
        %v1303 = vunpack.c.l.b16 %v1253
        %v1304 = vunpack.c.l.b16 %v1254
        %v1305 = vunpack.c.l.b16 %v1255
        %v1306 = vunpack.c.l.b16 %v1256
        %v1307 = vunpack.c.l.b16 %v1257
        %v1308 = vunpack.c.l.b16 %v1258
        %v1309 = vpack.c.b16 %v1285, %v1284
        %v1310 = vpack.c.b16 %v1287, %v1286
        %v1311 = vpack.c.b16 %v1289, %v1288
        %v1312 = vpack.c.b16 %v1291, %v1290
        %v1313 = vpack.c.b16 %v1293, %v1292
        %v1314 = vpack.c.b16 %v1295, %v1294
        %v1315 = vpack.c.b16 %v1297, %v1296
        %v1316 = vpack.c.b16 %v1299, %v1298
        %v1317 = vpack.c.b16 %v1301, %v1300
        %v1318 = vpack.c.b16 %v1303, %v1302
        %v1319 = vpack.c.b16 %v1305, %v1304
        %v1320 = vpack.c.b16 %v1307, %v1306
        %v1321 = vpack.c.b16 %v1308, %v1308
        %1335 = vmatprep.subr.bf16.mxu0 0
        %1336 = vmatpush1.bf16.msra.mxu0 %v768
        %1337 = vmatprep.subr.bf16.mxu0 0
        %1338 = vmatpush1.bf16.msra.mxu0 %v769
        %1339 = vmatprep.subr.bf16.mxu0 0
        %1340 = vmatpush1.bf16.msra.mxu0 %v770
        %1341 = vmatprep.subr.bf16.mxu0 0
        %1342 = vmatpush1.bf16.msra.mxu0 %v771
        %1343 = vmatprep.subr.bf16.mxu0 0
        %1344 = vmatpush1.bf16.msra.mxu0 %v772
        %1345 = vmatprep.subr.bf16.mxu0 0
        %1346 = vmatpush1.bf16.msra.mxu0 %v773
        %1347 = vmatprep.subr.bf16.mxu0 0
        %1348 = vmatpush1.bf16.msra.mxu0 %v774
        %1349 = vmatprep.subr.bf16.mxu0 0
        %1350 = vmatpush1.bf16.msra.mxu0 %v775
        %1351 = vmatprep.subr.bf16.mxu0 0
        %1352 = vmatpush1.bf16.msra.mxu0 0
        %1353 = vmatprep.subr.bf16.mxu0 0
        %1354 = vmatpush1.bf16.msra.mxu0 0
        %1355 = vmatprep.subr.bf16.mxu0 0
        %1356 = vmatpush1.bf16.msra.mxu0 0
        %1357 = vmatprep.subr.bf16.mxu0 0
        %1358 = vmatpush1.bf16.msra.mxu0 0
        %1359 = vmatprep.subr.bf16.mxu0 0
        %1360 = vmatpush1.bf16.msra.mxu0 0
        %1361 = vmatprep.subr.bf16.mxu0 0
        %1362 = vmatpush1.bf16.msra.mxu0 0
        %1363 = vmatprep.subr.bf16.mxu0 0
        %1364 = vmatpush1.bf16.msra.mxu0 0
        %1365 = vmatprep.subr.bf16.mxu0 0
        %1366 = vmatpush1.bf16.msra.mxu0 0
        %1367 = vmatprep.mubr.bf16.mxu0 0
        %1368 = vmatmul.mubr.bf16.gmra.mrb[0].mxu0 %v1309
        %v1369 = vpop.f32.mrb[0].mxu0
        %v1370 = vadd.f32 %v658, %v1369
        %v1371 = vpop.f32.mrb[0].mxu0
        %v1372 = vpop.f32.mrb[0].mxu0
        %v1373 = vadd.f32 %v658, %v1372
        %v1374 = vpop.f32.mrb[0].mxu0
        %1375 = vmatprep.mubr.bf16.mxu0 0
        %1376 = vmatmul.mubr.bf16.gmra.mrb[0].mxu0 %v1310
        %v1377 = vpop.f32.mrb[0].mxu0
        %v1378 = vadd.f32 %v658, %v1377
        %v1379 = vpop.f32.mrb[0].mxu0
        %v1380 = vpop.f32.mrb[0].mxu0
        %v1381 = vadd.f32 %v658, %v1380
        %v1382 = vpop.f32.mrb[0].mxu0
        %1383 = vmatprep.mubr.bf16.mxu0 0
        %1384 = vmatmul.mubr.bf16.gmra.mrb[0].mxu0 %v1311
        %v1385 = vpop.f32.mrb[0].mxu0
        %v1386 = vadd.f32 %v658, %v1385
        %v1387 = vpop.f32.mrb[0].mxu0
        %v1388 = vpop.f32.mrb[0].mxu0
        %v1389 = vadd.f32 %v658, %v1388
        %v1390 = vpop.f32.mrb[0].mxu0
        %1391 = vmatprep.mubr.bf16.mxu0 0
        %1392 = vmatmul.mubr.bf16.gmra.mrb[0].mxu0 %v1312
        %v1393 = vpop.f32.mrb[0].mxu0
        %v1394 = vadd.f32 %v658, %v1393
        %v1395 = vpop.f32.mrb[0].mxu0
        %v1396 = vpop.f32.mrb[0].mxu0
        %v1397 = vadd.f32 %v658, %v1396
        %v1398 = vpop.f32.mrb[0].mxu0
        %1399 = vmatprep.mubr.bf16.mxu0 0
        %1400 = vmatmul.mubr.bf16.gmra.mrb[0].mxu0 %v1313
        %v1401 = vpop.f32.mrb[0].mxu0
        %v1402 = vadd.f32 %v658, %v1401
        %v1403 = vpop.f32.mrb[0].mxu0
        %v1404 = vpop.f32.mrb[0].mxu0
        %v1405 = vadd.f32 %v658, %v1404
        %v1406 = vpop.f32.mrb[0].mxu0
        %1407 = vmatprep.mubr.bf16.mxu0 0
        %1408 = vmatmul.mubr.bf16.gmra.mrb[0].mxu0 %v1314
        %v1409 = vpop.f32.mrb[0].mxu0
        %v1410 = vadd.f32 %v658, %v1409
        %v1411 = vpop.f32.mrb[0].mxu0
        %v1412 = vpop.f32.mrb[0].mxu0
        %v1413 = vadd.f32 %v658, %v1412
        %v1414 = vpop.f32.mrb[0].mxu0
        %1415 = vmatprep.mubr.bf16.mxu0 0
        %1416 = vmatmul.mubr.bf16.gmra.mrb[0].mxu0 %v1315
        %v1417 = vpop.f32.mrb[0].mxu0
        %v1418 = vadd.f32 %v658, %v1417
        %v1419 = vpop.f32.mrb[0].mxu0
        %v1420 = vpop.f32.mrb[0].mxu0
        %v1421 = vadd.f32 %v658, %v1420
        %v1422 = vpop.f32.mrb[0].mxu0
        %1423 = vmatprep.mubr.bf16.mxu0 0
        %1424 = vmatmul.mubr.bf16.gmra.mrb[0].mxu0 %v1316
        %v1425 = vpop.f32.mrb[0].mxu0
        %v1426 = vadd.f32 %v658, %v1425
        %v1427 = vpop.f32.mrb[0].mxu0
        %v1428 = vpop.f32.mrb[0].mxu0
        %v1429 = vadd.f32 %v658, %v1428
        %v1430 = vpop.f32.mrb[0].mxu0
        %1431 = vmatprep.mubr.bf16.mxu0 0
        %1432 = vmatmul.mubr.bf16.gmra.mrb[0].mxu0 %v1317
        %v1433 = vpop.f32.mrb[0].mxu0
        %v1434 = vadd.f32 %v658, %v1433
        %v1435 = vpop.f32.mrb[0].mxu0
        %v1436 = vpop.f32.mrb[0].mxu0
        %v1437 = vadd.f32 %v658, %v1436
        %v1438 = vpop.f32.mrb[0].mxu0
        %1439 = vmatprep.mubr.bf16.mxu0 0
        %1440 = vmatmul.mubr.bf16.gmra.mrb[0].mxu0 %v1318
        %v1441 = vpop.f32.mrb[0].mxu0
        %v1442 = vadd.f32 %v658, %v1441
        %v1443 = vpop.f32.mrb[0].mxu0
        %v1444 = vpop.f32.mrb[0].mxu0
        %v1445 = vadd.f32 %v658, %v1444
        %v1446 = vpop.f32.mrb[0].mxu0
        %1447 = vmatprep.mubr.bf16.mxu0 0
        %1448 = vmatmul.mubr.bf16.gmra.mrb[0].mxu0 %v1319
        %v1449 = vpop.f32.mrb[0].mxu0
        %v1450 = vadd.f32 %v658, %v1449
        %v1451 = vpop.f32.mrb[0].mxu0
        %v1452 = vpop.f32.mrb[0].mxu0
        %v1453 = vadd.f32 %v658, %v1452
        %v1454 = vpop.f32.mrb[0].mxu0
        %1455 = vmatprep.mubr.bf16.mxu0 0
        %1456 = vmatmul.mubr.bf16.gmra.mrb[0].mxu0 %v1320
        %v1457 = vpop.f32.mrb[0].mxu0
        %v1458 = vadd.f32 %v658, %v1457
        %v1459 = vpop.f32.mrb[0].mxu0
        %v1460 = vpop.f32.mrb[0].mxu0
        %v1461 = vadd.f32 %v658, %v1460
        %v1462 = vpop.f32.mrb[0].mxu0
        %1463 = vmatprep.mubr.bf16.mxu0 0
        %1464 = vmatmul.mubr.bf16.gmra.mrb[0].mxu0 %v1321
        %v1465 = vpop.f32.mrb[0].mxu0
        %v1466 = vadd.f32 %v658, %v1465
        %v1467 = vpop.f32.mrb[0].mxu0
        %v1468 = vpop.f32.mrb[0].mxu0
        %v1469 = vpop.f32.mrb[0].mxu0
        %1470 = vdwg.mxu0
        %v1471 = vmax.f32 %v1370, 0.0
        %v1472 = vmax.f32 %v1373, 0.0
        %v1473 = vmax.f32 %v1378, 0.0
        %v1474 = vmax.f32 %v1381, 0.0
        %v1475 = vmax.f32 %v1386, 0.0
        %v1476 = vmax.f32 %v1389, 0.0
        %v1477 = vmax.f32 %v1394, 0.0
        %v1478 = vmax.f32 %v1397, 0.0
        %v1479 = vmax.f32 %v1402, 0.0
        %v1480 = vmax.f32 %v1405, 0.0
        %v1481 = vmax.f32 %v1410, 0.0
        %v1482 = vmax.f32 %v1413, 0.0
        %v1483 = vmax.f32 %v1418, 0.0
        %v1484 = vmax.f32 %v1421, 0.0
        %v1485 = vmax.f32 %v1426, 0.0
        %v1486 = vmax.f32 %v1429, 0.0
        %v1487 = vmax.f32 %v1434, 0.0
        %v1488 = vmax.f32 %v1437, 0.0
        %v1489 = vmax.f32 %v1442, 0.0
        %v1490 = vmax.f32 %v1445, 0.0
        %v1491 = vmax.f32 %v1450, 0.0
        %v1492 = vmax.f32 %v1453, 0.0
        %v1493 = vmax.f32 %v1458, 0.0
        %v1494 = vmax.f32 %v1461, 0.0
        %v1495 = vmax.f32 %v1466, 0.0
        %v1496 = vmax.f32 %v1208, %v1471
        %v1497 = vmax.f32 %v1209, %v1472
        %v1498 = vmax.f32 %v1210, %v1473
        %v1499 = vmax.f32 %v1211, %v1474
        %v1500 = vmax.f32 %v1212, %v1475
        %v1501 = vmax.f32 %v1213, %v1476
        %v1502 = vmax.f32 %v1214, %v1477
        %v1503 = vmax.f32 %v1215, %v1478
        %v1504 = vmax.f32 %v1216, %v1479
        %v1505 = vmax.f32 %v1217, %v1480
        %v1506 = vmax.f32 %v1218, %v1481
        %v1507 = vmax.f32 %v1219, %v1482
        %v1508 = vmax.f32 %v1220, %v1483
        %v1509 = vmax.f32 %v1221, %v1484
        %v1510 = vmax.f32 %v1222, %v1485
        %v1511 = vmax.f32 %v1223, %v1486
        %v1512 = vmax.f32 %v1224, %v1487
        %v1513 = vmax.f32 %v1225, %v1488
        %v1514 = vmax.f32 %v1226, %v1489
        %v1515 = vmax.f32 %v1227, %v1490
        %v1516 = vmax.f32 %v1228, %v1491
        %v1517 = vmax.f32 %v1229, %v1492
        %v1518 = vmax.f32 %v1230, %v1493
        %v1519 = vmax.f32 %v1231, %v1494
        %v1520 = vmax.f32 %v1232, %v1495
        %s1521 = scalar_lea.vmem %s583, 300 [#allocation2]
        %v1522 = vld [vmem:[%s1521] sm:$0xf]
        %v1523 = vld [vmem:[%s1521 + $0x4] sm:$0xf]
        %v1524 = vld [vmem:[%s1521 + $0x8] sm:$0xf]
        %v1525 = vld [vmem:[%s1521 + $0xc] sm:$0xf]
        %v1526 = vld [vmem:[%s1521 + $0x10] sm:$0xf]
        %v1527 = vld [vmem:[%s1521 + $0x14] sm:$0xf]
        %v1528 = vld [vmem:[%s1521 + $0x18] sm:$0xf]
        %v1529 = vld [vmem:[%s1521 + $0x1c] sm:$0xf]
        %v1530 = vld [vmem:[%s1521 + $0x20] sm:$0xf]
        %v1531 = vld [vmem:[%s1521 + $0x24] sm:$0xf]
        %v1532 = vld [vmem:[%s1521 + $0x28] sm:$0xf]
        %v1533 = vld [vmem:[%s1521 + $0x2c] sm:$0xf]
        %v1534 = vld [vmem:[%s1521 + $0x30] sm:$0xf]
        %v1535 = vld [vmem:[%s1521 + $0x34] sm:$0xf]
        %v1536 = vld [vmem:[%s1521 + $0x38] sm:$0xf]
        %v1537 = vld [vmem:[%s1521 + $0x3c] sm:$0xf]
        %v1538 = vld [vmem:[%s1521 + $0x40] sm:$0xf]
        %v1539 = vld [vmem:[%s1521 + $0x44] sm:$0xf]
        %v1540 = vld [vmem:[%s1521 + $0x48] sm:$0xf]
        %v1541 = vld [vmem:[%s1521 + $0x4c] sm:$0xf]
        %v1542 = vld [vmem:[%s1521 + $0x50] sm:$0xf]
        %v1543 = vld [vmem:[%s1521 + $0x54] sm:$0xf]
        %v1544 = vld [vmem:[%s1521 + $0x58] sm:$0xf]
        %v1545 = vld [vmem:[%s1521 + $0x5c] sm:$0xf]
        %v1546 = vld [vmem:[%s1521 + $0x60] sm:$0xf]
        %v1572 = vunpack.c.l.b16 %v1522
        %v1573 = vunpack.c.l.b16 %v1523
        %v1574 = vunpack.c.l.b16 %v1524
        %v1575 = vunpack.c.l.b16 %v1525
        %v1576 = vunpack.c.l.b16 %v1526
        %v1577 = vunpack.c.l.b16 %v1527
        %v1578 = vunpack.c.l.b16 %v1528
        %v1579 = vunpack.c.l.b16 %v1529
        %v1580 = vunpack.c.l.b16 %v1530
        %v1581 = vunpack.c.l.b16 %v1531
        %v1582 = vunpack.c.l.b16 %v1532
        %v1583 = vunpack.c.l.b16 %v1533
        %v1584 = vunpack.c.l.b16 %v1534
        %v1585 = vunpack.c.l.b16 %v1535
        %v1586 = vunpack.c.l.b16 %v1536
        %v1587 = vunpack.c.l.b16 %v1537
        %v1588 = vunpack.c.l.b16 %v1538
        %v1589 = vunpack.c.l.b16 %v1539
        %v1590 = vunpack.c.l.b16 %v1540
        %v1591 = vunpack.c.l.b16 %v1541
        %v1592 = vunpack.c.l.b16 %v1542
        %v1593 = vunpack.c.l.b16 %v1543
        %v1594 = vunpack.c.l.b16 %v1544
        %v1595 = vunpack.c.l.b16 %v1545
        %v1596 = vunpack.c.l.b16 %v1546
        %v1597 = vpack.c.b16 %v1573, %v1572
        %v1598 = vpack.c.b16 %v1575, %v1574
        %v1599 = vpack.c.b16 %v1577, %v1576
        %v1600 = vpack.c.b16 %v1579, %v1578
        %v1601 = vpack.c.b16 %v1581, %v1580
        %v1602 = vpack.c.b16 %v1583, %v1582
        %v1603 = vpack.c.b16 %v1585, %v1584
        %v1604 = vpack.c.b16 %v1587, %v1586
        %v1605 = vpack.c.b16 %v1589, %v1588
        %v1606 = vpack.c.b16 %v1591, %v1590
        %v1607 = vpack.c.b16 %v1593, %v1592
        %v1608 = vpack.c.b16 %v1595, %v1594
        %v1609 = vpack.c.b16 %v1596, %v1596
        %1623 = vmatprep.subr.bf16.mxu0 0
        %1624 = vmatpush1.bf16.msra.mxu0 %v768
        %1625 = vmatprep.subr.bf16.mxu0 0
        %1626 = vmatpush1.bf16.msra.mxu0 %v769
        %1627 = vmatprep.subr.bf16.mxu0 0
        %1628 = vmatpush1.bf16.msra.mxu0 %v770
        %1629 = vmatprep.subr.bf16.mxu0 0
        %1630 = vmatpush1.bf16.msra.mxu0 %v771
        %1631 = vmatprep.subr.bf16.mxu0 0
        %1632 = vmatpush1.bf16.msra.mxu0 %v772
        %1633 = vmatprep.subr.bf16.mxu0 0
        %1634 = vmatpush1.bf16.msra.mxu0 %v773
        %1635 = vmatprep.subr.bf16.mxu0 0
        %1636 = vmatpush1.bf16.msra.mxu0 %v774
        %1637 = vmatprep.subr.bf16.mxu0 0
        %1638 = vmatpush1.bf16.msra.mxu0 %v775
        %1639 = vmatprep.subr.bf16.mxu0 0
        %1640 = vmatpush1.bf16.msra.mxu0 0
        %1641 = vmatprep.subr.bf16.mxu0 0
        %1642 = vmatpush1.bf16.msra.mxu0 0
        %1643 = vmatprep.subr.bf16.mxu0 0
        %1644 = vmatpush1.bf16.msra.mxu0 0
        %1645 = vmatprep.subr.bf16.mxu0 0
        %1646 = vmatpush1.bf16.msra.mxu0 0
        %1647 = vmatprep.subr.bf16.mxu0 0
        %1648 = vmatpush1.bf16.msra.mxu0 0
        %1649 = vmatprep.subr.bf16.mxu0 0
        %1650 = vmatpush1.bf16.msra.mxu0 0
        %1651 = vmatprep.subr.bf16.mxu0 0
        %1652 = vmatpush1.bf16.msra.mxu0 0
        %1653 = vmatprep.subr.bf16.mxu0 0
        %1654 = vmatpush1.bf16.msra.mxu0 0
        %1655 = vmatprep.mubr.bf16.mxu0 0
        %1656 = vmatmul.mubr.bf16.gmra.mrb[0].mxu0 %v1597
        %v1657 = vpop.f32.mrb[0].mxu0
        %v1658 = vadd.f32 %v658, %v1657
        %v1659 = vpop.f32.mrb[0].mxu0
        %v1660 = vpop.f32.mrb[0].mxu0
        %v1661 = vadd.f32 %v658, %v1660
        %v1662 = vpop.f32.mrb[0].mxu0
        %1663 = vmatprep.mubr.bf16.mxu0 0
        %1664 = vmatmul.mubr.bf16.gmra.mrb[0].mxu0 %v1598
        %v1665 = vpop.f32.mrb[0].mxu0
        %v1666 = vadd.f32 %v658, %v1665
        %v1667 = vpop.f32.mrb[0].mxu0
        %v1668 = vpop.f32.mrb[0].mxu0
        %v1669 = vadd.f32 %v658, %v1668
        %v1670 = vpop.f32.mrb[0].mxu0
        %1671 = vmatprep.mubr.bf16.mxu0 0
        %1672 = vmatmul.mubr.bf16.gmra.mrb[0].mxu0 %v1599
        %v1673 = vpop.f32.mrb[0].mxu0
        %v1674 = vadd.f32 %v658, %v1673
        %v1675 = vpop.f32.mrb[0].mxu0
        %v1676 = vpop.f32.mrb[0].mxu0
        %v1677 = vadd.f32 %v658, %v1676
        %v1678 = vpop.f32.mrb[0].mxu0
        %1679 = vmatprep.mubr.bf16.mxu0 0
        %1680 = vmatmul.mubr.bf16.gmra.mrb[0].mxu0 %v1600
        %v1681 = vpop.f32.mrb[0].mxu0
        %v1682 = vadd.f32 %v658, %v1681
        %v1683 = vpop.f32.mrb[0].mxu0
        %v1684 = vpop.f32.mrb[0].mxu0
        %v1685 = vadd.f32 %v658, %v1684
        %v1686 = vpop.f32.mrb[0].mxu0
        %1687 = vmatprep.mubr.bf16.mxu0 0
        %1688 = vmatmul.mubr.bf16.gmra.mrb[0].mxu0 %v1601
        %v1689 = vpop.f32.mrb[0].mxu0
        %v1690 = vadd.f32 %v658, %v1689
        %v1691 = vpop.f32.mrb[0].mxu0
        %v1692 = vpop.f32.mrb[0].mxu0
        %v1693 = vadd.f32 %v658, %v1692
        %v1694 = vpop.f32.mrb[0].mxu0
        %1695 = vmatprep.mubr.bf16.mxu0 0
        %1696 = vmatmul.mubr.bf16.gmra.mrb[0].mxu0 %v1602
        %v1697 = vpop.f32.mrb[0].mxu0
        %v1698 = vadd.f32 %v658, %v1697
        %v1699 = vpop.f32.mrb[0].mxu0
        %v1700 = vpop.f32.mrb[0].mxu0
        %v1701 = vadd.f32 %v658, %v1700
        %v1702 = vpop.f32.mrb[0].mxu0
        %1703 = vmatprep.mubr.bf16.mxu0 0
        %1704 = vmatmul.mubr.bf16.gmra.mrb[0].mxu0 %v1603
        %v1705 = vpop.f32.mrb[0].mxu0
        %v1706 = vadd.f32 %v658, %v1705
        %v1707 = vpop.f32.mrb[0].mxu0
        %v1708 = vpop.f32.mrb[0].mxu0
        %v1709 = vadd.f32 %v658, %v1708
        %v1710 = vpop.f32.mrb[0].mxu0
        %1711 = vmatprep.mubr.bf16.mxu0 0
        %1712 = vmatmul.mubr.bf16.gmra.mrb[0].mxu0 %v1604
        %v1713 = vpop.f32.mrb[0].mxu0
        %v1714 = vadd.f32 %v658, %v1713
        %v1715 = vpop.f32.mrb[0].mxu0
        %v1716 = vpop.f32.mrb[0].mxu0
        %v1717 = vadd.f32 %v658, %v1716
        %v1718 = vpop.f32.mrb[0].mxu0
        %1719 = vmatprep.mubr.bf16.mxu0 0
        %1720 = vmatmul.mubr.bf16.gmra.mrb[0].mxu0 %v1605
        %v1721 = vpop.f32.mrb[0].mxu0
        %v1722 = vadd.f32 %v658, %v1721
        %v1723 = vpop.f32.mrb[0].mxu0
        %v1724 = vpop.f32.mrb[0].mxu0
        %v1725 = vadd.f32 %v658, %v1724
        %v1726 = vpop.f32.mrb[0].mxu0
        %1727 = vmatprep.mubr.bf16.mxu0 0
        %1728 = vmatmul.mubr.bf16.gmra.mrb[0].mxu0 %v1606
        %v1729 = vpop.f32.mrb[0].mxu0
        %v1730 = vadd.f32 %v658, %v1729
        %v1731 = vpop.f32.mrb[0].mxu0
        %v1732 = vpop.f32.mrb[0].mxu0
        %v1733 = vadd.f32 %v658, %v1732
        %v1734 = vpop.f32.mrb[0].mxu0
        %1735 = vmatprep.mubr.bf16.mxu0 0
        %1736 = vmatmul.mubr.bf16.gmra.mrb[0].mxu0 %v1607
        %v1737 = vpop.f32.mrb[0].mxu0
        %v1738 = vadd.f32 %v658, %v1737
        %v1739 = vpop.f32.mrb[0].mxu0
        %v1740 = vpop.f32.mrb[0].mxu0
        %v1741 = vadd.f32 %v658, %v1740
        %v1742 = vpop.f32.mrb[0].mxu0
        %1743 = vmatprep.mubr.bf16.mxu0 0
        %1744 = vmatmul.mubr.bf16.gmra.mrb[0].mxu0 %v1608
        %v1745 = vpop.f32.mrb[0].mxu0
        %v1746 = vadd.f32 %v658, %v1745
        %v1747 = vpop.f32.mrb[0].mxu0
        %v1748 = vpop.f32.mrb[0].mxu0
        %v1749 = vadd.f32 %v658, %v1748
        %v1750 = vpop.f32.mrb[0].mxu0
        %1751 = vmatprep.mubr.bf16.mxu0 0
        %1752 = vmatmul.mubr.bf16.gmra.mrb[0].mxu0 %v1609
        %v1753 = vpop.f32.mrb[0].mxu0
        %v1754 = vadd.f32 %v658, %v1753
        %v1755 = vpop.f32.mrb[0].mxu0
        %v1756 = vpop.f32.mrb[0].mxu0
        %v1757 = vpop.f32.mrb[0].mxu0
        %1758 = vdwg.mxu0
        %v1759 = vmax.f32 %v1658, 0.0
        %v1760 = vmax.f32 %v1661, 0.0
        %v1761 = vmax.f32 %v1666, 0.0
        %v1762 = vmax.f32 %v1669, 0.0
        %v1763 = vmax.f32 %v1674, 0.0
        %v1764 = vmax.f32 %v1677, 0.0
        %v1765 = vmax.f32 %v1682, 0.0
        %v1766 = vmax.f32 %v1685, 0.0
        %v1767 = vmax.f32 %v1690, 0.0
        %v1768 = vmax.f32 %v1693, 0.0
        %v1769 = vmax.f32 %v1698, 0.0
        %v1770 = vmax.f32 %v1701, 0.0
        %v1771 = vmax.f32 %v1706, 0.0
        %v1772 = vmax.f32 %v1709, 0.0
        %v1773 = vmax.f32 %v1714, 0.0
        %v1774 = vmax.f32 %v1717, 0.0
        %v1775 = vmax.f32 %v1722, 0.0
        %v1776 = vmax.f32 %v1725, 0.0
        %v1777 = vmax.f32 %v1730, 0.0
        %v1778 = vmax.f32 %v1733, 0.0
        %v1779 = vmax.f32 %v1738, 0.0
        %v1780 = vmax.f32 %v1741, 0.0
        %v1781 = vmax.f32 %v1746, 0.0
        %v1782 = vmax.f32 %v1749, 0.0
        %v1783 = vmax.f32 %v1754, 0.0
        %v1784 = vmax.f32 %v1496, %v1759
        %v1785 = vmax.f32 %v1497, %v1760
        %v1786 = vmax.f32 %v1498, %v1761
        %v1787 = vmax.f32 %v1499, %v1762
        %v1788 = vmax.f32 %v1500, %v1763
        %v1789 = vmax.f32 %v1501, %v1764
        %v1790 = vmax.f32 %v1502, %v1765
        %v1791 = vmax.f32 %v1503, %v1766
        %v1792 = vmax.f32 %v1504, %v1767
        %v1793 = vmax.f32 %v1505, %v1768
        %v1794 = vmax.f32 %v1506, %v1769
        %v1795 = vmax.f32 %v1507, %v1770
        %v1796 = vmax.f32 %v1508, %v1771
        %v1797 = vmax.f32 %v1509, %v1772
        %v1798 = vmax.f32 %v1510, %v1773
        %v1799 = vmax.f32 %v1511, %v1774
        %v1800 = vmax.f32 %v1512, %v1775
        %v1801 = vmax.f32 %v1513, %v1776
        %v1802 = vmax.f32 %v1514, %v1777
        %v1803 = vmax.f32 %v1515, %v1778
        %v1804 = vmax.f32 %v1516, %v1779
        %v1805 = vmax.f32 %v1517, %v1780
        %v1806 = vmax.f32 %v1518, %v1781
        %v1807 = vmax.f32 %v1519, %v1782
        %v1808 = vmax.f32 %v1520, %v1783
        %v1809 = vpack.c.bf16 %v1785, %v1784
        %v1810 = vpack.c.bf16 %v1787, %v1786
        %v1811 = vpack.c.bf16 %v1789, %v1788
        %v1812 = vpack.c.bf16 %v1791, %v1790
        %v1813 = vpack.c.bf16 %v1793, %v1792
        %v1814 = vpack.c.bf16 %v1795, %v1794
        %v1815 = vpack.c.bf16 %v1797, %v1796
        %v1816 = vpack.c.bf16 %v1799, %v1798
        %v1817 = vpack.c.bf16 %v1801, %v1800
        %v1818 = vpack.c.bf16 %v1803, %v1802
        %v1819 = vpack.c.bf16 %v1805, %v1804
        %v1820 = vpack.c.bf16 %v1807, %v1806
        %v1821 = vpack.c.bf16 %v1808, %v1808
        %v1835 = vunpack.c.l.b16 %v1809
        %v1836 = vunpack.c.h.b16 %v1809
        %v1837 = vunpack.c.l.b16 %v1810
        %v1838 = vunpack.c.h.b16 %v1810
        %v1839 = vunpack.c.l.b16 %v1811
        %v1840 = vunpack.c.h.b16 %v1811
        %v1841 = vunpack.c.l.b16 %v1812
        %v1842 = vunpack.c.h.b16 %v1812
        %v1843 = vunpack.c.l.b16 %v1813
        %v1844 = vunpack.c.h.b16 %v1813
        %v1845 = vunpack.c.l.b16 %v1814
        %v1846 = vunpack.c.h.b16 %v1814
        %v1847 = vunpack.c.l.b16 %v1815
        %v1848 = vunpack.c.h.b16 %v1815
        %v1849 = vunpack.c.l.b16 %v1816
        %v1850 = vunpack.c.h.b16 %v1816
        %v1851 = vunpack.c.l.b16 %v1817
        %v1852 = vunpack.c.h.b16 %v1817
        %v1853 = vunpack.c.l.b16 %v1818
        %v1854 = vunpack.c.h.b16 %v1818
        %v1855 = vunpack.c.l.b16 %v1819
        %v1856 = vunpack.c.h.b16 %v1819
        %v1857 = vunpack.c.l.b16 %v1820
        %v1858 = vunpack.c.h.b16 %v1820
        %v1859 = vunpack.c.l.b16 %v1821
        %v1860 = vpack.c.b16 %v1835, %v1835
        %v1861 = vpack.c.b16 %v1836, %v1836
        %v1862 = vpack.c.b16 %v1837, %v1837
        %v1863 = vpack.c.b16 %v1838, %v1838
        %v1864 = vpack.c.b16 %v1839, %v1839
        %v1865 = vpack.c.b16 %v1840, %v1840
        %v1866 = vpack.c.b16 %v1841, %v1841
        %v1867 = vpack.c.b16 %v1842, %v1842
        %v1868 = vpack.c.b16 %v1843, %v1843
        %v1869 = vpack.c.b16 %v1844, %v1844
        %v1870 = vpack.c.b16 %v1845, %v1845
        %v1871 = vpack.c.b16 %v1846, %v1846
        %v1872 = vpack.c.b16 %v1847, %v1847
        %v1873 = vpack.c.b16 %v1848, %v1848
        %v1874 = vpack.c.b16 %v1849, %v1849
        %v1875 = vpack.c.b16 %v1850, %v1850
        %v1876 = vpack.c.b16 %v1851, %v1851
        %v1877 = vpack.c.b16 %v1852, %v1852
        %v1878 = vpack.c.b16 %v1853, %v1853
        %v1879 = vpack.c.b16 %v1854, %v1854
        %v1880 = vpack.c.b16 %v1855, %v1855
        %v1881 = vpack.c.b16 %v1856, %v1856
        %v1882 = vpack.c.b16 %v1857, %v1857
        %v1883 = vpack.c.b16 %v1858, %v1858
        %v1884 = vpack.c.b16 %v1859, %v1859
        %1910 = vst [vmem:[%s609] sm:$0xf] %v1860
        %1911 = vst [vmem:[%s609 + $0x4] sm:$0xf] %v1861
        %1912 = vst [vmem:[%s609 + $0x8] sm:$0xf] %v1862
        %1913 = vst [vmem:[%s609 + $0xc] sm:$0xf] %v1863
        %1914 = vst [vmem:[%s609 + $0x10] sm:$0xf] %v1864
        %1915 = vst [vmem:[%s609 + $0x14] sm:$0xf] %v1865
        %1916 = vst [vmem:[%s609 + $0x18] sm:$0xf] %v1866
        %1917 = vst [vmem:[%s609 + $0x1c] sm:$0xf] %v1867
        %1918 = vst [vmem:[%s609 + $0x20] sm:$0xf] %v1868
        %1919 = vst [vmem:[%s609 + $0x24] sm:$0xf] %v1869
        %1920 = vst [vmem:[%s609 + $0x28] sm:$0xf] %v1870
        %1921 = vst [vmem:[%s609 + $0x2c] sm:$0xf] %v1871
        %1922 = vst [vmem:[%s609 + $0x30] sm:$0xf] %v1872
        %1923 = vst [vmem:[%s609 + $0x34] sm:$0xf] %v1873
        %1924 = vst [vmem:[%s609 + $0x38] sm:$0xf] %v1874
        %1925 = vst [vmem:[%s609 + $0x3c] sm:$0xf] %v1875
        %1926 = vst [vmem:[%s609 + $0x40] sm:$0xf] %v1876
        %1927 = vst [vmem:[%s609 + $0x44] sm:$0xf] %v1877
        %1928 = vst [vmem:[%s609 + $0x48] sm:$0xf] %v1878
        %1929 = vst [vmem:[%s609 + $0x4c] sm:$0xf] %v1879
        %1930 = vst [vmem:[%s609 + $0x50] sm:$0xf] %v1880
        %1931 = vst [vmem:[%s609 + $0x54] sm:$0xf] %v1881
        %1932 = vst [vmem:[%s609 + $0x58] sm:$0xf] %v1882
        %1933 = vst [vmem:[%s609 + $0x5c] sm:$0xf] %v1883
        %1934 = vst [vmem:[%s609 + $0x60] sm:$0xf] %v1884
        %s1935 = smul.u32 25, %s14
        %p1936 = scmp.lt.s32.totalorder %s1935, 49
        %s1937 = scalar_select %p1936, %s1935, 49
        %s1938 = smul.addr %s1937, 4
        %s1939 = scalar_lea.vmem %s3, %s1938
        // Predicated region
        $region74: #{mlp_forward.3} parent=68 // pred_check
          %p1940 = pneg %p100
        $region75: #{mlp_forward.3} parent=68 // pred_check_branch
          %1942 = sbr.rel (%p1940) target = $region77
        $region76: #{mlp_forward.3} parent=68 // pred_region
          %s1943 = smul.u32 25, %s14
        $region77: #{mlp_forward.3} parent=68 // pred_fallthru
          _
      $region69: #{mlp_forward.3} parent=5 // pred_fallthru
        _
      %p1944 = scmp.le.s32.totalorder 2, %s9
      // Predicated region
      $region78: #{mlp_forward.3} parent=5 // pred_check
        %p1945 = pneg %p1944
      $region79: #{mlp_forward.3} parent=5 // pred_check_branch
        %1947 = sbr.rel (%p1945) target = $region81
      $region80: #{mlp_forward.3} parent=5 // pred_region
        %s1948 = ssub.s32 %s9, 2
        // Predicated region
        $region82: #{mlp_forward.3} parent=80 // pred_check
          %p1949 = pneg %p106
        $region83: #{mlp_forward.3} parent=80 // pred_check_branch
          %1951 = sbr.rel (%p1949) target = $region85
        $region84: #{mlp_forward.3} parent=80 // pred_region
          %s1952 = smul.u32 25, %s15
          %p1953 = scmp.lt.s32.totalorder %s1952, 49
          %s1954 = scalar_select %p1953, %s1952, 49
          %s1955 = smul.addr %s1954, 4
          %s1956 = scalar_lea.vmem %s3, %s1955
        $region85: #{mlp_forward.3} parent=80 // pred_fallthru
          _
      $region81: #{mlp_forward.3} parent=5 // pred_fallthru
        _
    $region6: #{mlp_forward.3} parent=1 // loop_footer
      %s13 = sadd.s32 1, %s9
    $region7: #{mlp_forward.3} parent=1 // loop_footer_branch
      %8 = sbr.rel target = $region3
    $region8: #{mlp_forward.3} parent=1 // loop_exit
      _

// kernel: mlp_forward.4
$region0: #{mlp_forward.4}
  #allocation0 [shape = 'u32[]', space=smem, size = 0x4, offset = 0x4, fixed_abs, tag = 'smem constant byte address 0x4 - core index']
  #allocation1 [shape = 'u32[144,128]{1,0:T(1,128)}', space=vmem, size = 0x12000, scoped, tag = 'internal scratch']
  %s0 = inlined_call_operand.vmem [shape: bf16[4,64,1600], index: 0, kind: input, shape index: {}]
  %s1 = inlined_call_operand.vmem [shape: bf16[1600,128], index: 1, kind: input, shape index: {}]
  %s2 = inlined_call_operand.vmem [shape: f32[1,128], index: 2, kind: input, shape index: {}]
  %s3 = inlined_call_operand.vmem [shape: bf16[64,128], index: 3, kind: output, shape index: {}]
  %s4 = sld [smem:[#allocation0]]
  $region71: #{mlp_forward.4} parent=0
    _
  %s6 = ssub.s32 1, %s4
  %s7 = scalar_select 0, %s6, %s4
  $region1: #{mlp_forward.4} parent=0
    #allocation2 [shape = 'u8[851968]{0}', space=vmem, size = 0xd0000, scoped, tag = 'input window, operand 0']
    loop: start=0, step=1, limit=4
    $region2: #{mlp_forward.4} parent=1 // loop_pre_header
      _
    $region3: #{mlp_forward.4} parent=1 // loop_header
      %s9 = sphi 0, %s13
      %p10 = scmp.ge.s32.totalorder %s9, 4
      %s19 = sphi 0, %s21
      %s22 = sphi 0, %s19
      %s23 = sphi 0, %s22
      %s39 = sphi 0, %s23
      %s43 = sphi 0, %s43
      %s45 = sphi 0, %s43
      %s46 = sphi 0, %s45
      %s60 = sphi 0, %s46
      %s64 = sphi 0, %s64
      %s66 = sphi 0, %s64
      %s67 = sphi 0, %s66
      %s81 = sphi 0, %s67
      %s87 = sphi 0, %s89
      %s90 = sphi 0, %s87
      %s91 = sphi 0, %s90
      %s107 = sphi 0, %s91
    $region4: #{mlp_forward.4} parent=1 // loop_header_branch
      %12 = sbr.rel (%p10) target = $region8
    $region5: #{mlp_forward.4} parent=1 // loop_body
      %s14 = ssub.s32 %s9, 1
      %s15 = ssub.s32 %s9, 2
      %s16 = sadd.s32 %s9, 1
      %s17 = ssub.s32 %s9, %s16
      %p18 = scmp.eq.s32.totalorder %s17, 0
      %s20 = sadd.s32 %s19, 1
      %s21 = scalar_select %p18, %s19, %s20
      %p24 = pneg %p18
      %p25 = scmp.eq.s32.totalorder %s9, 1
      %p26 = por %p24, %p25
      %p27 = scmp.ne.s32.totalorder %s19, %s22
      %p28 = scmp.eq.s32.totalorder %s9, 0
      %p29 = por %p27, %p28
      %p30 = scmp.ne.s32.totalorder %s19, %s22
      %p31 = scmp.eq.s32.totalorder %s14, 1
      %p32 = por %p30, %p31
      %p33 = scmp.ne.s32.totalorder %s22, %s23
      %p34 = scmp.eq.s32.totalorder %s14, 0
      %p35 = por %p33, %p34
      %p36 = scmp.ne.s32.totalorder %s22, %s23
      %p37 = scmp.eq.s32.totalorder %s15, 1
      %p38 = por %p36, %p37
      %p40 = scmp.ne.s32.totalorder %s23, %s39
      %p41 = scmp.eq.s32.totalorder %s15, 0
      %p42 = por %p40, %p41
      %s44 = sadd.s32 %s43, 1
      %p47 = scmp.eq.s32.totalorder %s9, 1
      %p48 = scmp.ne.s32.totalorder %s43, %s45
      %p49 = scmp.eq.s32.totalorder %s9, 0
      %p50 = por %p48, %p49
      %p51 = scmp.ne.s32.totalorder %s43, %s45
      %p52 = scmp.eq.s32.totalorder %s14, 1
      %p53 = por %p51, %p52
      %p54 = scmp.ne.s32.totalorder %s45, %s46
      %p55 = scmp.eq.s32.totalorder %s14, 0
      %p56 = por %p54, %p55
      %p57 = scmp.ne.s32.totalorder %s45, %s46
      %p58 = scmp.eq.s32.totalorder %s15, 1
      %p59 = por %p57, %p58
      %p61 = scmp.ne.s32.totalorder %s46, %s60
      %p62 = scmp.eq.s32.totalorder %s15, 0
      %p63 = por %p61, %p62
      %s65 = sadd.s32 %s64, 1
      %p68 = scmp.eq.s32.totalorder %s9, 1
      %p69 = scmp.ne.s32.totalorder %s64, %s66
      %p70 = scmp.eq.s32.totalorder %s9, 0
      %p71 = por %p69, %p70
      %p72 = scmp.ne.s32.totalorder %s64, %s66
      %p73 = scmp.eq.s32.totalorder %s14, 1
      %p74 = por %p72, %p73
      %p75 = scmp.ne.s32.totalorder %s66, %s67
      %p76 = scmp.eq.s32.totalorder %s14, 0
      %p77 = por %p75, %p76
      %p78 = scmp.ne.s32.totalorder %s66, %s67
      %p79 = scmp.eq.s32.totalorder %s15, 1
      %p80 = por %p78, %p79
      %p82 = scmp.ne.s32.totalorder %s67, %s81
      %p83 = scmp.eq.s32.totalorder %s15, 0
      %p84 = por %p82, %p83
      %s85 = ssub.s32 %s9, %s16
      %p86 = scmp.eq.s32.totalorder %s85, 0
      %s88 = sadd.s32 %s87, 1
      %s89 = scalar_select %p86, %s87, %s88
      %p92 = pneg %p86
      %p93 = scmp.eq.s32.totalorder %s9, 1
      %p94 = por %p92, %p93
      %p95 = scmp.ne.s32.totalorder %s87, %s90
      %p96 = scmp.eq.s32.totalorder %s9, 0
      %p97 = por %p95, %p96
      %p98 = scmp.ne.s32.totalorder %s87, %s90
      %p99 = scmp.eq.s32.totalorder %s14, 1
      %p100 = por %p98, %p99
      %p101 = scmp.ne.s32.totalorder %s90, %s91
      %p102 = scmp.eq.s32.totalorder %s14, 0
      %p103 = por %p101, %p102
      %p104 = scmp.ne.s32.totalorder %s90, %s91
      %p105 = scmp.eq.s32.totalorder %s15, 1
      %p106 = por %p104, %p105
      %p108 = scmp.ne.s32.totalorder %s91, %s107
      %p109 = scmp.eq.s32.totalorder %s15, 0
      %p110 = por %p108, %p109
      %p111 = scmp.le.s32.totalorder 1, %s9
      %p112 = scmp.lt.s32.totalorder %s9, 3
      %p113 = pnand %p111, %p112
      %p114 = pneg %p113
      // Predicated region
      $region9: #{mlp_forward.4} parent=5 // pred_check
        _
      $region10: #{mlp_forward.4} parent=5 // pred_check_branch
        %116 = sbr.rel (%p113) target = $region12
      $region11: #{mlp_forward.4} parent=5 // pred_region
        %s117 = ssub.s32 %s9, 1
        // Predicated region
        $region13: #{mlp_forward.4} parent=11 // pred_check
          %p118 = pneg %p56
        $region14: #{mlp_forward.4} parent=11 // pred_check_branch
          %120 = sbr.rel (%p118) target = $region16
        $region15: #{mlp_forward.4} parent=11 // pred_region
          _
        $region16: #{mlp_forward.4} parent=11 // pred_fallthru
          _
        // Predicated region
        $region17: #{mlp_forward.4} parent=11 // pred_check
          %p121 = pneg %p77
        $region18: #{mlp_forward.4} parent=11 // pred_check_branch
          %123 = sbr.rel (%p121) target = $region20
        $region19: #{mlp_forward.4} parent=11 // pred_region
          _
        $region20: #{mlp_forward.4} parent=11 // pred_fallthru
          _
      $region12: #{mlp_forward.4} parent=5 // pred_fallthru
        _
      %p124 = scmp.lt.s32.totalorder %s9, 2
      // Predicated region
      $region21: #{mlp_forward.4} parent=5 // pred_check
        %p125 = pneg %p124
      $region22: #{mlp_forward.4} parent=5 // pred_check_branch
        %127 = sbr.rel (%p125) target = $region24
      $region23: #{mlp_forward.4} parent=5 // pred_region
        // Predicated region
        $region25: #{mlp_forward.4} parent=23 // pred_check
          %p128 = pneg %p29
        $region26: #{mlp_forward.4} parent=23 // pred_check_branch
          %130 = sbr.rel (%p128) target = $region28
        $region27: #{mlp_forward.4} parent=23 // pred_region
          %s131 = sand.u32 %s19, 1
          %s132 = sand.u32 %s19, 1
          %s133 = smul.addr %s132, 832
          %s134 = scalar_lea.vmem [#allocation2], %s133
          %s135 = smul.u32 4, %s9
          %s136 = smul.addr %s135, 13
          %s137 = smul.addr %s136, 4
          %s138 = scalar_lea.vmem %s0, %s137
          // Predicated region
          $region29: #{mlp_forward.4} parent=27 // pred_check
            _
          $region30: #{mlp_forward.4} parent=27 // pred_check_branch
            %140 = sbr.rel (0) target = $region32
          $region31: #{mlp_forward.4} parent=27 // pred_region
            // Predicated region
            $region33: #{mlp_forward.4} parent=31 // pred_check
              _
            $region34: #{mlp_forward.4} parent=31 // pred_check_branch
              %142 = sbr.rel (0) target = $region36
            $region35: #{mlp_forward.4} parent=31 // pred_region
              %s143 = scalar_lea.vmem %s138, 48
              %s144 = scalar_lea.vmem %s134, 48 [#allocation2]
              loop: start=0, step=1, limit=1
              $region37: #{mlp_forward.4} parent=35 // loop_pre_header
                _
              $region38: #{mlp_forward.4} parent=35 // loop_header
                %s146 = sphi 0, %s150
                %p147 = scmp.ge.s32.totalorder %s146, 1
                %s151 = sphi %s138, %s138
                %s152 = sphi %s134, %s134
              $region39: #{mlp_forward.4} parent=35 // loop_header_branch
                %149 = sbr.rel (%p147) target = $region43
              $region40: #{mlp_forward.4} parent=35 // loop_body
                %v153 = vld [vmem:[%s151] sm:$0xff]
                %154 = vst [vmem:[%s152] sm:$0xff] %v153
                %v155 = vld [vmem:[%s151 + $0x8] sm:$0xff]
                %156 = vst [vmem:[%s152 + $0x8] sm:$0xff] %v155
                %v157 = vld [vmem:[%s151 + $0x10] sm:$0xff]
                %158 = vst [vmem:[%s152 + $0x10] sm:$0xff] %v157
                %v159 = vld [vmem:[%s151 + $0x18] sm:$0xff]
                %160 = vst [vmem:[%s152 + $0x18] sm:$0xff] %v159
                %v161 = vld [vmem:[%s151 + $0x20] sm:$0xff]
                %162 = vst [vmem:[%s152 + $0x20] sm:$0xff] %v161
                %v163 = vld [vmem:[%s151 + $0x28] sm:$0xff]
                %164 = vst [vmem:[%s152 + $0x28] sm:$0xff] %v163
                %v165 = vld [vmem:[%s151 + $0x34] sm:$0xff]
                %166 = vst [vmem:[%s152 + $0x34] sm:$0xff] %v165
                %v167 = vld [vmem:[%s151 + $0x3c] sm:$0xff]
                %168 = vst [vmem:[%s152 + $0x3c] sm:$0xff] %v167
                %v169 = vld [vmem:[%s151 + $0x44] sm:$0xff]
                %170 = vst [vmem:[%s152 + $0x44] sm:$0xff] %v169
                %v171 = vld [vmem:[%s151 + $0x4c] sm:$0xff]
                %172 = vst [vmem:[%s152 + $0x4c] sm:$0xff] %v171
                %v173 = vld [vmem:[%s151 + $0x54] sm:$0xff]
                %174 = vst [vmem:[%s152 + $0x54] sm:$0xff] %v173
                %v175 = vld [vmem:[%s151 + $0x5c] sm:$0xff]
                %176 = vst [vmem:[%s152 + $0x5c] sm:$0xff] %v175
                %v177 = vld [vmem:[%s151 + $0x68] sm:$0xff]
                %178 = vst [vmem:[%s152 + $0x68] sm:$0xff] %v177
                %v179 = vld [vmem:[%s151 + $0x70] sm:$0xff]
                %180 = vst [vmem:[%s152 + $0x70] sm:$0xff] %v179
                %v181 = vld [vmem:[%s151 + $0x78] sm:$0xff]
                %182 = vst [vmem:[%s152 + $0x78] sm:$0xff] %v181
                %v183 = vld [vmem:[%s151 + $0x80] sm:$0xff]
                %184 = vst [vmem:[%s152 + $0x80] sm:$0xff] %v183
                %v185 = vld [vmem:[%s151 + $0x88] sm:$0xff]
                %186 = vst [vmem:[%s152 + $0x88] sm:$0xff] %v185
                %v187 = vld [vmem:[%s151 + $0x90] sm:$0xff]
                %188 = vst [vmem:[%s152 + $0x90] sm:$0xff] %v187
                %v189 = vld [vmem:[%s151 + $0x9c] sm:$0xff]
                %190 = vst [vmem:[%s152 + $0x9c] sm:$0xff] %v189
                %v191 = vld [vmem:[%s151 + $0xa4] sm:$0xff]
                %192 = vst [vmem:[%s152 + $0xa4] sm:$0xff] %v191
                %v193 = vld [vmem:[%s151 + $0xac] sm:$0xff]
                %194 = vst [vmem:[%s152 + $0xac] sm:$0xff] %v193
                %v195 = vld [vmem:[%s151 + $0xb4] sm:$0xff]
                %196 = vst [vmem:[%s152 + $0xb4] sm:$0xff] %v195
                %v197 = vld [vmem:[%s151 + $0xbc] sm:$0xff]
                %198 = vst [vmem:[%s152 + $0xbc] sm:$0xff] %v197
                %v199 = vld [vmem:[%s151 + $0xc4] sm:$0xff]
                %200 = vst [vmem:[%s152 + $0xc4] sm:$0xff] %v199
                %v201 = vld [vmem:[%s151 + $0x1a0] sm:$0xff]
                %202 = vst [vmem:[%s152 + $0xd0] sm:$0xff] %v201
                %v203 = vld [vmem:[%s151 + $0x1a8] sm:$0xff]
                %204 = vst [vmem:[%s152 + $0xd8] sm:$0xff] %v203
                %v205 = vld [vmem:[%s151 + $0x1b0] sm:$0xff]
                %206 = vst [vmem:[%s152 + $0xe0] sm:$0xff] %v205
                %v207 = vld [vmem:[%s151 + $0x1b8] sm:$0xff]
                %208 = vst [vmem:[%s152 + $0xe8] sm:$0xff] %v207
                %v209 = vld [vmem:[%s151 + $0x1c0] sm:$0xff]
                %210 = vst [vmem:[%s152 + $0xf0] sm:$0xff] %v209
                %v211 = vld [vmem:[%s151 + $0x1c8] sm:$0xff]
                %212 = vst [vmem:[%s152 + $0xf8] sm:$0xff] %v211
                %v213 = vld [vmem:[%s151 + $0x1d4] sm:$0xff]
                %214 = vst [vmem:[%s152 + $0x104] sm:$0xff] %v213
                %v215 = vld [vmem:[%s151 + $0x1dc] sm:$0xff]
                %216 = vst [vmem:[%s152 + $0x10c] sm:$0xff] %v215
                %v217 = vld [vmem:[%s151 + $0x1e4] sm:$0xff]
                %218 = vst [vmem:[%s152 + $0x114] sm:$0xff] %v217
                %v219 = vld [vmem:[%s151 + $0x1ec] sm:$0xff]
                %220 = vst [vmem:[%s152 + $0x11c] sm:$0xff] %v219
                %v221 = vld [vmem:[%s151 + $0x1f4] sm:$0xff]
                %222 = vst [vmem:[%s152 + $0x124] sm:$0xff] %v221
                %v223 = vld [vmem:[%s151 + $0x1fc] sm:$0xff]
                %224 = vst [vmem:[%s152 + $0x12c] sm:$0xff] %v223
                %v225 = vld [vmem:[%s151 + $0x208] sm:$0xff]
                %226 = vst [vmem:[%s152 + $0x138] sm:$0xff] %v225
                %v227 = vld [vmem:[%s151 + $0x210] sm:$0xff]
                %228 = vst [vmem:[%s152 + $0x140] sm:$0xff] %v227
                %v229 = vld [vmem:[%s151 + $0x218] sm:$0xff]
                %230 = vst [vmem:[%s152 + $0x148] sm:$0xff] %v229
                %v231 = vld [vmem:[%s151 + $0x220] sm:$0xff]
                %232 = vst [vmem:[%s152 + $0x150] sm:$0xff] %v231
                %v233 = vld [vmem:[%s151 + $0x228] sm:$0xff]
                %234 = vst [vmem:[%s152 + $0x158] sm:$0xff] %v233
                %v235 = vld [vmem:[%s151 + $0x230] sm:$0xff]
                %236 = vst [vmem:[%s152 + $0x160] sm:$0xff] %v235
                %v237 = vld [vmem:[%s151 + $0x23c] sm:$0xff]
                %238 = vst [vmem:[%s152 + $0x16c] sm:$0xff] %v237
                %v239 = vld [vmem:[%s151 + $0x244] sm:$0xff]
                %240 = vst [vmem:[%s152 + $0x174] sm:$0xff] %v239
                %v241 = vld [vmem:[%s151 + $0x24c] sm:$0xff]
                %242 = vst [vmem:[%s152 + $0x17c] sm:$0xff] %v241
                %v243 = vld [vmem:[%s151 + $0x254] sm:$0xff]
                %244 = vst [vmem:[%s152 + $0x184] sm:$0xff] %v243
                %v245 = vld [vmem:[%s151 + $0x25c] sm:$0xff]
                %246 = vst [vmem:[%s152 + $0x18c] sm:$0xff] %v245
                %v247 = vld [vmem:[%s151 + $0x264] sm:$0xff]
                %248 = vst [vmem:[%s152 + $0x194] sm:$0xff] %v247
                %v249 = vld [vmem:[%s151 + $0x340] sm:$0xff]
                %250 = vst [vmem:[%s152 + $0x1a0] sm:$0xff] %v249
                %v251 = vld [vmem:[%s151 + $0x348] sm:$0xff]
                %252 = vst [vmem:[%s152 + $0x1a8] sm:$0xff] %v251
                %v253 = vld [vmem:[%s151 + $0x350] sm:$0xff]
                %254 = vst [vmem:[%s152 + $0x1b0] sm:$0xff] %v253
                %v255 = vld [vmem:[%s151 + $0x358] sm:$0xff]
                %256 = vst [vmem:[%s152 + $0x1b8] sm:$0xff] %v255
                %v257 = vld [vmem:[%s151 + $0x360] sm:$0xff]
                %258 = vst [vmem:[%s152 + $0x1c0] sm:$0xff] %v257
                %v259 = vld [vmem:[%s151 + $0x368] sm:$0xff]
                %260 = vst [vmem:[%s152 + $0x1c8] sm:$0xff] %v259
                %v261 = vld [vmem:[%s151 + $0x374] sm:$0xff]
                %262 = vst [vmem:[%s152 + $0x1d4] sm:$0xff] %v261
                %v263 = vld [vmem:[%s151 + $0x37c] sm:$0xff]
                %264 = vst [vmem:[%s152 + $0x1dc] sm:$0xff] %v263
                %v265 = vld [vmem:[%s151 + $0x384] sm:$0xff]
                %266 = vst [vmem:[%s152 + $0x1e4] sm:$0xff] %v265
                %v267 = vld [vmem:[%s151 + $0x38c] sm:$0xff]
                %268 = vst [vmem:[%s152 + $0x1ec] sm:$0xff] %v267
                %v269 = vld [vmem:[%s151 + $0x394] sm:$0xff]
                %270 = vst [vmem:[%s152 + $0x1f4] sm:$0xff] %v269
                %v271 = vld [vmem:[%s151 + $0x39c] sm:$0xff]
                %272 = vst [vmem:[%s152 + $0x1fc] sm:$0xff] %v271
                %v273 = vld [vmem:[%s151 + $0x3a8] sm:$0xff]
                %274 = vst [vmem:[%s152 + $0x208] sm:$0xff] %v273
                %v275 = vld [vmem:[%s151 + $0x3b0] sm:$0xff]
                %276 = vst [vmem:[%s152 + $0x210] sm:$0xff] %v275
                %v277 = vld [vmem:[%s151 + $0x3b8] sm:$0xff]
                %278 = vst [vmem:[%s152 + $0x218] sm:$0xff] %v277
                %v279 = vld [vmem:[%s151 + $0x3c0] sm:$0xff]
                %280 = vst [vmem:[%s152 + $0x220] sm:$0xff] %v279
                %v281 = vld [vmem:[%s151 + $0x3c8] sm:$0xff]
                %282 = vst [vmem:[%s152 + $0x228] sm:$0xff] %v281
                %v283 = vld [vmem:[%s151 + $0x3d0] sm:$0xff]
                %284 = vst [vmem:[%s152 + $0x230] sm:$0xff] %v283
                %v285 = vld [vmem:[%s151 + $0x3dc] sm:$0xff]
                %286 = vst [vmem:[%s152 + $0x23c] sm:$0xff] %v285
                %v287 = vld [vmem:[%s151 + $0x3e4] sm:$0xff]
                %288 = vst [vmem:[%s152 + $0x244] sm:$0xff] %v287
                %v289 = vld [vmem:[%s151 + $0x3ec] sm:$0xff]
                %290 = vst [vmem:[%s152 + $0x24c] sm:$0xff] %v289
                %v291 = vld [vmem:[%s151 + $0x3f4] sm:$0xff]
                %292 = vst [vmem:[%s152 + $0x254] sm:$0xff] %v291
                %v293 = vld [vmem:[%s151 + $0x3fc] sm:$0xff]
                %294 = vst [vmem:[%s152 + $0x25c] sm:$0xff] %v293
                %v295 = vld [vmem:[%s151 + $0x404] sm:$0xff]
                %296 = vst [vmem:[%s152 + $0x264] sm:$0xff] %v295
                %v297 = vld [vmem:[%s151 + $0x4e0] sm:$0xff]
                %298 = vst [vmem:[%s152 + $0x270] sm:$0xff] %v297
                %v299 = vld [vmem:[%s151 + $0x4e8] sm:$0xff]
                %300 = vst [vmem:[%s152 + $0x278] sm:$0xff] %v299
                %v301 = vld [vmem:[%s151 + $0x4f0] sm:$0xff]
                %302 = vst [vmem:[%s152 + $0x280] sm:$0xff] %v301
                %v303 = vld [vmem:[%s151 + $0x4f8] sm:$0xff]
                %304 = vst [vmem:[%s152 + $0x288] sm:$0xff] %v303
                %v305 = vld [vmem:[%s151 + $0x500] sm:$0xff]
                %306 = vst [vmem:[%s152 + $0x290] sm:$0xff] %v305
                %v307 = vld [vmem:[%s151 + $0x508] sm:$0xff]
                %308 = vst [vmem:[%s152 + $0x298] sm:$0xff] %v307
                %v309 = vld [vmem:[%s151 + $0x514] sm:$0xff]
                %310 = vst [vmem:[%s152 + $0x2a4] sm:$0xff] %v309
                %v311 = vld [vmem:[%s151 + $0x51c] sm:$0xff]
                %312 = vst [vmem:[%s152 + $0x2ac] sm:$0xff] %v311
                %v313 = vld [vmem:[%s151 + $0x524] sm:$0xff]
                %314 = vst [vmem:[%s152 + $0x2b4] sm:$0xff] %v313
                %v315 = vld [vmem:[%s151 + $0x52c] sm:$0xff]
                %316 = vst [vmem:[%s152 + $0x2bc] sm:$0xff] %v315
                %v317 = vld [vmem:[%s151 + $0x534] sm:$0xff]
                %318 = vst [vmem:[%s152 + $0x2c4] sm:$0xff] %v317
                %v319 = vld [vmem:[%s151 + $0x53c] sm:$0xff]
                %320 = vst [vmem:[%s152 + $0x2cc] sm:$0xff] %v319
                %v321 = vld [vmem:[%s151 + $0x548] sm:$0xff]
                %322 = vst [vmem:[%s152 + $0x2d8] sm:$0xff] %v321
                %v323 = vld [vmem:[%s151 + $0x550] sm:$0xff]
                %324 = vst [vmem:[%s152 + $0x2e0] sm:$0xff] %v323
                %v325 = vld [vmem:[%s151 + $0x558] sm:$0xff]
                %326 = vst [vmem:[%s152 + $0x2e8] sm:$0xff] %v325
                %v327 = vld [vmem:[%s151 + $0x560] sm:$0xff]
                %328 = vst [vmem:[%s152 + $0x2f0] sm:$0xff] %v327
                %v329 = vld [vmem:[%s151 + $0x568] sm:$0xff]
                %330 = vst [vmem:[%s152 + $0x2f8] sm:$0xff] %v329
                %v331 = vld [vmem:[%s151 + $0x570] sm:$0xff]
                %332 = vst [vmem:[%s152 + $0x300] sm:$0xff] %v331
                %v333 = vld [vmem:[%s151 + $0x57c] sm:$0xff]
                %334 = vst [vmem:[%s152 + $0x30c] sm:$0xff] %v333
                %v335 = vld [vmem:[%s151 + $0x584] sm:$0xff]
                %336 = vst [vmem:[%s152 + $0x314] sm:$0xff] %v335
                %v337 = vld [vmem:[%s151 + $0x58c] sm:$0xff]
                %338 = vst [vmem:[%s152 + $0x31c] sm:$0xff] %v337
                %v339 = vld [vmem:[%s151 + $0x594] sm:$0xff]
                %340 = vst [vmem:[%s152 + $0x324] sm:$0xff] %v339
                %v341 = vld [vmem:[%s151 + $0x59c] sm:$0xff]
                %342 = vst [vmem:[%s152 + $0x32c] sm:$0xff] %v341
                %v343 = vld [vmem:[%s151 + $0x5a4] sm:$0xff]
                %344 = vst [vmem:[%s152 + $0x334] sm:$0xff] %v343
              $region41: #{mlp_forward.4} parent=35 // loop_footer
                %s150 = sadd.s32 1, %s146
              $region42: #{mlp_forward.4} parent=35 // loop_footer_branch
                %145 = sbr.rel target = $region38
              $region43: #{mlp_forward.4} parent=35 // loop_exit
                _
              loop: start=0, step=1, limit=1
              $region44: #{mlp_forward.4} parent=35 // loop_pre_header
                _
              $region45: #{mlp_forward.4} parent=35 // loop_header
                %s347 = sphi 0, %s351
                %p348 = scmp.ge.s32.totalorder %s347, 1
                %s352 = sphi %s143, %s143
                %s353 = sphi %s144, %s144
              $region46: #{mlp_forward.4} parent=35 // loop_header_branch
                %350 = sbr.rel (%p348) target = $region50
              $region47: #{mlp_forward.4} parent=35 // loop_body
                %v354 = vld [vmem:[%s352] sm:$0xf]
                %355 = vst [vmem:[%s353] sm:$0xf] %v354
                %v356 = vld [vmem:[%s352 + $0x34] sm:$0xf]
                %357 = vst [vmem:[%s353 + $0x34] sm:$0xf] %v356
                %v358 = vld [vmem:[%s352 + $0x68] sm:$0xf]
                %359 = vst [vmem:[%s353 + $0x68] sm:$0xf] %v358
                %v360 = vld [vmem:[%s352 + $0x9c] sm:$0xf]
                %361 = vst [vmem:[%s353 + $0x9c] sm:$0xf] %v360
                %v362 = vld [vmem:[%s352 + $0x1a0] sm:$0xf]
                %363 = vst [vmem:[%s353 + $0xd0] sm:$0xf] %v362
                %v364 = vld [vmem:[%s352 + $0x1d4] sm:$0xf]
                %365 = vst [vmem:[%s353 + $0x104] sm:$0xf] %v364
                %v366 = vld [vmem:[%s352 + $0x208] sm:$0xf]
                %367 = vst [vmem:[%s353 + $0x138] sm:$0xf] %v366
                %v368 = vld [vmem:[%s352 + $0x23c] sm:$0xf]
                %369 = vst [vmem:[%s353 + $0x16c] sm:$0xf] %v368
                %v370 = vld [vmem:[%s352 + $0x340] sm:$0xf]
                %371 = vst [vmem:[%s353 + $0x1a0] sm:$0xf] %v370
                %v372 = vld [vmem:[%s352 + $0x374] sm:$0xf]
                %373 = vst [vmem:[%s353 + $0x1d4] sm:$0xf] %v372
                %v374 = vld [vmem:[%s352 + $0x3a8] sm:$0xf]
                %375 = vst [vmem:[%s353 + $0x208] sm:$0xf] %v374
                %v376 = vld [vmem:[%s352 + $0x3dc] sm:$0xf]
                %377 = vst [vmem:[%s353 + $0x23c] sm:$0xf] %v376
                %v378 = vld [vmem:[%s352 + $0x4e0] sm:$0xf]
                %379 = vst [vmem:[%s353 + $0x270] sm:$0xf] %v378
                %v380 = vld [vmem:[%s352 + $0x514] sm:$0xf]
                %381 = vst [vmem:[%s353 + $0x2a4] sm:$0xf] %v380
                %v382 = vld [vmem:[%s352 + $0x548] sm:$0xf]
                %383 = vst [vmem:[%s353 + $0x2d8] sm:$0xf] %v382
                %v384 = vld [vmem:[%s352 + $0x57c] sm:$0xf]
                %385 = vst [vmem:[%s353 + $0x30c] sm:$0xf] %v384
              $region48: #{mlp_forward.4} parent=35 // loop_footer
                %s351 = sadd.s32 1, %s347
              $region49: #{mlp_forward.4} parent=35 // loop_footer_branch
                %346 = sbr.rel target = $region45
              $region50: #{mlp_forward.4} parent=35 // loop_exit
                _
            $region36: #{mlp_forward.4} parent=31 // pred_fallthru
              _
          $region32: #{mlp_forward.4} parent=27 // pred_fallthru
            _
          %386 = vnop
        $region28: #{mlp_forward.4} parent=23 // pred_fallthru
          _
      $region24: #{mlp_forward.4} parent=5 // pred_fallthru
        _
      %p387 = scmp.le.s32.totalorder 1, %s9
      %p388 = scmp.lt.s32.totalorder %s9, 3
      %p389 = pnand %p387, %p388
      %p390 = pneg %p389
      // Predicated region
      $region51: #{mlp_forward.4} parent=5 // pred_check
        _
      $region52: #{mlp_forward.4} parent=5 // pred_check_branch
        %392 = sbr.rel (%p389) target = $region54
      $region53: #{mlp_forward.4} parent=5 // pred_region
        %s393 = ssub.s32 %s9, 1
        %s394 = sand.u32 %s22, 1
        %s395 = sand.u32 %s22, 1
        %s396 = smul.addr %s395, 832
        %s397 = scalar_lea.vmem [#allocation2], %s396
        // Predicated region
        $region55: #{mlp_forward.4} parent=53 // pred_check
          %p398 = pneg %p35
        $region56: #{mlp_forward.4} parent=53 // pred_check_branch
          %400 = sbr.rel (%p398) target = $region58
        $region57: #{mlp_forward.4} parent=53 // pred_region
          _
        $region58: #{mlp_forward.4} parent=53 // pred_fallthru
          _
        %s401 = sand.u32 %s22, 1
        %s402 = sand.u32 %s22, 1
        %s403 = smul.addr %s402, 832
        %s404 = scalar_lea.vmem [#allocation2], %s403
        %p405 = pneg %p35
        %p406 = pneg %p32
        %p407 = pneg %p56
        %p408 = pneg %p53
        %p409 = pneg %p77
        %p410 = pneg %p74
        %p411 = pneg %p103
        %p412 = pneg %p100
        %s413 = smul.u32 4, %s14
        %p414 = scmp.lt.s32.totalorder %s413, 7
        %s415 = scalar_select %p414, %s413, 7
        %s416 = smul.addr %s415, 4
        %s417 = scalar_lea.vmem %s3, %s416
        %s418 = smul.u32 4, %s14
        %s419 = smul.u32 4, %s14
        %p420 = scmp.lt.s32.totalorder %s419, 7
        %s421 = scalar_select %p420, %s419, 7
        %s422 = smul.addr %s421, 4
        %s423 = scalar_lea.vmem %s3, %s422
        %s424 = smul.u32 4, %s14
        %v426 = vld [vmem:[%s1] sm:$0xf]
        %v427 = vld [vmem:[%s1 + $0x4] sm:$0xf]
        %v428 = vld [vmem:[%s1 + $0x8] sm:$0xf]
        %v429 = vld [vmem:[%s1 + $0xc] sm:$0xf]
        %v430 = vld [vmem:[%s1 + $0x10] sm:$0xf]
        %v431 = vld [vmem:[%s1 + $0x14] sm:$0xf]
        %v432 = vld [vmem:[%s1 + $0x18] sm:$0xf]
        %v433 = vld [vmem:[%s1 + $0x1c] sm:$0xf]
        %v434 = vld [vmem:[%s1 + $0x20] sm:$0xf]
        %v435 = vld [vmem:[%s1 + $0x24] sm:$0xf]
        %v436 = vld [vmem:[%s1 + $0x28] sm:$0xf]
        %v437 = vld [vmem:[%s1 + $0x2c] sm:$0xf]
        %v438 = vld [vmem:[%s1 + $0x30] sm:$0xf]
        %v439 = vld [vmem:[%s1 + $0x34] sm:$0xf]
        %v440 = vld [vmem:[%s1 + $0x38] sm:$0xf]
        %v441 = vld [vmem:[%s1 + $0x3c] sm:$0xf]
        %v442 = vld [vmem:[%s1 + $0x40] sm:$0xf]
        %v443 = vld [vmem:[%s1 + $0x44] sm:$0xf]
        %v444 = vld [vmem:[%s1 + $0x48] sm:$0xf]
        %v445 = vld [vmem:[%s1 + $0x4c] sm:$0xf]
        %v446 = vld [vmem:[%s1 + $0x50] sm:$0xf]
        %v447 = vld [vmem:[%s1 + $0x54] sm:$0xf]
        %v448 = vld [vmem:[%s1 + $0x58] sm:$0xf]
        %v449 = vld [vmem:[%s1 + $0x5c] sm:$0xf]
        %v450 = vld [vmem:[%s1 + $0x60] sm:$0xf]
        %v451 = vld [vmem:[%s1 + $0x64] sm:$0xf]
        %v452 = vld [vmem:[%s1 + $0x68] sm:$0xf]
        %v453 = vld [vmem:[%s1 + $0x6c] sm:$0xf]
        %v454 = vld [vmem:[%s1 + $0x70] sm:$0xf]
        %v455 = vld [vmem:[%s1 + $0x74] sm:$0xf]
        %v456 = vld [vmem:[%s1 + $0x78] sm:$0xf]
        %v457 = vld [vmem:[%s1 + $0x7c] sm:$0xf]
        %v458 = vld [vmem:[%s1 + $0x80] sm:$0xf]
        %v459 = vld [vmem:[%s1 + $0x84] sm:$0xf]
        %v460 = vld [vmem:[%s1 + $0x88] sm:$0xf]
        %v461 = vld [vmem:[%s1 + $0x8c] sm:$0xf]
        %v462 = vld [vmem:[%s1 + $0x90] sm:$0xf]
        %v463 = vld [vmem:[%s1 + $0x94] sm:$0xf]
        %v464 = vld [vmem:[%s1 + $0x98] sm:$0xf]
        %v465 = vld [vmem:[%s1 + $0x9c] sm:$0xf]
        %v466 = vld [vmem:[%s1 + $0xa0] sm:$0xf]
        %v467 = vld [vmem:[%s1 + $0xa4] sm:$0xf]
        %v468 = vld [vmem:[%s1 + $0xa8] sm:$0xf]
        %v469 = vld [vmem:[%s1 + $0xac] sm:$0xf]
        %v470 = vld [vmem:[%s1 + $0xb0] sm:$0xf]
        %v471 = vld [vmem:[%s1 + $0xb4] sm:$0xf]
        %v472 = vld [vmem:[%s1 + $0xb8] sm:$0xf]
        %v473 = vld [vmem:[%s1 + $0xbc] sm:$0xf]
        %v474 = vld [vmem:[%s1 + $0xc0] sm:$0xf]
        %v475 = vld [vmem:[%s1 + $0xc4] sm:$0xf]
        %v476 = vld [vmem:[%s1 + $0xc8] sm:$0xf]
        %v477 = vld [vmem:[%s1 + $0xcc] sm:$0xf]
        %v478 = vld [vmem:[%s1 + $0xd0] sm:$0xf]
        %v479 = vld [vmem:[%s1 + $0xd4] sm:$0xf]
        %v480 = vld [vmem:[%s1 + $0xd8] sm:$0xf]
        %v481 = vld [vmem:[%s1 + $0xdc] sm:$0xf]
        %v482 = vld [vmem:[%s1 + $0xe0] sm:$0xf]
        %v483 = vld [vmem:[%s1 + $0xe4] sm:$0xf]
        %v484 = vld [vmem:[%s1 + $0xe8] sm:$0xf]
        %v485 = vld [vmem:[%s1 + $0xec] sm:$0xf]
        %v486 = vld [vmem:[%s1 + $0xf0] sm:$0xf]
        %v487 = vld [vmem:[%s1 + $0xf4] sm:$0xf]
        %v488 = vld [vmem:[%s1 + $0xf8] sm:$0xf]
        %v489 = vld [vmem:[%s1 + $0xfc] sm:$0xf]
        %v490 = vld [vmem:[%s1 + $0x100] sm:$0xf]
        %v491 = vld [vmem:[%s1 + $0x104] sm:$0xf]
        %v492 = vld [vmem:[%s1 + $0x108] sm:$0xf]
        %v493 = vld [vmem:[%s1 + $0x10c] sm:$0xf]
        %v494 = vld [vmem:[%s1 + $0x110] sm:$0xf]
        %v495 = vld [vmem:[%s1 + $0x114] sm:$0xf]
        %v496 = vld [vmem:[%s1 + $0x118] sm:$0xf]
        %v497 = vld [vmem:[%s1 + $0x11c] sm:$0xf]
        %v498 = vld [vmem:[%s1 + $0x120] sm:$0xf]
        %v499 = vld [vmem:[%s1 + $0x124] sm:$0xf]
        %v500 = vld [vmem:[%s1 + $0x128] sm:$0xf]
        %v501 = vld [vmem:[%s1 + $0x12c] sm:$0xf]
        %v502 = vld [vmem:[%s1 + $0x130] sm:$0xf]
        %v503 = vld [vmem:[%s1 + $0x134] sm:$0xf]
        %v504 = vld [vmem:[%s1 + $0x138] sm:$0xf]
        %v505 = vld [vmem:[%s1 + $0x13c] sm:$0xf]
        %v506 = vld [vmem:[%s1 + $0x140] sm:$0xf]
        %v507 = vld [vmem:[%s1 + $0x144] sm:$0xf]
        %v508 = vld [vmem:[%s1 + $0x148] sm:$0xf]
        %v509 = vld [vmem:[%s1 + $0x14c] sm:$0xf]
        %v510 = vld [vmem:[%s1 + $0x150] sm:$0xf]
        %v511 = vld [vmem:[%s1 + $0x154] sm:$0xf]
        %v512 = vld [vmem:[%s1 + $0x158] sm:$0xf]
        %v513 = vld [vmem:[%s1 + $0x15c] sm:$0xf]
        %v514 = vld [vmem:[%s1 + $0x160] sm:$0xf]
        %v515 = vld [vmem:[%s1 + $0x164] sm:$0xf]
        %v516 = vld [vmem:[%s1 + $0x168] sm:$0xf]
        %v517 = vld [vmem:[%s1 + $0x16c] sm:$0xf]
        %v518 = vld [vmem:[%s1 + $0x170] sm:$0xf]
        %v519 = vld [vmem:[%s1 + $0x174] sm:$0xf]
        %v520 = vld [vmem:[%s1 + $0x178] sm:$0xf]
        %v521 = vld [vmem:[%s1 + $0x17c] sm:$0xf]
        %v522 = vld [vmem:[%s1 + $0x180] sm:$0xf]
        %v523 = vld [vmem:[%s1 + $0x184] sm:$0xf]
        %v524 = vld [vmem:[%s1 + $0x188] sm:$0xf]
        %v525 = vld [vmem:[%s1 + $0x18c] sm:$0xf]
        %v526 = vld [vmem:[%s1 + $0x190] sm:$0xf]
        %v527 = vld [vmem:[%s1 + $0x194] sm:$0xf]
        %v528 = vld [vmem:[%s1 + $0x198] sm:$0xf]
        %v529 = vld [vmem:[%s1 + $0x19c] sm:$0xf]
        %v530 = vld [vmem:[%s1 + $0x1a0] sm:$0xf]
        %v531 = vld [vmem:[%s1 + $0x1a4] sm:$0xf]
        %v532 = vld [vmem:[%s1 + $0x1a8] sm:$0xf]
        %v533 = vld [vmem:[%s1 + $0x1ac] sm:$0xf]
        %v534 = vld [vmem:[%s1 + $0x1b0] sm:$0xf]
        %v535 = vld [vmem:[%s1 + $0x1b4] sm:$0xf]
        %v536 = vld [vmem:[%s1 + $0x1b8] sm:$0xf]
        %v537 = vld [vmem:[%s1 + $0x1bc] sm:$0xf]
        %v538 = vld [vmem:[%s1 + $0x1c0] sm:$0xf]
        %v539 = vld [vmem:[%s1 + $0x1c4] sm:$0xf]
        %v540 = vld [vmem:[%s1 + $0x1c8] sm:$0xf]
        %v541 = vld [vmem:[%s1 + $0x1cc] sm:$0xf]
        %v542 = vld [vmem:[%s1 + $0x1d0] sm:$0xf]
        %v543 = vld [vmem:[%s1 + $0x1d4] sm:$0xf]
        %v544 = vld [vmem:[%s1 + $0x1d8] sm:$0xf]
        %v545 = vld [vmem:[%s1 + $0x1dc] sm:$0xf]
        %v546 = vld [vmem:[%s1 + $0x1e0] sm:$0xf]
        %v547 = vld [vmem:[%s1 + $0x1e4] sm:$0xf]
        %v548 = vld [vmem:[%s1 + $0x1e8] sm:$0xf]
        %v549 = vld [vmem:[%s1 + $0x1ec] sm:$0xf]
        %v550 = vld [vmem:[%s1 + $0x1f0] sm:$0xf]
        %v551 = vld [vmem:[%s1 + $0x1f4] sm:$0xf]
        %v552 = vld [vmem:[%s1 + $0x1f8] sm:$0xf]
        %v553 = vld [vmem:[%s1 + $0x1fc] sm:$0xf]
        %v554 = vld [vmem:[%s1 + $0x200] sm:$0xf]
        %v555 = vld [vmem:[%s1 + $0x204] sm:$0xf]
        %v556 = vld [vmem:[%s1 + $0x208] sm:$0xf]
        %v557 = vld [vmem:[%s1 + $0x20c] sm:$0xf]
        %v558 = vld [vmem:[%s1 + $0x210] sm:$0xf]
        %v559 = vld [vmem:[%s1 + $0x214] sm:$0xf]
        %v560 = vld [vmem:[%s1 + $0x218] sm:$0xf]
        %v561 = vld [vmem:[%s1 + $0x21c] sm:$0xf]
        %v562 = vld [vmem:[%s1 + $0x220] sm:$0xf]
        %v563 = vld [vmem:[%s1 + $0x224] sm:$0xf]
        %v564 = vld [vmem:[%s1 + $0x228] sm:$0xf]
        %v565 = vld [vmem:[%s1 + $0x22c] sm:$0xf]
        %v566 = vld [vmem:[%s1 + $0x230] sm:$0xf]
        %v567 = vld [vmem:[%s1 + $0x234] sm:$0xf]
        %v568 = vld [vmem:[%s1 + $0x238] sm:$0xf]
        %v569 = vld [vmem:[%s1 + $0x23c] sm:$0xf]
        %v570 = vld [vmem:[%s1 + $0x240] sm:$0xf]
        %v571 = vld [vmem:[%s1 + $0x244] sm:$0xf]
        %v572 = vld [vmem:[%s1 + $0x248] sm:$0xf]
        %v573 = vld [vmem:[%s1 + $0x24c] sm:$0xf]
        %v574 = vld [vmem:[%s1 + $0x250] sm:$0xf]
        %v575 = vld [vmem:[%s1 + $0x254] sm:$0xf]
        %v576 = vld [vmem:[%s1 + $0x258] sm:$0xf]
        %v577 = vld [vmem:[%s1 + $0x25c] sm:$0xf]
        %v578 = vld [vmem:[%s1 + $0x260] sm:$0xf]
        %v579 = vld [vmem:[%s1 + $0x264] sm:$0xf]
        %v580 = vld [vmem:[%s1 + $0x268] sm:$0xf]
        %v581 = vld [vmem:[%s1 + $0x26c] sm:$0xf]
        %v582 = vld [vmem:[%s1 + $0x270] sm:$0xf]
        %v583 = vld [vmem:[%s1 + $0x274] sm:$0xf]
        %v584 = vld [vmem:[%s1 + $0x278] sm:$0xf]
        %v585 = vld [vmem:[%s1 + $0x27c] sm:$0xf]
        %v586 = vld [vmem:[%s1 + $0x280] sm:$0xf]
        %v587 = vld [vmem:[%s1 + $0x284] sm:$0xf]
        %v588 = vld [vmem:[%s1 + $0x288] sm:$0xf]
        %v589 = vld [vmem:[%s1 + $0x28c] sm:$0xf]
        %v590 = vld [vmem:[%s1 + $0x290] sm:$0xf]
        %v591 = vld [vmem:[%s1 + $0x294] sm:$0xf]
        %v592 = vld [vmem:[%s1 + $0x298] sm:$0xf]
        %v593 = vld [vmem:[%s1 + $0x29c] sm:$0xf]
        %v594 = vld [vmem:[%s1 + $0x2a0] sm:$0xf]
        %v595 = vld [vmem:[%s1 + $0x2a4] sm:$0xf]
        %v596 = vld [vmem:[%s1 + $0x2a8] sm:$0xf]
        %v597 = vld [vmem:[%s1 + $0x2ac] sm:$0xf]
        %v598 = vld [vmem:[%s1 + $0x2b0] sm:$0xf]
        %v599 = vld [vmem:[%s1 + $0x2b4] sm:$0xf]
        %v600 = vld [vmem:[%s1 + $0x2b8] sm:$0xf]
        %v601 = vld [vmem:[%s1 + $0x2bc] sm:$0xf]
        %v602 = vld [vmem:[%s1 + $0x2c0] sm:$0xf]
        %v603 = vld [vmem:[%s1 + $0x2c4] sm:$0xf]
        %v604 = vld [vmem:[%s1 + $0x2c8] sm:$0xf]
        %v605 = vld [vmem:[%s1 + $0x2cc] sm:$0xf]
        %v606 = vld [vmem:[%s1 + $0x2d0] sm:$0xf]
        %v607 = vld [vmem:[%s1 + $0x2d4] sm:$0xf]
        %v608 = vld [vmem:[%s1 + $0x2d8] sm:$0xf]
        %v609 = vld [vmem:[%s1 + $0x2dc] sm:$0xf]
        %v610 = vld [vmem:[%s1 + $0x2e0] sm:$0xf]
        %v611 = vld [vmem:[%s1 + $0x2e4] sm:$0xf]
        %v612 = vld [vmem:[%s1 + $0x2e8] sm:$0xf]
        %v613 = vld [vmem:[%s1 + $0x2ec] sm:$0xf]
        %v614 = vld [vmem:[%s1 + $0x2f0] sm:$0xf]
        %v615 = vld [vmem:[%s1 + $0x2f4] sm:$0xf]
        %v616 = vld [vmem:[%s1 + $0x2f8] sm:$0xf]
        %v617 = vld [vmem:[%s1 + $0x2fc] sm:$0xf]
        %v618 = vld [vmem:[%s1 + $0x300] sm:$0xf]
        %v619 = vld [vmem:[%s1 + $0x304] sm:$0xf]
        %v620 = vld [vmem:[%s1 + $0x308] sm:$0xf]
        %v621 = vld [vmem:[%s1 + $0x30c] sm:$0xf]
        %v622 = vld [vmem:[%s1 + $0x310] sm:$0xf]
        %v623 = vld [vmem:[%s1 + $0x314] sm:$0xf]
        %v624 = vld [vmem:[%s1 + $0x318] sm:$0xf]
        %v625 = vld [vmem:[%s1 + $0x31c] sm:$0xf]
        %v626 = vld [vmem:[%s2] sm:$0x1]
        %v627 = vld [vmem:[%s397] sm:$0xff]
        %v628 = vld [vmem:[%s397 + $0x8] sm:$0xff]
        %v629 = vld [vmem:[%s397 + $0x10] sm:$0xff]
        %v630 = vld [vmem:[%s397 + $0x18] sm:$0xff]
        %v631 = vld [vmem:[%s397 + $0x20] sm:$0xff]
        %v632 = vld [vmem:[%s397 + $0x28] sm:$0xff]
        %v633 = vld [vmem:[%s397 + $0x30] sm:$0xf]
        %v634 = vld [vmem:[%s397 + $0x34] sm:$0xff]
        %v635 = vld [vmem:[%s397 + $0x3c] sm:$0xff]
        %v636 = vld [vmem:[%s397 + $0x44] sm:$0xff]
        %v637 = vld [vmem:[%s397 + $0x4c] sm:$0xff]
        %v638 = vld [vmem:[%s397 + $0x54] sm:$0xff]
        %v639 = vld [vmem:[%s397 + $0x5c] sm:$0xff]
        %v640 = vld [vmem:[%s397 + $0x64] sm:$0xf]
        %v641 = vld [vmem:[%s397 + $0x68] sm:$0xff]
        %v642 = vld [vmem:[%s397 + $0x70] sm:$0xff]
        %v643 = vld [vmem:[%s397 + $0x78] sm:$0xff]
        %v644 = vld [vmem:[%s397 + $0x80] sm:$0xff]
        %v645 = vld [vmem:[%s397 + $0x88] sm:$0xff]
        %v646 = vld [vmem:[%s397 + $0x90] sm:$0xff]
        %v647 = vld [vmem:[%s397 + $0x98] sm:$0xf]
        %v648 = vld [vmem:[%s397 + $0x9c] sm:$0xff]
        %v649 = vld [vmem:[%s397 + $0xa4] sm:$0xff]
        %v650 = vld [vmem:[%s397 + $0xac] sm:$0xff]
        %v651 = vld [vmem:[%s397 + $0xb4] sm:$0xff]
        %v652 = vld [vmem:[%s397 + $0xbc] sm:$0xff]
        %v653 = vld [vmem:[%s397 + $0xc4] sm:$0xff]
        %v654 = vld [vmem:[%s397 + $0xcc] sm:$0xf]
        %v656 = vlaneseq
        %v657 = vshrl.u32 %v656, 7
        %v658 = vsub.s32 0, %v657
        %v659 = vrot.slane %v626, %v658
        %v689 = vunpack.c.l.b16 %v627
        %v690 = vunpack.c.h.b16 %v627
        %v691 = vunpack.c.l.b16 %v628
        %v692 = vunpack.c.h.b16 %v628
        %v693 = vunpack.c.l.b16 %v629
        %v694 = vunpack.c.h.b16 %v629
        %v695 = vunpack.c.l.b16 %v630
        %v696 = vunpack.c.h.b16 %v630
        %v697 = vunpack.c.l.b16 %v631
        %v698 = vunpack.c.h.b16 %v631
        %v699 = vunpack.c.l.b16 %v632
        %v700 = vunpack.c.h.b16 %v632
        %v701 = vunpack.c.l.b16 %v633
        %v702 = vunpack.c.l.b16 %v634
        %v703 = vunpack.c.h.b16 %v634
        %v704 = vunpack.c.l.b16 %v635
        %v705 = vunpack.c.h.b16 %v635
        %v706 = vunpack.c.l.b16 %v636
        %v707 = vunpack.c.h.b16 %v636
        %v708 = vunpack.c.l.b16 %v637
        %v709 = vunpack.c.h.b16 %v637
        %v710 = vunpack.c.l.b16 %v638
        %v711 = vunpack.c.h.b16 %v638
        %v712 = vunpack.c.l.b16 %v639
        %v713 = vunpack.c.h.b16 %v639
        %v714 = vunpack.c.l.b16 %v640
        %v715 = vunpack.c.l.b16 %v641
        %v716 = vunpack.c.h.b16 %v641
        %v717 = vunpack.c.l.b16 %v642
        %v718 = vunpack.c.h.b16 %v642
        %v719 = vunpack.c.l.b16 %v643
        %v720 = vunpack.c.h.b16 %v643
        %v721 = vunpack.c.l.b16 %v644
        %v722 = vunpack.c.h.b16 %v644
        %v723 = vunpack.c.l.b16 %v645
        %v724 = vunpack.c.h.b16 %v645
        %v725 = vunpack.c.l.b16 %v646
        %v726 = vunpack.c.h.b16 %v646
        %v727 = vunpack.c.l.b16 %v647
        %v728 = vunpack.c.l.b16 %v648
        %v729 = vunpack.c.h.b16 %v648
        %v730 = vunpack.c.l.b16 %v649
        %v731 = vunpack.c.h.b16 %v649
        %v732 = vunpack.c.l.b16 %v650
        %v733 = vunpack.c.h.b16 %v650
        %v734 = vunpack.c.l.b16 %v651
        %v735 = vunpack.c.h.b16 %v651
        %v736 = vunpack.c.l.b16 %v652
        %v737 = vunpack.c.h.b16 %v652
        %v738 = vunpack.c.l.b16 %v653
        %v739 = vunpack.c.h.b16 %v653
        %v740 = vunpack.c.l.b16 %v654
        %v741 = vpack.c.b16 %v702, %v689
        %v742 = vpack.c.b16 %v703, %v690
        %v743 = vpack.c.b16 %v704, %v691
        %v744 = vpack.c.b16 %v705, %v692
        %v745 = vpack.c.b16 %v706, %v693
        %v746 = vpack.c.b16 %v707, %v694
        %v747 = vpack.c.b16 %v708, %v695
        %v748 = vpack.c.b16 %v709, %v696
        %v749 = vpack.c.b16 %v710, %v697
        %v750 = vpack.c.b16 %v711, %v698
        %v751 = vpack.c.b16 %v712, %v699
        %v752 = vpack.c.b16 %v713, %v700
        %v753 = vpack.c.b16 %v714, %v701
        %v754 = vpack.c.b16 %v728, %v715
        %v755 = vpack.c.b16 %v729, %v716
        %v756 = vpack.c.b16 %v730, %v717
        %v757 = vpack.c.b16 %v731, %v718
        %v758 = vpack.c.b16 %v732, %v719
        %v759 = vpack.c.b16 %v733, %v720
        %v760 = vpack.c.b16 %v734, %v721
        %v761 = vpack.c.b16 %v735, %v722
        %v762 = vpack.c.b16 %v736, %v723
        %v763 = vpack.c.b16 %v737, %v724
        %v764 = vpack.c.b16 %v738, %v725
        %v765 = vpack.c.b16 %v739, %v726
        %v766 = vpack.c.b16 %v740, %v727
        %v991 = vunpack.c.l.b16 %v426
        %v992 = vunpack.c.l.b16 %v427
        %v993 = vunpack.c.l.b16 %v428
        %v994 = vunpack.c.l.b16 %v429
        %v995 = vunpack.c.l.b16 %v430
        %v996 = vunpack.c.l.b16 %v431
        %v997 = vunpack.c.l.b16 %v432
        %v998 = vunpack.c.l.b16 %v433
        %v999 = vunpack.c.l.b16 %v434
        %v1000 = vunpack.c.l.b16 %v435
        %v1001 = vunpack.c.l.b16 %v436
        %v1002 = vunpack.c.l.b16 %v437
        %v1003 = vunpack.c.l.b16 %v438
        %v1004 = vunpack.c.l.b16 %v439
        %v1005 = vunpack.c.l.b16 %v440
        %v1006 = vunpack.c.l.b16 %v441
        %v1007 = vunpack.c.l.b16 %v442
        %v1008 = vunpack.c.l.b16 %v443
        %v1009 = vunpack.c.l.b16 %v444
        %v1010 = vunpack.c.l.b16 %v445
        %v1011 = vunpack.c.l.b16 %v446
        %v1012 = vunpack.c.l.b16 %v447
        %v1013 = vunpack.c.l.b16 %v448
        %v1014 = vunpack.c.l.b16 %v449
        %v1015 = vunpack.c.l.b16 %v450
        %v1016 = vunpack.c.l.b16 %v451
        %v1017 = vunpack.c.l.b16 %v452
        %v1018 = vunpack.c.l.b16 %v453
        %v1019 = vunpack.c.l.b16 %v454
        %v1020 = vunpack.c.l.b16 %v455
        %v1021 = vunpack.c.l.b16 %v456
        %v1022 = vunpack.c.l.b16 %v457
        %v1023 = vunpack.c.l.b16 %v458
        %v1024 = vunpack.c.l.b16 %v459
        %v1025 = vunpack.c.l.b16 %v460
        %v1026 = vunpack.c.l.b16 %v461
        %v1027 = vunpack.c.l.b16 %v462
        %v1028 = vunpack.c.l.b16 %v463
        %v1029 = vunpack.c.l.b16 %v464
        %v1030 = vunpack.c.l.b16 %v465
        %v1031 = vunpack.c.l.b16 %v466
        %v1032 = vunpack.c.l.b16 %v467
        %v1033 = vunpack.c.l.b16 %v468
        %v1034 = vunpack.c.l.b16 %v469
        %v1035 = vunpack.c.l.b16 %v470
        %v1036 = vunpack.c.l.b16 %v471
        %v1037 = vunpack.c.l.b16 %v472
        %v1038 = vunpack.c.l.b16 %v473
        %v1039 = vunpack.c.l.b16 %v474
        %v1040 = vunpack.c.l.b16 %v475
        %v1041 = vunpack.c.l.b16 %v476
        %v1042 = vunpack.c.l.b16 %v477
        %v1043 = vunpack.c.l.b16 %v478
        %v1044 = vunpack.c.l.b16 %v479
        %v1045 = vunpack.c.l.b16 %v480
        %v1046 = vunpack.c.l.b16 %v481
        %v1047 = vunpack.c.l.b16 %v482
        %v1048 = vunpack.c.l.b16 %v483
        %v1049 = vunpack.c.l.b16 %v484
        %v1050 = vunpack.c.l.b16 %v485
        %v1051 = vunpack.c.l.b16 %v486
        %v1052 = vunpack.c.l.b16 %v487
        %v1053 = vunpack.c.l.b16 %v488
        %v1054 = vunpack.c.l.b16 %v489
        %v1055 = vunpack.c.l.b16 %v490
        %v1056 = vunpack.c.l.b16 %v491
        %v1057 = vunpack.c.l.b16 %v492
        %v1058 = vunpack.c.l.b16 %v493
        %v1059 = vunpack.c.l.b16 %v494
        %v1060 = vunpack.c.l.b16 %v495
        %v1061 = vunpack.c.l.b16 %v496
        %v1062 = vunpack.c.l.b16 %v497
        %v1063 = vunpack.c.l.b16 %v498
        %v1064 = vunpack.c.l.b16 %v499
        %v1065 = vunpack.c.l.b16 %v500
        %v1066 = vunpack.c.l.b16 %v501
        %v1067 = vunpack.c.l.b16 %v502
        %v1068 = vunpack.c.l.b16 %v503
        %v1069 = vunpack.c.l.b16 %v504
        %v1070 = vunpack.c.l.b16 %v505
        %v1071 = vunpack.c.l.b16 %v506
        %v1072 = vunpack.c.l.b16 %v507
        %v1073 = vunpack.c.l.b16 %v508
        %v1074 = vunpack.c.l.b16 %v509
        %v1075 = vunpack.c.l.b16 %v510
        %v1076 = vunpack.c.l.b16 %v511
        %v1077 = vunpack.c.l.b16 %v512
        %v1078 = vunpack.c.l.b16 %v513
        %v1079 = vunpack.c.l.b16 %v514
        %v1080 = vunpack.c.l.b16 %v515
        %v1081 = vunpack.c.l.b16 %v516
        %v1082 = vunpack.c.l.b16 %v517
        %v1083 = vunpack.c.l.b16 %v518
        %v1084 = vunpack.c.l.b16 %v519
        %v1085 = vunpack.c.l.b16 %v520
        %v1086 = vunpack.c.l.b16 %v521
        %v1087 = vunpack.c.l.b16 %v522
        %v1088 = vunpack.c.l.b16 %v523
        %v1089 = vunpack.c.l.b16 %v524
        %v1090 = vunpack.c.l.b16 %v525
        %v1091 = vunpack.c.l.b16 %v526
        %v1092 = vunpack.c.l.b16 %v527
        %v1093 = vunpack.c.l.b16 %v528
        %v1094 = vunpack.c.l.b16 %v529
        %v1095 = vunpack.c.l.b16 %v530
        %v1096 = vunpack.c.l.b16 %v531
        %v1097 = vunpack.c.l.b16 %v532
        %v1098 = vunpack.c.l.b16 %v533
        %v1099 = vunpack.c.l.b16 %v534
        %v1100 = vunpack.c.l.b16 %v535
        %v1101 = vunpack.c.l.b16 %v536
        %v1102 = vunpack.c.l.b16 %v537
        %v1103 = vunpack.c.l.b16 %v538
        %v1104 = vunpack.c.l.b16 %v539
        %v1105 = vunpack.c.l.b16 %v540
        %v1106 = vunpack.c.l.b16 %v541
        %v1107 = vunpack.c.l.b16 %v542
        %v1108 = vunpack.c.l.b16 %v543
        %v1109 = vunpack.c.l.b16 %v544
        %v1110 = vunpack.c.l.b16 %v545
        %v1111 = vunpack.c.l.b16 %v546
        %v1112 = vunpack.c.l.b16 %v547
        %v1113 = vunpack.c.l.b16 %v548
        %v1114 = vunpack.c.l.b16 %v549
        %v1115 = vunpack.c.l.b16 %v550
        %v1116 = vunpack.c.l.b16 %v551
        %v1117 = vunpack.c.l.b16 %v552
        %v1118 = vunpack.c.l.b16 %v553
        %v1119 = vunpack.c.l.b16 %v554
        %v1120 = vunpack.c.l.b16 %v555
        %v1121 = vunpack.c.l.b16 %v556
        %v1122 = vunpack.c.l.b16 %v557
        %v1123 = vunpack.c.l.b16 %v558
        %v1124 = vunpack.c.l.b16 %v559
        %v1125 = vunpack.c.l.b16 %v560
        %v1126 = vunpack.c.l.b16 %v561
        %v1127 = vunpack.c.l.b16 %v562
        %v1128 = vunpack.c.l.b16 %v563
        %v1129 = vunpack.c.l.b16 %v564
        %v1130 = vunpack.c.l.b16 %v565
        %v1131 = vunpack.c.l.b16 %v566
        %v1132 = vunpack.c.l.b16 %v567
        %v1133 = vunpack.c.l.b16 %v568
        %v1134 = vunpack.c.l.b16 %v569
        %v1135 = vunpack.c.l.b16 %v570
        %v1136 = vunpack.c.l.b16 %v571
        %v1137 = vunpack.c.l.b16 %v572
        %v1138 = vunpack.c.l.b16 %v573
        %v1139 = vunpack.c.l.b16 %v574
        %v1140 = vunpack.c.l.b16 %v575
        %v1141 = vunpack.c.l.b16 %v576
        %v1142 = vunpack.c.l.b16 %v577
        %v1143 = vunpack.c.l.b16 %v578
        %v1144 = vunpack.c.l.b16 %v579
        %v1145 = vunpack.c.l.b16 %v580
        %v1146 = vunpack.c.l.b16 %v581
        %v1147 = vunpack.c.l.b16 %v582
        %v1148 = vunpack.c.l.b16 %v583
        %v1149 = vunpack.c.l.b16 %v584
        %v1150 = vunpack.c.l.b16 %v585
        %v1151 = vunpack.c.l.b16 %v586
        %v1152 = vunpack.c.l.b16 %v587
        %v1153 = vunpack.c.l.b16 %v588
        %v1154 = vunpack.c.l.b16 %v589
        %v1155 = vunpack.c.l.b16 %v590
        %v1156 = vunpack.c.l.b16 %v591
        %v1157 = vunpack.c.l.b16 %v592
        %v1158 = vunpack.c.l.b16 %v593
        %v1159 = vunpack.c.l.b16 %v594
        %v1160 = vunpack.c.l.b16 %v595
        %v1161 = vunpack.c.l.b16 %v596
        %v1162 = vunpack.c.l.b16 %v597
        %v1163 = vunpack.c.l.b16 %v598
        %v1164 = vunpack.c.l.b16 %v599
        %v1165 = vunpack.c.l.b16 %v600
        %v1166 = vunpack.c.l.b16 %v601
        %v1167 = vunpack.c.l.b16 %v602
        %v1168 = vunpack.c.l.b16 %v603
        %v1169 = vunpack.c.l.b16 %v604
        %v1170 = vunpack.c.l.b16 %v605
        %v1171 = vunpack.c.l.b16 %v606
        %v1172 = vunpack.c.l.b16 %v607
        %v1173 = vunpack.c.l.b16 %v608
        %v1174 = vunpack.c.l.b16 %v609
        %v1175 = vunpack.c.l.b16 %v610
        %v1176 = vunpack.c.l.b16 %v611
        %v1177 = vunpack.c.l.b16 %v612
        %v1178 = vunpack.c.l.b16 %v613
        %v1179 = vunpack.c.l.b16 %v614
        %v1180 = vunpack.c.l.b16 %v615
        %v1181 = vunpack.c.l.b16 %v616
        %v1182 = vunpack.c.l.b16 %v617
        %v1183 = vunpack.c.l.b16 %v618
        %v1184 = vunpack.c.l.b16 %v619
        %v1185 = vunpack.c.l.b16 %v620
        %v1186 = vunpack.c.l.b16 %v621
        %v1187 = vunpack.c.l.b16 %v622
        %v1188 = vunpack.c.l.b16 %v623
        %v1189 = vunpack.c.l.b16 %v624
        %v1190 = vunpack.c.l.b16 %v625
        %v1191 = vpack.c.b16 %v992, %v991
        %v1192 = vpack.c.b16 %v994, %v993
        %v1193 = vpack.c.b16 %v996, %v995
        %v1194 = vpack.c.b16 %v998, %v997
        %v1195 = vpack.c.b16 %v1000, %v999
        %v1196 = vpack.c.b16 %v1002, %v1001
        %v1197 = vpack.c.b16 %v1004, %v1003
        %v1198 = vpack.c.b16 %v1006, %v1005
        %v1199 = vpack.c.b16 %v1008, %v1007
        %v1200 = vpack.c.b16 %v1010, %v1009
        %v1201 = vpack.c.b16 %v1012, %v1011
        %v1202 = vpack.c.b16 %v1014, %v1013
        %v1203 = vpack.c.b16 %v1016, %v1015
        %v1204 = vpack.c.b16 %v1018, %v1017
        %v1205 = vpack.c.b16 %v1020, %v1019
        %v1206 = vpack.c.b16 %v1022, %v1021
        %v1207 = vpack.c.b16 %v1024, %v1023
        %v1208 = vpack.c.b16 %v1026, %v1025
        %v1209 = vpack.c.b16 %v1028, %v1027
        %v1210 = vpack.c.b16 %v1030, %v1029
        %v1211 = vpack.c.b16 %v1032, %v1031
        %v1212 = vpack.c.b16 %v1034, %v1033
        %v1213 = vpack.c.b16 %v1036, %v1035
        %v1214 = vpack.c.b16 %v1038, %v1037
        %v1215 = vpack.c.b16 %v1040, %v1039
        %v1216 = vpack.c.b16 %v1042, %v1041
        %v1217 = vpack.c.b16 %v1044, %v1043
        %v1218 = vpack.c.b16 %v1046, %v1045
        %v1219 = vpack.c.b16 %v1048, %v1047
        %v1220 = vpack.c.b16 %v1050, %v1049
        %v1221 = vpack.c.b16 %v1052, %v1051
        %v1222 = vpack.c.b16 %v1054, %v1053
        %v1223 = vpack.c.b16 %v1056, %v1055
        %v1224 = vpack.c.b16 %v1058, %v1057
        %v1225 = vpack.c.b16 %v1060, %v1059
        %v1226 = vpack.c.b16 %v1062, %v1061
        %v1227 = vpack.c.b16 %v1064, %v1063
        %v1228 = vpack.c.b16 %v1066, %v1065
        %v1229 = vpack.c.b16 %v1068, %v1067
        %v1230 = vpack.c.b16 %v1070, %v1069
        %v1231 = vpack.c.b16 %v1072, %v1071
        %v1232 = vpack.c.b16 %v1074, %v1073
        %v1233 = vpack.c.b16 %v1076, %v1075
        %v1234 = vpack.c.b16 %v1078, %v1077
        %v1235 = vpack.c.b16 %v1080, %v1079
        %v1236 = vpack.c.b16 %v1082, %v1081
        %v1237 = vpack.c.b16 %v1084, %v1083
        %v1238 = vpack.c.b16 %v1086, %v1085
        %v1239 = vpack.c.b16 %v1088, %v1087
        %v1240 = vpack.c.b16 %v1090, %v1089
        %v1241 = vpack.c.b16 %v1092, %v1091
        %v1242 = vpack.c.b16 %v1094, %v1093
        %v1243 = vpack.c.b16 %v1096, %v1095
        %v1244 = vpack.c.b16 %v1098, %v1097
        %v1245 = vpack.c.b16 %v1100, %v1099
        %v1246 = vpack.c.b16 %v1102, %v1101
        %v1247 = vpack.c.b16 %v1104, %v1103
        %v1248 = vpack.c.b16 %v1106, %v1105
        %v1249 = vpack.c.b16 %v1108, %v1107
        %v1250 = vpack.c.b16 %v1110, %v1109
        %v1251 = vpack.c.b16 %v1112, %v1111
        %v1252 = vpack.c.b16 %v1114, %v1113
        %v1253 = vpack.c.b16 %v1116, %v1115
        %v1254 = vpack.c.b16 %v1118, %v1117
        %v1255 = vpack.c.b16 %v1120, %v1119
        %v1256 = vpack.c.b16 %v1122, %v1121
        %v1257 = vpack.c.b16 %v1124, %v1123
        %v1258 = vpack.c.b16 %v1126, %v1125
        %v1259 = vpack.c.b16 %v1128, %v1127
        %v1260 = vpack.c.b16 %v1130, %v1129
        %v1261 = vpack.c.b16 %v1132, %v1131
        %v1262 = vpack.c.b16 %v1134, %v1133
        %v1263 = vpack.c.b16 %v1136, %v1135
        %v1264 = vpack.c.b16 %v1138, %v1137
        %v1265 = vpack.c.b16 %v1140, %v1139
        %v1266 = vpack.c.b16 %v1142, %v1141
        %v1267 = vpack.c.b16 %v1144, %v1143
        %v1268 = vpack.c.b16 %v1146, %v1145
        %v1269 = vpack.c.b16 %v1148, %v1147
        %v1270 = vpack.c.b16 %v1150, %v1149
        %v1271 = vpack.c.b16 %v1152, %v1151
        %v1272 = vpack.c.b16 %v1154, %v1153
        %v1273 = vpack.c.b16 %v1156, %v1155
        %v1274 = vpack.c.b16 %v1158, %v1157
        %v1275 = vpack.c.b16 %v1160, %v1159
        %v1276 = vpack.c.b16 %v1162, %v1161
        %v1277 = vpack.c.b16 %v1164, %v1163
        %v1278 = vpack.c.b16 %v1166, %v1165
        %v1279 = vpack.c.b16 %v1168, %v1167
        %v1280 = vpack.c.b16 %v1170, %v1169
        %v1281 = vpack.c.b16 %v1172, %v1171
        %v1282 = vpack.c.b16 %v1174, %v1173
        %v1283 = vpack.c.b16 %v1176, %v1175
        %v1284 = vpack.c.b16 %v1178, %v1177
        %v1285 = vpack.c.b16 %v1180, %v1179
        %v1286 = vpack.c.b16 %v1182, %v1181
        %v1287 = vpack.c.b16 %v1184, %v1183
        %v1288 = vpack.c.b16 %v1186, %v1185
        %v1289 = vpack.c.b16 %v1188, %v1187
        %v1290 = vpack.c.b16 %v1190, %v1189
        %vm1391 = vcmask 523264
        %v1393 = vsel %vm1391, %v753, 0
        %v1396 = vsel %vm1391, %v766, 0
        %1398 = vmatprep.subr.bf16.mxu0 0
        %1399 = vmatpush1.bf16.msra.mxu0 %v1191
        %1400 = vmatprep.subr.bf16.mxu0 0
        %1401 = vmatpush1.bf16.msra.mxu0 %v1192
        %1402 = vmatprep.subr.bf16.mxu0 0
        %1403 = vmatpush1.bf16.msra.mxu0 %v1193
        %1404 = vmatprep.subr.bf16.mxu0 0
        %1405 = vmatpush1.bf16.msra.mxu0 %v1194
        %1406 = vmatprep.subr.bf16.mxu0 0
        %1407 = vmatpush1.bf16.msra.mxu0 %v1195
        %1408 = vmatprep.subr.bf16.mxu0 0
        %1409 = vmatpush1.bf16.msra.mxu0 %v1196
        %1410 = vmatprep.subr.bf16.mxu0 0
        %1411 = vmatpush1.bf16.msra.mxu0 %v1197
        %1412 = vmatprep.subr.bf16.mxu0 0
        %1413 = vmatpush1.bf16.msra.mxu0 %v1198
        %1414 = vmatprep.subr.bf16.mxu0 0
        %1415 = vmatpush1.bf16.msra.mxu0 %v1199
        %1416 = vmatprep.subr.bf16.mxu0 0
        %1417 = vmatpush1.bf16.msra.mxu0 %v1200
        %1418 = vmatprep.subr.bf16.mxu0 0
        %1419 = vmatpush1.bf16.msra.mxu0 %v1201
        %1420 = vmatprep.subr.bf16.mxu0 0
        %1421 = vmatpush1.bf16.msra.mxu0 %v1202
        %1422 = vmatprep.subr.bf16.mxu0 0
        %1423 = vmatpush1.bf16.msra.mxu0 %v1203
        %1424 = vmatprep.subr.bf16.mxu0 0
        %1425 = vmatpush1.bf16.msra.mxu0 %v1204
        %1426 = vmatprep.subr.bf16.mxu0 0
        %1427 = vmatpush1.bf16.msra.mxu0 %v1205
        %1428 = vmatprep.subr.bf16.mxu0 0
        %1429 = vmatpush1.bf16.msra.mxu0 %v1206
        %1430 = vmatprep.mubr.bf16.mxu0 %v742
        %1431 = vmatmul.mubr.bf16.gmra.mrb[0].mxu0 %v741
        %v1432 = vpop.f32.mrb[0].mxu0
        %v1433 = vadd.f32 %v659, %v1432
        %v1434 = vpop.f32.mrb[0].mxu0
        %v1435 = vpop.f32.mrb[0].mxu0
        %v1436 = vadd.f32 %v659, %v1435
        %v1437 = vpop.f32.mrb[0].mxu0
        %1438 = vmatprep.mubr.bf16.mxu0 %v755
        %1439 = vmatmul.mubr.bf16.gmra.mrb[0].mxu0 %v754
        %v1440 = vpop.f32.mrb[0].mxu0
        %v1441 = vadd.f32 %v659, %v1440
        %v1442 = vpop.f32.mrb[0].mxu0
        %v1443 = vpop.f32.mrb[0].mxu0
        %v1444 = vadd.f32 %v659, %v1443
        %v1445 = vpop.f32.mrb[0].mxu0
        %1446 = vdwg.mxu0
        %1447 = vmatprep.subr.bf16.mxu0 0
        %1448 = vmatpush1.bf16.msra.mxu0 %v1207
        %1449 = vmatprep.subr.bf16.mxu0 0
        %1450 = vmatpush1.bf16.msra.mxu0 %v1208
        %1451 = vmatprep.subr.bf16.mxu0 0
        %1452 = vmatpush1.bf16.msra.mxu0 %v1209
        %1453 = vmatprep.subr.bf16.mxu0 0
        %1454 = vmatpush1.bf16.msra.mxu0 %v1210
        %1455 = vmatprep.subr.bf16.mxu0 0
        %1456 = vmatpush1.bf16.msra.mxu0 %v1211
        %1457 = vmatprep.subr.bf16.mxu0 0
        %1458 = vmatpush1.bf16.msra.mxu0 %v1212
        %1459 = vmatprep.subr.bf16.mxu0 0
        %1460 = vmatpush1.bf16.msra.mxu0 %v1213
        %1461 = vmatprep.subr.bf16.mxu0 0
        %1462 = vmatpush1.bf16.msra.mxu0 %v1214
        %1463 = vmatprep.subr.bf16.mxu0 0
        %1464 = vmatpush1.bf16.msra.mxu0 %v1215
        %1465 = vmatprep.subr.bf16.mxu0 0
        %1466 = vmatpush1.bf16.msra.mxu0 %v1216
        %1467 = vmatprep.subr.bf16.mxu0 0
        %1468 = vmatpush1.bf16.msra.mxu0 %v1217
        %1469 = vmatprep.subr.bf16.mxu0 0
        %1470 = vmatpush1.bf16.msra.mxu0 %v1218
        %1471 = vmatprep.subr.bf16.mxu0 0
        %1472 = vmatpush1.bf16.msra.mxu0 %v1219
        %1473 = vmatprep.subr.bf16.mxu0 0
        %1474 = vmatpush1.bf16.msra.mxu0 %v1220
        %1475 = vmatprep.subr.bf16.mxu0 0
        %1476 = vmatpush1.bf16.msra.mxu0 %v1221
        %1477 = vmatprep.subr.bf16.mxu0 0
        %1478 = vmatpush1.bf16.msra.mxu0 %v1222
        %1479 = vmatprep.mubr.bf16.mxu0 %v744
        %1480 = vmatmul.mubr.bf16.gmra.mrb[0].mxu0 %v743
        %v1481 = vpop.f32.mrb[0].mxu0
        %v1482 = vadd.f32 %v1433, %v1481
        %v1483 = vpop.f32.mrb[0].mxu0
        %v1484 = vpop.f32.mrb[0].mxu0
        %v1485 = vadd.f32 %v1436, %v1484
        %v1486 = vpop.f32.mrb[0].mxu0
        %1487 = vmatprep.mubr.bf16.mxu0 %v757
        %1488 = vmatmul.mubr.bf16.gmra.mrb[0].mxu0 %v756
        %v1489 = vpop.f32.mrb[0].mxu0
        %v1490 = vadd.f32 %v1441, %v1489
        %v1491 = vpop.f32.mrb[0].mxu0
        %v1492 = vpop.f32.mrb[0].mxu0
        %v1493 = vadd.f32 %v1444, %v1492
        %v1494 = vpop.f32.mrb[0].mxu0
        %1495 = vdwg.mxu0
        %1496 = vmatprep.subr.bf16.mxu0 0
        %1497 = vmatpush1.bf16.msra.mxu0 %v1223
        %1498 = vmatprep.subr.bf16.mxu0 0
        %1499 = vmatpush1.bf16.msra.mxu0 %v1224
        %1500 = vmatprep.subr.bf16.mxu0 0
        %1501 = vmatpush1.bf16.msra.mxu0 %v1225
        %1502 = vmatprep.subr.bf16.mxu0 0
        %1503 = vmatpush1.bf16.msra.mxu0 %v1226
        %1504 = vmatprep.subr.bf16.mxu0 0
        %1505 = vmatpush1.bf16.msra.mxu0 %v1227
        %1506 = vmatprep.subr.bf16.mxu0 0
        %1507 = vmatpush1.bf16.msra.mxu0 %v1228
        %1508 = vmatprep.subr.bf16.mxu0 0
        %1509 = vmatpush1.bf16.msra.mxu0 %v1229
        %1510 = vmatprep.subr.bf16.mxu0 0
        %1511 = vmatpush1.bf16.msra.mxu0 %v1230
        %1512 = vmatprep.subr.bf16.mxu0 0
        %1513 = vmatpush1.bf16.msra.mxu0 %v1231
        %1514 = vmatprep.subr.bf16.mxu0 0
        %1515 = vmatpush1.bf16.msra.mxu0 %v1232
        %1516 = vmatprep.subr.bf16.mxu0 0
        %1517 = vmatpush1.bf16.msra.mxu0 %v1233
        %1518 = vmatprep.subr.bf16.mxu0 0
        %1519 = vmatpush1.bf16.msra.mxu0 %v1234
        %1520 = vmatprep.subr.bf16.mxu0 0
        %1521 = vmatpush1.bf16.msra.mxu0 %v1235
        %1522 = vmatprep.subr.bf16.mxu0 0
        %1523 = vmatpush1.bf16.msra.mxu0 %v1236
        %1524 = vmatprep.subr.bf16.mxu0 0
        %1525 = vmatpush1.bf16.msra.mxu0 %v1237
        %1526 = vmatprep.subr.bf16.mxu0 0
        %1527 = vmatpush1.bf16.msra.mxu0 %v1238
        %1528 = vmatprep.mubr.bf16.mxu0 %v746
        %1529 = vmatmul.mubr.bf16.gmra.mrb[0].mxu0 %v745
        %v1530 = vpop.f32.mrb[0].mxu0
        %v1531 = vadd.f32 %v1482, %v1530
        %v1532 = vpop.f32.mrb[0].mxu0
        %v1533 = vpop.f32.mrb[0].mxu0
        %v1534 = vadd.f32 %v1485, %v1533
        %v1535 = vpop.f32.mrb[0].mxu0
        %1536 = vmatprep.mubr.bf16.mxu0 %v759
        %1537 = vmatmul.mubr.bf16.gmra.mrb[0].mxu0 %v758
        %v1538 = vpop.f32.mrb[0].mxu0
        %v1539 = vadd.f32 %v1490, %v1538
        %v1540 = vpop.f32.mrb[0].mxu0
        %v1541 = vpop.f32.mrb[0].mxu0
        %v1542 = vadd.f32 %v1493, %v1541
        %v1543 = vpop.f32.mrb[0].mxu0
        %1544 = vdwg.mxu0
        %1545 = vmatprep.subr.bf16.mxu0 0
        %1546 = vmatpush1.bf16.msra.mxu0 %v1239
        %1547 = vmatprep.subr.bf16.mxu0 0
        %1548 = vmatpush1.bf16.msra.mxu0 %v1240
        %1549 = vmatprep.subr.bf16.mxu0 0
        %1550 = vmatpush1.bf16.msra.mxu0 %v1241
        %1551 = vmatprep.subr.bf16.mxu0 0
        %1552 = vmatpush1.bf16.msra.mxu0 %v1242
        %1553 = vmatprep.subr.bf16.mxu0 0
        %1554 = vmatpush1.bf16.msra.mxu0 %v1243
        %1555 = vmatprep.subr.bf16.mxu0 0
        %1556 = vmatpush1.bf16.msra.mxu0 %v1244
        %1557 = vmatprep.subr.bf16.mxu0 0
        %1558 = vmatpush1.bf16.msra.mxu0 %v1245
        %1559 = vmatprep.subr.bf16.mxu0 0
        %1560 = vmatpush1.bf16.msra.mxu0 %v1246
        %1561 = vmatprep.subr.bf16.mxu0 0
        %1562 = vmatpush1.bf16.msra.mxu0 %v1247
        %1563 = vmatprep.subr.bf16.mxu0 0
        %1564 = vmatpush1.bf16.msra.mxu0 %v1248
        %1565 = vmatprep.subr.bf16.mxu0 0
        %1566 = vmatpush1.bf16.msra.mxu0 %v1249
        %1567 = vmatprep.subr.bf16.mxu0 0
        %1568 = vmatpush1.bf16.msra.mxu0 %v1250
        %1569 = vmatprep.subr.bf16.mxu0 0
        %1570 = vmatpush1.bf16.msra.mxu0 %v1251
        %1571 = vmatprep.subr.bf16.mxu0 0
        %1572 = vmatpush1.bf16.msra.mxu0 %v1252
        %1573 = vmatprep.subr.bf16.mxu0 0
        %1574 = vmatpush1.bf16.msra.mxu0 %v1253
        %1575 = vmatprep.subr.bf16.mxu0 0
        %1576 = vmatpush1.bf16.msra.mxu0 %v1254
        %1577 = vmatprep.mubr.bf16.mxu0 %v748
        %1578 = vmatmul.mubr.bf16.gmra.mrb[0].mxu0 %v747
        %v1579 = vpop.f32.mrb[0].mxu0
        %v1580 = vadd.f32 %v1531, %v1579
        %v1581 = vpop.f32.mrb[0].mxu0
        %v1582 = vpop.f32.mrb[0].mxu0
        %v1583 = vadd.f32 %v1534, %v1582
        %v1584 = vpop.f32.mrb[0].mxu0
        %1585 = vmatprep.mubr.bf16.mxu0 %v761
        %1586 = vmatmul.mubr.bf16.gmra.mrb[0].mxu0 %v760
        %v1587 = vpop.f32.mrb[0].mxu0
        %v1588 = vadd.f32 %v1539, %v1587
        %v1589 = vpop.f32.mrb[0].mxu0
        %v1590 = vpop.f32.mrb[0].mxu0
        %v1591 = vadd.f32 %v1542, %v1590
        %v1592 = vpop.f32.mrb[0].mxu0
        %1593 = vdwg.mxu0
        %1594 = vmatprep.subr.bf16.mxu0 0
        %1595 = vmatpush1.bf16.msra.mxu0 %v1255
        %1596 = vmatprep.subr.bf16.mxu0 0
        %1597 = vmatpush1.bf16.msra.mxu0 %v1256
        %1598 = vmatprep.subr.bf16.mxu0 0
        %1599 = vmatpush1.bf16.msra.mxu0 %v1257
        %1600 = vmatprep.subr.bf16.mxu0 0
        %1601 = vmatpush1.bf16.msra.mxu0 %v1258
        %1602 = vmatprep.subr.bf16.mxu0 0
        %1603 = vmatpush1.bf16.msra.mxu0 %v1259
        %1604 = vmatprep.subr.bf16.mxu0 0
        %1605 = vmatpush1.bf16.msra.mxu0 %v1260
        %1606 = vmatprep.subr.bf16.mxu0 0
        %1607 = vmatpush1.bf16.msra.mxu0 %v1261
        %1608 = vmatprep.subr.bf16.mxu0 0
        %1609 = vmatpush1.bf16.msra.mxu0 %v1262
        %1610 = vmatprep.subr.bf16.mxu0 0
        %1611 = vmatpush1.bf16.msra.mxu0 %v1263
        %1612 = vmatprep.subr.bf16.mxu0 0
        %1613 = vmatpush1.bf16.msra.mxu0 %v1264
        %1614 = vmatprep.subr.bf16.mxu0 0
        %1615 = vmatpush1.bf16.msra.mxu0 %v1265
        %1616 = vmatprep.subr.bf16.mxu0 0
        %1617 = vmatpush1.bf16.msra.mxu0 %v1266
        %1618 = vmatprep.subr.bf16.mxu0 0
        %1619 = vmatpush1.bf16.msra.mxu0 %v1267
        %1620 = vmatprep.subr.bf16.mxu0 0
        %1621 = vmatpush1.bf16.msra.mxu0 %v1268
        %1622 = vmatprep.subr.bf16.mxu0 0
        %1623 = vmatpush1.bf16.msra.mxu0 %v1269
        %1624 = vmatprep.subr.bf16.mxu0 0
        %1625 = vmatpush1.bf16.msra.mxu0 %v1270
        %1626 = vmatprep.mubr.bf16.mxu0 %v750
        %1627 = vmatmul.mubr.bf16.gmra.mrb[0].mxu0 %v749
        %v1628 = vpop.f32.mrb[0].mxu0
        %v1629 = vadd.f32 %v1580, %v1628
        %v1630 = vpop.f32.mrb[0].mxu0
        %v1631 = vpop.f32.mrb[0].mxu0
        %v1632 = vadd.f32 %v1583, %v1631
        %v1633 = vpop.f32.mrb[0].mxu0
        %1634 = vmatprep.mubr.bf16.mxu0 %v763
        %1635 = vmatmul.mubr.bf16.gmra.mrb[0].mxu0 %v762
        %v1636 = vpop.f32.mrb[0].mxu0
        %v1637 = vadd.f32 %v1588, %v1636
        %v1638 = vpop.f32.mrb[0].mxu0
        %v1639 = vpop.f32.mrb[0].mxu0
        %v1640 = vadd.f32 %v1591, %v1639
        %v1641 = vpop.f32.mrb[0].mxu0
        %1642 = vdwg.mxu0
        %1643 = vmatprep.subr.bf16.mxu0 0
        %1644 = vmatpush1.bf16.msra.mxu0 %v1271
        %1645 = vmatprep.subr.bf16.mxu0 0
        %1646 = vmatpush1.bf16.msra.mxu0 %v1272
        %1647 = vmatprep.subr.bf16.mxu0 0
        %1648 = vmatpush1.bf16.msra.mxu0 %v1273
        %1649 = vmatprep.subr.bf16.mxu0 0
        %1650 = vmatpush1.bf16.msra.mxu0 %v1274
        %1651 = vmatprep.subr.bf16.mxu0 0
        %1652 = vmatpush1.bf16.msra.mxu0 %v1275
        %1653 = vmatprep.subr.bf16.mxu0 0
        %1654 = vmatpush1.bf16.msra.mxu0 %v1276
        %1655 = vmatprep.subr.bf16.mxu0 0
        %1656 = vmatpush1.bf16.msra.mxu0 %v1277
        %1657 = vmatprep.subr.bf16.mxu0 0
        %1658 = vmatpush1.bf16.msra.mxu0 %v1278
        %1659 = vmatprep.subr.bf16.mxu0 0
        %1660 = vmatpush1.bf16.msra.mxu0 %v1279
        %1661 = vmatprep.subr.bf16.mxu0 0
        %1662 = vmatpush1.bf16.msra.mxu0 %v1280
        %1663 = vmatprep.subr.bf16.mxu0 0
        %1664 = vmatpush1.bf16.msra.mxu0 %v1281
        %1665 = vmatprep.subr.bf16.mxu0 0
        %1666 = vmatpush1.bf16.msra.mxu0 %v1282
        %1667 = vmatprep.subr.bf16.mxu0 0
        %1668 = vmatpush1.bf16.msra.mxu0 %v1283
        %1669 = vmatprep.subr.bf16.mxu0 0
        %1670 = vmatpush1.bf16.msra.mxu0 %v1284
        %1671 = vmatprep.subr.bf16.mxu0 0
        %1672 = vmatpush1.bf16.msra.mxu0 %v1285
        %1673 = vmatprep.subr.bf16.mxu0 0
        %1674 = vmatpush1.bf16.msra.mxu0 %v1286
        %1675 = vmatprep.mubr.bf16.mxu0 %v752
        %1676 = vmatmul.mubr.bf16.gmra.mrb[0].mxu0 %v751
        %v1677 = vpop.f32.mrb[0].mxu0
        %v1678 = vadd.f32 %v1629, %v1677
        %v1679 = vpop.f32.mrb[0].mxu0
        %v1680 = vpop.f32.mrb[0].mxu0
        %v1681 = vadd.f32 %v1632, %v1680
        %v1682 = vpop.f32.mrb[0].mxu0
        %1683 = vmatprep.mubr.bf16.mxu0 %v765
        %1684 = vmatmul.mubr.bf16.gmra.mrb[0].mxu0 %v764
        %v1685 = vpop.f32.mrb[0].mxu0
        %v1686 = vadd.f32 %v1637, %v1685
        %v1687 = vpop.f32.mrb[0].mxu0
        %v1688 = vpop.f32.mrb[0].mxu0
        %v1689 = vadd.f32 %v1640, %v1688
        %v1690 = vpop.f32.mrb[0].mxu0
        %1691 = vdwg.mxu0
        %1692 = vmatprep.subr.bf16.mxu0 0
        %1693 = vmatpush1.bf16.msra.mxu0 %v1287
        %1694 = vmatprep.subr.bf16.mxu0 0
        %1695 = vmatpush1.bf16.msra.mxu0 %v1288
        %1696 = vmatprep.subr.bf16.mxu0 0
        %1697 = vmatpush1.bf16.msra.mxu0 %v1289
        %1698 = vmatprep.subr.bf16.mxu0 0
        %1699 = vmatpush1.bf16.msra.mxu0 %v1290
        %1700 = vmatprep.subr.bf16.mxu0 0
        %1701 = vmatpush1.bf16.msra.mxu0 0
        %1702 = vmatprep.subr.bf16.mxu0 0
        %1703 = vmatpush1.bf16.msra.mxu0 0
        %1704 = vmatprep.subr.bf16.mxu0 0
        %1705 = vmatpush1.bf16.msra.mxu0 0
        %1706 = vmatprep.subr.bf16.mxu0 0
        %1707 = vmatpush1.bf16.msra.mxu0 0
        %1708 = vmatprep.subr.bf16.mxu0 0
        %1709 = vmatpush1.bf16.msra.mxu0 0
        %1710 = vmatprep.subr.bf16.mxu0 0
        %1711 = vmatpush1.bf16.msra.mxu0 0
        %1712 = vmatprep.subr.bf16.mxu0 0
        %1713 = vmatpush1.bf16.msra.mxu0 0
        %1714 = vmatprep.subr.bf16.mxu0 0
        %1715 = vmatpush1.bf16.msra.mxu0 0
        %1716 = vmatprep.subr.bf16.mxu0 0
        %1717 = vmatpush1.bf16.msra.mxu0 0
        %1718 = vmatprep.subr.bf16.mxu0 0
        %1719 = vmatpush1.bf16.msra.mxu0 0
        %1720 = vmatprep.subr.bf16.mxu0 0
        %1721 = vmatpush1.bf16.msra.mxu0 0
        %1722 = vmatprep.subr.bf16.mxu0 0
        %1723 = vmatpush1.bf16.msra.mxu0 0
        %1724 = vmatprep.mubr.bf16.mxu0 0
        %1725 = vmatmul.mubr.bf16.gmra.mrb[0].mxu0 %v1393
        %v1726 = vpop.f32.mrb[0].mxu0
        %v1727 = vadd.f32 %v1678, %v1726
        %v1728 = vpop.f32.mrb[0].mxu0
        %v1729 = vpop.f32.mrb[0].mxu0
        %v1730 = vadd.f32 %v1681, %v1729
        %v1731 = vpop.f32.mrb[0].mxu0
        %1732 = vmatprep.mubr.bf16.mxu0 0
        %1733 = vmatmul.mubr.bf16.gmra.mrb[0].mxu0 %v1396
        %v1734 = vpop.f32.mrb[0].mxu0
        %v1735 = vadd.f32 %v1686, %v1734
        %v1736 = vpop.f32.mrb[0].mxu0
        %v1737 = vpop.f32.mrb[0].mxu0
        %v1738 = vadd.f32 %v1689, %v1737
        %v1739 = vpop.f32.mrb[0].mxu0
        %1740 = vdwg.mxu0
        %v1741 = vmax.f32 %v1727, 0.0
        %v1742 = vmax.f32 %v1730, 0.0
        %v1743 = vmax.f32 %v1735, 0.0
        %v1744 = vmax.f32 %v1738, 0.0
        %s1745 = scalar_lea.vmem %s397, 208 [#allocation2]
        %v1746 = vld [vmem:[%s1745] sm:$0xff]
        %v1747 = vld [vmem:[%s1745 + $0x8] sm:$0xff]
        %v1748 = vld [vmem:[%s1745 + $0x10] sm:$0xff]
        %v1749 = vld [vmem:[%s1745 + $0x18] sm:$0xff]
        %v1750 = vld [vmem:[%s1745 + $0x20] sm:$0xff]
        %v1751 = vld [vmem:[%s1745 + $0x28] sm:$0xff]
        %v1752 = vld [vmem:[%s1745 + $0x30] sm:$0xf]
        %v1753 = vld [vmem:[%s1745 + $0x34] sm:$0xff]
        %v1754 = vld [vmem:[%s1745 + $0x3c] sm:$0xff]
        %v1755 = vld [vmem:[%s1745 + $0x44] sm:$0xff]
        %v1756 = vld [vmem:[%s1745 + $0x4c] sm:$0xff]
        %v1757 = vld [vmem:[%s1745 + $0x54] sm:$0xff]
        %v1758 = vld [vmem:[%s1745 + $0x5c] sm:$0xff]
        %v1759 = vld [vmem:[%s1745 + $0x64] sm:$0xf]
        %v1760 = vld [vmem:[%s1745 + $0x68] sm:$0xff]
        %v1761 = vld [vmem:[%s1745 + $0x70] sm:$0xff]
        %v1762 = vld [vmem:[%s1745 + $0x78] sm:$0xff]
        %v1763 = vld [vmem:[%s1745 + $0x80] sm:$0xff]
        %v1764 = vld [vmem:[%s1745 + $0x88] sm:$0xff]
        %v1765 = vld [vmem:[%s1745 + $0x90] sm:$0xff]
        %v1766 = vld [vmem:[%s1745 + $0x98] sm:$0xf]
        %v1767 = vld [vmem:[%s1745 + $0x9c] sm:$0xff]
        %v1768 = vld [vmem:[%s1745 + $0xa4] sm:$0xff]
        %v1769 = vld [vmem:[%s1745 + $0xac] sm:$0xff]
        %v1770 = vld [vmem:[%s1745 + $0xb4] sm:$0xff]
        %v1771 = vld [vmem:[%s1745 + $0xbc] sm:$0xff]
        %v1772 = vld [vmem:[%s1745 + $0xc4] sm:$0xff]
        %v1773 = vld [vmem:[%s1745 + $0xcc] sm:$0xf]
        %v1802 = vunpack.c.l.b16 %v1746
        %v1803 = vunpack.c.h.b16 %v1746
        %v1804 = vunpack.c.l.b16 %v1747
        %v1805 = vunpack.c.h.b16 %v1747
        %v1806 = vunpack.c.l.b16 %v1748
        %v1807 = vunpack.c.h.b16 %v1748
        %v1808 = vunpack.c.l.b16 %v1749
        %v1809 = vunpack.c.h.b16 %v1749
        %v1810 = vunpack.c.l.b16 %v1750
        %v1811 = vunpack.c.h.b16 %v1750
        %v1812 = vunpack.c.l.b16 %v1751
        %v1813 = vunpack.c.h.b16 %v1751
        %v1814 = vunpack.c.l.b16 %v1752
        %v1815 = vunpack.c.l.b16 %v1753
        %v1816 = vunpack.c.h.b16 %v1753
        %v1817 = vunpack.c.l.b16 %v1754
        %v1818 = vunpack.c.h.b16 %v1754
        %v1819 = vunpack.c.l.b16 %v1755
        %v1820 = vunpack.c.h.b16 %v1755
        %v1821 = vunpack.c.l.b16 %v1756
        %v1822 = vunpack.c.h.b16 %v1756
        %v1823 = vunpack.c.l.b16 %v1757
        %v1824 = vunpack.c.h.b16 %v1757
        %v1825 = vunpack.c.l.b16 %v1758
        %v1826 = vunpack.c.h.b16 %v1758
        %v1827 = vunpack.c.l.b16 %v1759
        %v1828 = vunpack.c.l.b16 %v1760
        %v1829 = vunpack.c.h.b16 %v1760
        %v1830 = vunpack.c.l.b16 %v1761
        %v1831 = vunpack.c.h.b16 %v1761
        %v1832 = vunpack.c.l.b16 %v1762
        %v1833 = vunpack.c.h.b16 %v1762
        %v1834 = vunpack.c.l.b16 %v1763
        %v1835 = vunpack.c.h.b16 %v1763
        %v1836 = vunpack.c.l.b16 %v1764
        %v1837 = vunpack.c.h.b16 %v1764
        %v1838 = vunpack.c.l.b16 %v1765
        %v1839 = vunpack.c.h.b16 %v1765
        %v1840 = vunpack.c.l.b16 %v1766
        %v1841 = vunpack.c.l.b16 %v1767
        %v1842 = vunpack.c.h.b16 %v1767
        %v1843 = vunpack.c.l.b16 %v1768
        %v1844 = vunpack.c.h.b16 %v1768
        %v1845 = vunpack.c.l.b16 %v1769
        %v1846 = vunpack.c.h.b16 %v1769
        %v1847 = vunpack.c.l.b16 %v1770
        %v1848 = vunpack.c.h.b16 %v1770
        %v1849 = vunpack.c.l.b16 %v1771
        %v1850 = vunpack.c.h.b16 %v1771
        %v1851 = vunpack.c.l.b16 %v1772
        %v1852 = vunpack.c.h.b16 %v1772
        %v1853 = vunpack.c.l.b16 %v1773
        %v1854 = vpack.c.b16 %v1815, %v1802
        %v1855 = vpack.c.b16 %v1816, %v1803
        %v1856 = vpack.c.b16 %v1817, %v1804
        %v1857 = vpack.c.b16 %v1818, %v1805
        %v1858 = vpack.c.b16 %v1819, %v1806
        %v1859 = vpack.c.b16 %v1820, %v1807
        %v1860 = vpack.c.b16 %v1821, %v1808
        %v1861 = vpack.c.b16 %v1822, %v1809
        %v1862 = vpack.c.b16 %v1823, %v1810
        %v1863 = vpack.c.b16 %v1824, %v1811
        %v1864 = vpack.c.b16 %v1825, %v1812
        %v1865 = vpack.c.b16 %v1826, %v1813
        %v1866 = vpack.c.b16 %v1827, %v1814
        %v1867 = vpack.c.b16 %v1841, %v1828
        %v1868 = vpack.c.b16 %v1842, %v1829
        %v1869 = vpack.c.b16 %v1843, %v1830
        %v1870 = vpack.c.b16 %v1844, %v1831
        %v1871 = vpack.c.b16 %v1845, %v1832
        %v1872 = vpack.c.b16 %v1846, %v1833
        %v1873 = vpack.c.b16 %v1847, %v1834
        %v1874 = vpack.c.b16 %v1848, %v1835
        %v1875 = vpack.c.b16 %v1849, %v1836
        %v1876 = vpack.c.b16 %v1850, %v1837
        %v1877 = vpack.c.b16 %v1851, %v1838
        %v1878 = vpack.c.b16 %v1852, %v1839
        %v1879 = vpack.c.b16 %v1853, %v1840
        %v1905 = vsel %vm1391, %v1866, 0
        %v1908 = vsel %vm1391, %v1879, 0
        %1910 = vmatprep.subr.bf16.mxu0 0
        %1911 = vmatpush1.bf16.msra.mxu0 %v1191
        %1912 = vmatprep.subr.bf16.mxu0 0
        %1913 = vmatpush1.bf16.msra.mxu0 %v1192
        %1914 = vmatprep.subr.bf16.mxu0 0
        %1915 = vmatpush1.bf16.msra.mxu0 %v1193
        %1916 = vmatprep.subr.bf16.mxu0 0
        %1917 = vmatpush1.bf16.msra.mxu0 %v1194
        %1918 = vmatprep.subr.bf16.mxu0 0
        %1919 = vmatpush1.bf16.msra.mxu0 %v1195
        %1920 = vmatprep.subr.bf16.mxu0 0
        %1921 = vmatpush1.bf16.msra.mxu0 %v1196
        %1922 = vmatprep.subr.bf16.mxu0 0
        %1923 = vmatpush1.bf16.msra.mxu0 %v1197
        %1924 = vmatprep.subr.bf16.mxu0 0
        %1925 = vmatpush1.bf16.msra.mxu0 %v1198
        %1926 = vmatprep.subr.bf16.mxu0 0
        %1927 = vmatpush1.bf16.msra.mxu0 %v1199
        %1928 = vmatprep.subr.bf16.mxu0 0
        %1929 = vmatpush1.bf16.msra.mxu0 %v1200
        %1930 = vmatprep.subr.bf16.mxu0 0
        %1931 = vmatpush1.bf16.msra.mxu0 %v1201
        %1932 = vmatprep.subr.bf16.mxu0 0
        %1933 = vmatpush1.bf16.msra.mxu0 %v1202
        %1934 = vmatprep.subr.bf16.mxu0 0
        %1935 = vmatpush1.bf16.msra.mxu0 %v1203
        %1936 = vmatprep.subr.bf16.mxu0 0
        %1937 = vmatpush1.bf16.msra.mxu0 %v1204
        %1938 = vmatprep.subr.bf16.mxu0 0
        %1939 = vmatpush1.bf16.msra.mxu0 %v1205
        %1940 = vmatprep.subr.bf16.mxu0 0
        %1941 = vmatpush1.bf16.msra.mxu0 %v1206
        %1942 = vmatprep.mubr.bf16.mxu0 %v1855
        %1943 = vmatmul.mubr.bf16.gmra.mrb[0].mxu0 %v1854
        %v1944 = vpop.f32.mrb[0].mxu0
        %v1945 = vadd.f32 %v659, %v1944
        %v1946 = vpop.f32.mrb[0].mxu0
        %v1947 = vpop.f32.mrb[0].mxu0
        %v1948 = vadd.f32 %v659, %v1947
        %v1949 = vpop.f32.mrb[0].mxu0
        %1950 = vmatprep.mubr.bf16.mxu0 %v1868
        %1951 = vmatmul.mubr.bf16.gmra.mrb[0].mxu0 %v1867
        %v1952 = vpop.f32.mrb[0].mxu0
        %v1953 = vadd.f32 %v659, %v1952
        %v1954 = vpop.f32.mrb[0].mxu0
        %v1955 = vpop.f32.mrb[0].mxu0
        %v1956 = vadd.f32 %v659, %v1955
        %v1957 = vpop.f32.mrb[0].mxu0
        %1958 = vdwg.mxu0
        %1959 = vmatprep.subr.bf16.mxu0 0
        %1960 = vmatpush1.bf16.msra.mxu0 %v1207
        %1961 = vmatprep.subr.bf16.mxu0 0
        %1962 = vmatpush1.bf16.msra.mxu0 %v1208
        %1963 = vmatprep.subr.bf16.mxu0 0
        %1964 = vmatpush1.bf16.msra.mxu0 %v1209
        %1965 = vmatprep.subr.bf16.mxu0 0
        %1966 = vmatpush1.bf16.msra.mxu0 %v1210
        %1967 = vmatprep.subr.bf16.mxu0 0
        %1968 = vmatpush1.bf16.msra.mxu0 %v1211
        %1969 = vmatprep.subr.bf16.mxu0 0
        %1970 = vmatpush1.bf16.msra.mxu0 %v1212
        %1971 = vmatprep.subr.bf16.mxu0 0
        %1972 = vmatpush1.bf16.msra.mxu0 %v1213
        %1973 = vmatprep.subr.bf16.mxu0 0
        %1974 = vmatpush1.bf16.msra.mxu0 %v1214
        %1975 = vmatprep.subr.bf16.mxu0 0
        %1976 = vmatpush1.bf16.msra.mxu0 %v1215
        %1977 = vmatprep.subr.bf16.mxu0 0
        %1978 = vmatpush1.bf16.msra.mxu0 %v1216
        %1979 = vmatprep.subr.bf16.mxu0 0
        %1980 = vmatpush1.bf16.msra.mxu0 %v1217
        %1981 = vmatprep.subr.bf16.mxu0 0
        %1982 = vmatpush1.bf16.msra.mxu0 %v1218
        %1983 = vmatprep.subr.bf16.mxu0 0
        %1984 = vmatpush1.bf16.msra.mxu0 %v1219
        %1985 = vmatprep.subr.bf16.mxu0 0
        %1986 = vmatpush1.bf16.msra.mxu0 %v1220
        %1987 = vmatprep.subr.bf16.mxu0 0
        %1988 = vmatpush1.bf16.msra.mxu0 %v1221
        %1989 = vmatprep.subr.bf16.mxu0 0
        %1990 = vmatpush1.bf16.msra.mxu0 %v1222
        %1991 = vmatprep.mubr.bf16.mxu0 %v1857
        %1992 = vmatmul.mubr.bf16.gmra.mrb[0].mxu0 %v1856
        %v1993 = vpop.f32.mrb[0].mxu0
        %v1994 = vadd.f32 %v1945, %v1993
        %v1995 = vpop.f32.mrb[0].mxu0
        %v1996 = vpop.f32.mrb[0].mxu0
        %v1997 = vadd.f32 %v1948, %v1996
        %v1998 = vpop.f32.mrb[0].mxu0
        %1999 = vmatprep.mubr.bf16.mxu0 %v1870
        %2000 = vmatmul.mubr.bf16.gmra.mrb[0].mxu0 %v1869
        %v2001 = vpop.f32.mrb[0].mxu0
        %v2002 = vadd.f32 %v1953, %v2001
        %v2003 = vpop.f32.mrb[0].mxu0
        %v2004 = vpop.f32.mrb[0].mxu0
        %v2005 = vadd.f32 %v1956, %v2004
        %v2006 = vpop.f32.mrb[0].mxu0
        %2007 = vdwg.mxu0
        %2008 = vmatprep.subr.bf16.mxu0 0
        %2009 = vmatpush1.bf16.msra.mxu0 %v1223
        %2010 = vmatprep.subr.bf16.mxu0 0
        %2011 = vmatpush1.bf16.msra.mxu0 %v1224
        %2012 = vmatprep.subr.bf16.mxu0 0
        %2013 = vmatpush1.bf16.msra.mxu0 %v1225
        %2014 = vmatprep.subr.bf16.mxu0 0
        %2015 = vmatpush1.bf16.msra.mxu0 %v1226
        %2016 = vmatprep.subr.bf16.mxu0 0
        %2017 = vmatpush1.bf16.msra.mxu0 %v1227
        %2018 = vmatprep.subr.bf16.mxu0 0
        %2019 = vmatpush1.bf16.msra.mxu0 %v1228
        %2020 = vmatprep.subr.bf16.mxu0 0
        %2021 = vmatpush1.bf16.msra.mxu0 %v1229
        %2022 = vmatprep.subr.bf16.mxu0 0
        %2023 = vmatpush1.bf16.msra.mxu0 %v1230
        %2024 = vmatprep.subr.bf16.mxu0 0
        %2025 = vmatpush1.bf16.msra.mxu0 %v1231
        %2026 = vmatprep.subr.bf16.mxu0 0
        %2027 = vmatpush1.bf16.msra.mxu0 %v1232
        %2028 = vmatprep.subr.bf16.mxu0 0
        %2029 = vmatpush1.bf16.msra.mxu0 %v1233
        %2030 = vmatprep.subr.bf16.mxu0 0
        %2031 = vmatpush1.bf16.msra.mxu0 %v1234
        %2032 = vmatprep.subr.bf16.mxu0 0
        %2033 = vmatpush1.bf16.msra.mxu0 %v1235
        %2034 = vmatprep.subr.bf16.mxu0 0
        %2035 = vmatpush1.bf16.msra.mxu0 %v1236
        %2036 = vmatprep.subr.bf16.mxu0 0
        %2037 = vmatpush1.bf16.msra.mxu0 %v1237
        %2038 = vmatprep.subr.bf16.mxu0 0
        %2039 = vmatpush1.bf16.msra.mxu0 %v1238
        %2040 = vmatprep.mubr.bf16.mxu0 %v1859
        %2041 = vmatmul.mubr.bf16.gmra.mrb[0].mxu0 %v1858
        %v2042 = vpop.f32.mrb[0].mxu0
        %v2043 = vadd.f32 %v1994, %v2042
        %v2044 = vpop.f32.mrb[0].mxu0
        %v2045 = vpop.f32.mrb[0].mxu0
        %v2046 = vadd.f32 %v1997, %v2045
        %v2047 = vpop.f32.mrb[0].mxu0
        %2048 = vmatprep.mubr.bf16.mxu0 %v1872
        %2049 = vmatmul.mubr.bf16.gmra.mrb[0].mxu0 %v1871
        %v2050 = vpop.f32.mrb[0].mxu0
        %v2051 = vadd.f32 %v2002, %v2050
        %v2052 = vpop.f32.mrb[0].mxu0
        %v2053 = vpop.f32.mrb[0].mxu0
        %v2054 = vadd.f32 %v2005, %v2053
        %v2055 = vpop.f32.mrb[0].mxu0
        %2056 = vdwg.mxu0
        %2057 = vmatprep.subr.bf16.mxu0 0
        %2058 = vmatpush1.bf16.msra.mxu0 %v1239
        %2059 = vmatprep.subr.bf16.mxu0 0
        %2060 = vmatpush1.bf16.msra.mxu0 %v1240
        %2061 = vmatprep.subr.bf16.mxu0 0
        %2062 = vmatpush1.bf16.msra.mxu0 %v1241
        %2063 = vmatprep.subr.bf16.mxu0 0
        %2064 = vmatpush1.bf16.msra.mxu0 %v1242
        %2065 = vmatprep.subr.bf16.mxu0 0
        %2066 = vmatpush1.bf16.msra.mxu0 %v1243
        %2067 = vmatprep.subr.bf16.mxu0 0
        %2068 = vmatpush1.bf16.msra.mxu0 %v1244
        %2069 = vmatprep.subr.bf16.mxu0 0
        %2070 = vmatpush1.bf16.msra.mxu0 %v1245
        %2071 = vmatprep.subr.bf16.mxu0 0
        %2072 = vmatpush1.bf16.msra.mxu0 %v1246
        %2073 = vmatprep.subr.bf16.mxu0 0
        %2074 = vmatpush1.bf16.msra.mxu0 %v1247
        %2075 = vmatprep.subr.bf16.mxu0 0
        %2076 = vmatpush1.bf16.msra.mxu0 %v1248
        %2077 = vmatprep.subr.bf16.mxu0 0
        %2078 = vmatpush1.bf16.msra.mxu0 %v1249
        %2079 = vmatprep.subr.bf16.mxu0 0
        %2080 = vmatpush1.bf16.msra.mxu0 %v1250
        %2081 = vmatprep.subr.bf16.mxu0 0
        %2082 = vmatpush1.bf16.msra.mxu0 %v1251
        %2083 = vmatprep.subr.bf16.mxu0 0
        %2084 = vmatpush1.bf16.msra.mxu0 %v1252
        %2085 = vmatprep.subr.bf16.mxu0 0
        %2086 = vmatpush1.bf16.msra.mxu0 %v1253
        %2087 = vmatprep.subr.bf16.mxu0 0
        %2088 = vmatpush1.bf16.msra.mxu0 %v1254
        %2089 = vmatprep.mubr.bf16.mxu0 %v1861
        %2090 = vmatmul.mubr.bf16.gmra.mrb[0].mxu0 %v1860
        %v2091 = vpop.f32.mrb[0].mxu0
        %v2092 = vadd.f32 %v2043, %v2091
        %v2093 = vpop.f32.mrb[0].mxu0
        %v2094 = vpop.f32.mrb[0].mxu0
        %v2095 = vadd.f32 %v2046, %v2094
        %v2096 = vpop.f32.mrb[0].mxu0
        %2097 = vmatprep.mubr.bf16.mxu0 %v1874
        %2098 = vmatmul.mubr.bf16.gmra.mrb[0].mxu0 %v1873
        %v2099 = vpop.f32.mrb[0].mxu0
        %v2100 = vadd.f32 %v2051, %v2099
        %v2101 = vpop.f32.mrb[0].mxu0
        %v2102 = vpop.f32.mrb[0].mxu0
        %v2103 = vadd.f32 %v2054, %v2102
        %v2104 = vpop.f32.mrb[0].mxu0
        %2105 = vdwg.mxu0
        %2106 = vmatprep.subr.bf16.mxu0 0
        %2107 = vmatpush1.bf16.msra.mxu0 %v1255
        %2108 = vmatprep.subr.bf16.mxu0 0
        %2109 = vmatpush1.bf16.msra.mxu0 %v1256
        %2110 = vmatprep.subr.bf16.mxu0 0
        %2111 = vmatpush1.bf16.msra.mxu0 %v1257
        %2112 = vmatprep.subr.bf16.mxu0 0
        %2113 = vmatpush1.bf16.msra.mxu0 %v1258
        %2114 = vmatprep.subr.bf16.mxu0 0
        %2115 = vmatpush1.bf16.msra.mxu0 %v1259
        %2116 = vmatprep.subr.bf16.mxu0 0
        %2117 = vmatpush1.bf16.msra.mxu0 %v1260
        %2118 = vmatprep.subr.bf16.mxu0 0
        %2119 = vmatpush1.bf16.msra.mxu0 %v1261
        %2120 = vmatprep.subr.bf16.mxu0 0
        %2121 = vmatpush1.bf16.msra.mxu0 %v1262
        %2122 = vmatprep.subr.bf16.mxu0 0
        %2123 = vmatpush1.bf16.msra.mxu0 %v1263
        %2124 = vmatprep.subr.bf16.mxu0 0
        %2125 = vmatpush1.bf16.msra.mxu0 %v1264
        %2126 = vmatprep.subr.bf16.mxu0 0
        %2127 = vmatpush1.bf16.msra.mxu0 %v1265
        %2128 = vmatprep.subr.bf16.mxu0 0
        %2129 = vmatpush1.bf16.msra.mxu0 %v1266
        %2130 = vmatprep.subr.bf16.mxu0 0
        %2131 = vmatpush1.bf16.msra.mxu0 %v1267
        %2132 = vmatprep.subr.bf16.mxu0 0
        %2133 = vmatpush1.bf16.msra.mxu0 %v1268
        %2134 = vmatprep.subr.bf16.mxu0 0
        %2135 = vmatpush1.bf16.msra.mxu0 %v1269
        %2136 = vmatprep.subr.bf16.mxu0 0
        %2137 = vmatpush1.bf16.msra.mxu0 %v1270
        %2138 = vmatprep.mubr.bf16.mxu0 %v1863
        %2139 = vmatmul.mubr.bf16.gmra.mrb[0].mxu0 %v1862
        %v2140 = vpop.f32.mrb[0].mxu0
        %v2141 = vadd.f32 %v2092, %v2140
        %v2142 = vpop.f32.mrb[0].mxu0
        %v2143 = vpop.f32.mrb[0].mxu0
        %v2144 = vadd.f32 %v2095, %v2143
        %v2145 = vpop.f32.mrb[0].mxu0
        %2146 = vmatprep.mubr.bf16.mxu0 %v1876
        %2147 = vmatmul.mubr.bf16.gmra.mrb[0].mxu0 %v1875
        %v2148 = vpop.f32.mrb[0].mxu0
        %v2149 = vadd.f32 %v2100, %v2148
        %v2150 = vpop.f32.mrb[0].mxu0
        %v2151 = vpop.f32.mrb[0].mxu0
        %v2152 = vadd.f32 %v2103, %v2151
        %v2153 = vpop.f32.mrb[0].mxu0
        %2154 = vdwg.mxu0
        %2155 = vmatprep.subr.bf16.mxu0 0
        %2156 = vmatpush1.bf16.msra.mxu0 %v1271
        %2157 = vmatprep.subr.bf16.mxu0 0
        %2158 = vmatpush1.bf16.msra.mxu0 %v1272
        %2159 = vmatprep.subr.bf16.mxu0 0
        %2160 = vmatpush1.bf16.msra.mxu0 %v1273
        %2161 = vmatprep.subr.bf16.mxu0 0
        %2162 = vmatpush1.bf16.msra.mxu0 %v1274
        %2163 = vmatprep.subr.bf16.mxu0 0
        %2164 = vmatpush1.bf16.msra.mxu0 %v1275
        %2165 = vmatprep.subr.bf16.mxu0 0
        %2166 = vmatpush1.bf16.msra.mxu0 %v1276
        %2167 = vmatprep.subr.bf16.mxu0 0
        %2168 = vmatpush1.bf16.msra.mxu0 %v1277
        %2169 = vmatprep.subr.bf16.mxu0 0
        %2170 = vmatpush1.bf16.msra.mxu0 %v1278
        %2171 = vmatprep.subr.bf16.mxu0 0
        %2172 = vmatpush1.bf16.msra.mxu0 %v1279
        %2173 = vmatprep.subr.bf16.mxu0 0
        %2174 = vmatpush1.bf16.msra.mxu0 %v1280
        %2175 = vmatprep.subr.bf16.mxu0 0
        %2176 = vmatpush1.bf16.msra.mxu0 %v1281
        %2177 = vmatprep.subr.bf16.mxu0 0
        %2178 = vmatpush1.bf16.msra.mxu0 %v1282
        %2179 = vmatprep.subr.bf16.mxu0 0
        %2180 = vmatpush1.bf16.msra.mxu0 %v1283
        %2181 = vmatprep.subr.bf16.mxu0 0
        %2182 = vmatpush1.bf16.msra.mxu0 %v1284
        %2183 = vmatprep.subr.bf16.mxu0 0
        %2184 = vmatpush1.bf16.msra.mxu0 %v1285
        %2185 = vmatprep.subr.bf16.mxu0 0
        %2186 = vmatpush1.bf16.msra.mxu0 %v1286
        %2187 = vmatprep.mubr.bf16.mxu0 %v1865
        %2188 = vmatmul.mubr.bf16.gmra.mrb[0].mxu0 %v1864
        %v2189 = vpop.f32.mrb[0].mxu0
        %v2190 = vadd.f32 %v2141, %v2189
        %v2191 = vpop.f32.mrb[0].mxu0
        %v2192 = vpop.f32.mrb[0].mxu0
        %v2193 = vadd.f32 %v2144, %v2192
        %v2194 = vpop.f32.mrb[0].mxu0
        %2195 = vmatprep.mubr.bf16.mxu0 %v1878
        %2196 = vmatmul.mubr.bf16.gmra.mrb[0].mxu0 %v1877
        %v2197 = vpop.f32.mrb[0].mxu0
        %v2198 = vadd.f32 %v2149, %v2197
        %v2199 = vpop.f32.mrb[0].mxu0
        %v2200 = vpop.f32.mrb[0].mxu0
        %v2201 = vadd.f32 %v2152, %v2200
        %v2202 = vpop.f32.mrb[0].mxu0
        %2203 = vdwg.mxu0
        %2204 = vmatprep.subr.bf16.mxu0 0
        %2205 = vmatpush1.bf16.msra.mxu0 %v1287
        %2206 = vmatprep.subr.bf16.mxu0 0
        %2207 = vmatpush1.bf16.msra.mxu0 %v1288
        %2208 = vmatprep.subr.bf16.mxu0 0
        %2209 = vmatpush1.bf16.msra.mxu0 %v1289
        %2210 = vmatprep.subr.bf16.mxu0 0
        %2211 = vmatpush1.bf16.msra.mxu0 %v1290
        %2212 = vmatprep.subr.bf16.mxu0 0
        %2213 = vmatpush1.bf16.msra.mxu0 0
        %2214 = vmatprep.subr.bf16.mxu0 0
        %2215 = vmatpush1.bf16.msra.mxu0 0
        %2216 = vmatprep.subr.bf16.mxu0 0
        %2217 = vmatpush1.bf16.msra.mxu0 0
        %2218 = vmatprep.subr.bf16.mxu0 0
        %2219 = vmatpush1.bf16.msra.mxu0 0
        %2220 = vmatprep.subr.bf16.mxu0 0
        %2221 = vmatpush1.bf16.msra.mxu0 0
        %2222 = vmatprep.subr.bf16.mxu0 0
        %2223 = vmatpush1.bf16.msra.mxu0 0
        %2224 = vmatprep.subr.bf16.mxu0 0
        %2225 = vmatpush1.bf16.msra.mxu0 0
        %2226 = vmatprep.subr.bf16.mxu0 0
        %2227 = vmatpush1.bf16.msra.mxu0 0
        %2228 = vmatprep.subr.bf16.mxu0 0
        %2229 = vmatpush1.bf16.msra.mxu0 0
        %2230 = vmatprep.subr.bf16.mxu0 0
        %2231 = vmatpush1.bf16.msra.mxu0 0
        %2232 = vmatprep.subr.bf16.mxu0 0
        %2233 = vmatpush1.bf16.msra.mxu0 0
        %2234 = vmatprep.subr.bf16.mxu0 0
        %2235 = vmatpush1.bf16.msra.mxu0 0
        %2236 = vmatprep.mubr.bf16.mxu0 0
        %2237 = vmatmul.mubr.bf16.gmra.mrb[0].mxu0 %v1905
        %v2238 = vpop.f32.mrb[0].mxu0
        %v2239 = vadd.f32 %v2190, %v2238
        %v2240 = vpop.f32.mrb[0].mxu0
        %v2241 = vpop.f32.mrb[0].mxu0
        %v2242 = vadd.f32 %v2193, %v2241
        %v2243 = vpop.f32.mrb[0].mxu0
        %2244 = vmatprep.mubr.bf16.mxu0 0
        %2245 = vmatmul.mubr.bf16.gmra.mrb[0].mxu0 %v1908
        %v2246 = vpop.f32.mrb[0].mxu0
        %v2247 = vadd.f32 %v2198, %v2246
        %v2248 = vpop.f32.mrb[0].mxu0
        %v2249 = vpop.f32.mrb[0].mxu0
        %v2250 = vadd.f32 %v2201, %v2249
        %v2251 = vpop.f32.mrb[0].mxu0
        %2252 = vdwg.mxu0
        %v2253 = vmax.f32 %v2239, 0.0
        %v2254 = vmax.f32 %v2242, 0.0
        %v2255 = vmax.f32 %v2247, 0.0
        %v2256 = vmax.f32 %v2250, 0.0
        %v2257 = vmax.f32 %v1741, %v2253
        %v2258 = vmax.f32 %v1742, %v2254
        %v2259 = vmax.f32 %v1743, %v2255
        %v2260 = vmax.f32 %v1744, %v2256
        %s2261 = scalar_lea.vmem %s397, 416 [#allocation2]
        %v2262 = vld [vmem:[%s2261] sm:$0xff]
        %v2263 = vld [vmem:[%s2261 + $0x8] sm:$0xff]
        %v2264 = vld [vmem:[%s2261 + $0x10] sm:$0xff]
        %v2265 = vld [vmem:[%s2261 + $0x18] sm:$0xff]
        %v2266 = vld [vmem:[%s2261 + $0x20] sm:$0xff]
        %v2267 = vld [vmem:[%s2261 + $0x28] sm:$0xff]
        %v2268 = vld [vmem:[%s2261 + $0x30] sm:$0xf]
        %v2269 = vld [vmem:[%s2261 + $0x34] sm:$0xff]
        %v2270 = vld [vmem:[%s2261 + $0x3c] sm:$0xff]
        %v2271 = vld [vmem:[%s2261 + $0x44] sm:$0xff]
        %v2272 = vld [vmem:[%s2261 + $0x4c] sm:$0xff]
        %v2273 = vld [vmem:[%s2261 + $0x54] sm:$0xff]
        %v2274 = vld [vmem:[%s2261 + $0x5c] sm:$0xff]
        %v2275 = vld [vmem:[%s2261 + $0x64] sm:$0xf]
        %v2276 = vld [vmem:[%s2261 + $0x68] sm:$0xff]
        %v2277 = vld [vmem:[%s2261 + $0x70] sm:$0xff]
        %v2278 = vld [vmem:[%s2261 + $0x78] sm:$0xff]
        %v2279 = vld [vmem:[%s2261 + $0x80] sm:$0xff]
        %v2280 = vld [vmem:[%s2261 + $0x88] sm:$0xff]
        %v2281 = vld [vmem:[%s2261 + $0x90] sm:$0xff]
        %v2282 = vld [vmem:[%s2261 + $0x98] sm:$0xf]
        %v2283 = vld [vmem:[%s2261 + $0x9c] sm:$0xff]
        %v2284 = vld [vmem:[%s2261 + $0xa4] sm:$0xff]
        %v2285 = vld [vmem:[%s2261 + $0xac] sm:$0xff]
        %v2286 = vld [vmem:[%s2261 + $0xb4] sm:$0xff]
        %v2287 = vld [vmem:[%s2261 + $0xbc] sm:$0xff]
        %v2288 = vld [vmem:[%s2261 + $0xc4] sm:$0xff]
        %v2289 = vld [vmem:[%s2261 + $0xcc] sm:$0xf]
        %v2318 = vunpack.c.l.b16 %v2262
        %v2319 = vunpack.c.h.b16 %v2262
        %v2320 = vunpack.c.l.b16 %v2263
        %v2321 = vunpack.c.h.b16 %v2263
        %v2322 = vunpack.c.l.b16 %v2264
        %v2323 = vunpack.c.h.b16 %v2264
        %v2324 = vunpack.c.l.b16 %v2265
        %v2325 = vunpack.c.h.b16 %v2265
        %v2326 = vunpack.c.l.b16 %v2266
        %v2327 = vunpack.c.h.b16 %v2266
        %v2328 = vunpack.c.l.b16 %v2267
        %v2329 = vunpack.c.h.b16 %v2267
        %v2330 = vunpack.c.l.b16 %v2268
        %v2331 = vunpack.c.l.b16 %v2269
        %v2332 = vunpack.c.h.b16 %v2269
        %v2333 = vunpack.c.l.b16 %v2270
        %v2334 = vunpack.c.h.b16 %v2270
        %v2335 = vunpack.c.l.b16 %v2271
        %v2336 = vunpack.c.h.b16 %v2271
        %v2337 = vunpack.c.l.b16 %v2272
        %v2338 = vunpack.c.h.b16 %v2272
        %v2339 = vunpack.c.l.b16 %v2273
        %v2340 = vunpack.c.h.b16 %v2273
        %v2341 = vunpack.c.l.b16 %v2274
        %v2342 = vunpack.c.h.b16 %v2274
        %v2343 = vunpack.c.l.b16 %v2275
        %v2344 = vunpack.c.l.b16 %v2276
        %v2345 = vunpack.c.h.b16 %v2276
        %v2346 = vunpack.c.l.b16 %v2277
        %v2347 = vunpack.c.h.b16 %v2277
        %v2348 = vunpack.c.l.b16 %v2278
        %v2349 = vunpack.c.h.b16 %v2278
        %v2350 = vunpack.c.l.b16 %v2279
        %v2351 = vunpack.c.h.b16 %v2279
        %v2352 = vunpack.c.l.b16 %v2280
        %v2353 = vunpack.c.h.b16 %v2280
        %v2354 = vunpack.c.l.b16 %v2281
        %v2355 = vunpack.c.h.b16 %v2281
        %v2356 = vunpack.c.l.b16 %v2282
        %v2357 = vunpack.c.l.b16 %v2283
        %v2358 = vunpack.c.h.b16 %v2283
        %v2359 = vunpack.c.l.b16 %v2284
        %v2360 = vunpack.c.h.b16 %v2284
        %v2361 = vunpack.c.l.b16 %v2285
        %v2362 = vunpack.c.h.b16 %v2285
        %v2363 = vunpack.c.l.b16 %v2286
        %v2364 = vunpack.c.h.b16 %v2286
        %v2365 = vunpack.c.l.b16 %v2287
        %v2366 = vunpack.c.h.b16 %v2287
        %v2367 = vunpack.c.l.b16 %v2288
        %v2368 = vunpack.c.h.b16 %v2288
        %v2369 = vunpack.c.l.b16 %v2289
        %v2370 = vpack.c.b16 %v2331, %v2318
        %v2371 = vpack.c.b16 %v2332, %v2319
        %v2372 = vpack.c.b16 %v2333, %v2320
        %v2373 = vpack.c.b16 %v2334, %v2321
        %v2374 = vpack.c.b16 %v2335, %v2322
        %v2375 = vpack.c.b16 %v2336, %v2323
        %v2376 = vpack.c.b16 %v2337, %v2324
        %v2377 = vpack.c.b16 %v2338, %v2325
        %v2378 = vpack.c.b16 %v2339, %v2326
        %v2379 = vpack.c.b16 %v2340, %v2327
        %v2380 = vpack.c.b16 %v2341, %v2328
        %v2381 = vpack.c.b16 %v2342, %v2329
        %v2382 = vpack.c.b16 %v2343, %v2330
        %v2383 = vpack.c.b16 %v2357, %v2344
        %v2384 = vpack.c.b16 %v2358, %v2345
        %v2385 = vpack.c.b16 %v2359, %v2346
        %v2386 = vpack.c.b16 %v2360, %v2347
        %v2387 = vpack.c.b16 %v2361, %v2348
        %v2388 = vpack.c.b16 %v2362, %v2349
        %v2389 = vpack.c.b16 %v2363, %v2350
        %v2390 = vpack.c.b16 %v2364, %v2351
        %v2391 = vpack.c.b16 %v2365, %v2352
        %v2392 = vpack.c.b16 %v2366, %v2353
        %v2393 = vpack.c.b16 %v2367, %v2354
        %v2394 = vpack.c.b16 %v2368, %v2355
        %v2395 = vpack.c.b16 %v2369, %v2356
        %v2421 = vsel %vm1391, %v2382, 0
        %v2424 = vsel %vm1391, %v2395, 0
        %2426 = vmatprep.subr.bf16.mxu0 0
        %2427 = vmatpush1.bf16.msra.mxu0 %v1191
        %2428 = vmatprep.subr.bf16.mxu0 0
        %2429 = vmatpush1.bf16.msra.mxu0 %v1192
        %2430 = vmatprep.subr.bf16.mxu0 0
        %2431 = vmatpush1.bf16.msra.mxu0 %v1193
        %2432 = vmatprep.subr.bf16.mxu0 0
        %2433 = vmatpush1.bf16.msra.mxu0 %v1194
        %2434 = vmatprep.subr.bf16.mxu0 0
        %2435 = vmatpush1.bf16.msra.mxu0 %v1195
        %2436 = vmatprep.subr.bf16.mxu0 0
        %2437 = vmatpush1.bf16.msra.mxu0 %v1196
        %2438 = vmatprep.subr.bf16.mxu0 0
        %2439 = vmatpush1.bf16.msra.mxu0 %v1197
        %2440 = vmatprep.subr.bf16.mxu0 0
        %2441 = vmatpush1.bf16.msra.mxu0 %v1198
        %2442 = vmatprep.subr.bf16.mxu0 0
        %2443 = vmatpush1.bf16.msra.mxu0 %v1199
        %2444 = vmatprep.subr.bf16.mxu0 0
        %2445 = vmatpush1.bf16.msra.mxu0 %v1200
        %2446 = vmatprep.subr.bf16.mxu0 0
        %2447 = vmatpush1.bf16.msra.mxu0 %v1201
        %2448 = vmatprep.subr.bf16.mxu0 0
        %2449 = vmatpush1.bf16.msra.mxu0 %v1202
        %2450 = vmatprep.subr.bf16.mxu0 0
        %2451 = vmatpush1.bf16.msra.mxu0 %v1203
        %2452 = vmatprep.subr.bf16.mxu0 0
        %2453 = vmatpush1.bf16.msra.mxu0 %v1204
        %2454 = vmatprep.subr.bf16.mxu0 0
        %2455 = vmatpush1.bf16.msra.mxu0 %v1205
        %2456 = vmatprep.subr.bf16.mxu0 0
        %2457 = vmatpush1.bf16.msra.mxu0 %v1206
        %2458 = vmatprep.mubr.bf16.mxu0 %v2371
        %2459 = vmatmul.mubr.bf16.gmra.mrb[0].mxu0 %v2370
        %v2460 = vpop.f32.mrb[0].mxu0
        %v2461 = vadd.f32 %v659, %v2460
        %v2462 = vpop.f32.mrb[0].mxu0
        %v2463 = vpop.f32.mrb[0].mxu0
        %v2464 = vadd.f32 %v659, %v2463
        %v2465 = vpop.f32.mrb[0].mxu0
        %2466 = vmatprep.mubr.bf16.mxu0 %v2384
        %2467 = vmatmul.mubr.bf16.gmra.mrb[0].mxu0 %v2383
        %v2468 = vpop.f32.mrb[0].mxu0
        %v2469 = vadd.f32 %v659, %v2468
        %v2470 = vpop.f32.mrb[0].mxu0
        %v2471 = vpop.f32.mrb[0].mxu0
        %v2472 = vadd.f32 %v659, %v2471
        %v2473 = vpop.f32.mrb[0].mxu0
        %2474 = vdwg.mxu0
        %2475 = vmatprep.subr.bf16.mxu0 0
        %2476 = vmatpush1.bf16.msra.mxu0 %v1207
        %2477 = vmatprep.subr.bf16.mxu0 0
        %2478 = vmatpush1.bf16.msra.mxu0 %v1208
        %2479 = vmatprep.subr.bf16.mxu0 0
        %2480 = vmatpush1.bf16.msra.mxu0 %v1209
        %2481 = vmatprep.subr.bf16.mxu0 0
        %2482 = vmatpush1.bf16.msra.mxu0 %v1210
        %2483 = vmatprep.subr.bf16.mxu0 0
        %2484 = vmatpush1.bf16.msra.mxu0 %v1211
        %2485 = vmatprep.subr.bf16.mxu0 0
        %2486 = vmatpush1.bf16.msra.mxu0 %v1212
        %2487 = vmatprep.subr.bf16.mxu0 0
        %2488 = vmatpush1.bf16.msra.mxu0 %v1213
        %2489 = vmatprep.subr.bf16.mxu0 0
        %2490 = vmatpush1.bf16.msra.mxu0 %v1214
        %2491 = vmatprep.subr.bf16.mxu0 0
        %2492 = vmatpush1.bf16.msra.mxu0 %v1215
        %2493 = vmatprep.subr.bf16.mxu0 0
        %2494 = vmatpush1.bf16.msra.mxu0 %v1216
        %2495 = vmatprep.subr.bf16.mxu0 0
        %2496 = vmatpush1.bf16.msra.mxu0 %v1217
        %2497 = vmatprep.subr.bf16.mxu0 0
        %2498 = vmatpush1.bf16.msra.mxu0 %v1218
        %2499 = vmatprep.subr.bf16.mxu0 0
        %2500 = vmatpush1.bf16.msra.mxu0 %v1219
        %2501 = vmatprep.subr.bf16.mxu0 0
        %2502 = vmatpush1.bf16.msra.mxu0 %v1220
        %2503 = vmatprep.subr.bf16.mxu0 0
        %2504 = vmatpush1.bf16.msra.mxu0 %v1221
        %2505 = vmatprep.subr.bf16.mxu0 0
        %2506 = vmatpush1.bf16.msra.mxu0 %v1222
        %2507 = vmatprep.mubr.bf16.mxu0 %v2373
        %2508 = vmatmul.mubr.bf16.gmra.mrb[0].mxu0 %v2372
        %v2509 = vpop.f32.mrb[0].mxu0
        %v2510 = vadd.f32 %v2461, %v2509
        %v2511 = vpop.f32.mrb[0].mxu0
        %v2512 = vpop.f32.mrb[0].mxu0
        %v2513 = vadd.f32 %v2464, %v2512
        %v2514 = vpop.f32.mrb[0].mxu0
        %2515 = vmatprep.mubr.bf16.mxu0 %v2386
        %2516 = vmatmul.mubr.bf16.gmra.mrb[0].mxu0 %v2385
        %v2517 = vpop.f32.mrb[0].mxu0
        %v2518 = vadd.f32 %v2469, %v2517
        %v2519 = vpop.f32.mrb[0].mxu0
        %v2520 = vpop.f32.mrb[0].mxu0
        %v2521 = vadd.f32 %v2472, %v2520
        %v2522 = vpop.f32.mrb[0].mxu0
        %2523 = vdwg.mxu0
        %2524 = vmatprep.subr.bf16.mxu0 0
        %2525 = vmatpush1.bf16.msra.mxu0 %v1223
        %2526 = vmatprep.subr.bf16.mxu0 0
        %2527 = vmatpush1.bf16.msra.mxu0 %v1224
        %2528 = vmatprep.subr.bf16.mxu0 0
        %2529 = vmatpush1.bf16.msra.mxu0 %v1225
        %2530 = vmatprep.subr.bf16.mxu0 0
        %2531 = vmatpush1.bf16.msra.mxu0 %v1226
        %2532 = vmatprep.subr.bf16.mxu0 0
        %2533 = vmatpush1.bf16.msra.mxu0 %v1227
        %2534 = vmatprep.subr.bf16.mxu0 0
        %2535 = vmatpush1.bf16.msra.mxu0 %v1228
        %2536 = vmatprep.subr.bf16.mxu0 0
        %2537 = vmatpush1.bf16.msra.mxu0 %v1229
        %2538 = vmatprep.subr.bf16.mxu0 0
        %2539 = vmatpush1.bf16.msra.mxu0 %v1230
        %2540 = vmatprep.subr.bf16.mxu0 0
        %2541 = vmatpush1.bf16.msra.mxu0 %v1231
        %2542 = vmatprep.subr.bf16.mxu0 0
        %2543 = vmatpush1.bf16.msra.mxu0 %v1232
        %2544 = vmatprep.subr.bf16.mxu0 0
        %2545 = vmatpush1.bf16.msra.mxu0 %v1233
        %2546 = vmatprep.subr.bf16.mxu0 0
        %2547 = vmatpush1.bf16.msra.mxu0 %v1234
        %2548 = vmatprep.subr.bf16.mxu0 0
        %2549 = vmatpush1.bf16.msra.mxu0 %v1235
        %2550 = vmatprep.subr.bf16.mxu0 0
        %2551 = vmatpush1.bf16.msra.mxu0 %v1236
        %2552 = vmatprep.subr.bf16.mxu0 0
        %2553 = vmatpush1.bf16.msra.mxu0 %v1237
        %2554 = vmatprep.subr.bf16.mxu0 0
        %2555 = vmatpush1.bf16.msra.mxu0 %v1238
        %2556 = vmatprep.mubr.bf16.mxu0 %v2375
        %2557 = vmatmul.mubr.bf16.gmra.mrb[0].mxu0 %v2374
        %v2558 = vpop.f32.mrb[0].mxu0
        %v2559 = vadd.f32 %v2510, %v2558
        %v2560 = vpop.f32.mrb[0].mxu0
        %v2561 = vpop.f32.mrb[0].mxu0
        %v2562 = vadd.f32 %v2513, %v2561
        %v2563 = vpop.f32.mrb[0].mxu0
        %2564 = vmatprep.mubr.bf16.mxu0 %v2388
        %2565 = vmatmul.mubr.bf16.gmra.mrb[0].mxu0 %v2387
        %v2566 = vpop.f32.mrb[0].mxu0
        %v2567 = vadd.f32 %v2518, %v2566
        %v2568 = vpop.f32.mrb[0].mxu0
        %v2569 = vpop.f32.mrb[0].mxu0
        %v2570 = vadd.f32 %v2521, %v2569
        %v2571 = vpop.f32.mrb[0].mxu0
        %2572 = vdwg.mxu0
        %2573 = vmatprep.subr.bf16.mxu0 0
        %2574 = vmatpush1.bf16.msra.mxu0 %v1239
        %2575 = vmatprep.subr.bf16.mxu0 0
        %2576 = vmatpush1.bf16.msra.mxu0 %v1240
        %2577 = vmatprep.subr.bf16.mxu0 0
        %2578 = vmatpush1.bf16.msra.mxu0 %v1241
        %2579 = vmatprep.subr.bf16.mxu0 0
        %2580 = vmatpush1.bf16.msra.mxu0 %v1242
        %2581 = vmatprep.subr.bf16.mxu0 0
        %2582 = vmatpush1.bf16.msra.mxu0 %v1243
        %2583 = vmatprep.subr.bf16.mxu0 0
        %2584 = vmatpush1.bf16.msra.mxu0 %v1244
        %2585 = vmatprep.subr.bf16.mxu0 0
        %2586 = vmatpush1.bf16.msra.mxu0 %v1245
        %2587 = vmatprep.subr.bf16.mxu0 0
        %2588 = vmatpush1.bf16.msra.mxu0 %v1246
        %2589 = vmatprep.subr.bf16.mxu0 0
        %2590 = vmatpush1.bf16.msra.mxu0 %v1247
        %2591 = vmatprep.subr.bf16.mxu0 0
        %2592 = vmatpush1.bf16.msra.mxu0 %v1248
        %2593 = vmatprep.subr.bf16.mxu0 0
        %2594 = vmatpush1.bf16.msra.mxu0 %v1249
        %2595 = vmatprep.subr.bf16.mxu0 0
        %2596 = vmatpush1.bf16.msra.mxu0 %v1250
        %2597 = vmatprep.subr.bf16.mxu0 0
        %2598 = vmatpush1.bf16.msra.mxu0 %v1251
        %2599 = vmatprep.subr.bf16.mxu0 0
        %2600 = vmatpush1.bf16.msra.mxu0 %v1252
        %2601 = vmatprep.subr.bf16.mxu0 0
        %2602 = vmatpush1.bf16.msra.mxu0 %v1253
        %2603 = vmatprep.subr.bf16.mxu0 0
        %2604 = vmatpush1.bf16.msra.mxu0 %v1254
        %2605 = vmatprep.mubr.bf16.mxu0 %v2377
        %2606 = vmatmul.mubr.bf16.gmra.mrb[0].mxu0 %v2376
        %v2607 = vpop.f32.mrb[0].mxu0
        %v2608 = vadd.f32 %v2559, %v2607
        %v2609 = vpop.f32.mrb[0].mxu0
        %v2610 = vpop.f32.mrb[0].mxu0
        %v2611 = vadd.f32 %v2562, %v2610
        %v2612 = vpop.f32.mrb[0].mxu0
        %2613 = vmatprep.mubr.bf16.mxu0 %v2390
        %2614 = vmatmul.mubr.bf16.gmra.mrb[0].mxu0 %v2389
        %v2615 = vpop.f32.mrb[0].mxu0
        %v2616 = vadd.f32 %v2567, %v2615
        %v2617 = vpop.f32.mrb[0].mxu0
        %v2618 = vpop.f32.mrb[0].mxu0
        %v2619 = vadd.f32 %v2570, %v2618
        %v2620 = vpop.f32.mrb[0].mxu0
        %2621 = vdwg.mxu0
        %2622 = vmatprep.subr.bf16.mxu0 0
        %2623 = vmatpush1.bf16.msra.mxu0 %v1255
        %2624 = vmatprep.subr.bf16.mxu0 0
        %2625 = vmatpush1.bf16.msra.mxu0 %v1256
        %2626 = vmatprep.subr.bf16.mxu0 0
        %2627 = vmatpush1.bf16.msra.mxu0 %v1257
        %2628 = vmatprep.subr.bf16.mxu0 0
        %2629 = vmatpush1.bf16.msra.mxu0 %v1258
        %2630 = vmatprep.subr.bf16.mxu0 0
        %2631 = vmatpush1.bf16.msra.mxu0 %v1259
        %2632 = vmatprep.subr.bf16.mxu0 0
        %2633 = vmatpush1.bf16.msra.mxu0 %v1260
        %2634 = vmatprep.subr.bf16.mxu0 0
        %2635 = vmatpush1.bf16.msra.mxu0 %v1261
        %2636 = vmatprep.subr.bf16.mxu0 0
        %2637 = vmatpush1.bf16.msra.mxu0 %v1262
        %2638 = vmatprep.subr.bf16.mxu0 0
        %2639 = vmatpush1.bf16.msra.mxu0 %v1263
        %2640 = vmatprep.subr.bf16.mxu0 0
        %2641 = vmatpush1.bf16.msra.mxu0 %v1264
        %2642 = vmatprep.subr.bf16.mxu0 0
        %2643 = vmatpush1.bf16.msra.mxu0 %v1265
        %2644 = vmatprep.subr.bf16.mxu0 0
        %2645 = vmatpush1.bf16.msra.mxu0 %v1266
        %2646 = vmatprep.subr.bf16.mxu0 0
        %2647 = vmatpush1.bf16.msra.mxu0 %v1267
        %2648 = vmatprep.subr.bf16.mxu0 0
        %2649 = vmatpush1.bf16.msra.mxu0 %v1268
        %2650 = vmatprep.subr.bf16.mxu0 0
        %2651 = vmatpush1.bf16.msra.mxu0 %v1269
        %2652 = vmatprep.subr.bf16.mxu0 0
        %2653 = vmatpush1.bf16.msra.mxu0 %v1270
        %2654 = vmatprep.mubr.bf16.mxu0 %v2379
        %2655 = vmatmul.mubr.bf16.gmra.mrb[0].mxu0 %v2378
        %v2656 = vpop.f32.mrb[0].mxu0
        %v2657 = vadd.f32 %v2608, %v2656
        %v2658 = vpop.f32.mrb[0].mxu0
        %v2659 = vpop.f32.mrb[0].mxu0
        %v2660 = vadd.f32 %v2611, %v2659
        %v2661 = vpop.f32.mrb[0].mxu0
        %2662 = vmatprep.mubr.bf16.mxu0 %v2392
        %2663 = vmatmul.mubr.bf16.gmra.mrb[0].mxu0 %v2391
        %v2664 = vpop.f32.mrb[0].mxu0
        %v2665 = vadd.f32 %v2616, %v2664
        %v2666 = vpop.f32.mrb[0].mxu0
        %v2667 = vpop.f32.mrb[0].mxu0
        %v2668 = vadd.f32 %v2619, %v2667
        %v2669 = vpop.f32.mrb[0].mxu0
        %2670 = vdwg.mxu0
        %2671 = vmatprep.subr.bf16.mxu0 0
        %2672 = vmatpush1.bf16.msra.mxu0 %v1271
        %2673 = vmatprep.subr.bf16.mxu0 0
        %2674 = vmatpush1.bf16.msra.mxu0 %v1272
        %2675 = vmatprep.subr.bf16.mxu0 0
        %2676 = vmatpush1.bf16.msra.mxu0 %v1273
        %2677 = vmatprep.subr.bf16.mxu0 0
        %2678 = vmatpush1.bf16.msra.mxu0 %v1274
        %2679 = vmatprep.subr.bf16.mxu0 0
        %2680 = vmatpush1.bf16.msra.mxu0 %v1275
        %2681 = vmatprep.subr.bf16.mxu0 0
        %2682 = vmatpush1.bf16.msra.mxu0 %v1276
        %2683 = vmatprep.subr.bf16.mxu0 0
        %2684 = vmatpush1.bf16.msra.mxu0 %v1277
        %2685 = vmatprep.subr.bf16.mxu0 0
        %2686 = vmatpush1.bf16.msra.mxu0 %v1278
        %2687 = vmatprep.subr.bf16.mxu0 0
        %2688 = vmatpush1.bf16.msra.mxu0 %v1279
        %2689 = vmatprep.subr.bf16.mxu0 0
        %2690 = vmatpush1.bf16.msra.mxu0 %v1280
        %2691 = vmatprep.subr.bf16.mxu0 0
        %2692 = vmatpush1.bf16.msra.mxu0 %v1281
        %2693 = vmatprep.subr.bf16.mxu0 0
        %2694 = vmatpush1.bf16.msra.mxu0 %v1282
        %2695 = vmatprep.subr.bf16.mxu0 0
        %2696 = vmatpush1.bf16.msra.mxu0 %v1283
        %2697 = vmatprep.subr.bf16.mxu0 0
        %2698 = vmatpush1.bf16.msra.mxu0 %v1284
        %2699 = vmatprep.subr.bf16.mxu0 0
        %2700 = vmatpush1.bf16.msra.mxu0 %v1285
        %2701 = vmatprep.subr.bf16.mxu0 0
        %2702 = vmatpush1.bf16.msra.mxu0 %v1286
        %2703 = vmatprep.mubr.bf16.mxu0 %v2381
        %2704 = vmatmul.mubr.bf16.gmra.mrb[0].mxu0 %v2380
        %v2705 = vpop.f32.mrb[0].mxu0
        %v2706 = vadd.f32 %v2657, %v2705
        %v2707 = vpop.f32.mrb[0].mxu0
        %v2708 = vpop.f32.mrb[0].mxu0
        %v2709 = vadd.f32 %v2660, %v2708
        %v2710 = vpop.f32.mrb[0].mxu0
        %2711 = vmatprep.mubr.bf16.mxu0 %v2394
        %2712 = vmatmul.mubr.bf16.gmra.mrb[0].mxu0 %v2393
        %v2713 = vpop.f32.mrb[0].mxu0
        %v2714 = vadd.f32 %v2665, %v2713
        %v2715 = vpop.f32.mrb[0].mxu0
        %v2716 = vpop.f32.mrb[0].mxu0
        %v2717 = vadd.f32 %v2668, %v2716
        %v2718 = vpop.f32.mrb[0].mxu0
        %2719 = vdwg.mxu0
        %2720 = vmatprep.subr.bf16.mxu0 0
        %2721 = vmatpush1.bf16.msra.mxu0 %v1287
        %2722 = vmatprep.subr.bf16.mxu0 0
        %2723 = vmatpush1.bf16.msra.mxu0 %v1288
        %2724 = vmatprep.subr.bf16.mxu0 0
        %2725 = vmatpush1.bf16.msra.mxu0 %v1289
        %2726 = vmatprep.subr.bf16.mxu0 0
        %2727 = vmatpush1.bf16.msra.mxu0 %v1290
        %2728 = vmatprep.subr.bf16.mxu0 0
        %2729 = vmatpush1.bf16.msra.mxu0 0
        %2730 = vmatprep.subr.bf16.mxu0 0
        %2731 = vmatpush1.bf16.msra.mxu0 0
        %2732 = vmatprep.subr.bf16.mxu0 0
        %2733 = vmatpush1.bf16.msra.mxu0 0
        %2734 = vmatprep.subr.bf16.mxu0 0
        %2735 = vmatpush1.bf16.msra.mxu0 0
        %2736 = vmatprep.subr.bf16.mxu0 0
        %2737 = vmatpush1.bf16.msra.mxu0 0
        %2738 = vmatprep.subr.bf16.mxu0 0
        %2739 = vmatpush1.bf16.msra.mxu0 0
        %2740 = vmatprep.subr.bf16.mxu0 0
        %2741 = vmatpush1.bf16.msra.mxu0 0
        %2742 = vmatprep.subr.bf16.mxu0 0
        %2743 = vmatpush1.bf16.msra.mxu0 0
        %2744 = vmatprep.subr.bf16.mxu0 0
        %2745 = vmatpush1.bf16.msra.mxu0 0
        %2746 = vmatprep.subr.bf16.mxu0 0
        %2747 = vmatpush1.bf16.msra.mxu0 0
        %2748 = vmatprep.subr.bf16.mxu0 0
        %2749 = vmatpush1.bf16.msra.mxu0 0
        %2750 = vmatprep.subr.bf16.mxu0 0
        %2751 = vmatpush1.bf16.msra.mxu0 0
        %2752 = vmatprep.mubr.bf16.mxu0 0
        %2753 = vmatmul.mubr.bf16.gmra.mrb[0].mxu0 %v2421
        %v2754 = vpop.f32.mrb[0].mxu0
        %v2755 = vadd.f32 %v2706, %v2754
        %v2756 = vpop.f32.mrb[0].mxu0
        %v2757 = vpop.f32.mrb[0].mxu0
        %v2758 = vadd.f32 %v2709, %v2757
        %v2759 = vpop.f32.mrb[0].mxu0
        %2760 = vmatprep.mubr.bf16.mxu0 0
        %2761 = vmatmul.mubr.bf16.gmra.mrb[0].mxu0 %v2424
        %v2762 = vpop.f32.mrb[0].mxu0
        %v2763 = vadd.f32 %v2714, %v2762
        %v2764 = vpop.f32.mrb[0].mxu0
        %v2765 = vpop.f32.mrb[0].mxu0
        %v2766 = vadd.f32 %v2717, %v2765
        %v2767 = vpop.f32.mrb[0].mxu0
        %2768 = vdwg.mxu0
        %v2769 = vmax.f32 %v2755, 0.0
        %v2770 = vmax.f32 %v2758, 0.0
        %v2771 = vmax.f32 %v2763, 0.0
        %v2772 = vmax.f32 %v2766, 0.0
        %v2773 = vmax.f32 %v2257, %v2769
        %v2774 = vmax.f32 %v2258, %v2770
        %v2775 = vmax.f32 %v2259, %v2771
        %v2776 = vmax.f32 %v2260, %v2772
        %s2777 = scalar_lea.vmem %s397, 624 [#allocation2]
        %v2778 = vld [vmem:[%s2777] sm:$0xff]
        %v2779 = vld [vmem:[%s2777 + $0x8] sm:$0xff]
        %v2780 = vld [vmem:[%s2777 + $0x10] sm:$0xff]
        %v2781 = vld [vmem:[%s2777 + $0x18] sm:$0xff]
        %v2782 = vld [vmem:[%s2777 + $0x20] sm:$0xff]
        %v2783 = vld [vmem:[%s2777 + $0x28] sm:$0xff]
        %v2784 = vld [vmem:[%s2777 + $0x30] sm:$0xf]
        %v2785 = vld [vmem:[%s2777 + $0x34] sm:$0xff]
        %v2786 = vld [vmem:[%s2777 + $0x3c] sm:$0xff]
        %v2787 = vld [vmem:[%s2777 + $0x44] sm:$0xff]
        %v2788 = vld [vmem:[%s2777 + $0x4c] sm:$0xff]
        %v2789 = vld [vmem:[%s2777 + $0x54] sm:$0xff]
        %v2790 = vld [vmem:[%s2777 + $0x5c] sm:$0xff]
        %v2791 = vld [vmem:[%s2777 + $0x64] sm:$0xf]
        %v2792 = vld [vmem:[%s2777 + $0x68] sm:$0xff]
        %v2793 = vld [vmem:[%s2777 + $0x70] sm:$0xff]
        %v2794 = vld [vmem:[%s2777 + $0x78] sm:$0xff]
        %v2795 = vld [vmem:[%s2777 + $0x80] sm:$0xff]
        %v2796 = vld [vmem:[%s2777 + $0x88] sm:$0xff]
        %v2797 = vld [vmem:[%s2777 + $0x90] sm:$0xff]
        %v2798 = vld [vmem:[%s2777 + $0x98] sm:$0xf]
        %v2799 = vld [vmem:[%s2777 + $0x9c] sm:$0xff]
        %v2800 = vld [vmem:[%s2777 + $0xa4] sm:$0xff]
        %v2801 = vld [vmem:[%s2777 + $0xac] sm:$0xff]
        %v2802 = vld [vmem:[%s2777 + $0xb4] sm:$0xff]
        %v2803 = vld [vmem:[%s2777 + $0xbc] sm:$0xff]
        %v2804 = vld [vmem:[%s2777 + $0xc4] sm:$0xff]
        %v2805 = vld [vmem:[%s2777 + $0xcc] sm:$0xf]
        %v2834 = vunpack.c.l.b16 %v2778
        %v2835 = vunpack.c.h.b16 %v2778
        %v2836 = vunpack.c.l.b16 %v2779
        %v2837 = vunpack.c.h.b16 %v2779
        %v2838 = vunpack.c.l.b16 %v2780
        %v2839 = vunpack.c.h.b16 %v2780
        %v2840 = vunpack.c.l.b16 %v2781
        %v2841 = vunpack.c.h.b16 %v2781
        %v2842 = vunpack.c.l.b16 %v2782
        %v2843 = vunpack.c.h.b16 %v2782
        %v2844 = vunpack.c.l.b16 %v2783
        %v2845 = vunpack.c.h.b16 %v2783
        %v2846 = vunpack.c.l.b16 %v2784
        %v2847 = vunpack.c.l.b16 %v2785
        %v2848 = vunpack.c.h.b16 %v2785
        %v2849 = vunpack.c.l.b16 %v2786
        %v2850 = vunpack.c.h.b16 %v2786
        %v2851 = vunpack.c.l.b16 %v2787
        %v2852 = vunpack.c.h.b16 %v2787
        %v2853 = vunpack.c.l.b16 %v2788
        %v2854 = vunpack.c.h.b16 %v2788
        %v2855 = vunpack.c.l.b16 %v2789
        %v2856 = vunpack.c.h.b16 %v2789
        %v2857 = vunpack.c.l.b16 %v2790
        %v2858 = vunpack.c.h.b16 %v2790
        %v2859 = vunpack.c.l.b16 %v2791
        %v2860 = vunpack.c.l.b16 %v2792
        %v2861 = vunpack.c.h.b16 %v2792
        %v2862 = vunpack.c.l.b16 %v2793
        %v2863 = vunpack.c.h.b16 %v2793
        %v2864 = vunpack.c.l.b16 %v2794
        %v2865 = vunpack.c.h.b16 %v2794
        %v2866 = vunpack.c.l.b16 %v2795
        %v2867 = vunpack.c.h.b16 %v2795
        %v2868 = vunpack.c.l.b16 %v2796
        %v2869 = vunpack.c.h.b16 %v2796
        %v2870 = vunpack.c.l.b16 %v2797
        %v2871 = vunpack.c.h.b16 %v2797
        %v2872 = vunpack.c.l.b16 %v2798
        %v2873 = vunpack.c.l.b16 %v2799
        %v2874 = vunpack.c.h.b16 %v2799
        %v2875 = vunpack.c.l.b16 %v2800
        %v2876 = vunpack.c.h.b16 %v2800
        %v2877 = vunpack.c.l.b16 %v2801
        %v2878 = vunpack.c.h.b16 %v2801
        %v2879 = vunpack.c.l.b16 %v2802
        %v2880 = vunpack.c.h.b16 %v2802
        %v2881 = vunpack.c.l.b16 %v2803
        %v2882 = vunpack.c.h.b16 %v2803
        %v2883 = vunpack.c.l.b16 %v2804
        %v2884 = vunpack.c.h.b16 %v2804
        %v2885 = vunpack.c.l.b16 %v2805
        %v2886 = vpack.c.b16 %v2847, %v2834
        %v2887 = vpack.c.b16 %v2848, %v2835
        %v2888 = vpack.c.b16 %v2849, %v2836
        %v2889 = vpack.c.b16 %v2850, %v2837
        %v2890 = vpack.c.b16 %v2851, %v2838
        %v2891 = vpack.c.b16 %v2852, %v2839
        %v2892 = vpack.c.b16 %v2853, %v2840
        %v2893 = vpack.c.b16 %v2854, %v2841
        %v2894 = vpack.c.b16 %v2855, %v2842
        %v2895 = vpack.c.b16 %v2856, %v2843
        %v2896 = vpack.c.b16 %v2857, %v2844
        %v2897 = vpack.c.b16 %v2858, %v2845
        %v2898 = vpack.c.b16 %v2859, %v2846
        %v2899 = vpack.c.b16 %v2873, %v2860
        %v2900 = vpack.c.b16 %v2874, %v2861
        %v2901 = vpack.c.b16 %v2875, %v2862
        %v2902 = vpack.c.b16 %v2876, %v2863
        %v2903 = vpack.c.b16 %v2877, %v2864
        %v2904 = vpack.c.b16 %v2878, %v2865
        %v2905 = vpack.c.b16 %v2879, %v2866
        %v2906 = vpack.c.b16 %v2880, %v2867
        %v2907 = vpack.c.b16 %v2881, %v2868
        %v2908 = vpack.c.b16 %v2882, %v2869
        %v2909 = vpack.c.b16 %v2883, %v2870
        %v2910 = vpack.c.b16 %v2884, %v2871
        %v2911 = vpack.c.b16 %v2885, %v2872
        %v2937 = vsel %vm1391, %v2898, 0
        %v2940 = vsel %vm1391, %v2911, 0
        %2942 = vmatprep.subr.bf16.mxu0 0
        %2943 = vmatpush1.bf16.msra.mxu0 %v1191
        %2944 = vmatprep.subr.bf16.mxu0 0
        %2945 = vmatpush1.bf16.msra.mxu0 %v1192
        %2946 = vmatprep.subr.bf16.mxu0 0
        %2947 = vmatpush1.bf16.msra.mxu0 %v1193
        %2948 = vmatprep.subr.bf16.mxu0 0
        %2949 = vmatpush1.bf16.msra.mxu0 %v1194
        %2950 = vmatprep.subr.bf16.mxu0 0
        %2951 = vmatpush1.bf16.msra.mxu0 %v1195
        %2952 = vmatprep.subr.bf16.mxu0 0
        %2953 = vmatpush1.bf16.msra.mxu0 %v1196
        %2954 = vmatprep.subr.bf16.mxu0 0
        %2955 = vmatpush1.bf16.msra.mxu0 %v1197
        %2956 = vmatprep.subr.bf16.mxu0 0
        %2957 = vmatpush1.bf16.msra.mxu0 %v1198
        %2958 = vmatprep.subr.bf16.mxu0 0
        %2959 = vmatpush1.bf16.msra.mxu0 %v1199
        %2960 = vmatprep.subr.bf16.mxu0 0
        %2961 = vmatpush1.bf16.msra.mxu0 %v1200
        %2962 = vmatprep.subr.bf16.mxu0 0
        %2963 = vmatpush1.bf16.msra.mxu0 %v1201
        %2964 = vmatprep.subr.bf16.mxu0 0
        %2965 = vmatpush1.bf16.msra.mxu0 %v1202
        %2966 = vmatprep.subr.bf16.mxu0 0
        %2967 = vmatpush1.bf16.msra.mxu0 %v1203
        %2968 = vmatprep.subr.bf16.mxu0 0
        %2969 = vmatpush1.bf16.msra.mxu0 %v1204
        %2970 = vmatprep.subr.bf16.mxu0 0
        %2971 = vmatpush1.bf16.msra.mxu0 %v1205
        %2972 = vmatprep.subr.bf16.mxu0 0
        %2973 = vmatpush1.bf16.msra.mxu0 %v1206
        %2974 = vmatprep.mubr.bf16.mxu0 %v2887
        %2975 = vmatmul.mubr.bf16.gmra.mrb[0].mxu0 %v2886
        %v2976 = vpop.f32.mrb[0].mxu0
        %v2977 = vadd.f32 %v659, %v2976
        %v2978 = vpop.f32.mrb[0].mxu0
        %v2979 = vpop.f32.mrb[0].mxu0
        %v2980 = vadd.f32 %v659, %v2979
        %v2981 = vpop.f32.mrb[0].mxu0
        %2982 = vmatprep.mubr.bf16.mxu0 %v2900
        %2983 = vmatmul.mubr.bf16.gmra.mrb[0].mxu0 %v2899
        %v2984 = vpop.f32.mrb[0].mxu0
        %v2985 = vadd.f32 %v659, %v2984
        %v2986 = vpop.f32.mrb[0].mxu0
        %v2987 = vpop.f32.mrb[0].mxu0
        %v2988 = vadd.f32 %v659, %v2987
        %v2989 = vpop.f32.mrb[0].mxu0
        %2990 = vdwg.mxu0
        %2991 = vmatprep.subr.bf16.mxu0 0
        %2992 = vmatpush1.bf16.msra.mxu0 %v1207
        %2993 = vmatprep.subr.bf16.mxu0 0
        %2994 = vmatpush1.bf16.msra.mxu0 %v1208
        %2995 = vmatprep.subr.bf16.mxu0 0
        %2996 = vmatpush1.bf16.msra.mxu0 %v1209
        %2997 = vmatprep.subr.bf16.mxu0 0
        %2998 = vmatpush1.bf16.msra.mxu0 %v1210
        %2999 = vmatprep.subr.bf16.mxu0 0
        %3000 = vmatpush1.bf16.msra.mxu0 %v1211
        %3001 = vmatprep.subr.bf16.mxu0 0
        %3002 = vmatpush1.bf16.msra.mxu0 %v1212
        %3003 = vmatprep.subr.bf16.mxu0 0
        %3004 = vmatpush1.bf16.msra.mxu0 %v1213
        %3005 = vmatprep.subr.bf16.mxu0 0
        %3006 = vmatpush1.bf16.msra.mxu0 %v1214
        %3007 = vmatprep.subr.bf16.mxu0 0
        %3008 = vmatpush1.bf16.msra.mxu0 %v1215
        %3009 = vmatprep.subr.bf16.mxu0 0
        %3010 = vmatpush1.bf16.msra.mxu0 %v1216
        %3011 = vmatprep.subr.bf16.mxu0 0
        %3012 = vmatpush1.bf16.msra.mxu0 %v1217
        %3013 = vmatprep.subr.bf16.mxu0 0
        %3014 = vmatpush1.bf16.msra.mxu0 %v1218
        %3015 = vmatprep.subr.bf16.mxu0 0
        %3016 = vmatpush1.bf16.msra.mxu0 %v1219
        %3017 = vmatprep.subr.bf16.mxu0 0
        %3018 = vmatpush1.bf16.msra.mxu0 %v1220
        %3019 = vmatprep.subr.bf16.mxu0 0
        %3020 = vmatpush1.bf16.msra.mxu0 %v1221
        %3021 = vmatprep.subr.bf16.mxu0 0
        %3022 = vmatpush1.bf16.msra.mxu0 %v1222
        %3023 = vmatprep.mubr.bf16.mxu0 %v2889
        %3024 = vmatmul.mubr.bf16.gmra.mrb[0].mxu0 %v2888
        %v3025 = vpop.f32.mrb[0].mxu0
        %v3026 = vadd.f32 %v2977, %v3025
        %v3027 = vpop.f32.mrb[0].mxu0
        %v3028 = vpop.f32.mrb[0].mxu0
        %v3029 = vadd.f32 %v2980, %v3028
        %v3030 = vpop.f32.mrb[0].mxu0
        %3031 = vmatprep.mubr.bf16.mxu0 %v2902
        %3032 = vmatmul.mubr.bf16.gmra.mrb[0].mxu0 %v2901
        %v3033 = vpop.f32.mrb[0].mxu0
        %v3034 = vadd.f32 %v2985, %v3033
        %v3035 = vpop.f32.mrb[0].mxu0
        %v3036 = vpop.f32.mrb[0].mxu0
        %v3037 = vadd.f32 %v2988, %v3036
        %v3038 = vpop.f32.mrb[0].mxu0
        %3039 = vdwg.mxu0
        %3040 = vmatprep.subr.bf16.mxu0 0
        %3041 = vmatpush1.bf16.msra.mxu0 %v1223
        %3042 = vmatprep.subr.bf16.mxu0 0
        %3043 = vmatpush1.bf16.msra.mxu0 %v1224
        %3044 = vmatprep.subr.bf16.mxu0 0
        %3045 = vmatpush1.bf16.msra.mxu0 %v1225
        %3046 = vmatprep.subr.bf16.mxu0 0
        %3047 = vmatpush1.bf16.msra.mxu0 %v1226
        %3048 = vmatprep.subr.bf16.mxu0 0
        %3049 = vmatpush1.bf16.msra.mxu0 %v1227
        %3050 = vmatprep.subr.bf16.mxu0 0
        %3051 = vmatpush1.bf16.msra.mxu0 %v1228
        %3052 = vmatprep.subr.bf16.mxu0 0
        %3053 = vmatpush1.bf16.msra.mxu0 %v1229
        %3054 = vmatprep.subr.bf16.mxu0 0
        %3055 = vmatpush1.bf16.msra.mxu0 %v1230
        %3056 = vmatprep.subr.bf16.mxu0 0
        %3057 = vmatpush1.bf16.msra.mxu0 %v1231
        %3058 = vmatprep.subr.bf16.mxu0 0
        %3059 = vmatpush1.bf16.msra.mxu0 %v1232
        %3060 = vmatprep.subr.bf16.mxu0 0
        %3061 = vmatpush1.bf16.msra.mxu0 %v1233
        %3062 = vmatprep.subr.bf16.mxu0 0
        %3063 = vmatpush1.bf16.msra.mxu0 %v1234
        %3064 = vmatprep.subr.bf16.mxu0 0
        %3065 = vmatpush1.bf16.msra.mxu0 %v1235
        %3066 = vmatprep.subr.bf16.mxu0 0
        %3067 = vmatpush1.bf16.msra.mxu0 %v1236
        %3068 = vmatprep.subr.bf16.mxu0 0
        %3069 = vmatpush1.bf16.msra.mxu0 %v1237
        %3070 = vmatprep.subr.bf16.mxu0 0
        %3071 = vmatpush1.bf16.msra.mxu0 %v1238
        %3072 = vmatprep.mubr.bf16.mxu0 %v2891
        %3073 = vmatmul.mubr.bf16.gmra.mrb[0].mxu0 %v2890
        %v3074 = vpop.f32.mrb[0].mxu0
        %v3075 = vadd.f32 %v3026, %v3074
        %v3076 = vpop.f32.mrb[0].mxu0
        %v3077 = vpop.f32.mrb[0].mxu0
        %v3078 = vadd.f32 %v3029, %v3077
        %v3079 = vpop.f32.mrb[0].mxu0
        %3080 = vmatprep.mubr.bf16.mxu0 %v2904
        %3081 = vmatmul.mubr.bf16.gmra.mrb[0].mxu0 %v2903
        %v3082 = vpop.f32.mrb[0].mxu0
        %v3083 = vadd.f32 %v3034, %v3082
        %v3084 = vpop.f32.mrb[0].mxu0
        %v3085 = vpop.f32.mrb[0].mxu0
        %v3086 = vadd.f32 %v3037, %v3085
        %v3087 = vpop.f32.mrb[0].mxu0
        %3088 = vdwg.mxu0
        %3089 = vmatprep.subr.bf16.mxu0 0
        %3090 = vmatpush1.bf16.msra.mxu0 %v1239
        %3091 = vmatprep.subr.bf16.mxu0 0
        %3092 = vmatpush1.bf16.msra.mxu0 %v1240
        %3093 = vmatprep.subr.bf16.mxu0 0
        %3094 = vmatpush1.bf16.msra.mxu0 %v1241
        %3095 = vmatprep.subr.bf16.mxu0 0
        %3096 = vmatpush1.bf16.msra.mxu0 %v1242
        %3097 = vmatprep.subr.bf16.mxu0 0
        %3098 = vmatpush1.bf16.msra.mxu0 %v1243
        %3099 = vmatprep.subr.bf16.mxu0 0
        %3100 = vmatpush1.bf16.msra.mxu0 %v1244
        %3101 = vmatprep.subr.bf16.mxu0 0
        %3102 = vmatpush1.bf16.msra.mxu0 %v1245
        %3103 = vmatprep.subr.bf16.mxu0 0
        %3104 = vmatpush1.bf16.msra.mxu0 %v1246
        %3105 = vmatprep.subr.bf16.mxu0 0
        %3106 = vmatpush1.bf16.msra.mxu0 %v1247
        %3107 = vmatprep.subr.bf16.mxu0 0
        %3108 = vmatpush1.bf16.msra.mxu0 %v1248
        %3109 = vmatprep.subr.bf16.mxu0 0
        %3110 = vmatpush1.bf16.msra.mxu0 %v1249
        %3111 = vmatprep.subr.bf16.mxu0 0
        %3112 = vmatpush1.bf16.msra.mxu0 %v1250
        %3113 = vmatprep.subr.bf16.mxu0 0
        %3114 = vmatpush1.bf16.msra.mxu0 %v1251
        %3115 = vmatprep.subr.bf16.mxu0 0
        %3116 = vmatpush1.bf16.msra.mxu0 %v1252
        %3117 = vmatprep.subr.bf16.mxu0 0
        %3118 = vmatpush1.bf16.msra.mxu0 %v1253
        %3119 = vmatprep.subr.bf16.mxu0 0
        %3120 = vmatpush1.bf16.msra.mxu0 %v1254
        %3121 = vmatprep.mubr.bf16.mxu0 %v2893
        %3122 = vmatmul.mubr.bf16.gmra.mrb[0].mxu0 %v2892
        %v3123 = vpop.f32.mrb[0].mxu0
        %v3124 = vadd.f32 %v3075, %v3123
        %v3125 = vpop.f32.mrb[0].mxu0
        %v3126 = vpop.f32.mrb[0].mxu0
        %v3127 = vadd.f32 %v3078, %v3126
        %v3128 = vpop.f32.mrb[0].mxu0
        %3129 = vmatprep.mubr.bf16.mxu0 %v2906
        %3130 = vmatmul.mubr.bf16.gmra.mrb[0].mxu0 %v2905
        %v3131 = vpop.f32.mrb[0].mxu0
        %v3132 = vadd.f32 %v3083, %v3131
        %v3133 = vpop.f32.mrb[0].mxu0
        %v3134 = vpop.f32.mrb[0].mxu0
        %v3135 = vadd.f32 %v3086, %v3134
        %v3136 = vpop.f32.mrb[0].mxu0
        %3137 = vdwg.mxu0
        %3138 = vmatprep.subr.bf16.mxu0 0
        %3139 = vmatpush1.bf16.msra.mxu0 %v1255
        %3140 = vmatprep.subr.bf16.mxu0 0
        %3141 = vmatpush1.bf16.msra.mxu0 %v1256
        %3142 = vmatprep.subr.bf16.mxu0 0
        %3143 = vmatpush1.bf16.msra.mxu0 %v1257
        %3144 = vmatprep.subr.bf16.mxu0 0
        %3145 = vmatpush1.bf16.msra.mxu0 %v1258
        %3146 = vmatprep.subr.bf16.mxu0 0
        %3147 = vmatpush1.bf16.msra.mxu0 %v1259
        %3148 = vmatprep.subr.bf16.mxu0 0
        %3149 = vmatpush1.bf16.msra.mxu0 %v1260
        %3150 = vmatprep.subr.bf16.mxu0 0
        %3151 = vmatpush1.bf16.msra.mxu0 %v1261
        %3152 = vmatprep.subr.bf16.mxu0 0
        %3153 = vmatpush1.bf16.msra.mxu0 %v1262
        %3154 = vmatprep.subr.bf16.mxu0 0
        %3155 = vmatpush1.bf16.msra.mxu0 %v1263
        %3156 = vmatprep.subr.bf16.mxu0 0
        %3157 = vmatpush1.bf16.msra.mxu0 %v1264
        %3158 = vmatprep.subr.bf16.mxu0 0
        %3159 = vmatpush1.bf16.msra.mxu0 %v1265
        %3160 = vmatprep.subr.bf16.mxu0 0
        %3161 = vmatpush1.bf16.msra.mxu0 %v1266
        %3162 = vmatprep.subr.bf16.mxu0 0
        %3163 = vmatpush1.bf16.msra.mxu0 %v1267
        %3164 = vmatprep.subr.bf16.mxu0 0
        %3165 = vmatpush1.bf16.msra.mxu0 %v1268
        %3166 = vmatprep.subr.bf16.mxu0 0
        %3167 = vmatpush1.bf16.msra.mxu0 %v1269
        %3168 = vmatprep.subr.bf16.mxu0 0
        %3169 = vmatpush1.bf16.msra.mxu0 %v1270
        %3170 = vmatprep.mubr.bf16.mxu0 %v2895
        %3171 = vmatmul.mubr.bf16.gmra.mrb[0].mxu0 %v2894
        %v3172 = vpop.f32.mrb[0].mxu0
        %v3173 = vadd.f32 %v3124, %v3172
        %v3174 = vpop.f32.mrb[0].mxu0
        %v3175 = vpop.f32.mrb[0].mxu0
        %v3176 = vadd.f32 %v3127, %v3175
        %v3177 = vpop.f32.mrb[0].mxu0
        %3178 = vmatprep.mubr.bf16.mxu0 %v2908
        %3179 = vmatmul.mubr.bf16.gmra.mrb[0].mxu0 %v2907
        %v3180 = vpop.f32.mrb[0].mxu0
        %v3181 = vadd.f32 %v3132, %v3180
        %v3182 = vpop.f32.mrb[0].mxu0
        %v3183 = vpop.f32.mrb[0].mxu0
        %v3184 = vadd.f32 %v3135, %v3183
        %v3185 = vpop.f32.mrb[0].mxu0
        %3186 = vdwg.mxu0
        %3187 = vmatprep.subr.bf16.mxu0 0
        %3188 = vmatpush1.bf16.msra.mxu0 %v1271
        %3189 = vmatprep.subr.bf16.mxu0 0
        %3190 = vmatpush1.bf16.msra.mxu0 %v1272
        %3191 = vmatprep.subr.bf16.mxu0 0
        %3192 = vmatpush1.bf16.msra.mxu0 %v1273
        %3193 = vmatprep.subr.bf16.mxu0 0
        %3194 = vmatpush1.bf16.msra.mxu0 %v1274
        %3195 = vmatprep.subr.bf16.mxu0 0
        %3196 = vmatpush1.bf16.msra.mxu0 %v1275
        %3197 = vmatprep.subr.bf16.mxu0 0
        %3198 = vmatpush1.bf16.msra.mxu0 %v1276
        %3199 = vmatprep.subr.bf16.mxu0 0
        %3200 = vmatpush1.bf16.msra.mxu0 %v1277
        %3201 = vmatprep.subr.bf16.mxu0 0
        %3202 = vmatpush1.bf16.msra.mxu0 %v1278
        %3203 = vmatprep.subr.bf16.mxu0 0
        %3204 = vmatpush1.bf16.msra.mxu0 %v1279
        %3205 = vmatprep.subr.bf16.mxu0 0
        %3206 = vmatpush1.bf16.msra.mxu0 %v1280
        %3207 = vmatprep.subr.bf16.mxu0 0
        %3208 = vmatpush1.bf16.msra.mxu0 %v1281
        %3209 = vmatprep.subr.bf16.mxu0 0
        %3210 = vmatpush1.bf16.msra.mxu0 %v1282
        %3211 = vmatprep.subr.bf16.mxu0 0
        %3212 = vmatpush1.bf16.msra.mxu0 %v1283
        %3213 = vmatprep.subr.bf16.mxu0 0
        %3214 = vmatpush1.bf16.msra.mxu0 %v1284
        %3215 = vmatprep.subr.bf16.mxu0 0
        %3216 = vmatpush1.bf16.msra.mxu0 %v1285
        %3217 = vmatprep.subr.bf16.mxu0 0
        %3218 = vmatpush1.bf16.msra.mxu0 %v1286
        %3219 = vmatprep.mubr.bf16.mxu0 %v2897
        %3220 = vmatmul.mubr.bf16.gmra.mrb[0].mxu0 %v2896
        %v3221 = vpop.f32.mrb[0].mxu0
        %v3222 = vadd.f32 %v3173, %v3221
        %v3223 = vpop.f32.mrb[0].mxu0
        %v3224 = vpop.f32.mrb[0].mxu0
        %v3225 = vadd.f32 %v3176, %v3224
        %v3226 = vpop.f32.mrb[0].mxu0
        %3227 = vmatprep.mubr.bf16.mxu0 %v2910
        %3228 = vmatmul.mubr.bf16.gmra.mrb[0].mxu0 %v2909
        %v3229 = vpop.f32.mrb[0].mxu0
        %v3230 = vadd.f32 %v3181, %v3229
        %v3231 = vpop.f32.mrb[0].mxu0
        %v3232 = vpop.f32.mrb[0].mxu0
        %v3233 = vadd.f32 %v3184, %v3232
        %v3234 = vpop.f32.mrb[0].mxu0
        %3235 = vdwg.mxu0
        %3236 = vmatprep.subr.bf16.mxu0 0
        %3237 = vmatpush1.bf16.msra.mxu0 %v1287
        %3238 = vmatprep.subr.bf16.mxu0 0
        %3239 = vmatpush1.bf16.msra.mxu0 %v1288
        %3240 = vmatprep.subr.bf16.mxu0 0
        %3241 = vmatpush1.bf16.msra.mxu0 %v1289
        %3242 = vmatprep.subr.bf16.mxu0 0
        %3243 = vmatpush1.bf16.msra.mxu0 %v1290
        %3244 = vmatprep.subr.bf16.mxu0 0
        %3245 = vmatpush1.bf16.msra.mxu0 0
        %3246 = vmatprep.subr.bf16.mxu0 0
        %3247 = vmatpush1.bf16.msra.mxu0 0
        %3248 = vmatprep.subr.bf16.mxu0 0
        %3249 = vmatpush1.bf16.msra.mxu0 0
        %3250 = vmatprep.subr.bf16.mxu0 0
        %3251 = vmatpush1.bf16.msra.mxu0 0
        %3252 = vmatprep.subr.bf16.mxu0 0
        %3253 = vmatpush1.bf16.msra.mxu0 0
        %3254 = vmatprep.subr.bf16.mxu0 0
        %3255 = vmatpush1.bf16.msra.mxu0 0
        %3256 = vmatprep.subr.bf16.mxu0 0
        %3257 = vmatpush1.bf16.msra.mxu0 0
        %3258 = vmatprep.subr.bf16.mxu0 0
        %3259 = vmatpush1.bf16.msra.mxu0 0
        %3260 = vmatprep.subr.bf16.mxu0 0
        %3261 = vmatpush1.bf16.msra.mxu0 0
        %3262 = vmatprep.subr.bf16.mxu0 0
        %3263 = vmatpush1.bf16.msra.mxu0 0
        %3264 = vmatprep.subr.bf16.mxu0 0
        %3265 = vmatpush1.bf16.msra.mxu0 0
        %3266 = vmatprep.subr.bf16.mxu0 0
        %3267 = vmatpush1.bf16.msra.mxu0 0
        %3268 = vmatprep.mubr.bf16.mxu0 0
        %3269 = vmatmul.mubr.bf16.gmra.mrb[0].mxu0 %v2937
        %v3270 = vpop.f32.mrb[0].mxu0
        %v3271 = vadd.f32 %v3222, %v3270
        %v3272 = vpop.f32.mrb[0].mxu0
        %v3273 = vpop.f32.mrb[0].mxu0
        %v3274 = vadd.f32 %v3225, %v3273
        %v3275 = vpop.f32.mrb[0].mxu0
        %3276 = vmatprep.mubr.bf16.mxu0 0
        %3277 = vmatmul.mubr.bf16.gmra.mrb[0].mxu0 %v2940
        %v3278 = vpop.f32.mrb[0].mxu0
        %v3279 = vadd.f32 %v3230, %v3278
        %v3280 = vpop.f32.mrb[0].mxu0
        %v3281 = vpop.f32.mrb[0].mxu0
        %v3282 = vadd.f32 %v3233, %v3281
        %v3283 = vpop.f32.mrb[0].mxu0
        %3284 = vdwg.mxu0
        %v3285 = vmax.f32 %v3271, 0.0
        %v3286 = vmax.f32 %v3274, 0.0
        %v3287 = vmax.f32 %v3279, 0.0
        %v3288 = vmax.f32 %v3282, 0.0
        %v3289 = vmax.f32 %v2773, %v3285
        %v3290 = vmax.f32 %v2774, %v3286
        %v3291 = vmax.f32 %v2775, %v3287
        %v3292 = vmax.f32 %v2776, %v3288
        %v3293 = vpack.c.bf16 %v3290, %v3289
        %v3294 = vpack.c.bf16 %v3292, %v3291
        %v3297 = vunpack.c.l.b16 %v3293
        %v3298 = vunpack.c.h.b16 %v3293
        %v3299 = vunpack.c.l.b16 %v3294
        %v3300 = vunpack.c.h.b16 %v3294
        %v3301 = vpack.c.b16 %v3297, %v3297
        %v3302 = vpack.c.b16 %v3298, %v3298
        %v3303 = vpack.c.b16 %v3299, %v3299
        %v3304 = vpack.c.b16 %v3300, %v3300
        %3309 = vst [vmem:[%s423] sm:$0xf] %v3301
        %3310 = vst [vmem:[%s423 + $0x4] sm:$0xf] %v3302
        %3311 = vst [vmem:[%s423 + $0x8] sm:$0xf] %v3303
        %3312 = vst [vmem:[%s423 + $0xc] sm:$0xf] %v3304
        %s3313 = smul.u32 4, %s14
        %p3314 = scmp.lt.s32.totalorder %s3313, 7
        %s3315 = scalar_select %p3314, %s3313, 7
        %s3316 = smul.addr %s3315, 4
        %s3317 = scalar_lea.vmem %s3, %s3316
        // Predicated region
        $region59: #{mlp_forward.4} parent=53 // pred_check
          %p3318 = pneg %p100
        $region60: #{mlp_forward.4} parent=53 // pred_check_branch
          %3320 = sbr.rel (%p3318) target = $region62
        $region61: #{mlp_forward.4} parent=53 // pred_region
          %s3321 = smul.u32 4, %s14
        $region62: #{mlp_forward.4} parent=53 // pred_fallthru
          _
      $region54: #{mlp_forward.4} parent=5 // pred_fallthru
        _
      %p3322 = scmp.le.s32.totalorder 2, %s9
      // Predicated region
      $region63: #{mlp_forward.4} parent=5 // pred_check
        %p3323 = pneg %p3322
      $region64: #{mlp_forward.4} parent=5 // pred_check_branch
        %3325 = sbr.rel (%p3323) target = $region66
      $region65: #{mlp_forward.4} parent=5 // pred_region
        %s3326 = ssub.s32 %s9, 2
        // Predicated region
        $region67: #{mlp_forward.4} parent=65 // pred_check
          %p3327 = pneg %p106
        $region68: #{mlp_forward.4} parent=65 // pred_check_branch
          %3329 = sbr.rel (%p3327) target = $region70
        $region69: #{mlp_forward.4} parent=65 // pred_region
          %s3330 = smul.u32 4, %s15
          %p3331 = scmp.lt.s32.totalorder %s3330, 7
          %s3332 = scalar_select %p3331, %s3330, 7
          %s3333 = smul.addr %s3332, 4
          %s3334 = scalar_lea.vmem %s3, %s3333
        $region70: #{mlp_forward.4} parent=65 // pred_fallthru
          _
      $region66: #{mlp_forward.4} parent=5 // pred_fallthru
        _
    $region6: #{mlp_forward.4} parent=1 // loop_footer
      %s13 = sadd.s32 1, %s9
    $region7: #{mlp_forward.4} parent=1 // loop_footer_branch
      %8 = sbr.rel target = $region3
    $region8: #{mlp_forward.4} parent=1 // loop_exit
      _

// kernel: mlp_forward.5
$region0: #{mlp_forward.5}
  #allocation0 [shape = 'u32[]', space=smem, size = 0x4, offset = 0x4, fixed_abs, tag = 'smem constant byte address 0x4 - core index']
  #allocation1 [shape = 'u32[144,128]{1,0:T(1,128)}', space=vmem, size = 0x12000, scoped, tag = 'internal scratch']
  %s0 = inlined_call_operand.vmem [shape: bf16[8,3200], index: 0, kind: input, shape index: {}]
  %s1 = inlined_call_operand.vmem [shape: bf16[3200,128], index: 1, kind: input, shape index: {}]
  %s2 = inlined_call_operand.vmem [shape: f32[1,128], index: 2, kind: input, shape index: {}]
  %s3 = inlined_call_operand.vmem [shape: f32[8,128], index: 3, kind: output, shape index: {}]
  %s4 = sld [smem:[#allocation0]]
  $region22: #{mlp_forward.5} parent=0
    _
  %s6 = ssub.s32 1, %s4
  %s7 = scalar_select 0, %s6, %s4
  // Predicated region
  $region2: #{mlp_forward.5} parent=0 // pred_check
    _
  $region3: #{mlp_forward.5} parent=0 // pred_check_branch
    %9 = sbr.rel (0) target = $region5
  $region4: #{mlp_forward.5} parent=0 // pred_region
    _
  $region5: #{mlp_forward.5} parent=0 // pred_fallthru
    _
  // Predicated region
  $region6: #{mlp_forward.5} parent=0 // pred_check
    _
  $region7: #{mlp_forward.5} parent=0 // pred_check_branch
    %11 = sbr.rel (0) target = $region9
  $region8: #{mlp_forward.5} parent=0 // pred_region
    _
  $region9: #{mlp_forward.5} parent=0 // pred_fallthru
    _
  // Predicated region
  $region10: #{mlp_forward.5} parent=0 // pred_check
    _
  $region11: #{mlp_forward.5} parent=0 // pred_check_branch
    %13 = sbr.rel (0) target = $region13
  $region12: #{mlp_forward.5} parent=0 // pred_region
    _
  $region13: #{mlp_forward.5} parent=0 // pred_fallthru
    _
  %v15 = vld [vmem:[%s0] sm:$0xff]
  %v16 = vld [vmem:[%s0 + $0x8] sm:$0xff]
  %v17 = vld [vmem:[%s0 + $0x10] sm:$0xff]
  %v18 = vld [vmem:[%s0 + $0x18] sm:$0xff]
  %v19 = vld [vmem:[%s0 + $0x20] sm:$0xff]
  %v20 = vld [vmem:[%s0 + $0x28] sm:$0xff]
  %v21 = vld [vmem:[%s0 + $0x30] sm:$0xff]
  %v22 = vld [vmem:[%s0 + $0x38] sm:$0xff]
  %v23 = vld [vmem:[%s0 + $0x40] sm:$0xff]
  %v24 = vld [vmem:[%s0 + $0x48] sm:$0xff]
  %v25 = vld [vmem:[%s0 + $0x50] sm:$0xff]
  %v26 = vld [vmem:[%s0 + $0x58] sm:$0xff]
  %v27 = vld [vmem:[%s0 + $0x60] sm:$0xf]
  %v28 = vld [vmem:[%s1] sm:$0xf]
  %v29 = vld [vmem:[%s1 + $0x4] sm:$0xf]
  %v30 = vld [vmem:[%s1 + $0x8] sm:$0xf]
  %v31 = vld [vmem:[%s1 + $0xc] sm:$0xf]
  %v32 = vld [vmem:[%s1 + $0x10] sm:$0xf]
  %v33 = vld [vmem:[%s1 + $0x14] sm:$0xf]
  %v34 = vld [vmem:[%s1 + $0x18] sm:$0xf]
  %v35 = vld [vmem:[%s1 + $0x1c] sm:$0xf]
  %v36 = vld [vmem:[%s1 + $0x20] sm:$0xf]
  %v37 = vld [vmem:[%s1 + $0x24] sm:$0xf]
  %v38 = vld [vmem:[%s1 + $0x28] sm:$0xf]
  %v39 = vld [vmem:[%s1 + $0x2c] sm:$0xf]
  %v40 = vld [vmem:[%s1 + $0x30] sm:$0xf]
  %v41 = vld [vmem:[%s1 + $0x34] sm:$0xf]
  %v42 = vld [vmem:[%s1 + $0x38] sm:$0xf]
  %v43 = vld [vmem:[%s1 + $0x3c] sm:$0xf]
  %v44 = vld [vmem:[%s1 + $0x40] sm:$0xf]
  %v45 = vld [vmem:[%s1 + $0x44] sm:$0xf]
  %v46 = vld [vmem:[%s1 + $0x48] sm:$0xf]
  %v47 = vld [vmem:[%s1 + $0x4c] sm:$0xf]
  %v48 = vld [vmem:[%s1 + $0x50] sm:$0xf]
  %v49 = vld [vmem:[%s1 + $0x54] sm:$0xf]
  %v50 = vld [vmem:[%s1 + $0x58] sm:$0xf]
  %v51 = vld [vmem:[%s1 + $0x5c] sm:$0xf]
  %v52 = vld [vmem:[%s1 + $0x60] sm:$0xf]
  %v53 = vld [vmem:[%s1 + $0x64] sm:$0xf]
  %v54 = vld [vmem:[%s1 + $0x68] sm:$0xf]
  %v55 = vld [vmem:[%s1 + $0x6c] sm:$0xf]
  %v56 = vld [vmem:[%s1 + $0x70] sm:$0xf]
  %v57 = vld [vmem:[%s1 + $0x74] sm:$0xf]
  %v58 = vld [vmem:[%s1 + $0x78] sm:$0xf]
  %v59 = vld [vmem:[%s1 + $0x7c] sm:$0xf]
  %v60 = vld [vmem:[%s1 + $0x80] sm:$0xf]
  %v61 = vld [vmem:[%s1 + $0x84] sm:$0xf]
  %v62 = vld [vmem:[%s1 + $0x88] sm:$0xf]
  %v63 = vld [vmem:[%s1 + $0x8c] sm:$0xf]
  %v64 = vld [vmem:[%s1 + $0x90] sm:$0xf]
  %v65 = vld [vmem:[%s1 + $0x94] sm:$0xf]
  %v66 = vld [vmem:[%s1 + $0x98] sm:$0xf]
  %v67 = vld [vmem:[%s1 + $0x9c] sm:$0xf]
  %v68 = vld [vmem:[%s1 + $0xa0] sm:$0xf]
  %v69 = vld [vmem:[%s1 + $0xa4] sm:$0xf]
  %v70 = vld [vmem:[%s1 + $0xa8] sm:$0xf]
  %v71 = vld [vmem:[%s1 + $0xac] sm:$0xf]
  %v72 = vld [vmem:[%s1 + $0xb0] sm:$0xf]
  %v73 = vld [vmem:[%s1 + $0xb4] sm:$0xf]
  %v74 = vld [vmem:[%s1 + $0xb8] sm:$0xf]
  %v75 = vld [vmem:[%s1 + $0xbc] sm:$0xf]
  %v76 = vld [vmem:[%s1 + $0xc0] sm:$0xf]
  %v77 = vld [vmem:[%s1 + $0xc4] sm:$0xf]
  %v78 = vld [vmem:[%s1 + $0xc8] sm:$0xf]
  %v79 = vld [vmem:[%s1 + $0xcc] sm:$0xf]
  %v80 = vld [vmem:[%s1 + $0xd0] sm:$0xf]
  %v81 = vld [vmem:[%s1 + $0xd4] sm:$0xf]
  %v82 = vld [vmem:[%s1 + $0xd8] sm:$0xf]
  %v83 = vld [vmem:[%s1 + $0xdc] sm:$0xf]
  %v84 = vld [vmem:[%s1 + $0xe0] sm:$0xf]
  %v85 = vld [vmem:[%s1 + $0xe4] sm:$0xf]
  %v86 = vld [vmem:[%s1 + $0xe8] sm:$0xf]
  %v87 = vld [vmem:[%s1 + $0xec] sm:$0xf]
  %v88 = vld [vmem:[%s1 + $0xf0] sm:$0xf]
  %v89 = vld [vmem:[%s1 + $0xf4] sm:$0xf]
  %v90 = vld [vmem:[%s1 + $0xf8] sm:$0xf]
  %v91 = vld [vmem:[%s1 + $0xfc] sm:$0xf]
  %v92 = vld [vmem:[%s1 + $0x100] sm:$0xf]
  %v93 = vld [vmem:[%s1 + $0x104] sm:$0xf]
  %v94 = vld [vmem:[%s1 + $0x108] sm:$0xf]
  %v95 = vld [vmem:[%s1 + $0x10c] sm:$0xf]
  %v96 = vld [vmem:[%s1 + $0x110] sm:$0xf]
  %v97 = vld [vmem:[%s1 + $0x114] sm:$0xf]
  %v98 = vld [vmem:[%s1 + $0x118] sm:$0xf]
  %v99 = vld [vmem:[%s1 + $0x11c] sm:$0xf]
  %v100 = vld [vmem:[%s1 + $0x120] sm:$0xf]
  %v101 = vld [vmem:[%s1 + $0x124] sm:$0xf]
  %v102 = vld [vmem:[%s1 + $0x128] sm:$0xf]
  %v103 = vld [vmem:[%s1 + $0x12c] sm:$0xf]
  %v104 = vld [vmem:[%s1 + $0x130] sm:$0xf]
  %v105 = vld [vmem:[%s1 + $0x134] sm:$0xf]
  %v106 = vld [vmem:[%s1 + $0x138] sm:$0xf]
  %v107 = vld [vmem:[%s1 + $0x13c] sm:$0xf]
  %v108 = vld [vmem:[%s1 + $0x140] sm:$0xf]
  %v109 = vld [vmem:[%s1 + $0x144] sm:$0xf]
  %v110 = vld [vmem:[%s1 + $0x148] sm:$0xf]
  %v111 = vld [vmem:[%s1 + $0x14c] sm:$0xf]
  %v112 = vld [vmem:[%s1 + $0x150] sm:$0xf]
  %v113 = vld [vmem:[%s1 + $0x154] sm:$0xf]
  %v114 = vld [vmem:[%s1 + $0x158] sm:$0xf]
  %v115 = vld [vmem:[%s1 + $0x15c] sm:$0xf]
  %v116 = vld [vmem:[%s1 + $0x160] sm:$0xf]
  %v117 = vld [vmem:[%s1 + $0x164] sm:$0xf]
  %v118 = vld [vmem:[%s1 + $0x168] sm:$0xf]
  %v119 = vld [vmem:[%s1 + $0x16c] sm:$0xf]
  %v120 = vld [vmem:[%s1 + $0x170] sm:$0xf]
  %v121 = vld [vmem:[%s1 + $0x174] sm:$0xf]
  %v122 = vld [vmem:[%s1 + $0x178] sm:$0xf]
  %v123 = vld [vmem:[%s1 + $0x17c] sm:$0xf]
  %v124 = vld [vmem:[%s1 + $0x180] sm:$0xf]
  %v125 = vld [vmem:[%s1 + $0x184] sm:$0xf]
  %v126 = vld [vmem:[%s1 + $0x188] sm:$0xf]
  %v127 = vld [vmem:[%s1 + $0x18c] sm:$0xf]
  %v128 = vld [vmem:[%s1 + $0x190] sm:$0xf]
  %v129 = vld [vmem:[%s1 + $0x194] sm:$0xf]
  %v130 = vld [vmem:[%s1 + $0x198] sm:$0xf]
  %v131 = vld [vmem:[%s1 + $0x19c] sm:$0xf]
  %v132 = vld [vmem:[%s1 + $0x1a0] sm:$0xf]
  %v133 = vld [vmem:[%s1 + $0x1a4] sm:$0xf]
  %v134 = vld [vmem:[%s1 + $0x1a8] sm:$0xf]
  %v135 = vld [vmem:[%s1 + $0x1ac] sm:$0xf]
  %v136 = vld [vmem:[%s1 + $0x1b0] sm:$0xf]
  %v137 = vld [vmem:[%s1 + $0x1b4] sm:$0xf]
  %v138 = vld [vmem:[%s1 + $0x1b8] sm:$0xf]
  %v139 = vld [vmem:[%s1 + $0x1bc] sm:$0xf]
  %v140 = vld [vmem:[%s1 + $0x1c0] sm:$0xf]
  %v141 = vld [vmem:[%s1 + $0x1c4] sm:$0xf]
  %v142 = vld [vmem:[%s1 + $0x1c8] sm:$0xf]
  %v143 = vld [vmem:[%s1 + $0x1cc] sm:$0xf]
  %v144 = vld [vmem:[%s1 + $0x1d0] sm:$0xf]
  %v145 = vld [vmem:[%s1 + $0x1d4] sm:$0xf]
  %v146 = vld [vmem:[%s1 + $0x1d8] sm:$0xf]
  %v147 = vld [vmem:[%s1 + $0x1dc] sm:$0xf]
  %v148 = vld [vmem:[%s1 + $0x1e0] sm:$0xf]
  %v149 = vld [vmem:[%s1 + $0x1e4] sm:$0xf]
  %v150 = vld [vmem:[%s1 + $0x1e8] sm:$0xf]
  %v151 = vld [vmem:[%s1 + $0x1ec] sm:$0xf]
  %v152 = vld [vmem:[%s1 + $0x1f0] sm:$0xf]
  %v153 = vld [vmem:[%s1 + $0x1f4] sm:$0xf]
  %v154 = vld [vmem:[%s1 + $0x1f8] sm:$0xf]
  %v155 = vld [vmem:[%s1 + $0x1fc] sm:$0xf]
  %v156 = vld [vmem:[%s1 + $0x200] sm:$0xf]
  %v157 = vld [vmem:[%s1 + $0x204] sm:$0xf]
  %v158 = vld [vmem:[%s1 + $0x208] sm:$0xf]
  %v159 = vld [vmem:[%s1 + $0x20c] sm:$0xf]
  %v160 = vld [vmem:[%s1 + $0x210] sm:$0xf]
  %v161 = vld [vmem:[%s1 + $0x214] sm:$0xf]
  %v162 = vld [vmem:[%s1 + $0x218] sm:$0xf]
  %v163 = vld [vmem:[%s1 + $0x21c] sm:$0xf]
  %v164 = vld [vmem:[%s1 + $0x220] sm:$0xf]
  %v165 = vld [vmem:[%s1 + $0x224] sm:$0xf]
  %v166 = vld [vmem:[%s1 + $0x228] sm:$0xf]
  %v167 = vld [vmem:[%s1 + $0x22c] sm:$0xf]
  %v168 = vld [vmem:[%s1 + $0x230] sm:$0xf]
  %v169 = vld [vmem:[%s1 + $0x234] sm:$0xf]
  %v170 = vld [vmem:[%s1 + $0x238] sm:$0xf]
  %v171 = vld [vmem:[%s1 + $0x23c] sm:$0xf]
  %v172 = vld [vmem:[%s1 + $0x240] sm:$0xf]
  %v173 = vld [vmem:[%s1 + $0x244] sm:$0xf]
  %v174 = vld [vmem:[%s1 + $0x248] sm:$0xf]
  %v175 = vld [vmem:[%s1 + $0x24c] sm:$0xf]
  %v176 = vld [vmem:[%s1 + $0x250] sm:$0xf]
  %v177 = vld [vmem:[%s1 + $0x254] sm:$0xf]
  %v178 = vld [vmem:[%s1 + $0x258] sm:$0xf]
  %v179 = vld [vmem:[%s1 + $0x25c] sm:$0xf]
  %v180 = vld [vmem:[%s1 + $0x260] sm:$0xf]
  %v181 = vld [vmem:[%s1 + $0x264] sm:$0xf]
  %v182 = vld [vmem:[%s1 + $0x268] sm:$0xf]
  %v183 = vld [vmem:[%s1 + $0x26c] sm:$0xf]
  %v184 = vld [vmem:[%s1 + $0x270] sm:$0xf]
  %v185 = vld [vmem:[%s1 + $0x274] sm:$0xf]
  %v186 = vld [vmem:[%s1 + $0x278] sm:$0xf]
  %v187 = vld [vmem:[%s1 + $0x27c] sm:$0xf]
  %v188 = vld [vmem:[%s1 + $0x280] sm:$0xf]
  %v189 = vld [vmem:[%s1 + $0x284] sm:$0xf]
  %v190 = vld [vmem:[%s1 + $0x288] sm:$0xf]
  %v191 = vld [vmem:[%s1 + $0x28c] sm:$0xf]
  %v192 = vld [vmem:[%s1 + $0x290] sm:$0xf]
  %v193 = vld [vmem:[%s1 + $0x294] sm:$0xf]
  %v194 = vld [vmem:[%s1 + $0x298] sm:$0xf]
  %v195 = vld [vmem:[%s1 + $0x29c] sm:$0xf]
  %v196 = vld [vmem:[%s1 + $0x2a0] sm:$0xf]
  %v197 = vld [vmem:[%s1 + $0x2a4] sm:$0xf]
  %v198 = vld [vmem:[%s1 + $0x2a8] sm:$0xf]
  %v199 = vld [vmem:[%s1 + $0x2ac] sm:$0xf]
  %v200 = vld [vmem:[%s1 + $0x2b0] sm:$0xf]
  %v201 = vld [vmem:[%s1 + $0x2b4] sm:$0xf]
  %v202 = vld [vmem:[%s1 + $0x2b8] sm:$0xf]
  %v203 = vld [vmem:[%s1 + $0x2bc] sm:$0xf]
  %v204 = vld [vmem:[%s1 + $0x2c0] sm:$0xf]
  %v205 = vld [vmem:[%s1 + $0x2c4] sm:$0xf]
  %v206 = vld [vmem:[%s1 + $0x2c8] sm:$0xf]
  %v207 = vld [vmem:[%s1 + $0x2cc] sm:$0xf]
  %v208 = vld [vmem:[%s1 + $0x2d0] sm:$0xf]
  %v209 = vld [vmem:[%s1 + $0x2d4] sm:$0xf]
  %v210 = vld [vmem:[%s1 + $0x2d8] sm:$0xf]
  %v211 = vld [vmem:[%s1 + $0x2dc] sm:$0xf]
  %v212 = vld [vmem:[%s1 + $0x2e0] sm:$0xf]
  %v213 = vld [vmem:[%s1 + $0x2e4] sm:$0xf]
  %v214 = vld [vmem:[%s1 + $0x2e8] sm:$0xf]
  %v215 = vld [vmem:[%s1 + $0x2ec] sm:$0xf]
  %v216 = vld [vmem:[%s1 + $0x2f0] sm:$0xf]
  %v217 = vld [vmem:[%s1 + $0x2f4] sm:$0xf]
  %v218 = vld [vmem:[%s1 + $0x2f8] sm:$0xf]
  %v219 = vld [vmem:[%s1 + $0x2fc] sm:$0xf]
  %v220 = vld [vmem:[%s1 + $0x300] sm:$0xf]
  %v221 = vld [vmem:[%s1 + $0x304] sm:$0xf]
  %v222 = vld [vmem:[%s1 + $0x308] sm:$0xf]
  %v223 = vld [vmem:[%s1 + $0x30c] sm:$0xf]
  %v224 = vld [vmem:[%s1 + $0x310] sm:$0xf]
  %v225 = vld [vmem:[%s1 + $0x314] sm:$0xf]
  %v226 = vld [vmem:[%s1 + $0x318] sm:$0xf]
  %v227 = vld [vmem:[%s1 + $0x31c] sm:$0xf]
  %v228 = vld [vmem:[%s1 + $0x320] sm:$0xf]
  %v229 = vld [vmem:[%s1 + $0x324] sm:$0xf]
  %v230 = vld [vmem:[%s1 + $0x328] sm:$0xf]
  %v231 = vld [vmem:[%s1 + $0x32c] sm:$0xf]
  %v232 = vld [vmem:[%s1 + $0x330] sm:$0xf]
  %v233 = vld [vmem:[%s1 + $0x334] sm:$0xf]
  %v234 = vld [vmem:[%s1 + $0x338] sm:$0xf]
  %v235 = vld [vmem:[%s1 + $0x33c] sm:$0xf]
  %v236 = vld [vmem:[%s1 + $0x340] sm:$0xf]
  %v237 = vld [vmem:[%s1 + $0x344] sm:$0xf]
  %v238 = vld [vmem:[%s1 + $0x348] sm:$0xf]
  %v239 = vld [vmem:[%s1 + $0x34c] sm:$0xf]
  %v240 = vld [vmem:[%s1 + $0x350] sm:$0xf]
  %v241 = vld [vmem:[%s1 + $0x354] sm:$0xf]
  %v242 = vld [vmem:[%s1 + $0x358] sm:$0xf]
  %v243 = vld [vmem:[%s1 + $0x35c] sm:$0xf]
  %v244 = vld [vmem:[%s1 + $0x360] sm:$0xf]
  %v245 = vld [vmem:[%s1 + $0x364] sm:$0xf]
  %v246 = vld [vmem:[%s1 + $0x368] sm:$0xf]
  %v247 = vld [vmem:[%s1 + $0x36c] sm:$0xf]
  %v248 = vld [vmem:[%s1 + $0x370] sm:$0xf]
  %v249 = vld [vmem:[%s1 + $0x374] sm:$0xf]
  %v250 = vld [vmem:[%s1 + $0x378] sm:$0xf]
  %v251 = vld [vmem:[%s1 + $0x37c] sm:$0xf]
  %v252 = vld [vmem:[%s1 + $0x380] sm:$0xf]
  %v253 = vld [vmem:[%s1 + $0x384] sm:$0xf]
  %v254 = vld [vmem:[%s1 + $0x388] sm:$0xf]
  %v255 = vld [vmem:[%s1 + $0x38c] sm:$0xf]
  %v256 = vld [vmem:[%s1 + $0x390] sm:$0xf]
  %v257 = vld [vmem:[%s1 + $0x394] sm:$0xf]
  %v258 = vld [vmem:[%s1 + $0x398] sm:$0xf]
  %v259 = vld [vmem:[%s1 + $0x39c] sm:$0xf]
  %v260 = vld [vmem:[%s1 + $0x3a0] sm:$0xf]
  %v261 = vld [vmem:[%s1 + $0x3a4] sm:$0xf]
  %v262 = vld [vmem:[%s1 + $0x3a8] sm:$0xf]
  %v263 = vld [vmem:[%s1 + $0x3ac] sm:$0xf]
  %v264 = vld [vmem:[%s1 + $0x3b0] sm:$0xf]
  %v265 = vld [vmem:[%s1 + $0x3b4] sm:$0xf]
  %v266 = vld [vmem:[%s1 + $0x3b8] sm:$0xf]
  %v267 = vld [vmem:[%s1 + $0x3bc] sm:$0xf]
  %v268 = vld [vmem:[%s1 + $0x3c0] sm:$0xf]
  %v269 = vld [vmem:[%s1 + $0x3c4] sm:$0xf]
  %v270 = vld [vmem:[%s1 + $0x3c8] sm:$0xf]
  %v271 = vld [vmem:[%s1 + $0x3cc] sm:$0xf]
  %v272 = vld [vmem:[%s1 + $0x3d0] sm:$0xf]
  %v273 = vld [vmem:[%s1 + $0x3d4] sm:$0xf]
  %v274 = vld [vmem:[%s1 + $0x3d8] sm:$0xf]
  %v275 = vld [vmem:[%s1 + $0x3dc] sm:$0xf]
  %v276 = vld [vmem:[%s1 + $0x3e0] sm:$0xf]
  %v277 = vld [vmem:[%s1 + $0x3e4] sm:$0xf]
  %v278 = vld [vmem:[%s1 + $0x3e8] sm:$0xf]
  %v279 = vld [vmem:[%s1 + $0x3ec] sm:$0xf]
  %v280 = vld [vmem:[%s1 + $0x3f0] sm:$0xf]
  %v281 = vld [vmem:[%s1 + $0x3f4] sm:$0xf]
  %v282 = vld [vmem:[%s1 + $0x3f8] sm:$0xf]
  %v283 = vld [vmem:[%s1 + $0x3fc] sm:$0xf]
  %v284 = vld [vmem:[%s1 + $0x400] sm:$0xf]
  %v285 = vld [vmem:[%s1 + $0x404] sm:$0xf]
  %v286 = vld [vmem:[%s1 + $0x408] sm:$0xf]
  %v287 = vld [vmem:[%s1 + $0x40c] sm:$0xf]
  %v288 = vld [vmem:[%s1 + $0x410] sm:$0xf]
  %v289 = vld [vmem:[%s1 + $0x414] sm:$0xf]
  %v290 = vld [vmem:[%s1 + $0x418] sm:$0xf]
  %v291 = vld [vmem:[%s1 + $0x41c] sm:$0xf]
  %v292 = vld [vmem:[%s1 + $0x420] sm:$0xf]
  %v293 = vld [vmem:[%s1 + $0x424] sm:$0xf]
  %v294 = vld [vmem:[%s1 + $0x428] sm:$0xf]
  %v295 = vld [vmem:[%s1 + $0x42c] sm:$0xf]
  %v296 = vld [vmem:[%s1 + $0x430] sm:$0xf]
  %v297 = vld [vmem:[%s1 + $0x434] sm:$0xf]
  %v298 = vld [vmem:[%s1 + $0x438] sm:$0xf]
  %v299 = vld [vmem:[%s1 + $0x43c] sm:$0xf]
  %v300 = vld [vmem:[%s1 + $0x440] sm:$0xf]
  %v301 = vld [vmem:[%s1 + $0x444] sm:$0xf]
  %v302 = vld [vmem:[%s1 + $0x448] sm:$0xf]
  %v303 = vld [vmem:[%s1 + $0x44c] sm:$0xf]
  %v304 = vld [vmem:[%s1 + $0x450] sm:$0xf]
  %v305 = vld [vmem:[%s1 + $0x454] sm:$0xf]
  %v306 = vld [vmem:[%s1 + $0x458] sm:$0xf]
  %v307 = vld [vmem:[%s1 + $0x45c] sm:$0xf]
  %v308 = vld [vmem:[%s1 + $0x460] sm:$0xf]
  %v309 = vld [vmem:[%s1 + $0x464] sm:$0xf]
  %v310 = vld [vmem:[%s1 + $0x468] sm:$0xf]
  %v311 = vld [vmem:[%s1 + $0x46c] sm:$0xf]
  %v312 = vld [vmem:[%s1 + $0x470] sm:$0xf]
  %v313 = vld [vmem:[%s1 + $0x474] sm:$0xf]
  %v314 = vld [vmem:[%s1 + $0x478] sm:$0xf]
  %v315 = vld [vmem:[%s1 + $0x47c] sm:$0xf]
  %v316 = vld [vmem:[%s1 + $0x480] sm:$0xf]
  %v317 = vld [vmem:[%s1 + $0x484] sm:$0xf]
  %v318 = vld [vmem:[%s1 + $0x488] sm:$0xf]
  %v319 = vld [vmem:[%s1 + $0x48c] sm:$0xf]
  %v320 = vld [vmem:[%s1 + $0x490] sm:$0xf]
  %v321 = vld [vmem:[%s1 + $0x494] sm:$0xf]
  %v322 = vld [vmem:[%s1 + $0x498] sm:$0xf]
  %v323 = vld [vmem:[%s1 + $0x49c] sm:$0xf]
  %v324 = vld [vmem:[%s1 + $0x4a0] sm:$0xf]
  %v325 = vld [vmem:[%s1 + $0x4a4] sm:$0xf]
  %v326 = vld [vmem:[%s1 + $0x4a8] sm:$0xf]
  %v327 = vld [vmem:[%s1 + $0x4ac] sm:$0xf]
  %v328 = vld [vmem:[%s1 + $0x4b0] sm:$0xf]
  %v329 = vld [vmem:[%s1 + $0x4b4] sm:$0xf]
  %v330 = vld [vmem:[%s1 + $0x4b8] sm:$0xf]
  %v331 = vld [vmem:[%s1 + $0x4bc] sm:$0xf]
  %v332 = vld [vmem:[%s1 + $0x4c0] sm:$0xf]
  %v333 = vld [vmem:[%s1 + $0x4c4] sm:$0xf]
  %v334 = vld [vmem:[%s1 + $0x4c8] sm:$0xf]
  %v335 = vld [vmem:[%s1 + $0x4cc] sm:$0xf]
  %v336 = vld [vmem:[%s1 + $0x4d0] sm:$0xf]
  %v337 = vld [vmem:[%s1 + $0x4d4] sm:$0xf]
  %v338 = vld [vmem:[%s1 + $0x4d8] sm:$0xf]
  %v339 = vld [vmem:[%s1 + $0x4dc] sm:$0xf]
  %v340 = vld [vmem:[%s1 + $0x4e0] sm:$0xf]
  %v341 = vld [vmem:[%s1 + $0x4e4] sm:$0xf]
  %v342 = vld [vmem:[%s1 + $0x4e8] sm:$0xf]
  %v343 = vld [vmem:[%s1 + $0x4ec] sm:$0xf]
  %v344 = vld [vmem:[%s1 + $0x4f0] sm:$0xf]
  %v345 = vld [vmem:[%s1 + $0x4f4] sm:$0xf]
  %v346 = vld [vmem:[%s1 + $0x4f8] sm:$0xf]
  %v347 = vld [vmem:[%s1 + $0x4fc] sm:$0xf]
  %v348 = vld [vmem:[%s1 + $0x500] sm:$0xf]
  %v349 = vld [vmem:[%s1 + $0x504] sm:$0xf]
  %v350 = vld [vmem:[%s1 + $0x508] sm:$0xf]
  %v351 = vld [vmem:[%s1 + $0x50c] sm:$0xf]
  %v352 = vld [vmem:[%s1 + $0x510] sm:$0xf]
  %v353 = vld [vmem:[%s1 + $0x514] sm:$0xf]
  %v354 = vld [vmem:[%s1 + $0x518] sm:$0xf]
  %v355 = vld [vmem:[%s1 + $0x51c] sm:$0xf]
  %v356 = vld [vmem:[%s1 + $0x520] sm:$0xf]
  %v357 = vld [vmem:[%s1 + $0x524] sm:$0xf]
  %v358 = vld [vmem:[%s1 + $0x528] sm:$0xf]
  %v359 = vld [vmem:[%s1 + $0x52c] sm:$0xf]
  %v360 = vld [vmem:[%s1 + $0x530] sm:$0xf]
  %v361 = vld [vmem:[%s1 + $0x534] sm:$0xf]
  %v362 = vld [vmem:[%s1 + $0x538] sm:$0xf]
  %v363 = vld [vmem:[%s1 + $0x53c] sm:$0xf]
  %v364 = vld [vmem:[%s1 + $0x540] sm:$0xf]
  %v365 = vld [vmem:[%s1 + $0x544] sm:$0xf]
  %v366 = vld [vmem:[%s1 + $0x548] sm:$0xf]
  %v367 = vld [vmem:[%s1 + $0x54c] sm:$0xf]
  %v368 = vld [vmem:[%s1 + $0x550] sm:$0xf]
  %v369 = vld [vmem:[%s1 + $0x554] sm:$0xf]
  %v370 = vld [vmem:[%s1 + $0x558] sm:$0xf]
  %v371 = vld [vmem:[%s1 + $0x55c] sm:$0xf]
  %v372 = vld [vmem:[%s1 + $0x560] sm:$0xf]
  %v373 = vld [vmem:[%s1 + $0x564] sm:$0xf]
  %v374 = vld [vmem:[%s1 + $0x568] sm:$0xf]
  %v375 = vld [vmem:[%s1 + $0x56c] sm:$0xf]
  %v376 = vld [vmem:[%s1 + $0x570] sm:$0xf]
  %v377 = vld [vmem:[%s1 + $0x574] sm:$0xf]
  %v378 = vld [vmem:[%s1 + $0x578] sm:$0xf]
  %v379 = vld [vmem:[%s1 + $0x57c] sm:$0xf]
  %v380 = vld [vmem:[%s1 + $0x580] sm:$0xf]
  %v381 = vld [vmem:[%s1 + $0x584] sm:$0xf]
  %v382 = vld [vmem:[%s1 + $0x588] sm:$0xf]
  %v383 = vld [vmem:[%s1 + $0x58c] sm:$0xf]
  %v384 = vld [vmem:[%s1 + $0x590] sm:$0xf]
  %v385 = vld [vmem:[%s1 + $0x594] sm:$0xf]
  %v386 = vld [vmem:[%s1 + $0x598] sm:$0xf]
  %v387 = vld [vmem:[%s1 + $0x59c] sm:$0xf]
  %v388 = vld [vmem:[%s1 + $0x5a0] sm:$0xf]
  %v389 = vld [vmem:[%s1 + $0x5a4] sm:$0xf]
  %v390 = vld [vmem:[%s1 + $0x5a8] sm:$0xf]
  %v391 = vld [vmem:[%s1 + $0x5ac] sm:$0xf]
  %v392 = vld [vmem:[%s1 + $0x5b0] sm:$0xf]
  %v393 = vld [vmem:[%s1 + $0x5b4] sm:$0xf]
  %v394 = vld [vmem:[%s1 + $0x5b8] sm:$0xf]
  %v395 = vld [vmem:[%s1 + $0x5bc] sm:$0xf]
  %v396 = vld [vmem:[%s1 + $0x5c0] sm:$0xf]
  %v397 = vld [vmem:[%s1 + $0x5c4] sm:$0xf]
  %v398 = vld [vmem:[%s1 + $0x5c8] sm:$0xf]
  %v399 = vld [vmem:[%s1 + $0x5cc] sm:$0xf]
  %v400 = vld [vmem:[%s1 + $0x5d0] sm:$0xf]
  %v401 = vld [vmem:[%s1 + $0x5d4] sm:$0xf]
  %v402 = vld [vmem:[%s1 + $0x5d8] sm:$0xf]
  %v403 = vld [vmem:[%s1 + $0x5dc] sm:$0xf]
  %v404 = vld [vmem:[%s1 + $0x5e0] sm:$0xf]
  %v405 = vld [vmem:[%s1 + $0x5e4] sm:$0xf]
  %v406 = vld [vmem:[%s1 + $0x5e8] sm:$0xf]
  %v407 = vld [vmem:[%s1 + $0x5ec] sm:$0xf]
  %v408 = vld [vmem:[%s1 + $0x5f0] sm:$0xf]
  %v409 = vld [vmem:[%s1 + $0x5f4] sm:$0xf]
  %v410 = vld [vmem:[%s1 + $0x5f8] sm:$0xf]
  %v411 = vld [vmem:[%s1 + $0x5fc] sm:$0xf]
  %v412 = vld [vmem:[%s1 + $0x600] sm:$0xf]
  %v413 = vld [vmem:[%s1 + $0x604] sm:$0xf]
  %v414 = vld [vmem:[%s1 + $0x608] sm:$0xf]
  %v415 = vld [vmem:[%s1 + $0x60c] sm:$0xf]
  %v416 = vld [vmem:[%s1 + $0x610] sm:$0xf]
  %v417 = vld [vmem:[%s1 + $0x614] sm:$0xf]
  %v418 = vld [vmem:[%s1 + $0x618] sm:$0xf]
  %v419 = vld [vmem:[%s1 + $0x61c] sm:$0xf]
  %v420 = vld [vmem:[%s1 + $0x620] sm:$0xf]
  %v421 = vld [vmem:[%s1 + $0x624] sm:$0xf]
  %v422 = vld [vmem:[%s1 + $0x628] sm:$0xf]
  %v423 = vld [vmem:[%s1 + $0x62c] sm:$0xf]
  %v424 = vld [vmem:[%s1 + $0x630] sm:$0xf]
  %v425 = vld [vmem:[%s1 + $0x634] sm:$0xf]
  %v426 = vld [vmem:[%s1 + $0x638] sm:$0xf]
  %v427 = vld [vmem:[%s1 + $0x63c] sm:$0xf]
  %v428 = vld [vmem:[%s2] sm:$0x1]
  %v430 = vlaneseq
  %v431 = vshrl.u32 %v430, 7
  %v432 = vsub.s32 0, %v431
  %v433 = vrot.slane %v428, %v432
  %v448 = vunpack.c.l.b16 %v15
  %v449 = vunpack.c.h.b16 %v15
  %v450 = vunpack.c.l.b16 %v16
  %v451 = vunpack.c.h.b16 %v16
  %v452 = vunpack.c.l.b16 %v17
  %v453 = vunpack.c.h.b16 %v17
  %v454 = vunpack.c.l.b16 %v18
  %v455 = vunpack.c.h.b16 %v18
  %v456 = vunpack.c.l.b16 %v19
  %v457 = vunpack.c.h.b16 %v19
  %v458 = vunpack.c.l.b16 %v20
  %v459 = vunpack.c.h.b16 %v20
  %v460 = vunpack.c.l.b16 %v21
  %v461 = vunpack.c.h.b16 %v21
  %v462 = vunpack.c.l.b16 %v22
  %v463 = vunpack.c.h.b16 %v22
  %v464 = vunpack.c.l.b16 %v23
  %v465 = vunpack.c.h.b16 %v23
  %v466 = vunpack.c.l.b16 %v24
  %v467 = vunpack.c.h.b16 %v24
  %v468 = vunpack.c.l.b16 %v25
  %v469 = vunpack.c.h.b16 %v25
  %v470 = vunpack.c.l.b16 %v26
  %v471 = vunpack.c.h.b16 %v26
  %v472 = vunpack.c.l.b16 %v27
  %v473 = vpack.c.b16 %v448, %v448
  %v474 = vpack.c.b16 %v449, %v449
  %v475 = vpack.c.b16 %v450, %v450
  %v476 = vpack.c.b16 %v451, %v451
  %v477 = vpack.c.b16 %v452, %v452
  %v478 = vpack.c.b16 %v453, %v453
  %v479 = vpack.c.b16 %v454, %v454
  %v480 = vpack.c.b16 %v455, %v455
  %v481 = vpack.c.b16 %v456, %v456
  %v482 = vpack.c.b16 %v457, %v457
  %v483 = vpack.c.b16 %v458, %v458
  %v484 = vpack.c.b16 %v459, %v459
  %v485 = vpack.c.b16 %v460, %v460
  %v486 = vpack.c.b16 %v461, %v461
  %v487 = vpack.c.b16 %v462, %v462
  %v488 = vpack.c.b16 %v463, %v463
  %v489 = vpack.c.b16 %v464, %v464
  %v490 = vpack.c.b16 %v465, %v465
  %v491 = vpack.c.b16 %v466, %v466
  %v492 = vpack.c.b16 %v467, %v467
  %v493 = vpack.c.b16 %v468, %v468
  %v494 = vpack.c.b16 %v469, %v469
  %v495 = vpack.c.b16 %v470, %v470
  %v496 = vpack.c.b16 %v471, %v471
  %v497 = vpack.c.b16 %v472, %v472
  %v923 = vunpack.c.l.b16 %v28
  %v924 = vunpack.c.l.b16 %v29
  %v925 = vunpack.c.l.b16 %v30
  %v926 = vunpack.c.l.b16 %v31
  %v927 = vunpack.c.l.b16 %v32
  %v928 = vunpack.c.l.b16 %v33
  %v929 = vunpack.c.l.b16 %v34
  %v930 = vunpack.c.l.b16 %v35
  %v931 = vunpack.c.l.b16 %v36
  %v932 = vunpack.c.l.b16 %v37
  %v933 = vunpack.c.l.b16 %v38
  %v934 = vunpack.c.l.b16 %v39
  %v935 = vunpack.c.l.b16 %v40
  %v936 = vunpack.c.l.b16 %v41
  %v937 = vunpack.c.l.b16 %v42
  %v938 = vunpack.c.l.b16 %v43
  %v939 = vunpack.c.l.b16 %v44
  %v940 = vunpack.c.l.b16 %v45
  %v941 = vunpack.c.l.b16 %v46
  %v942 = vunpack.c.l.b16 %v47
  %v943 = vunpack.c.l.b16 %v48
  %v944 = vunpack.c.l.b16 %v49
  %v945 = vunpack.c.l.b16 %v50
  %v946 = vunpack.c.l.b16 %v51
  %v947 = vunpack.c.l.b16 %v52
  %v948 = vunpack.c.l.b16 %v53
  %v949 = vunpack.c.l.b16 %v54
  %v950 = vunpack.c.l.b16 %v55
  %v951 = vunpack.c.l.b16 %v56
  %v952 = vunpack.c.l.b16 %v57
  %v953 = vunpack.c.l.b16 %v58
  %v954 = vunpack.c.l.b16 %v59
  %v955 = vunpack.c.l.b16 %v60
  %v956 = vunpack.c.l.b16 %v61
  %v957 = vunpack.c.l.b16 %v62
  %v958 = vunpack.c.l.b16 %v63
  %v959 = vunpack.c.l.b16 %v64
  %v960 = vunpack.c.l.b16 %v65
  %v961 = vunpack.c.l.b16 %v66
  %v962 = vunpack.c.l.b16 %v67
  %v963 = vunpack.c.l.b16 %v68
  %v964 = vunpack.c.l.b16 %v69
  %v965 = vunpack.c.l.b16 %v70
  %v966 = vunpack.c.l.b16 %v71
  %v967 = vunpack.c.l.b16 %v72
  %v968 = vunpack.c.l.b16 %v73
  %v969 = vunpack.c.l.b16 %v74
  %v970 = vunpack.c.l.b16 %v75
  %v971 = vunpack.c.l.b16 %v76
  %v972 = vunpack.c.l.b16 %v77
  %v973 = vunpack.c.l.b16 %v78
  %v974 = vunpack.c.l.b16 %v79
  %v975 = vunpack.c.l.b16 %v80
  %v976 = vunpack.c.l.b16 %v81
  %v977 = vunpack.c.l.b16 %v82
  %v978 = vunpack.c.l.b16 %v83
  %v979 = vunpack.c.l.b16 %v84
  %v980 = vunpack.c.l.b16 %v85
  %v981 = vunpack.c.l.b16 %v86
  %v982 = vunpack.c.l.b16 %v87
  %v983 = vunpack.c.l.b16 %v88
  %v984 = vunpack.c.l.b16 %v89
  %v985 = vunpack.c.l.b16 %v90
  %v986 = vunpack.c.l.b16 %v91
  %v987 = vunpack.c.l.b16 %v92
  %v988 = vunpack.c.l.b16 %v93
  %v989 = vunpack.c.l.b16 %v94
  %v990 = vunpack.c.l.b16 %v95
  %v991 = vunpack.c.l.b16 %v96
  %v992 = vunpack.c.l.b16 %v97
  %v993 = vunpack.c.l.b16 %v98
  %v994 = vunpack.c.l.b16 %v99
  %v995 = vunpack.c.l.b16 %v100
  %v996 = vunpack.c.l.b16 %v101
  %v997 = vunpack.c.l.b16 %v102
  %v998 = vunpack.c.l.b16 %v103
  %v999 = vunpack.c.l.b16 %v104
  %v1000 = vunpack.c.l.b16 %v105
  %v1001 = vunpack.c.l.b16 %v106
  %v1002 = vunpack.c.l.b16 %v107
  %v1003 = vunpack.c.l.b16 %v108
  %v1004 = vunpack.c.l.b16 %v109
  %v1005 = vunpack.c.l.b16 %v110
  %v1006 = vunpack.c.l.b16 %v111
  %v1007 = vunpack.c.l.b16 %v112
  %v1008 = vunpack.c.l.b16 %v113
  %v1009 = vunpack.c.l.b16 %v114
  %v1010 = vunpack.c.l.b16 %v115
  %v1011 = vunpack.c.l.b16 %v116
  %v1012 = vunpack.c.l.b16 %v117
  %v1013 = vunpack.c.l.b16 %v118
  %v1014 = vunpack.c.l.b16 %v119
  %v1015 = vunpack.c.l.b16 %v120
  %v1016 = vunpack.c.l.b16 %v121
  %v1017 = vunpack.c.l.b16 %v122
  %v1018 = vunpack.c.l.b16 %v123
  %v1019 = vunpack.c.l.b16 %v124
  %v1020 = vunpack.c.l.b16 %v125
  %v1021 = vunpack.c.l.b16 %v126
  %v1022 = vunpack.c.l.b16 %v127
  %v1023 = vunpack.c.l.b16 %v128
  %v1024 = vunpack.c.l.b16 %v129
  %v1025 = vunpack.c.l.b16 %v130
  %v1026 = vunpack.c.l.b16 %v131
  %v1027 = vunpack.c.l.b16 %v132
  %v1028 = vunpack.c.l.b16 %v133
  %v1029 = vunpack.c.l.b16 %v134
  %v1030 = vunpack.c.l.b16 %v135
  %v1031 = vunpack.c.l.b16 %v136
  %v1032 = vunpack.c.l.b16 %v137
  %v1033 = vunpack.c.l.b16 %v138
  %v1034 = vunpack.c.l.b16 %v139
  %v1035 = vunpack.c.l.b16 %v140
  %v1036 = vunpack.c.l.b16 %v141
  %v1037 = vunpack.c.l.b16 %v142
  %v1038 = vunpack.c.l.b16 %v143
  %v1039 = vunpack.c.l.b16 %v144
  %v1040 = vunpack.c.l.b16 %v145
  %v1041 = vunpack.c.l.b16 %v146
  %v1042 = vunpack.c.l.b16 %v147
  %v1043 = vunpack.c.l.b16 %v148
  %v1044 = vunpack.c.l.b16 %v149
  %v1045 = vunpack.c.l.b16 %v150
  %v1046 = vunpack.c.l.b16 %v151
  %v1047 = vunpack.c.l.b16 %v152
  %v1048 = vunpack.c.l.b16 %v153
  %v1049 = vunpack.c.l.b16 %v154
  %v1050 = vunpack.c.l.b16 %v155
  %v1051 = vunpack.c.l.b16 %v156
  %v1052 = vunpack.c.l.b16 %v157
  %v1053 = vunpack.c.l.b16 %v158
  %v1054 = vunpack.c.l.b16 %v159
  %v1055 = vunpack.c.l.b16 %v160
  %v1056 = vunpack.c.l.b16 %v161
  %v1057 = vunpack.c.l.b16 %v162
  %v1058 = vunpack.c.l.b16 %v163
  %v1059 = vunpack.c.l.b16 %v164
  %v1060 = vunpack.c.l.b16 %v165
  %v1061 = vunpack.c.l.b16 %v166
  %v1062 = vunpack.c.l.b16 %v167
  %v1063 = vunpack.c.l.b16 %v168
  %v1064 = vunpack.c.l.b16 %v169
  %v1065 = vunpack.c.l.b16 %v170
  %v1066 = vunpack.c.l.b16 %v171
  %v1067 = vunpack.c.l.b16 %v172
  %v1068 = vunpack.c.l.b16 %v173
  %v1069 = vunpack.c.l.b16 %v174
  %v1070 = vunpack.c.l.b16 %v175
  %v1071 = vunpack.c.l.b16 %v176
  %v1072 = vunpack.c.l.b16 %v177
  %v1073 = vunpack.c.l.b16 %v178
  %v1074 = vunpack.c.l.b16 %v179
  %v1075 = vunpack.c.l.b16 %v180
  %v1076 = vunpack.c.l.b16 %v181
  %v1077 = vunpack.c.l.b16 %v182
  %v1078 = vunpack.c.l.b16 %v183
  %v1079 = vunpack.c.l.b16 %v184
  %v1080 = vunpack.c.l.b16 %v185
  %v1081 = vunpack.c.l.b16 %v186
  %v1082 = vunpack.c.l.b16 %v187
  %v1083 = vunpack.c.l.b16 %v188
  %v1084 = vunpack.c.l.b16 %v189
  %v1085 = vunpack.c.l.b16 %v190
  %v1086 = vunpack.c.l.b16 %v191
  %v1087 = vunpack.c.l.b16 %v192
  %v1088 = vunpack.c.l.b16 %v193
  %v1089 = vunpack.c.l.b16 %v194
  %v1090 = vunpack.c.l.b16 %v195
  %v1091 = vunpack.c.l.b16 %v196
  %v1092 = vunpack.c.l.b16 %v197
  %v1093 = vunpack.c.l.b16 %v198
  %v1094 = vunpack.c.l.b16 %v199
  %v1095 = vunpack.c.l.b16 %v200
  %v1096 = vunpack.c.l.b16 %v201
  %v1097 = vunpack.c.l.b16 %v202
  %v1098 = vunpack.c.l.b16 %v203
  %v1099 = vunpack.c.l.b16 %v204
  %v1100 = vunpack.c.l.b16 %v205
  %v1101 = vunpack.c.l.b16 %v206
  %v1102 = vunpack.c.l.b16 %v207
  %v1103 = vunpack.c.l.b16 %v208
  %v1104 = vunpack.c.l.b16 %v209
  %v1105 = vunpack.c.l.b16 %v210
  %v1106 = vunpack.c.l.b16 %v211
  %v1107 = vunpack.c.l.b16 %v212
  %v1108 = vunpack.c.l.b16 %v213
  %v1109 = vunpack.c.l.b16 %v214
  %v1110 = vunpack.c.l.b16 %v215
  %v1111 = vunpack.c.l.b16 %v216
  %v1112 = vunpack.c.l.b16 %v217
  %v1113 = vunpack.c.l.b16 %v218
  %v1114 = vunpack.c.l.b16 %v219
  %v1115 = vunpack.c.l.b16 %v220
  %v1116 = vunpack.c.l.b16 %v221
  %v1117 = vunpack.c.l.b16 %v222
  %v1118 = vunpack.c.l.b16 %v223
  %v1119 = vunpack.c.l.b16 %v224
  %v1120 = vunpack.c.l.b16 %v225
  %v1121 = vunpack.c.l.b16 %v226
  %v1122 = vunpack.c.l.b16 %v227
  %v1123 = vunpack.c.l.b16 %v228
  %v1124 = vunpack.c.l.b16 %v229
  %v1125 = vunpack.c.l.b16 %v230
  %v1126 = vunpack.c.l.b16 %v231
  %v1127 = vunpack.c.l.b16 %v232
  %v1128 = vunpack.c.l.b16 %v233
  %v1129 = vunpack.c.l.b16 %v234
  %v1130 = vunpack.c.l.b16 %v235
  %v1131 = vunpack.c.l.b16 %v236
  %v1132 = vunpack.c.l.b16 %v237
  %v1133 = vunpack.c.l.b16 %v238
  %v1134 = vunpack.c.l.b16 %v239
  %v1135 = vunpack.c.l.b16 %v240
  %v1136 = vunpack.c.l.b16 %v241
  %v1137 = vunpack.c.l.b16 %v242
  %v1138 = vunpack.c.l.b16 %v243
  %v1139 = vunpack.c.l.b16 %v244
  %v1140 = vunpack.c.l.b16 %v245
  %v1141 = vunpack.c.l.b16 %v246
  %v1142 = vunpack.c.l.b16 %v247
  %v1143 = vunpack.c.l.b16 %v248
  %v1144 = vunpack.c.l.b16 %v249
  %v1145 = vunpack.c.l.b16 %v250
  %v1146 = vunpack.c.l.b16 %v251
  %v1147 = vunpack.c.l.b16 %v252
  %v1148 = vunpack.c.l.b16 %v253
  %v1149 = vunpack.c.l.b16 %v254
  %v1150 = vunpack.c.l.b16 %v255
  %v1151 = vunpack.c.l.b16 %v256
  %v1152 = vunpack.c.l.b16 %v257
  %v1153 = vunpack.c.l.b16 %v258
  %v1154 = vunpack.c.l.b16 %v259
  %v1155 = vunpack.c.l.b16 %v260
  %v1156 = vunpack.c.l.b16 %v261
  %v1157 = vunpack.c.l.b16 %v262
  %v1158 = vunpack.c.l.b16 %v263
  %v1159 = vunpack.c.l.b16 %v264
  %v1160 = vunpack.c.l.b16 %v265
  %v1161 = vunpack.c.l.b16 %v266
  %v1162 = vunpack.c.l.b16 %v267
  %v1163 = vunpack.c.l.b16 %v268
  %v1164 = vunpack.c.l.b16 %v269
  %v1165 = vunpack.c.l.b16 %v270
  %v1166 = vunpack.c.l.b16 %v271
  %v1167 = vunpack.c.l.b16 %v272
  %v1168 = vunpack.c.l.b16 %v273
  %v1169 = vunpack.c.l.b16 %v274
  %v1170 = vunpack.c.l.b16 %v275
  %v1171 = vunpack.c.l.b16 %v276
  %v1172 = vunpack.c.l.b16 %v277
  %v1173 = vunpack.c.l.b16 %v278
  %v1174 = vunpack.c.l.b16 %v279
  %v1175 = vunpack.c.l.b16 %v280
  %v1176 = vunpack.c.l.b16 %v281
  %v1177 = vunpack.c.l.b16 %v282
  %v1178 = vunpack.c.l.b16 %v283
  %v1179 = vunpack.c.l.b16 %v284
  %v1180 = vunpack.c.l.b16 %v285
  %v1181 = vunpack.c.l.b16 %v286
  %v1182 = vunpack.c.l.b16 %v287
  %v1183 = vunpack.c.l.b16 %v288
  %v1184 = vunpack.c.l.b16 %v289
  %v1185 = vunpack.c.l.b16 %v290
  %v1186 = vunpack.c.l.b16 %v291
  %v1187 = vunpack.c.l.b16 %v292
  %v1188 = vunpack.c.l.b16 %v293
  %v1189 = vunpack.c.l.b16 %v294
  %v1190 = vunpack.c.l.b16 %v295
  %v1191 = vunpack.c.l.b16 %v296
  %v1192 = vunpack.c.l.b16 %v297
  %v1193 = vunpack.c.l.b16 %v298
  %v1194 = vunpack.c.l.b16 %v299
  %v1195 = vunpack.c.l.b16 %v300
  %v1196 = vunpack.c.l.b16 %v301
  %v1197 = vunpack.c.l.b16 %v302
  %v1198 = vunpack.c.l.b16 %v303
  %v1199 = vunpack.c.l.b16 %v304
  %v1200 = vunpack.c.l.b16 %v305
  %v1201 = vunpack.c.l.b16 %v306
  %v1202 = vunpack.c.l.b16 %v307
  %v1203 = vunpack.c.l.b16 %v308
  %v1204 = vunpack.c.l.b16 %v309
  %v1205 = vunpack.c.l.b16 %v310
  %v1206 = vunpack.c.l.b16 %v311
  %v1207 = vunpack.c.l.b16 %v312
  %v1208 = vunpack.c.l.b16 %v313
  %v1209 = vunpack.c.l.b16 %v314
  %v1210 = vunpack.c.l.b16 %v315
  %v1211 = vunpack.c.l.b16 %v316
  %v1212 = vunpack.c.l.b16 %v317
  %v1213 = vunpack.c.l.b16 %v318
  %v1214 = vunpack.c.l.b16 %v319
  %v1215 = vunpack.c.l.b16 %v320
  %v1216 = vunpack.c.l.b16 %v321
  %v1217 = vunpack.c.l.b16 %v322
  %v1218 = vunpack.c.l.b16 %v323
  %v1219 = vunpack.c.l.b16 %v324
  %v1220 = vunpack.c.l.b16 %v325
  %v1221 = vunpack.c.l.b16 %v326
  %v1222 = vunpack.c.l.b16 %v327
  %v1223 = vunpack.c.l.b16 %v328
  %v1224 = vunpack.c.l.b16 %v329
  %v1225 = vunpack.c.l.b16 %v330
  %v1226 = vunpack.c.l.b16 %v331
  %v1227 = vunpack.c.l.b16 %v332
  %v1228 = vunpack.c.l.b16 %v333
  %v1229 = vunpack.c.l.b16 %v334
  %v1230 = vunpack.c.l.b16 %v335
  %v1231 = vunpack.c.l.b16 %v336
  %v1232 = vunpack.c.l.b16 %v337
  %v1233 = vunpack.c.l.b16 %v338
  %v1234 = vunpack.c.l.b16 %v339
  %v1235 = vunpack.c.l.b16 %v340
  %v1236 = vunpack.c.l.b16 %v341
  %v1237 = vunpack.c.l.b16 %v342
  %v1238 = vunpack.c.l.b16 %v343
  %v1239 = vunpack.c.l.b16 %v344
  %v1240 = vunpack.c.l.b16 %v345
  %v1241 = vunpack.c.l.b16 %v346
  %v1242 = vunpack.c.l.b16 %v347
  %v1243 = vunpack.c.l.b16 %v348
  %v1244 = vunpack.c.l.b16 %v349
  %v1245 = vunpack.c.l.b16 %v350
  %v1246 = vunpack.c.l.b16 %v351
  %v1247 = vunpack.c.l.b16 %v352
  %v1248 = vunpack.c.l.b16 %v353
  %v1249 = vunpack.c.l.b16 %v354
  %v1250 = vunpack.c.l.b16 %v355
  %v1251 = vunpack.c.l.b16 %v356
  %v1252 = vunpack.c.l.b16 %v357
  %v1253 = vunpack.c.l.b16 %v358
  %v1254 = vunpack.c.l.b16 %v359
  %v1255 = vunpack.c.l.b16 %v360
  %v1256 = vunpack.c.l.b16 %v361
  %v1257 = vunpack.c.l.b16 %v362
  %v1258 = vunpack.c.l.b16 %v363
  %v1259 = vunpack.c.l.b16 %v364
  %v1260 = vunpack.c.l.b16 %v365
  %v1261 = vunpack.c.l.b16 %v366
  %v1262 = vunpack.c.l.b16 %v367
  %v1263 = vunpack.c.l.b16 %v368
  %v1264 = vunpack.c.l.b16 %v369
  %v1265 = vunpack.c.l.b16 %v370
  %v1266 = vunpack.c.l.b16 %v371
  %v1267 = vunpack.c.l.b16 %v372
  %v1268 = vunpack.c.l.b16 %v373
  %v1269 = vunpack.c.l.b16 %v374
  %v1270 = vunpack.c.l.b16 %v375
  %v1271 = vunpack.c.l.b16 %v376
  %v1272 = vunpack.c.l.b16 %v377
  %v1273 = vunpack.c.l.b16 %v378
  %v1274 = vunpack.c.l.b16 %v379
  %v1275 = vunpack.c.l.b16 %v380
  %v1276 = vunpack.c.l.b16 %v381
  %v1277 = vunpack.c.l.b16 %v382
  %v1278 = vunpack.c.l.b16 %v383
  %v1279 = vunpack.c.l.b16 %v384
  %v1280 = vunpack.c.l.b16 %v385
  %v1281 = vunpack.c.l.b16 %v386
  %v1282 = vunpack.c.l.b16 %v387
  %v1283 = vunpack.c.l.b16 %v388
  %v1284 = vunpack.c.l.b16 %v389
  %v1285 = vunpack.c.l.b16 %v390
  %v1286 = vunpack.c.l.b16 %v391
  %v1287 = vunpack.c.l.b16 %v392
  %v1288 = vunpack.c.l.b16 %v393
  %v1289 = vunpack.c.l.b16 %v394
  %v1290 = vunpack.c.l.b16 %v395
  %v1291 = vunpack.c.l.b16 %v396
  %v1292 = vunpack.c.l.b16 %v397
  %v1293 = vunpack.c.l.b16 %v398
  %v1294 = vunpack.c.l.b16 %v399
  %v1295 = vunpack.c.l.b16 %v400
  %v1296 = vunpack.c.l.b16 %v401
  %v1297 = vunpack.c.l.b16 %v402
  %v1298 = vunpack.c.l.b16 %v403
  %v1299 = vunpack.c.l.b16 %v404
  %v1300 = vunpack.c.l.b16 %v405
  %v1301 = vunpack.c.l.b16 %v406
  %v1302 = vunpack.c.l.b16 %v407
  %v1303 = vunpack.c.l.b16 %v408
  %v1304 = vunpack.c.l.b16 %v409
  %v1305 = vunpack.c.l.b16 %v410
  %v1306 = vunpack.c.l.b16 %v411
  %v1307 = vunpack.c.l.b16 %v412
  %v1308 = vunpack.c.l.b16 %v413
  %v1309 = vunpack.c.l.b16 %v414
  %v1310 = vunpack.c.l.b16 %v415
  %v1311 = vunpack.c.l.b16 %v416
  %v1312 = vunpack.c.l.b16 %v417
  %v1313 = vunpack.c.l.b16 %v418
  %v1314 = vunpack.c.l.b16 %v419
  %v1315 = vunpack.c.l.b16 %v420
  %v1316 = vunpack.c.l.b16 %v421
  %v1317 = vunpack.c.l.b16 %v422
  %v1318 = vunpack.c.l.b16 %v423
  %v1319 = vunpack.c.l.b16 %v424
  %v1320 = vunpack.c.l.b16 %v425
  %v1321 = vunpack.c.l.b16 %v426
  %v1322 = vunpack.c.l.b16 %v427
  %v1323 = vpack.c.b16 %v924, %v923
  %v1324 = vpack.c.b16 %v926, %v925
  %v1325 = vpack.c.b16 %v928, %v927
  %v1326 = vpack.c.b16 %v930, %v929
  %v1327 = vpack.c.b16 %v932, %v931
  %v1328 = vpack.c.b16 %v934, %v933
  %v1329 = vpack.c.b16 %v936, %v935
  %v1330 = vpack.c.b16 %v938, %v937
  %v1331 = vpack.c.b16 %v940, %v939
  %v1332 = vpack.c.b16 %v942, %v941
  %v1333 = vpack.c.b16 %v944, %v943
  %v1334 = vpack.c.b16 %v946, %v945
  %v1335 = vpack.c.b16 %v948, %v947
  %v1336 = vpack.c.b16 %v950, %v949
  %v1337 = vpack.c.b16 %v952, %v951
  %v1338 = vpack.c.b16 %v954, %v953
  %v1339 = vpack.c.b16 %v956, %v955
  %v1340 = vpack.c.b16 %v958, %v957
  %v1341 = vpack.c.b16 %v960, %v959
  %v1342 = vpack.c.b16 %v962, %v961
  %v1343 = vpack.c.b16 %v964, %v963
  %v1344 = vpack.c.b16 %v966, %v965
  %v1345 = vpack.c.b16 %v968, %v967
  %v1346 = vpack.c.b16 %v970, %v969
  %v1347 = vpack.c.b16 %v972, %v971
  %v1348 = vpack.c.b16 %v974, %v973
  %v1349 = vpack.c.b16 %v976, %v975
  %v1350 = vpack.c.b16 %v978, %v977
  %v1351 = vpack.c.b16 %v980, %v979
  %v1352 = vpack.c.b16 %v982, %v981
  %v1353 = vpack.c.b16 %v984, %v983
  %v1354 = vpack.c.b16 %v986, %v985
  %v1355 = vpack.c.b16 %v988, %v987
  %v1356 = vpack.c.b16 %v990, %v989
  %v1357 = vpack.c.b16 %v992, %v991
  %v1358 = vpack.c.b16 %v994, %v993
  %v1359 = vpack.c.b16 %v996, %v995
  %v1360 = vpack.c.b16 %v998, %v997
  %v1361 = vpack.c.b16 %v1000, %v999
  %v1362 = vpack.c.b16 %v1002, %v1001
  %v1363 = vpack.c.b16 %v1004, %v1003
  %v1364 = vpack.c.b16 %v1006, %v1005
  %v1365 = vpack.c.b16 %v1008, %v1007
  %v1366 = vpack.c.b16 %v1010, %v1009
  %v1367 = vpack.c.b16 %v1012, %v1011
  %v1368 = vpack.c.b16 %v1014, %v1013
  %v1369 = vpack.c.b16 %v1016, %v1015
  %v1370 = vpack.c.b16 %v1018, %v1017
  %v1371 = vpack.c.b16 %v1020, %v1019
  %v1372 = vpack.c.b16 %v1022, %v1021
  %v1373 = vpack.c.b16 %v1024, %v1023
  %v1374 = vpack.c.b16 %v1026, %v1025
  %v1375 = vpack.c.b16 %v1028, %v1027
  %v1376 = vpack.c.b16 %v1030, %v1029
  %v1377 = vpack.c.b16 %v1032, %v1031
  %v1378 = vpack.c.b16 %v1034, %v1033
  %v1379 = vpack.c.b16 %v1036, %v1035
  %v1380 = vpack.c.b16 %v1038, %v1037
  %v1381 = vpack.c.b16 %v1040, %v1039
  %v1382 = vpack.c.b16 %v1042, %v1041
  %v1383 = vpack.c.b16 %v1044, %v1043
  %v1384 = vpack.c.b16 %v1046, %v1045
  %v1385 = vpack.c.b16 %v1048, %v1047
  %v1386 = vpack.c.b16 %v1050, %v1049
  %v1387 = vpack.c.b16 %v1052, %v1051
  %v1388 = vpack.c.b16 %v1054, %v1053
  %v1389 = vpack.c.b16 %v1056, %v1055
  %v1390 = vpack.c.b16 %v1058, %v1057
  %v1391 = vpack.c.b16 %v1060, %v1059
  %v1392 = vpack.c.b16 %v1062, %v1061
  %v1393 = vpack.c.b16 %v1064, %v1063
  %v1394 = vpack.c.b16 %v1066, %v1065
  %v1395 = vpack.c.b16 %v1068, %v1067
  %v1396 = vpack.c.b16 %v1070, %v1069
  %v1397 = vpack.c.b16 %v1072, %v1071
  %v1398 = vpack.c.b16 %v1074, %v1073
  %v1399 = vpack.c.b16 %v1076, %v1075
  %v1400 = vpack.c.b16 %v1078, %v1077
  %v1401 = vpack.c.b16 %v1080, %v1079
  %v1402 = vpack.c.b16 %v1082, %v1081
  %v1403 = vpack.c.b16 %v1084, %v1083
  %v1404 = vpack.c.b16 %v1086, %v1085
  %v1405 = vpack.c.b16 %v1088, %v1087
  %v1406 = vpack.c.b16 %v1090, %v1089
  %v1407 = vpack.c.b16 %v1092, %v1091
  %v1408 = vpack.c.b16 %v1094, %v1093
  %v1409 = vpack.c.b16 %v1096, %v1095
  %v1410 = vpack.c.b16 %v1098, %v1097
  %v1411 = vpack.c.b16 %v1100, %v1099
  %v1412 = vpack.c.b16 %v1102, %v1101
  %v1413 = vpack.c.b16 %v1104, %v1103
  %v1414 = vpack.c.b16 %v1106, %v1105
  %v1415 = vpack.c.b16 %v1108, %v1107
  %v1416 = vpack.c.b16 %v1110, %v1109
  %v1417 = vpack.c.b16 %v1112, %v1111
  %v1418 = vpack.c.b16 %v1114, %v1113
  %v1419 = vpack.c.b16 %v1116, %v1115
  %v1420 = vpack.c.b16 %v1118, %v1117
  %v1421 = vpack.c.b16 %v1120, %v1119
  %v1422 = vpack.c.b16 %v1122, %v1121
  %v1423 = vpack.c.b16 %v1124, %v1123
  %v1424 = vpack.c.b16 %v1126, %v1125
  %v1425 = vpack.c.b16 %v1128, %v1127
  %v1426 = vpack.c.b16 %v1130, %v1129
  %v1427 = vpack.c.b16 %v1132, %v1131
  %v1428 = vpack.c.b16 %v1134, %v1133
  %v1429 = vpack.c.b16 %v1136, %v1135
  %v1430 = vpack.c.b16 %v1138, %v1137
  %v1431 = vpack.c.b16 %v1140, %v1139
  %v1432 = vpack.c.b16 %v1142, %v1141
  %v1433 = vpack.c.b16 %v1144, %v1143
  %v1434 = vpack.c.b16 %v1146, %v1145
  %v1435 = vpack.c.b16 %v1148, %v1147
  %v1436 = vpack.c.b16 %v1150, %v1149
  %v1437 = vpack.c.b16 %v1152, %v1151
  %v1438 = vpack.c.b16 %v1154, %v1153
  %v1439 = vpack.c.b16 %v1156, %v1155
  %v1440 = vpack.c.b16 %v1158, %v1157
  %v1441 = vpack.c.b16 %v1160, %v1159
  %v1442 = vpack.c.b16 %v1162, %v1161
  %v1443 = vpack.c.b16 %v1164, %v1163
  %v1444 = vpack.c.b16 %v1166, %v1165
  %v1445 = vpack.c.b16 %v1168, %v1167
  %v1446 = vpack.c.b16 %v1170, %v1169
  %v1447 = vpack.c.b16 %v1172, %v1171
  %v1448 = vpack.c.b16 %v1174, %v1173
  %v1449 = vpack.c.b16 %v1176, %v1175
  %v1450 = vpack.c.b16 %v1178, %v1177
  %v1451 = vpack.c.b16 %v1180, %v1179
  %v1452 = vpack.c.b16 %v1182, %v1181
  %v1453 = vpack.c.b16 %v1184, %v1183
  %v1454 = vpack.c.b16 %v1186, %v1185
  %v1455 = vpack.c.b16 %v1188, %v1187
  %v1456 = vpack.c.b16 %v1190, %v1189
  %v1457 = vpack.c.b16 %v1192, %v1191
  %v1458 = vpack.c.b16 %v1194, %v1193
  %v1459 = vpack.c.b16 %v1196, %v1195
  %v1460 = vpack.c.b16 %v1198, %v1197
  %v1461 = vpack.c.b16 %v1200, %v1199
  %v1462 = vpack.c.b16 %v1202, %v1201
  %v1463 = vpack.c.b16 %v1204, %v1203
  %v1464 = vpack.c.b16 %v1206, %v1205
  %v1465 = vpack.c.b16 %v1208, %v1207
  %v1466 = vpack.c.b16 %v1210, %v1209
  %v1467 = vpack.c.b16 %v1212, %v1211
  %v1468 = vpack.c.b16 %v1214, %v1213
  %v1469 = vpack.c.b16 %v1216, %v1215
  %v1470 = vpack.c.b16 %v1218, %v1217
  %v1471 = vpack.c.b16 %v1220, %v1219
  %v1472 = vpack.c.b16 %v1222, %v1221
  %v1473 = vpack.c.b16 %v1224, %v1223
  %v1474 = vpack.c.b16 %v1226, %v1225
  %v1475 = vpack.c.b16 %v1228, %v1227
  %v1476 = vpack.c.b16 %v1230, %v1229
  %v1477 = vpack.c.b16 %v1232, %v1231
  %v1478 = vpack.c.b16 %v1234, %v1233
  %v1479 = vpack.c.b16 %v1236, %v1235
  %v1480 = vpack.c.b16 %v1238, %v1237
  %v1481 = vpack.c.b16 %v1240, %v1239
  %v1482 = vpack.c.b16 %v1242, %v1241
  %v1483 = vpack.c.b16 %v1244, %v1243
  %v1484 = vpack.c.b16 %v1246, %v1245
  %v1485 = vpack.c.b16 %v1248, %v1247
  %v1486 = vpack.c.b16 %v1250, %v1249
  %v1487 = vpack.c.b16 %v1252, %v1251
  %v1488 = vpack.c.b16 %v1254, %v1253
  %v1489 = vpack.c.b16 %v1256, %v1255
  %v1490 = vpack.c.b16 %v1258, %v1257
  %v1491 = vpack.c.b16 %v1260, %v1259
  %v1492 = vpack.c.b16 %v1262, %v1261
  %v1493 = vpack.c.b16 %v1264, %v1263
  %v1494 = vpack.c.b16 %v1266, %v1265
  %v1495 = vpack.c.b16 %v1268, %v1267
  %v1496 = vpack.c.b16 %v1270, %v1269
  %v1497 = vpack.c.b16 %v1272, %v1271
  %v1498 = vpack.c.b16 %v1274, %v1273
  %v1499 = vpack.c.b16 %v1276, %v1275
  %v1500 = vpack.c.b16 %v1278, %v1277
  %v1501 = vpack.c.b16 %v1280, %v1279
  %v1502 = vpack.c.b16 %v1282, %v1281
  %v1503 = vpack.c.b16 %v1284, %v1283
  %v1504 = vpack.c.b16 %v1286, %v1285
  %v1505 = vpack.c.b16 %v1288, %v1287
  %v1506 = vpack.c.b16 %v1290, %v1289
  %v1507 = vpack.c.b16 %v1292, %v1291
  %v1508 = vpack.c.b16 %v1294, %v1293
  %v1509 = vpack.c.b16 %v1296, %v1295
  %v1510 = vpack.c.b16 %v1298, %v1297
  %v1511 = vpack.c.b16 %v1300, %v1299
  %v1512 = vpack.c.b16 %v1302, %v1301
  %v1513 = vpack.c.b16 %v1304, %v1303
  %v1514 = vpack.c.b16 %v1306, %v1305
  %v1515 = vpack.c.b16 %v1308, %v1307
  %v1516 = vpack.c.b16 %v1310, %v1309
  %v1517 = vpack.c.b16 %v1312, %v1311
  %v1518 = vpack.c.b16 %v1314, %v1313
  %v1519 = vpack.c.b16 %v1316, %v1315
  %v1520 = vpack.c.b16 %v1318, %v1317
  %v1521 = vpack.c.b16 %v1320, %v1319
  %v1522 = vpack.c.b16 %v1322, %v1321
  %1723 = vmatprep.subr.bf16.mxu0 0
  %1724 = vmatpush1.bf16.msra.mxu0 %v1323
  %1725 = vmatprep.subr.bf16.mxu0 0
  %1726 = vmatpush1.bf16.msra.mxu0 %v1324
  %1727 = vmatprep.subr.bf16.mxu0 0
  %1728 = vmatpush1.bf16.msra.mxu0 %v1325
  %1729 = vmatprep.subr.bf16.mxu0 0
  %1730 = vmatpush1.bf16.msra.mxu0 %v1326
  %1731 = vmatprep.subr.bf16.mxu0 0
  %1732 = vmatpush1.bf16.msra.mxu0 %v1327
  %1733 = vmatprep.subr.bf16.mxu0 0
  %1734 = vmatpush1.bf16.msra.mxu0 %v1328
  %1735 = vmatprep.subr.bf16.mxu0 0
  %1736 = vmatpush1.bf16.msra.mxu0 %v1329
  %1737 = vmatprep.subr.bf16.mxu0 0
  %1738 = vmatpush1.bf16.msra.mxu0 %v1330
  %1739 = vmatprep.subr.bf16.mxu0 0
  %1740 = vmatpush1.bf16.msra.mxu0 %v1331
  %1741 = vmatprep.subr.bf16.mxu0 0
  %1742 = vmatpush1.bf16.msra.mxu0 %v1332
  %1743 = vmatprep.subr.bf16.mxu0 0
  %1744 = vmatpush1.bf16.msra.mxu0 %v1333
  %1745 = vmatprep.subr.bf16.mxu0 0
  %1746 = vmatpush1.bf16.msra.mxu0 %v1334
  %1747 = vmatprep.subr.bf16.mxu0 0
  %1748 = vmatpush1.bf16.msra.mxu0 %v1335
  %1749 = vmatprep.subr.bf16.mxu0 0
  %1750 = vmatpush1.bf16.msra.mxu0 %v1336
  %1751 = vmatprep.subr.bf16.mxu0 0
  %1752 = vmatpush1.bf16.msra.mxu0 %v1337
  %1753 = vmatprep.subr.bf16.mxu0 0
  %1754 = vmatpush1.bf16.msra.mxu0 %v1338
  %1755 = vmatprep.mubr.bf16.mxu0 %v474
  %1756 = vmatmul.mubr.bf16.gmra.mrb[0].mxu0 %v473
  %v1757 = vpop.f32.mrb[0].mxu0
  %v1758 = vadd.f32 %v433, %v1757
  %v1759 = vpop.f32.mrb[0].mxu0
  %v1760 = vpop.f32.mrb[0].mxu0
  %v1761 = vpop.f32.mrb[0].mxu0
  %1762 = vdwg.mxu0
  %1763 = vmatprep.subr.bf16.mxu0 0
  %1764 = vmatpush1.bf16.msra.mxu0 %v1339
  %1765 = vmatprep.subr.bf16.mxu0 0
  %1766 = vmatpush1.bf16.msra.mxu0 %v1340
  %1767 = vmatprep.subr.bf16.mxu0 0
  %1768 = vmatpush1.bf16.msra.mxu0 %v1341
  %1769 = vmatprep.subr.bf16.mxu0 0
  %1770 = vmatpush1.bf16.msra.mxu0 %v1342
  %1771 = vmatprep.subr.bf16.mxu0 0
  %1772 = vmatpush1.bf16.msra.mxu0 %v1343
  %1773 = vmatprep.subr.bf16.mxu0 0
  %1774 = vmatpush1.bf16.msra.mxu0 %v1344
  %1775 = vmatprep.subr.bf16.mxu0 0
  %1776 = vmatpush1.bf16.msra.mxu0 %v1345
  %1777 = vmatprep.subr.bf16.mxu0 0
  %1778 = vmatpush1.bf16.msra.mxu0 %v1346
  %1779 = vmatprep.subr.bf16.mxu0 0
  %1780 = vmatpush1.bf16.msra.mxu0 %v1347
  %1781 = vmatprep.subr.bf16.mxu0 0
  %1782 = vmatpush1.bf16.msra.mxu0 %v1348
  %1783 = vmatprep.subr.bf16.mxu0 0
  %1784 = vmatpush1.bf16.msra.mxu0 %v1349
  %1785 = vmatprep.subr.bf16.mxu0 0
  %1786 = vmatpush1.bf16.msra.mxu0 %v1350
  %1787 = vmatprep.subr.bf16.mxu0 0
  %1788 = vmatpush1.bf16.msra.mxu0 %v1351
  %1789 = vmatprep.subr.bf16.mxu0 0
  %1790 = vmatpush1.bf16.msra.mxu0 %v1352
  %1791 = vmatprep.subr.bf16.mxu0 0
  %1792 = vmatpush1.bf16.msra.mxu0 %v1353
  %1793 = vmatprep.subr.bf16.mxu0 0
  %1794 = vmatpush1.bf16.msra.mxu0 %v1354
  %1795 = vmatprep.mubr.bf16.mxu0 %v476
  %1796 = vmatmul.mubr.bf16.gmra.mrb[0].mxu0 %v475
  %v1797 = vpop.f32.mrb[0].mxu0
  %v1798 = vadd.f32 %v1758, %v1797
  %v1799 = vpop.f32.mrb[0].mxu0
  %v1800 = vpop.f32.mrb[0].mxu0
  %v1801 = vpop.f32.mrb[0].mxu0
  %1802 = vdwg.mxu0
  %1803 = vmatprep.subr.bf16.mxu0 0
  %1804 = vmatpush1.bf16.msra.mxu0 %v1355
  %1805 = vmatprep.subr.bf16.mxu0 0
  %1806 = vmatpush1.bf16.msra.mxu0 %v1356
  %1807 = vmatprep.subr.bf16.mxu0 0
  %1808 = vmatpush1.bf16.msra.mxu0 %v1357
  %1809 = vmatprep.subr.bf16.mxu0 0
  %1810 = vmatpush1.bf16.msra.mxu0 %v1358
  %1811 = vmatprep.subr.bf16.mxu0 0
  %1812 = vmatpush1.bf16.msra.mxu0 %v1359
  %1813 = vmatprep.subr.bf16.mxu0 0
  %1814 = vmatpush1.bf16.msra.mxu0 %v1360
  %1815 = vmatprep.subr.bf16.mxu0 0
  %1816 = vmatpush1.bf16.msra.mxu0 %v1361
  %1817 = vmatprep.subr.bf16.mxu0 0
  %1818 = vmatpush1.bf16.msra.mxu0 %v1362
  %1819 = vmatprep.subr.bf16.mxu0 0
  %1820 = vmatpush1.bf16.msra.mxu0 %v1363
  %1821 = vmatprep.subr.bf16.mxu0 0
  %1822 = vmatpush1.bf16.msra.mxu0 %v1364
  %1823 = vmatprep.subr.bf16.mxu0 0
  %1824 = vmatpush1.bf16.msra.mxu0 %v1365
  %1825 = vmatprep.subr.bf16.mxu0 0
  %1826 = vmatpush1.bf16.msra.mxu0 %v1366
  %1827 = vmatprep.subr.bf16.mxu0 0
  %1828 = vmatpush1.bf16.msra.mxu0 %v1367
  %1829 = vmatprep.subr.bf16.mxu0 0
  %1830 = vmatpush1.bf16.msra.mxu0 %v1368
  %1831 = vmatprep.subr.bf16.mxu0 0
  %1832 = vmatpush1.bf16.msra.mxu0 %v1369
  %1833 = vmatprep.subr.bf16.mxu0 0
  %1834 = vmatpush1.bf16.msra.mxu0 %v1370
  %1835 = vmatprep.mubr.bf16.mxu0 %v478
  %1836 = vmatmul.mubr.bf16.gmra.mrb[0].mxu0 %v477
  %v1837 = vpop.f32.mrb[0].mxu0
  %v1838 = vadd.f32 %v1798, %v1837
  %v1839 = vpop.f32.mrb[0].mxu0
  %v1840 = vpop.f32.mrb[0].mxu0
  %v1841 = vpop.f32.mrb[0].mxu0
  %1842 = vdwg.mxu0
  %1843 = vmatprep.subr.bf16.mxu0 0
  %1844 = vmatpush1.bf16.msra.mxu0 %v1371
  %1845 = vmatprep.subr.bf16.mxu0 0
  %1846 = vmatpush1.bf16.msra.mxu0 %v1372
  %1847 = vmatprep.subr.bf16.mxu0 0
  %1848 = vmatpush1.bf16.msra.mxu0 %v1373
  %1849 = vmatprep.subr.bf16.mxu0 0
  %1850 = vmatpush1.bf16.msra.mxu0 %v1374
  %1851 = vmatprep.subr.bf16.mxu0 0
  %1852 = vmatpush1.bf16.msra.mxu0 %v1375
  %1853 = vmatprep.subr.bf16.mxu0 0
  %1854 = vmatpush1.bf16.msra.mxu0 %v1376
  %1855 = vmatprep.subr.bf16.mxu0 0
  %1856 = vmatpush1.bf16.msra.mxu0 %v1377
  %1857 = vmatprep.subr.bf16.mxu0 0
  %1858 = vmatpush1.bf16.msra.mxu0 %v1378
  %1859 = vmatprep.subr.bf16.mxu0 0
  %1860 = vmatpush1.bf16.msra.mxu0 %v1379
  %1861 = vmatprep.subr.bf16.mxu0 0
  %1862 = vmatpush1.bf16.msra.mxu0 %v1380
  %1863 = vmatprep.subr.bf16.mxu0 0
  %1864 = vmatpush1.bf16.msra.mxu0 %v1381
  %1865 = vmatprep.subr.bf16.mxu0 0
  %1866 = vmatpush1.bf16.msra.mxu0 %v1382
  %1867 = vmatprep.subr.bf16.mxu0 0
  %1868 = vmatpush1.bf16.msra.mxu0 %v1383
  %1869 = vmatprep.subr.bf16.mxu0 0
  %1870 = vmatpush1.bf16.msra.mxu0 %v1384
  %1871 = vmatprep.subr.bf16.mxu0 0
  %1872 = vmatpush1.bf16.msra.mxu0 %v1385
  %1873 = vmatprep.subr.bf16.mxu0 0
  %1874 = vmatpush1.bf16.msra.mxu0 %v1386
  %1875 = vmatprep.mubr.bf16.mxu0 %v480
  %1876 = vmatmul.mubr.bf16.gmra.mrb[0].mxu0 %v479
  %v1877 = vpop.f32.mrb[0].mxu0
  %v1878 = vadd.f32 %v1838, %v1877
  %v1879 = vpop.f32.mrb[0].mxu0
  %v1880 = vpop.f32.mrb[0].mxu0
  %v1881 = vpop.f32.mrb[0].mxu0
  %1882 = vdwg.mxu0
  %1883 = vmatprep.subr.bf16.mxu0 0
  %1884 = vmatpush1.bf16.msra.mxu0 %v1387
  %1885 = vmatprep.subr.bf16.mxu0 0
  %1886 = vmatpush1.bf16.msra.mxu0 %v1388
  %1887 = vmatprep.subr.bf16.mxu0 0
  %1888 = vmatpush1.bf16.msra.mxu0 %v1389
  %1889 = vmatprep.subr.bf16.mxu0 0
  %1890 = vmatpush1.bf16.msra.mxu0 %v1390
  %1891 = vmatprep.subr.bf16.mxu0 0
  %1892 = vmatpush1.bf16.msra.mxu0 %v1391
  %1893 = vmatprep.subr.bf16.mxu0 0
  %1894 = vmatpush1.bf16.msra.mxu0 %v1392
  %1895 = vmatprep.subr.bf16.mxu0 0
  %1896 = vmatpush1.bf16.msra.mxu0 %v1393
  %1897 = vmatprep.subr.bf16.mxu0 0
  %1898 = vmatpush1.bf16.msra.mxu0 %v1394
  %1899 = vmatprep.subr.bf16.mxu0 0
  %1900 = vmatpush1.bf16.msra.mxu0 %v1395
  %1901 = vmatprep.subr.bf16.mxu0 0
  %1902 = vmatpush1.bf16.msra.mxu0 %v1396
  %1903 = vmatprep.subr.bf16.mxu0 0
  %1904 = vmatpush1.bf16.msra.mxu0 %v1397
  %1905 = vmatprep.subr.bf16.mxu0 0
  %1906 = vmatpush1.bf16.msra.mxu0 %v1398
  %1907 = vmatprep.subr.bf16.mxu0 0
  %1908 = vmatpush1.bf16.msra.mxu0 %v1399
  %1909 = vmatprep.subr.bf16.mxu0 0
  %1910 = vmatpush1.bf16.msra.mxu0 %v1400
  %1911 = vmatprep.subr.bf16.mxu0 0
  %1912 = vmatpush1.bf16.msra.mxu0 %v1401
  %1913 = vmatprep.subr.bf16.mxu0 0
  %1914 = vmatpush1.bf16.msra.mxu0 %v1402
  %1915 = vmatprep.mubr.bf16.mxu0 %v482
  %1916 = vmatmul.mubr.bf16.gmra.mrb[0].mxu0 %v481
  %v1917 = vpop.f32.mrb[0].mxu0
  %v1918 = vadd.f32 %v1878, %v1917
  %v1919 = vpop.f32.mrb[0].mxu0
  %v1920 = vpop.f32.mrb[0].mxu0
  %v1921 = vpop.f32.mrb[0].mxu0
  %1922 = vdwg.mxu0
  %1923 = vmatprep.subr.bf16.mxu0 0
  %1924 = vmatpush1.bf16.msra.mxu0 %v1403
  %1925 = vmatprep.subr.bf16.mxu0 0
  %1926 = vmatpush1.bf16.msra.mxu0 %v1404
  %1927 = vmatprep.subr.bf16.mxu0 0
  %1928 = vmatpush1.bf16.msra.mxu0 %v1405
  %1929 = vmatprep.subr.bf16.mxu0 0
  %1930 = vmatpush1.bf16.msra.mxu0 %v1406
  %1931 = vmatprep.subr.bf16.mxu0 0
  %1932 = vmatpush1.bf16.msra.mxu0 %v1407
  %1933 = vmatprep.subr.bf16.mxu0 0
  %1934 = vmatpush1.bf16.msra.mxu0 %v1408
  %1935 = vmatprep.subr.bf16.mxu0 0
  %1936 = vmatpush1.bf16.msra.mxu0 %v1409
  %1937 = vmatprep.subr.bf16.mxu0 0
  %1938 = vmatpush1.bf16.msra.mxu0 %v1410
  %1939 = vmatprep.subr.bf16.mxu0 0
  %1940 = vmatpush1.bf16.msra.mxu0 %v1411
  %1941 = vmatprep.subr.bf16.mxu0 0
  %1942 = vmatpush1.bf16.msra.mxu0 %v1412
  %1943 = vmatprep.subr.bf16.mxu0 0
  %1944 = vmatpush1.bf16.msra.mxu0 %v1413
  %1945 = vmatprep.subr.bf16.mxu0 0
  %1946 = vmatpush1.bf16.msra.mxu0 %v1414
  %1947 = vmatprep.subr.bf16.mxu0 0
  %1948 = vmatpush1.bf16.msra.mxu0 %v1415
  %1949 = vmatprep.subr.bf16.mxu0 0
  %1950 = vmatpush1.bf16.msra.mxu0 %v1416
  %1951 = vmatprep.subr.bf16.mxu0 0
  %1952 = vmatpush1.bf16.msra.mxu0 %v1417
  %1953 = vmatprep.subr.bf16.mxu0 0
  %1954 = vmatpush1.bf16.msra.mxu0 %v1418
  %1955 = vmatprep.mubr.bf16.mxu0 %v484
  %1956 = vmatmul.mubr.bf16.gmra.mrb[0].mxu0 %v483
  %v1957 = vpop.f32.mrb[0].mxu0
  %v1958 = vadd.f32 %v1918, %v1957
  %v1959 = vpop.f32.mrb[0].mxu0
  %v1960 = vpop.f32.mrb[0].mxu0
  %v1961 = vpop.f32.mrb[0].mxu0
  %1962 = vdwg.mxu0
  %1963 = vmatprep.subr.bf16.mxu0 0
  %1964 = vmatpush1.bf16.msra.mxu0 %v1419
  %1965 = vmatprep.subr.bf16.mxu0 0
  %1966 = vmatpush1.bf16.msra.mxu0 %v1420
  %1967 = vmatprep.subr.bf16.mxu0 0
  %1968 = vmatpush1.bf16.msra.mxu0 %v1421
  %1969 = vmatprep.subr.bf16.mxu0 0
  %1970 = vmatpush1.bf16.msra.mxu0 %v1422
  %1971 = vmatprep.subr.bf16.mxu0 0
  %1972 = vmatpush1.bf16.msra.mxu0 %v1423
  %1973 = vmatprep.subr.bf16.mxu0 0
  %1974 = vmatpush1.bf16.msra.mxu0 %v1424
  %1975 = vmatprep.subr.bf16.mxu0 0
  %1976 = vmatpush1.bf16.msra.mxu0 %v1425
  %1977 = vmatprep.subr.bf16.mxu0 0
  %1978 = vmatpush1.bf16.msra.mxu0 %v1426
  %1979 = vmatprep.subr.bf16.mxu0 0
  %1980 = vmatpush1.bf16.msra.mxu0 %v1427
  %1981 = vmatprep.subr.bf16.mxu0 0
  %1982 = vmatpush1.bf16.msra.mxu0 %v1428
  %1983 = vmatprep.subr.bf16.mxu0 0
  %1984 = vmatpush1.bf16.msra.mxu0 %v1429
  %1985 = vmatprep.subr.bf16.mxu0 0
  %1986 = vmatpush1.bf16.msra.mxu0 %v1430
  %1987 = vmatprep.subr.bf16.mxu0 0
  %1988 = vmatpush1.bf16.msra.mxu0 %v1431
  %1989 = vmatprep.subr.bf16.mxu0 0
  %1990 = vmatpush1.bf16.msra.mxu0 %v1432
  %1991 = vmatprep.subr.bf16.mxu0 0
  %1992 = vmatpush1.bf16.msra.mxu0 %v1433
  %1993 = vmatprep.subr.bf16.mxu0 0
  %1994 = vmatpush1.bf16.msra.mxu0 %v1434
  %1995 = vmatprep.mubr.bf16.mxu0 %v486
  %1996 = vmatmul.mubr.bf16.gmra.mrb[0].mxu0 %v485
  %v1997 = vpop.f32.mrb[0].mxu0
  %v1998 = vadd.f32 %v1958, %v1997
  %v1999 = vpop.f32.mrb[0].mxu0
  %v2000 = vpop.f32.mrb[0].mxu0
  %v2001 = vpop.f32.mrb[0].mxu0
  %2002 = vdwg.mxu0
  %2003 = vmatprep.subr.bf16.mxu0 0
  %2004 = vmatpush1.bf16.msra.mxu0 %v1435
  %2005 = vmatprep.subr.bf16.mxu0 0
  %2006 = vmatpush1.bf16.msra.mxu0 %v1436
  %2007 = vmatprep.subr.bf16.mxu0 0
  %2008 = vmatpush1.bf16.msra.mxu0 %v1437
  %2009 = vmatprep.subr.bf16.mxu0 0
  %2010 = vmatpush1.bf16.msra.mxu0 %v1438
  %2011 = vmatprep.subr.bf16.mxu0 0
  %2012 = vmatpush1.bf16.msra.mxu0 %v1439
  %2013 = vmatprep.subr.bf16.mxu0 0
  %2014 = vmatpush1.bf16.msra.mxu0 %v1440
  %2015 = vmatprep.subr.bf16.mxu0 0
  %2016 = vmatpush1.bf16.msra.mxu0 %v1441
  %2017 = vmatprep.subr.bf16.mxu0 0
  %2018 = vmatpush1.bf16.msra.mxu0 %v1442
  %2019 = vmatprep.subr.bf16.mxu0 0
  %2020 = vmatpush1.bf16.msra.mxu0 %v1443
  %2021 = vmatprep.subr.bf16.mxu0 0
  %2022 = vmatpush1.bf16.msra.mxu0 %v1444
  %2023 = vmatprep.subr.bf16.mxu0 0
  %2024 = vmatpush1.bf16.msra.mxu0 %v1445
  %2025 = vmatprep.subr.bf16.mxu0 0
  %2026 = vmatpush1.bf16.msra.mxu0 %v1446
  %2027 = vmatprep.subr.bf16.mxu0 0
  %2028 = vmatpush1.bf16.msra.mxu0 %v1447
  %2029 = vmatprep.subr.bf16.mxu0 0
  %2030 = vmatpush1.bf16.msra.mxu0 %v1448
  %2031 = vmatprep.subr.bf16.mxu0 0
  %2032 = vmatpush1.bf16.msra.mxu0 %v1449
  %2033 = vmatprep.subr.bf16.mxu0 0
  %2034 = vmatpush1.bf16.msra.mxu0 %v1450
  %2035 = vmatprep.mubr.bf16.mxu0 %v488
  %2036 = vmatmul.mubr.bf16.gmra.mrb[0].mxu0 %v487
  %v2037 = vpop.f32.mrb[0].mxu0
  %v2038 = vadd.f32 %v1998, %v2037
  %v2039 = vpop.f32.mrb[0].mxu0
  %v2040 = vpop.f32.mrb[0].mxu0
  %v2041 = vpop.f32.mrb[0].mxu0
  %2042 = vdwg.mxu0
  %2043 = vmatprep.subr.bf16.mxu0 0
  %2044 = vmatpush1.bf16.msra.mxu0 %v1451
  %2045 = vmatprep.subr.bf16.mxu0 0
  %2046 = vmatpush1.bf16.msra.mxu0 %v1452
  %2047 = vmatprep.subr.bf16.mxu0 0
  %2048 = vmatpush1.bf16.msra.mxu0 %v1453
  %2049 = vmatprep.subr.bf16.mxu0 0
  %2050 = vmatpush1.bf16.msra.mxu0 %v1454
  %2051 = vmatprep.subr.bf16.mxu0 0
  %2052 = vmatpush1.bf16.msra.mxu0 %v1455
  %2053 = vmatprep.subr.bf16.mxu0 0
  %2054 = vmatpush1.bf16.msra.mxu0 %v1456
  %2055 = vmatprep.subr.bf16.mxu0 0
  %2056 = vmatpush1.bf16.msra.mxu0 %v1457
  %2057 = vmatprep.subr.bf16.mxu0 0
  %2058 = vmatpush1.bf16.msra.mxu0 %v1458
  %2059 = vmatprep.subr.bf16.mxu0 0
  %2060 = vmatpush1.bf16.msra.mxu0 %v1459
  %2061 = vmatprep.subr.bf16.mxu0 0
  %2062 = vmatpush1.bf16.msra.mxu0 %v1460
  %2063 = vmatprep.subr.bf16.mxu0 0
  %2064 = vmatpush1.bf16.msra.mxu0 %v1461
  %2065 = vmatprep.subr.bf16.mxu0 0
  %2066 = vmatpush1.bf16.msra.mxu0 %v1462
  %2067 = vmatprep.subr.bf16.mxu0 0
  %2068 = vmatpush1.bf16.msra.mxu0 %v1463
  %2069 = vmatprep.subr.bf16.mxu0 0
  %2070 = vmatpush1.bf16.msra.mxu0 %v1464
  %2071 = vmatprep.subr.bf16.mxu0 0
  %2072 = vmatpush1.bf16.msra.mxu0 %v1465
  %2073 = vmatprep.subr.bf16.mxu0 0
  %2074 = vmatpush1.bf16.msra.mxu0 %v1466
  %2075 = vmatprep.mubr.bf16.mxu0 %v490
  %2076 = vmatmul.mubr.bf16.gmra.mrb[0].mxu0 %v489
  %v2077 = vpop.f32.mrb[0].mxu0
  %v2078 = vadd.f32 %v2038, %v2077
  %v2079 = vpop.f32.mrb[0].mxu0
  %v2080 = vpop.f32.mrb[0].mxu0
  %v2081 = vpop.f32.mrb[0].mxu0
  %2082 = vdwg.mxu0
  %2083 = vmatprep.subr.bf16.mxu0 0
  %2084 = vmatpush1.bf16.msra.mxu0 %v1467
  %2085 = vmatprep.subr.bf16.mxu0 0
  %2086 = vmatpush1.bf16.msra.mxu0 %v1468
  %2087 = vmatprep.subr.bf16.mxu0 0
  %2088 = vmatpush1.bf16.msra.mxu0 %v1469
  %2089 = vmatprep.subr.bf16.mxu0 0
  %2090 = vmatpush1.bf16.msra.mxu0 %v1470
  %2091 = vmatprep.subr.bf16.mxu0 0
  %2092 = vmatpush1.bf16.msra.mxu0 %v1471
  %2093 = vmatprep.subr.bf16.mxu0 0
  %2094 = vmatpush1.bf16.msra.mxu0 %v1472
  %2095 = vmatprep.subr.bf16.mxu0 0
  %2096 = vmatpush1.bf16.msra.mxu0 %v1473
  %2097 = vmatprep.subr.bf16.mxu0 0
  %2098 = vmatpush1.bf16.msra.mxu0 %v1474
  %2099 = vmatprep.subr.bf16.mxu0 0
  %2100 = vmatpush1.bf16.msra.mxu0 %v1475
  %2101 = vmatprep.subr.bf16.mxu0 0
  %2102 = vmatpush1.bf16.msra.mxu0 %v1476
  %2103 = vmatprep.subr.bf16.mxu0 0
  %2104 = vmatpush1.bf16.msra.mxu0 %v1477
  %2105 = vmatprep.subr.bf16.mxu0 0
  %2106 = vmatpush1.bf16.msra.mxu0 %v1478
  %2107 = vmatprep.subr.bf16.mxu0 0
  %2108 = vmatpush1.bf16.msra.mxu0 %v1479
  %2109 = vmatprep.subr.bf16.mxu0 0
  %2110 = vmatpush1.bf16.msra.mxu0 %v1480
  %2111 = vmatprep.subr.bf16.mxu0 0
  %2112 = vmatpush1.bf16.msra.mxu0 %v1481
  %2113 = vmatprep.subr.bf16.mxu0 0
  %2114 = vmatpush1.bf16.msra.mxu0 %v1482
  %2115 = vmatprep.mubr.bf16.mxu0 %v492
  %2116 = vmatmul.mubr.bf16.gmra.mrb[0].mxu0 %v491
  %v2117 = vpop.f32.mrb[0].mxu0
  %v2118 = vadd.f32 %v2078, %v2117
  %v2119 = vpop.f32.mrb[0].mxu0
  %v2120 = vpop.f32.mrb[0].mxu0
  %v2121 = vpop.f32.mrb[0].mxu0
  %2122 = vdwg.mxu0
  %2123 = vmatprep.subr.bf16.mxu0 0
  %2124 = vmatpush1.bf16.msra.mxu0 %v1483
  %2125 = vmatprep.subr.bf16.mxu0 0
  %2126 = vmatpush1.bf16.msra.mxu0 %v1484
  %2127 = vmatprep.subr.bf16.mxu0 0
  %2128 = vmatpush1.bf16.msra.mxu0 %v1485
  %2129 = vmatprep.subr.bf16.mxu0 0
  %2130 = vmatpush1.bf16.msra.mxu0 %v1486
  %2131 = vmatprep.subr.bf16.mxu0 0
  %2132 = vmatpush1.bf16.msra.mxu0 %v1487
  %2133 = vmatprep.subr.bf16.mxu0 0
  %2134 = vmatpush1.bf16.msra.mxu0 %v1488
  %2135 = vmatprep.subr.bf16.mxu0 0
  %2136 = vmatpush1.bf16.msra.mxu0 %v1489
  %2137 = vmatprep.subr.bf16.mxu0 0
  %2138 = vmatpush1.bf16.msra.mxu0 %v1490
  %2139 = vmatprep.subr.bf16.mxu0 0
  %2140 = vmatpush1.bf16.msra.mxu0 %v1491
  %2141 = vmatprep.subr.bf16.mxu0 0
  %2142 = vmatpush1.bf16.msra.mxu0 %v1492
  %2143 = vmatprep.subr.bf16.mxu0 0
  %2144 = vmatpush1.bf16.msra.mxu0 %v1493
  %2145 = vmatprep.subr.bf16.mxu0 0
  %2146 = vmatpush1.bf16.msra.mxu0 %v1494
  %2147 = vmatprep.subr.bf16.mxu0 0
  %2148 = vmatpush1.bf16.msra.mxu0 %v1495
  %2149 = vmatprep.subr.bf16.mxu0 0
  %2150 = vmatpush1.bf16.msra.mxu0 %v1496
  %2151 = vmatprep.subr.bf16.mxu0 0
  %2152 = vmatpush1.bf16.msra.mxu0 %v1497
  %2153 = vmatprep.subr.bf16.mxu0 0
  %2154 = vmatpush1.bf16.msra.mxu0 %v1498
  %2155 = vmatprep.mubr.bf16.mxu0 %v494
  %2156 = vmatmul.mubr.bf16.gmra.mrb[0].mxu0 %v493
  %v2157 = vpop.f32.mrb[0].mxu0
  %v2158 = vadd.f32 %v2118, %v2157
  %v2159 = vpop.f32.mrb[0].mxu0
  %v2160 = vpop.f32.mrb[0].mxu0
  %v2161 = vpop.f32.mrb[0].mxu0
  %2162 = vdwg.mxu0
  %2163 = vmatprep.subr.bf16.mxu0 0
  %2164 = vmatpush1.bf16.msra.mxu0 %v1499
  %2165 = vmatprep.subr.bf16.mxu0 0
  %2166 = vmatpush1.bf16.msra.mxu0 %v1500
  %2167 = vmatprep.subr.bf16.mxu0 0
  %2168 = vmatpush1.bf16.msra.mxu0 %v1501
  %2169 = vmatprep.subr.bf16.mxu0 0
  %2170 = vmatpush1.bf16.msra.mxu0 %v1502
  %2171 = vmatprep.subr.bf16.mxu0 0
  %2172 = vmatpush1.bf16.msra.mxu0 %v1503
  %2173 = vmatprep.subr.bf16.mxu0 0
  %2174 = vmatpush1.bf16.msra.mxu0 %v1504
  %2175 = vmatprep.subr.bf16.mxu0 0
  %2176 = vmatpush1.bf16.msra.mxu0 %v1505
  %2177 = vmatprep.subr.bf16.mxu0 0
  %2178 = vmatpush1.bf16.msra.mxu0 %v1506
  %2179 = vmatprep.subr.bf16.mxu0 0
  %2180 = vmatpush1.bf16.msra.mxu0 %v1507
  %2181 = vmatprep.subr.bf16.mxu0 0
  %2182 = vmatpush1.bf16.msra.mxu0 %v1508
  %2183 = vmatprep.subr.bf16.mxu0 0
  %2184 = vmatpush1.bf16.msra.mxu0 %v1509
  %2185 = vmatprep.subr.bf16.mxu0 0
  %2186 = vmatpush1.bf16.msra.mxu0 %v1510
  %2187 = vmatprep.subr.bf16.mxu0 0
  %2188 = vmatpush1.bf16.msra.mxu0 %v1511
  %2189 = vmatprep.subr.bf16.mxu0 0
  %2190 = vmatpush1.bf16.msra.mxu0 %v1512
  %2191 = vmatprep.subr.bf16.mxu0 0
  %2192 = vmatpush1.bf16.msra.mxu0 %v1513
  %2193 = vmatprep.subr.bf16.mxu0 0
  %2194 = vmatpush1.bf16.msra.mxu0 %v1514
  %2195 = vmatprep.mubr.bf16.mxu0 %v496
  %2196 = vmatmul.mubr.bf16.gmra.mrb[0].mxu0 %v495
  %v2197 = vpop.f32.mrb[0].mxu0
  %v2198 = vadd.f32 %v2158, %v2197
  %v2199 = vpop.f32.mrb[0].mxu0
  %v2200 = vpop.f32.mrb[0].mxu0
  %v2201 = vpop.f32.mrb[0].mxu0
  %2202 = vdwg.mxu0
  %2203 = vmatprep.subr.bf16.mxu0 0
  %2204 = vmatpush1.bf16.msra.mxu0 %v1515
  %2205 = vmatprep.subr.bf16.mxu0 0
  %2206 = vmatpush1.bf16.msra.mxu0 %v1516
  %2207 = vmatprep.subr.bf16.mxu0 0
  %2208 = vmatpush1.bf16.msra.mxu0 %v1517
  %2209 = vmatprep.subr.bf16.mxu0 0
  %2210 = vmatpush1.bf16.msra.mxu0 %v1518
  %2211 = vmatprep.subr.bf16.mxu0 0
  %2212 = vmatpush1.bf16.msra.mxu0 %v1519
  %2213 = vmatprep.subr.bf16.mxu0 0
  %2214 = vmatpush1.bf16.msra.mxu0 %v1520
  %2215 = vmatprep.subr.bf16.mxu0 0
  %2216 = vmatpush1.bf16.msra.mxu0 %v1521
  %2217 = vmatprep.subr.bf16.mxu0 0
  %2218 = vmatpush1.bf16.msra.mxu0 %v1522
  %2219 = vmatprep.subr.bf16.mxu0 0
  %2220 = vmatpush1.bf16.msra.mxu0 0
  %2221 = vmatprep.subr.bf16.mxu0 0
  %2222 = vmatpush1.bf16.msra.mxu0 0
  %2223 = vmatprep.subr.bf16.mxu0 0
  %2224 = vmatpush1.bf16.msra.mxu0 0
  %2225 = vmatprep.subr.bf16.mxu0 0
  %2226 = vmatpush1.bf16.msra.mxu0 0
  %2227 = vmatprep.subr.bf16.mxu0 0
  %2228 = vmatpush1.bf16.msra.mxu0 0
  %2229 = vmatprep.subr.bf16.mxu0 0
  %2230 = vmatpush1.bf16.msra.mxu0 0
  %2231 = vmatprep.subr.bf16.mxu0 0
  %2232 = vmatpush1.bf16.msra.mxu0 0
  %2233 = vmatprep.subr.bf16.mxu0 0
  %2234 = vmatpush1.bf16.msra.mxu0 0
  %2235 = vmatprep.mubr.bf16.mxu0 0
  %2236 = vmatmul.mubr.bf16.gmra.mrb[0].mxu0 %v497
  %v2237 = vpop.f32.mrb[0].mxu0
  %v2238 = vadd.f32 %v2198, %v2237
  %v2239 = vpop.f32.mrb[0].mxu0
  %v2240 = vpop.f32.mrb[0].mxu0
  %v2241 = vpop.f32.mrb[0].mxu0
  %2242 = vdwg.mxu0
  %v2243 = vmax.f32 %v2238, 0.0
  %2244 = vst [vmem:[%s3] sm:$0xff] %v2243
  // Predicated region
  $region14: #{mlp_forward.5} parent=0 // pred_check
    _
  $region15: #{mlp_forward.5} parent=0 // pred_check_branch
    %2246 = sbr.rel (0) target = $region17
  $region16: #{mlp_forward.5} parent=0 // pred_region
    _
  $region17: #{mlp_forward.5} parent=0 // pred_fallthru
    _
  // Predicated region
  $region18: #{mlp_forward.5} parent=0 // pred_check
    _
  $region19: #{mlp_forward.5} parent=0 // pred_check_branch
    %2248 = sbr.rel (0) target = $region21
  $region20: #{mlp_forward.5} parent=0 // pred_region
    _
  $region21: #{mlp_forward.5} parent=0 // pred_fallthru
    _

</llo_original>
